<compile_context>
chip_gen: v6e
topology: v6e:2x2x1
jax: 0.10.0
libtpu: 0.0.40
codegen_flags: <defaults>
</compile_context>

<pallas_src>
import functools
import math

import jax
import jax.numpy as jnp
from jax import lax
from jax.experimental import pallas as pl
from jax.experimental.pallas import tpu as pltpu

# ----------------------------------------------------------------------------
# Synthetic "constants" (demo-sized; the real module hardcodes hidden=2048).
# ----------------------------------------------------------------------------
VISUAL_FEATURES = 32
N_DOF_ROBOT = 7
PLAN_FEATURES = 16
N_MIXTURES = 5
HIDDEN_SIZE = 256          # module default is 2048
INPUT_SIZE = VISUAL_FEATURES + N_DOF_ROBOT + VISUAL_FEATURES + PLAN_FEATURES  # 87
HEAD_WIDTH = 128           # fused pi|sigma|mu head, padded to one lane-dense width
TIME_TILE_MAX = 16         # timesteps per serial grid step
ROW_TILE_MAX = 512         # row-tile cap for the token-parallel kernels (v7x-safe)


def _vmem_limit_bytes():
    """Conservative VMEM limit that also fits v7x (64 MiB physical)."""
    cap = 64 << 20
    try:
        info_fn = getattr(pltpu, "get_tpu_info", None)
        if info_fn is not None:
            cap = int(getattr(info_fn(), "vmem_capacity_bytes", cap) or cap)
    except Exception:
        cap = 64 << 20
    return max(32 << 20, min(cap - (16 << 20), 64 << 20))


def _time_tile(t):
    """Timesteps processed per serial grid step."""
    return max(1, min(t, TIME_TILE_MAX))


def _row_tile(t_pad, b_pad):
    """Row tile that EXACTLY divides t_pad*b_pad (no wrapper pad/slice passes)."""
    d_best = 1
    for d in range(1, t_pad + 1):
        if t_pad % d == 0 and b_pad * d <= ROW_TILE_MAX:
            d_best = d
    return b_pad * d_best


# ----------------------------------------------------------------------------
# Kernel 1: hoisted input projection  (rows @ W_ih0^T + (b_ih0 + b_hh0)) -> bf16
# ----------------------------------------------------------------------------
def _proj_kernel(x_ref, w_ref, b_ref, o_ref):
    acc = (jnp.dot(x_ref[...].astype(jnp.bfloat16), w_ref[...],
                   preferred_element_type=jnp.float32)
           + b_ref[...])
    o_ref[...] = acc.astype(o_ref.dtype)


def input_projection(x2d, p, row_tile):
    """x2d: (N, D_pad) f32 -> (N, H) bf16, N a multiple of row_tile."""
    N, D = x2d.shape
    H = p["wih0_t"].shape[1]
    return pl.pallas_call(
        _proj_kernel,
        out_shape=jax.ShapeDtypeStruct((N, H), jnp.bfloat16),
        grid_spec=pltpu.PrefetchScalarGridSpec(
            num_scalar_prefetch=0,
            grid=(N // row_tile,),
            in_specs=[
                pl.BlockSpec((row_tile, D), lambda i: (i, 0)),   # x rows (f32)
                pl.BlockSpec((D, H), lambda i: (0, 0)),          # W_ih0^T (bf16)
                pl.BlockSpec((1, H), lambda i: (0, 0)),          # fused bias (f32)
            ],
            out_specs=pl.BlockSpec((row_tile, H), lambda i: (i, 0)),
        ),
        compiler_params=pltpu.CompilerParams(
            dimension_semantics=("parallel",),
            vmem_limit_bytes=_vmem_limit_bytes(),
        ),
        cost_estimate=pl.CostEstimate(
            flops=2 * N * D * H,
            transcendentals=0,
            bytes_accessed=N * D * 4 + D * H * 2 + N * H * 2),
    )(x2d, p["wih0_t"], p["b0"])


# ----------------------------------------------------------------------------
# Kernel 2: serial recurrence, TT timesteps per grid step, resident weights.
# ----------------------------------------------------------------------------
def _rnn_kernel(xproj_ref, whh0_hbm, wih1_hbm, whh1_hbm, b1_ref,   # inputs
                y_ref,                                             # output
                h1_ref, h2_ref, whh0_v, wih1_v, whh1_v, dma_sem,   # scratch
                *, tt):
    step = pl.program_id(0)

    @pl.when(step == 0)
    def _():
        # One-time weight residency: DMA HBM -> VMEM (single-buffered); zero the
        # carries while the copies are in flight, then wait before first use.
        c0 = pltpu.make_async_copy(whh0_hbm, whh0_v, dma_sem.at[0])
        c1 = pltpu.make_async_copy(wih1_hbm, wih1_v, dma_sem.at[1])
        c2 = pltpu.make_async_copy(whh1_hbm, whh1_v, dma_sem.at[2])
        c0.start()
        c1.start()
        c2.start()
        h1_ref[...] = jnp.zeros_like(h1_ref)
        h2_ref[...] = jnp.zeros_like(h2_ref)
        c0.wait()
        c1.wait()
        c2.wait()

    b1 = b1_ref[...]

    def body(i, carry):
        h1, h2 = carry
        xp = xproj_ref[i].astype(jnp.float32)                       # (B, H)
        # layer 0:  h1 = relu(xproj_t + h1_prev @ W_hh0^T)
        rec0 = jnp.dot(h1.astype(jnp.bfloat16), whh0_v[...],
                       preferred_element_type=jnp.float32)
        h1n = jnp.maximum(xp + rec0, 0.0)
        # layer 1:  h2 = relu(h1 @ W_ih1^T + h2_prev @ W_hh1^T + b1)
        pre2 = (jnp.dot(h1n.astype(jnp.bfloat16), wih1_v[...],
                        preferred_element_type=jnp.float32)
                + jnp.dot(h2.astype(jnp.bfloat16), whh1_v[...],
                          preferred_element_type=jnp.float32)
                + b1)
        h2n = jnp.maximum(pre2, 0.0)
        y_ref[i] = h2n.astype(y_ref.dtype)
        return (h1n, h2n)

    h1, h2 = lax.fori_loop(0, tt, body, (h1_ref[...], h2_ref[...]), unroll=True)
    h1_ref[...] = h1
    h2_ref[...] = h2


def rnn_forward(xproj_tm, p, tt):
    """xproj_tm: (T_pad, B, H) bf16 (already x @ W_ih0^T + b0) -> (T_pad, B, H) bf16."""
    T_pad, B, H = xproj_tm.shape
    steps = T_pad // tt
    flops = 2 * T_pad * B * 3 * H * H
    bytes_accessed = (2 * T_pad * B * H * 2) + (3 * H * H * 2) + H * 4
    kern = functools.partial(_rnn_kernel, tt=tt)
    return pl.pallas_call(
        kern,
        out_shape=jax.ShapeDtypeStruct((T_pad, B, H), jnp.bfloat16),
        grid_spec=pltpu.PrefetchScalarGridSpec(
            num_scalar_prefetch=0,
            grid=(steps,),
            in_specs=[
                pl.BlockSpec((tt, B, H), lambda s: (s, 0, 0)),   # xproj block
                pl.BlockSpec(memory_space=pl.ANY),               # W_hh0^T  (HBM)
                pl.BlockSpec(memory_space=pl.ANY),               # W_ih1^T  (HBM)
                pl.BlockSpec(memory_space=pl.ANY),               # W_hh1^T  (HBM)
                pl.BlockSpec((1, H), lambda s: (0, 0)),          # b_ih1 + b_hh1
            ],
            out_specs=pl.BlockSpec((tt, B, H), lambda s: (s, 0, 0)),
            scratch_shapes=[
                pltpu.VMEM((B, H), jnp.float32),        # h1 carry
                pltpu.VMEM((B, H), jnp.float32),        # h2 carry
                pltpu.VMEM((H, H), jnp.bfloat16),       # resident W_hh0^T
                pltpu.VMEM((H, H), jnp.bfloat16),       # resident W_ih1^T
                pltpu.VMEM((H, H), jnp.bfloat16),       # resident W_hh1^T
                pltpu.SemaphoreType.DMA((3,)),
            ],
        ),
        compiler_params=pltpu.CompilerParams(
            dimension_semantics=("arbitrary",),
            vmem_limit_bytes=_vmem_limit_bytes(),
        ),
        cost_estimate=pl.CostEstimate(
            flops=flops, transcendentals=0, bytes_accessed=bytes_accessed),
    )(xproj_tm, p["whh0"], p["wih1"], p["whh1"], p["b1"])


# ----------------------------------------------------------------------------
# Kernel 3: fused MDN heads.  One (H, 128) matmul, lane-dense (N, 128) output:
#   cols [0, K)        -> softmax(pi logits)
#   cols [K, K+KO)     -> exp(sigma logits)
#   cols [K+KO, K+2KO) -> mu
#   remaining cols     -> zero padding
# ----------------------------------------------------------------------------
def _mdn_kernel(y_ref, w_ref, b_ref, o_ref, *, k, ko):
    z = (jnp.dot(y_ref[...], w_ref[...], preferred_element_type=jnp.float32)
         + b_ref[...])                                          # (TN, 128) f32

    col = lax.broadcasted_iota(jnp.int32, z.shape, 1)
    is_pi = col < k
    is_sig = (col >= k) & (col < k + ko)

    # masked softmax over the first k columns (masked cols underflow to 0)
    logits = jnp.where(is_pi, z, jnp.float32(-1e30))
    m = jnp.max(logits, axis=-1, keepdims=True)
    e = jnp.exp(logits - m)
    den = jnp.sum(e, axis=-1, keepdims=True)
    pi = e / den                                                # exact: rows sum to 1

    # gate BEFORE exp so mu/pad columns cannot overflow to inf
    sig = jnp.exp(jnp.where(is_sig, z, 0.0))
    o_ref[...] = jnp.where(is_pi, pi, jnp.where(is_sig, sig, z))


def mdn_forward(y2d, p, row_tile, k, ko):
    """y2d: (N, H) bf16 -> (N, 128) f32 (pi | sigma | mu | pad)."""
    N, H = y2d.shape
    W = p["w_heads"].shape[1]
    kern = functools.partial(_mdn_kernel, k=k, ko=ko)
    return pl.pallas_call(
        kern,
        out_shape=jax.ShapeDtypeStruct((N, W), jnp.float32),
        grid_spec=pltpu.PrefetchScalarGridSpec(
            num_scalar_prefetch=0,
            grid=(N // row_tile,),
            in_specs=[
                pl.BlockSpec((row_tile, H), lambda i: (i, 0)),   # y rows (bf16)
                pl.BlockSpec((H, W), lambda i: (0, 0)),          # fused head weight
                pl.BlockSpec((1, W), lambda i: (0, 0)),          # fused head bias
            ],
            out_specs=pl.BlockSpec((row_tile, W), lambda i: (i, 0)),
        ),
        compiler_params=pltpu.CompilerParams(
            dimension_semantics=("parallel",),
            vmem_limit_bytes=_vmem_limit_bytes(),
        ),
        cost_estimate=pl.CostEstimate(
            flops=2 * N * H * W,
            transcendentals=2 * N * W,
            bytes_accessed=N * H * 2 + H * W * 2 + N * W * 4),
    )(y2d, p["w_heads"], p["b_heads"])


# ----------------------------------------------------------------------------
# Full forward:  x (B, T, D_in) -> pi (B,T,K), sigma (B,T,K,O), mu (B,T,K,O)
# ----------------------------------------------------------------------------
def action_decoder_forward(x, params, *, num_gaussians=N_MIXTURES,
                           out_features=N_DOF_ROBOT):
    B, T, D = x.shape
    H = params["whh0"].shape[0]
    D_pad = params["wih0_t"].shape[0]
    K = num_gaussians
    KO = K * out_features

    tt = _time_tile(T)
    T_pad = pl.cdiv(T, tt) * tt
    B_pad = ((B + 7) // 8) * 8

    # Pad batch (8 sublanes), time (multiple of tt) and features (lane-aligned
    # 128) ONCE on the small raw input; padded rows/steps are dropped at the end.
    x_p = jnp.pad(x, ((0, B_pad - B), (0, T_pad - T), (0, D_pad - D)))
    x_tm = jnp.transpose(x_p, (1, 0, 2))                        # (T_pad, B_pad, D_pad)

    n = T_pad * B_pad
    tile = _row_tile(T_pad, B_pad)                              # divides n exactly

    # 1) hoisted input projection over all timesteps at once (bf16 out)
    xproj = input_projection(x_tm.reshape(n, D_pad), params, tile)
    xproj = xproj.reshape(T_pad, B_pad, H)

    # 2) serial recurrence: tt timesteps per grid step, resident hidden weights
    y_tm = rnn_forward(xproj, params, tt)                       # (T_pad, B_pad, H) bf16

    # 3) fused MDN heads with a lane-dense 128-wide output
    z = mdn_forward(y_tm.reshape(n, H), params, tile, K, KO)    # (n, 128) f32
    z = z.reshape(T_pad, B_pad, HEAD_WIDTH)

    pi = z[:T, :B, :K].transpose(1, 0, 2)
    sigma = (z[:T, :B, K:K + KO]
             .reshape(T, B, K, out_features).transpose(1, 0, 2, 3))
    mu = (z[:T, :B, K + KO:K + 2 * KO]
          .reshape(T, B, K, out_features).transpose(1, 0, 2, 3))
    return pi, sigma, mu


# ----------------------------------------------------------------------------
# Deterministic parameter init (PyTorch-style uniform(-1/sqrt(fan), 1/sqrt(fan))).
# Weights stored pre-transposed (in_dim, out_dim) in bf16; biases fused in f32.
# ----------------------------------------------------------------------------
def init_params(key, input_size=INPUT_SIZE, hidden=HIDDEN_SIZE,
                num_gaussians=N_MIXTURES, out_features=N_DOF_ROBOT):
    ks = jax.random.split(key, 16)
    bf = jnp.bfloat16

    def u(k, shape, bound):
        return jax.random.uniform(k, shape, jnp.float32, -bound, bound)

    rb = 1.0 / math.sqrt(hidden)       # RNN init bound
    lb = 1.0 / math.sqrt(hidden)       # Linear heads: fan_in = hidden
    K = num_gaussians
    KO = num_gaussians * out_features
    assert K + 2 * KO <= HEAD_WIDTH
    d_pad = ((input_size + 127) // 128) * 128

    wih0 = u(ks[0], (input_size, hidden), rb)
    wih0_t = jnp.zeros((d_pad, hidden), jnp.float32).at[:input_size].set(wih0)
    whh0 = u(ks[1], (hidden, hidden), rb)
    b0 = u(ks[2], (1, hidden), rb) + u(ks[3], (1, hidden), rb)    # b_ih0 + b_hh0
    wih1 = u(ks[4], (hidden, hidden), rb)
    whh1 = u(ks[5], (hidden, hidden), rb)
    b1 = u(ks[6], (1, hidden), rb) + u(ks[7], (1, hidden), rb)    # b_ih1 + b_hh1

    wpi = u(ks[8], (hidden, K), lb)
    bpi = u(ks[9], (1, K), lb)
    wsig = u(ks[10], (hidden, KO), lb)
    bsig = u(ks[11], (1, KO), lb)
    wmu = u(ks[12], (hidden, KO), lb)
    bmu = u(ks[13], (1, KO), lb)

    w_heads = jnp.zeros((hidden, HEAD_WIDTH), jnp.float32)
    w_heads = w_heads.at[:, :K].set(wpi)
    w_heads = w_heads.at[:, K:K + KO].set(wsig)
    w_heads = w_heads.at[:, K + KO:K + 2 * KO].set(wmu)
    b_heads = jnp.zeros((1, HEAD_WIDTH), jnp.float32)
    b_heads = b_heads.at[:, :K].set(bpi)
    b_heads = b_heads.at[:, K:K + KO].set(bsig)
    b_heads = b_heads.at[:, K + KO:K + 2 * KO].set(bmu)

    return {
        "wih0_t": wih0_t.astype(bf),          # (D_pad, H), zero-padded rows
        "b0": b0,                              # (1, H) f32
        "whh0": whh0.astype(bf),               # W_hh0^T  (H, H)
        "wih1": wih1.astype(bf),               # W_ih1^T  (H, H)
        "whh1": whh1.astype(bf),               # W_hh1^T  (H, H)
        "b1": b1,                              # (1, H) f32
        "w_heads": w_heads.astype(bf),         # (H, 128)
        "b_heads": b_heads,                    # (1, 128) f32
    }


# ----------------------------------------------------------------------------
# Pure-JAX reference (same bf16-weight / bf16-activation / f32-accumulate math).
# ----------------------------------------------------------------------------
def reference_forward(x, p, *, num_gaussians=N_MIXTURES, out_features=N_DOF_ROBOT):
    f32, bf = jnp.float32, jnp.bfloat16
    B, T, D = x.shape
    H = p["whh0"].shape[0]
    D_pad = p["wih0_t"].shape[0]
    K = num_gaussians
    KO = K * out_features

    def mm(a, w):
        return jnp.dot(a.astype(bf), w, preferred_element_type=f32)

    x_tm = jnp.transpose(x, (1, 0, 2))                              # (T, B, D)
    x_tm = jnp.pad(x_tm, ((0, 0), (0, 0), (0, D_pad - D)))
    xproj = (mm(x_tm.reshape(T * B, D_pad), p["wih0_t"]) + p["b0"]).astype(bf)
    xproj = xproj.reshape(T, B, H)

    def step(carry, xp_t):
        h1, h2 = carry
        h1 = jnp.maximum(xp_t.astype(f32) + mm(h1, p["whh0"]), 0.0)
        h2 = jnp.maximum(mm(h1, p["wih1"]) + mm(h2, p["whh1"]) + p["b1"], 0.0)
        return (h1, h2), h2.astype(bf)

    h0 = (jnp.zeros((B, H), f32), jnp.zeros((B, H), f32))
    _, y_tm = lax.scan(step, h0, xproj)                             # (T, B, H) bf16

    z = mm(y_tm.reshape(T * B, H), p["w_heads"]) + p["b_heads"]     # (T*B, 128)
    pi = jax.nn.softmax(z[:, :K], axis=-1)
    sigma = jnp.exp(z[:, K:K + KO])
    mu = z[:, K + KO:K + 2 * KO]

    pi = pi.reshape(T, B, K).transpose(1, 0, 2)
    sigma = sigma.reshape(T, B, K, out_features).transpose(1, 0, 2, 3)
    mu = mu.reshape(T, B, K, out_features).transpose(1, 0, 2, 3)
    return pi, sigma, mu


if __name__ == "__main__":
    key = jax.random.PRNGKey(0)
    pkey, xkey = jax.random.split(key)

    B, T = 2, 8
    params = init_params(pkey)
    x = jax.random.normal(xkey, (B, T, INPUT_SIZE), jnp.float32)

    pi, sigma, mu = jax.block_until_ready(
        jax.jit(action_decoder_forward)(x, params))

    # sanity check against pure-JAX reference (same bf16 weights/activations,
    # f32 accumulate; tolerance covers accumulation-order differences)
    pi_r, sigma_r, mu_r = reference_forward(x, params)
    assert pi.shape == (B, T, N_MIXTURES)
    assert sigma.shape == (B, T, N_MIXTURES, N_DOF_ROBOT)
    assert mu.shape == (B, T, N_MIXTURES, N_DOF_ROBOT)
    assert jnp.allclose(pi, pi_r, rtol=2e-2, atol=2e-2)
    assert jnp.allclose(sigma, sigma_r, rtol=2e-2, atol=2e-2)
    assert jnp.allclose(mu, mu_r, rtol=2e-2, atol=2e-2)

    print("KERNEL_OK")
</pallas_src>

<mosaic_0001>
module attributes {stable_mosaic.version = 11 : i64} {
  func.func @_proj_kernel(%arg0: i32, %arg1: memref<64x128xf32, #tpu.memory_space<vmem>>, %arg2: memref<128x256xbf16, #tpu.memory_space<vmem>>, %arg3: memref<1x256xf32, #tpu.memory_space<vmem>>, %arg4: memref<64x256xbf16, #tpu.memory_space<vmem>>) attributes {dimension_semantics = [#tpu.dimension_semantics<parallel>], iteration_bounds = array<i64: 1>, scalar_prefetch = 0 : i64, scratch_operands = 0 : i64, tpu.core_type = #tpu.core_type<tc>, window_params = [{transform_indices = @transform_0, window_bounds = array<i64: 64, 128>}, {pipeline_mode = #tpu.pipeline_mode<synchronous>, transform_indices = @transform_1, window_bounds = array<i64: 128, 256>}, {pipeline_mode = #tpu.pipeline_mode<synchronous>, transform_indices = @transform_2, window_bounds = array<i64: 1, 256>}, {transform_indices = @transform_3, window_bounds = array<i64: 64, 256>}]} {
    %c0 = arith.constant 0 : index
    %c0_0 = arith.constant 0 : index
    %0 = vector.load %arg1[%c0, %c0_0] : memref<64x128xf32, #tpu.memory_space<vmem>>, vector<64x128xf32>
    %1 = arith.truncf %0 : vector<64x128xf32> to vector<64x128xbf16>
    %c0_1 = arith.constant 0 : index
    %c0_2 = arith.constant 0 : index
    %2 = vector.load %arg2[%c0_1, %c0_2] : memref<128x256xbf16, #tpu.memory_space<vmem>>, vector<128x256xbf16>
    %cst = arith.constant dense<0.000000e+00> : vector<64x256xf32>
    %3 = tpu.matmul %1, %2, %cst {dimension_numbers = #tpu.dot_dimension_numbers<[1], [0], [0], [1], [0, 0, 1, 1], [], []>} : vector<64x128xbf16>, vector<128x256xbf16>, vector<64x256xf32> -> vector<64x256xf32>
    %c0_3 = arith.constant 0 : index
    %c0_4 = arith.constant 0 : index
    %4 = vector.load %arg3[%c0_3, %c0_4] : memref<1x256xf32, #tpu.memory_space<vmem>>, vector<1x256xf32>
    %5 = vector.broadcast %4 : vector<1x256xf32> to vector<64x256xf32>
    %6 = arith.addf %3, %5 : vector<64x256xf32>
    %7 = arith.truncf %6 : vector<64x256xf32> to vector<64x256xbf16>
    %c0_5 = arith.constant 0 : index
    %c0_6 = arith.constant 0 : index
    %8 = vector.load %arg4[%c0_5, %c0_6] : memref<64x256xbf16, #tpu.memory_space<vmem>>, vector<64x256xbf16>
    tpu.vector_store %arg4[%c0_5, %c0_6], %7 {strides = array<i32>} : memref<64x256xbf16, #tpu.memory_space<vmem>>, vector<64x256xbf16>,
    return
  }
  func.func @transform_0(%arg0: i32) -> (i32, i32) {
    %c0_i32 = arith.constant 0 : i32
    %c0_i32_0 = arith.constant 0 : i32
    return %arg0, %c0_i32 : i32, i32
  }
  func.func @transform_1(%arg0: i32) -> (i32, i32) {
    %c0_i32 = arith.constant 0 : i32
    %c0_i32_0 = arith.constant 0 : i32
    %c0_i32_1 = arith.constant 0 : i32
    return %c0_i32, %c0_i32_0 : i32, i32
  }
  func.func @transform_2(%arg0: i32) -> (i32, i32) {
    %c0_i32 = arith.constant 0 : i32
    %c0_i32_0 = arith.constant 0 : i32
    %c0_i32_1 = arith.constant 0 : i32
    return %c0_i32, %c0_i32_0 : i32, i32
  }
  func.func @transform_3(%arg0: i32) -> (i32, i32) {
    %c0_i32 = arith.constant 0 : i32
    %c0_i32_0 = arith.constant 0 : i32
    return %arg0, %c0_i32 : i32, i32
  }
}

module attributes {stable_mosaic.version = 11 : i64} {
  func.func @_rnn_kernel(%arg0: i32, %arg1: memref<8x8x256xbf16, #tpu.memory_space<vmem>>, %arg2: memref<256x256xbf16, #tpu.memory_space<any>>, %arg3: memref<256x256xbf16, #tpu.memory_space<any>>, %arg4: memref<256x256xbf16, #tpu.memory_space<any>>, %arg5: memref<1x256xf32, #tpu.memory_space<vmem>>, %arg6: memref<8x8x256xbf16, #tpu.memory_space<vmem>>, %arg7: memref<8x256xf32, #tpu.memory_space<vmem>>, %arg8: memref<8x256xf32, #tpu.memory_space<vmem>>, %arg9: memref<256x256xbf16, #tpu.memory_space<vmem>>, %arg10: memref<256x256xbf16, #tpu.memory_space<vmem>>, %arg11: memref<256x256xbf16, #tpu.memory_space<vmem>>, %arg12: memref<3x!tpu.dma_semaphore, #tpu.memory_space<semaphore_mem>>) attributes {dimension_semantics = [#tpu.dimension_semantics<arbitrary>], iteration_bounds = array<i64: 1>, scalar_prefetch = 0 : i64, scratch_operands = 6 : i64, tpu.core_type = #tpu.core_type<tc>, window_params = [{transform_indices = @transform_0, window_bounds = array<i64: 8, 8, 256>}, {}, {}, {}, {pipeline_mode = #tpu.pipeline_mode<synchronous>, transform_indices = @transform_4, window_bounds = array<i64: 1, 256>}, {transform_indices = @transform_5, window_bounds = array<i64: 8, 8, 256>}]} {
    %c0_i32 = arith.constant 0 : i32
    %0 = arith.cmpi eq, %arg0, %c0_i32 : i32
    %1 = arith.extui %0 : i1 to i32
    %c0_i32_0 = arith.constant 0 : i32
    %2 = arith.cmpi ne, %1, %c0_i32_0 : i32
    scf.if %2 {
      %c0_i32_130 = arith.constant 0 : i32
      %216 = tpu.memref_slice %arg12[%c0_i32_130] : memref<3x!tpu.dma_semaphore, #tpu.memory_space<semaphore_mem>> -> memref<1x!tpu.dma_semaphore, #tpu.memory_space<semaphore_mem>>
      %217 = tpu.memref_squeeze %216 : memref<1x!tpu.dma_semaphore, #tpu.memory_space<semaphore_mem>> -> memref<!tpu.dma_semaphore, #tpu.memory_space<semaphore_mem>>
      tpu.enqueue_dma source(%arg2 : memref<256x256xbf16, #tpu.memory_space<any>>) target(%arg9 : memref<256x256xbf16, #tpu.memory_space<vmem>>) target_semaphore(%217 : memref<!tpu.dma_semaphore, #tpu.memory_space<semaphore_mem>>)
      %c1_i32_131 = arith.constant 1 : i32
      %218 = tpu.memref_slice %arg12[%c1_i32_131] : memref<3x!tpu.dma_semaphore, #tpu.memory_space<semaphore_mem>> -> memref<1x!tpu.dma_semaphore, #tpu.memory_space<semaphore_mem>>
      %219 = tpu.memref_squeeze %218 : memref<1x!tpu.dma_semaphore, #tpu.memory_space<semaphore_mem>> -> memref<!tpu.dma_semaphore, #tpu.memory_space<semaphore_mem>>
      tpu.enqueue_dma source(%arg3 : memref<256x256xbf16, #tpu.memory_space<any>>) target(%arg10 : memref<256x256xbf16, #tpu.memory_space<vmem>>) target_semaphore(%219 : memref<!tpu.dma_semaphore, #tpu.memory_space<semaphore_mem>>)
      %c2_i32_132 = arith.constant 2 : i32
      %220 = tpu.memref_slice %arg12[%c2_i32_132] : memref<3x!tpu.dma_semaphore, #tpu.memory_space<semaphore_mem>> -> memref<1x!tpu.dma_semaphore, #tpu.memory_space<semaphore_mem>>
      %221 = tpu.memref_squeeze %220 : memref<1x!tpu.dma_semaphore, #tpu.memory_space<semaphore_mem>> -> memref<!tpu.dma_semaphore, #tpu.memory_space<semaphore_mem>>
      tpu.enqueue_dma source(%arg4 : memref<256x256xbf16, #tpu.memory_space<any>>) target(%arg11 : memref<256x256xbf16, #tpu.memory_space<vmem>>) target_semaphore(%221 : memref<!tpu.dma_semaphore, #tpu.memory_space<semaphore_mem>>)
      %cst_133 = arith.constant 0.000000e+00 : f32
      %222 = vector.broadcast %cst_133 : f32 to vector<8x256xf32>
      %c0_134 = arith.constant 0 : index
      %c0_135 = arith.constant 0 : index
      %223 = vector.load %arg7[%c0_134, %c0_135] : memref<8x256xf32, #tpu.memory_space<vmem>>, vector<8x256xf32>
      tpu.vector_store %arg7[%c0_134, %c0_135], %222 {strides = array<i32>} : memref<8x256xf32, #tpu.memory_space<vmem>>, vector<8x256xf32>,
      %cst_136 = arith.constant 0.000000e+00 : f32
      %224 = vector.broadcast %cst_136 : f32 to vector<8x256xf32>
      %c0_137 = arith.constant 0 : index
      %c0_138 = arith.constant 0 : index
      %225 = vector.load %arg8[%c0_137, %c0_138] : memref<8x256xf32, #tpu.memory_space<vmem>>, vector<8x256xf32>
      tpu.vector_store %arg8[%c0_137, %c0_138], %224 {strides = array<i32>} : memref<8x256xf32, #tpu.memory_space<vmem>>, vector<8x256xf32>,
      %c0_i32_139 = arith.constant 0 : i32
      %226 = tpu.memref_slice %arg12[%c0_i32_139] : memref<3x!tpu.dma_semaphore, #tpu.memory_space<semaphore_mem>> -> memref<1x!tpu.dma_semaphore, #tpu.memory_space<semaphore_mem>>
      %227 = tpu.memref_squeeze %226 : memref<1x!tpu.dma_semaphore, #tpu.memory_space<semaphore_mem>> -> memref<!tpu.dma_semaphore, #tpu.memory_space<semaphore_mem>>
      tpu.wait_dma2 semaphore(%227 : memref<!tpu.dma_semaphore, #tpu.memory_space<semaphore_mem>>) src(%arg2 : memref<256x256xbf16, #tpu.memory_space<any>>) dst(%arg9 : memref<256x256xbf16, #tpu.memory_space<vmem>>)
      %c1_i32_140 = arith.constant 1 : i32
      %228 = tpu.memref_slice %arg12[%c1_i32_140] : memref<3x!tpu.dma_semaphore, #tpu.memory_space<semaphore_mem>> -> memref<1x!tpu.dma_semaphore, #tpu.memory_space<semaphore_mem>>
      %229 = tpu.memref_squeeze %228 : memref<1x!tpu.dma_semaphore, #tpu.memory_space<semaphore_mem>> -> memref<!tpu.dma_semaphore, #tpu.memory_space<semaphore_mem>>
      tpu.wait_dma2 semaphore(%229 : memref<!tpu.dma_semaphore, #tpu.memory_space<semaphore_mem>>) src(%arg3 : memref<256x256xbf16, #tpu.memory_space<any>>) dst(%arg10 : memref<256x256xbf16, #tpu.memory_space<vmem>>)
      %c2_i32_141 = arith.constant 2 : i32
      %230 = tpu.memref_slice %arg12[%c2_i32_141] : memref<3x!tpu.dma_semaphore, #tpu.memory_space<semaphore_mem>> -> memref<1x!tpu.dma_semaphore, #tpu.memory_space<semaphore_mem>>
      %231 = tpu.memref_squeeze %230 : memref<1x!tpu.dma_semaphore, #tpu.memory_space<semaphore_mem>> -> memref<!tpu.dma_semaphore, #tpu.memory_space<semaphore_mem>>
      tpu.wait_dma2 semaphore(%231 : memref<!tpu.dma_semaphore, #tpu.memory_space<semaphore_mem>>) src(%arg4 : memref<256x256xbf16, #tpu.memory_space<any>>) dst(%arg11 : memref<256x256xbf16, #tpu.memory_space<vmem>>)
    } else {
    }
    %c0 = arith.constant 0 : index
    %c0_1 = arith.constant 0 : index
    %3 = vector.load %arg5[%c0, %c0_1] : memref<1x256xf32, #tpu.memory_space<vmem>>, vector<1x256xf32>
    %c0_2 = arith.constant 0 : index
    %c0_3 = arith.constant 0 : index
    %4 = vector.load %arg7[%c0_2, %c0_3] : memref<8x256xf32, #tpu.memory_space<vmem>>, vector<8x256xf32>
    %c0_4 = arith.constant 0 : index
    %c0_5 = arith.constant 0 : index
    %5 = vector.load %arg8[%c0_4, %c0_5] : memref<8x256xf32, #tpu.memory_space<vmem>>, vector<8x256xf32>
    %c0_i32_6 = arith.constant 0 : i32
    %6 = arith.index_cast %c0_i32_6 : i32 to index
    %c0_7 = arith.constant 0 : index
    %c0_8 = arith.constant 0 : index
    %7 = vector.load %arg1[%6, %c0_7, %c0_8] : memref<8x8x256xbf16, #tpu.memory_space<vmem>>, vector<1x8x256xbf16>
    %8 = vector.shape_cast %7 : vector<1x8x256xbf16> to vector<8x256xbf16>
    %9 = arith.extf %8 : vector<8x256xbf16> to vector<8x256xf32>
    %10 = arith.truncf %4 : vector<8x256xf32> to vector<8x256xbf16>
    %c0_9 = arith.constant 0 : index
    %c0_10 = arith.constant 0 : index
    %11 = vector.load %arg9[%c0_9, %c0_10] : memref<256x256xbf16, #tpu.memory_space<vmem>>, vector<256x256xbf16>
    %cst = arith.constant dense<0.000000e+00> : vector<8x256xf32>
    %12 = tpu.matmul %10, %11, %cst {dimension_numbers = #tpu.dot_dimension_numbers<[1], [0], [0], [1], [0, 0, 1, 1], [], []>} : vector<8x256xbf16>, vector<256x256xbf16>, vector<8x256xf32> -> vector<8x256xf32>
    %13 = arith.addf %9, %12 : vector<8x256xf32>
    %cst_11 = arith.constant 0.000000e+00 : f32
    %14 = vector.broadcast %cst_11 : f32 to vector<8x256xf32>
    %15 = arith.maximumf %13, %14 : vector<8x256xf32>
    %16 = arith.truncf %15 : vector<8x256xf32> to vector<8x256xbf16>
    %c0_12 = arith.constant 0 : index
    %c0_13 = arith.constant 0 : index
    %17 = vector.load %arg10[%c0_12, %c0_13] : memref<256x256xbf16, #tpu.memory_space<vmem>>, vector<256x256xbf16>
    %cst_14 = arith.constant dense<0.000000e+00> : vector<8x256xf32>
    %18 = tpu.matmul %16, %17, %cst_14 {dimension_numbers = #tpu.dot_dimension_numbers<[1], [0], [0], [1], [0, 0, 1, 1], [], []>} : vector<8x256xbf16>, vector<256x256xbf16>, vector<8x256xf32> -> vector<8x256xf32>
    %19 = arith.truncf %5 : vector<8x256xf32> to vector<8x256xbf16>
    %c0_15 = arith.constant 0 : index
    %c0_16 = arith.constant 0 : index
    %20 = vector.load %arg11[%c0_15, %c0_16] : memref<256x256xbf16, #tpu.memory_space<vmem>>, vector<256x256xbf16>
    %cst_17 = arith.constant dense<0.000000e+00> : vector<8x256xf32>
    %21 = tpu.matmul %19, %20, %cst_17 {dimension_numbers = #tpu.dot_dimension_numbers<[1], [0], [0], [1], [0, 0, 1, 1], [], []>} : vector<8x256xbf16>, vector<256x256xbf16>, vector<8x256xf32> -> vector<8x256xf32>
    %22 = arith.addf %18, %21 : vector<8x256xf32>
    %23 = vector.broadcast %3 : vector<1x256xf32> to vector<8x256xf32>
    %24 = arith.addf %22, %23 : vector<8x256xf32>
    %cst_18 = arith.constant 0.000000e+00 : f32
    %25 = vector.broadcast %cst_18 : f32 to vector<8x256xf32>
    %26 = arith.maximumf %24, %25 : vector<8x256xf32>
    %27 = arith.truncf %26 : vector<8x256xf32> to vector<8x256xbf16>
    %28 = arith.index_cast %c0_i32_6 : i32 to index
    %c0_19 = arith.constant 0 : index
    %c0_20 = arith.constant 0 : index
    %29 = vector.load %arg6[%28, %c0_19, %c0_20] : memref<8x8x256xbf16, #tpu.memory_space<vmem>>, vector<1x8x256xbf16>
    %30 = vector.shape_cast %29 : vector<1x8x256xbf16> to vector<8x256xbf16>
    %31 = vector.shape_cast %27 : vector<8x256xbf16> to vector<1x8x256xbf16>
    tpu.vector_store %arg6[%28, %c0_19, %c0_20], %31 {strides = array<i32>} : memref<8x8x256xbf16, #tpu.memory_space<vmem>>, vector<1x8x256xbf16>,
    %c1_i32 = arith.constant 1 : i32
    %32 = arith.index_cast %c1_i32 : i32 to index
    %c0_21 = arith.constant 0 : index
    %c0_22 = arith.constant 0 : index
    %33 = vector.load %arg1[%32, %c0_21, %c0_22] : memref<8x8x256xbf16, #tpu.memory_space<vmem>>, vector<1x8x256xbf16>
    %34 = vector.shape_cast %33 : vector<1x8x256xbf16> to vector<8x256xbf16>
    %35 = arith.extf %34 : vector<8x256xbf16> to vector<8x256xf32>
    %36 = arith.truncf %15 : vector<8x256xf32> to vector<8x256xbf16>
    %c0_23 = arith.constant 0 : index
    %c0_24 = arith.constant 0 : index
    %37 = vector.load %arg9[%c0_23, %c0_24] : memref<256x256xbf16, #tpu.memory_space<vmem>>, vector<256x256xbf16>
    %cst_25 = arith.constant dense<0.000000e+00> : vector<8x256xf32>
    %38 = tpu.matmul %36, %37, %cst_25 {dimension_numbers = #tpu.dot_dimension_numbers<[1], [0], [0], [1], [0, 0, 1, 1], [], []>} : vector<8x256xbf16>, vector<256x256xbf16>, vector<8x256xf32> -> vector<8x256xf32>
    %39 = arith.addf %35, %38 : vector<8x256xf32>
    %cst_26 = arith.constant 0.000000e+00 : f32
    %40 = vector.broadcast %cst_26 : f32 to vector<8x256xf32>
    %41 = arith.maximumf %39, %40 : vector<8x256xf32>
    %42 = arith.truncf %41 : vector<8x256xf32> to vector<8x256xbf16>
    %c0_27 = arith.constant 0 : index
    %c0_28 = arith.constant 0 : index
    %43 = vector.load %arg10[%c0_27, %c0_28] : memref<256x256xbf16, #tpu.memory_space<vmem>>, vector<256x256xbf16>
    %cst_29 = arith.constant dense<0.000000e+00> : vector<8x256xf32>
    %44 = tpu.matmul %42, %43, %cst_29 {dimension_numbers = #tpu.dot_dimension_numbers<[1], [0], [0], [1], [0, 0, 1, 1], [], []>} : vector<8x256xbf16>, vector<256x256xbf16>, vector<8x256xf32> -> vector<8x256xf32>
    %45 = arith.truncf %26 : vector<8x256xf32> to vector<8x256xbf16>
    %c0_30 = arith.constant 0 : index
    %c0_31 = arith.constant 0 : index
    %46 = vector.load %arg11[%c0_30, %c0_31] : memref<256x256xbf16, #tpu.memory_space<vmem>>, vector<256x256xbf16>
    %cst_32 = arith.constant dense<0.000000e+00> : vector<8x256xf32>
    %47 = tpu.matmul %45, %46, %cst_32 {dimension_numbers = #tpu.dot_dimension_numbers<[1], [0], [0], [1], [0, 0, 1, 1], [], []>} : vector<8x256xbf16>, vector<256x256xbf16>, vector<8x256xf32> -> vector<8x256xf32>
    %48 = arith.addf %44, %47 : vector<8x256xf32>
    %49 = vector.broadcast %3 : vector<1x256xf32> to vector<8x256xf32>
    %50 = arith.addf %48, %49 : vector<8x256xf32>
    %cst_33 = arith.constant 0.000000e+00 : f32
    %51 = vector.broadcast %cst_33 : f32 to vector<8x256xf32>
    %52 = arith.maximumf %50, %51 : vector<8x256xf32>
    %53 = arith.truncf %52 : vector<8x256xf32> to vector<8x256xbf16>
    %54 = arith.index_cast %c1_i32 : i32 to index
    %c0_34 = arith.constant 0 : index
    %c0_35 = arith.constant 0 : index
    %55 = vector.load %arg6[%54, %c0_34, %c0_35] : memref<8x8x256xbf16, #tpu.memory_space<vmem>>, vector<1x8x256xbf16>
    %56 = vector.shape_cast %55 : vector<1x8x256xbf16> to vector<8x256xbf16>
    %57 = vector.shape_cast %53 : vector<8x256xbf16> to vector<1x8x256xbf16>
    tpu.vector_store %arg6[%54, %c0_34, %c0_35], %57 {strides = array<i32>} : memref<8x8x256xbf16, #tpu.memory_space<vmem>>, vector<1x8x256xbf16>,
    %c2_i32 = arith.constant 2 : i32
    %58 = arith.index_cast %c2_i32 : i32 to index
    %c0_36 = arith.constant 0 : index
    %c0_37 = arith.constant 0 : index
    %59 = vector.load %arg1[%58, %c0_36, %c0_37] : memref<8x8x256xbf16, #tpu.memory_space<vmem>>, vector<1x8x256xbf16>
    %60 = vector.shape_cast %59 : vector<1x8x256xbf16> to vector<8x256xbf16>
    %61 = arith.extf %60 : vector<8x256xbf16> to vector<8x256xf32>
    %62 = arith.truncf %41 : vector<8x256xf32> to vector<8x256xbf16>
    %c0_38 = arith.constant 0 : index
    %c0_39 = arith.constant 0 : index
    %63 = vector.load %arg9[%c0_38, %c0_39] : memref<256x256xbf16, #tpu.memory_space<vmem>>, vector<256x256xbf16>
    %cst_40 = arith.constant dense<0.000000e+00> : vector<8x256xf32>
    %64 = tpu.matmul %62, %63, %cst_40 {dimension_numbers = #tpu.dot_dimension_numbers<[1], [0], [0], [1], [0, 0, 1, 1], [], []>} : vector<8x256xbf16>, vector<256x256xbf16>, vector<8x256xf32> -> vector<8x256xf32>
    %65 = arith.addf %61, %64 : vector<8x256xf32>
    %cst_41 = arith.constant 0.000000e+00 : f32
    %66 = vector.broadcast %cst_41 : f32 to vector<8x256xf32>
    %67 = arith.maximumf %65, %66 : vector<8x256xf32>
    %68 = arith.truncf %67 : vector<8x256xf32> to vector<8x256xbf16>
    %c0_42 = arith.constant 0 : index
    %c0_43 = arith.constant 0 : index
    %69 = vector.load %arg10[%c0_42, %c0_43] : memref<256x256xbf16, #tpu.memory_space<vmem>>, vector<256x256xbf16>
    %cst_44 = arith.constant dense<0.000000e+00> : vector<8x256xf32>
    %70 = tpu.matmul %68, %69, %cst_44 {dimension_numbers = #tpu.dot_dimension_numbers<[1], [0], [0], [1], [0, 0, 1, 1], [], []>} : vector<8x256xbf16>, vector<256x256xbf16>, vector<8x256xf32> -> vector<8x256xf32>
    %71 = arith.truncf %52 : vector<8x256xf32> to vector<8x256xbf16>
    %c0_45 = arith.constant 0 : index
    %c0_46 = arith.constant 0 : index
    %72 = vector.load %arg11[%c0_45, %c0_46] : memref<256x256xbf16, #tpu.memory_space<vmem>>, vector<256x256xbf16>
    %cst_47 = arith.constant dense<0.000000e+00> : vector<8x256xf32>
    %73 = tpu.matmul %71, %72, %cst_47 {dimension_numbers = #tpu.dot_dimension_numbers<[1], [0], [0], [1], [0, 0, 1, 1], [], []>} : vector<8x256xbf16>, vector<256x256xbf16>, vector<8x256xf32> -> vector<8x256xf32>
    %74 = arith.addf %70, %73 : vector<8x256xf32>
    %75 = vector.broadcast %3 : vector<1x256xf32> to vector<8x256xf32>
    %76 = arith.addf %74, %75 : vector<8x256xf32>
    %cst_48 = arith.constant 0.000000e+00 : f32
    %77 = vector.broadcast %cst_48 : f32 to vector<8x256xf32>
    %78 = arith.maximumf %76, %77 : vector<8x256xf32>
    %79 = arith.truncf %78 : vector<8x256xf32> to vector<8x256xbf16>
    %80 = arith.index_cast %c2_i32 : i32 to index
    %c0_49 = arith.constant 0 : index
    %c0_50 = arith.constant 0 : index
    %81 = vector.load %arg6[%80, %c0_49, %c0_50] : memref<8x8x256xbf16, #tpu.memory_space<vmem>>, vector<1x8x256xbf16>
    %82 = vector.shape_cast %81 : vector<1x8x256xbf16> to vector<8x256xbf16>
    %83 = vector.shape_cast %79 : vector<8x256xbf16> to vector<1x8x256xbf16>
    tpu.vector_store %arg6[%80, %c0_49, %c0_50], %83 {strides = array<i32>} : memref<8x8x256xbf16, #tpu.memory_space<vmem>>, vector<1x8x256xbf16>,
    %c3_i32 = arith.constant 3 : i32
    %84 = arith.index_cast %c3_i32 : i32 to index
    %c0_51 = arith.constant 0 : index
    %c0_52 = arith.constant 0 : index
    %85 = vector.load %arg1[%84, %c0_51, %c0_52] : memref<8x8x256xbf16, #tpu.memory_space<vmem>>, vector<1x8x256xbf16>
    %86 = vector.shape_cast %85 : vector<1x8x256xbf16> to vector<8x256xbf16>
    %87 = arith.extf %86 : vector<8x256xbf16> to vector<8x256xf32>
    %88 = arith.truncf %67 : vector<8x256xf32> to vector<8x256xbf16>
    %c0_53 = arith.constant 0 : index
    %c0_54 = arith.constant 0 : index
    %89 = vector.load %arg9[%c0_53, %c0_54] : memref<256x256xbf16, #tpu.memory_space<vmem>>, vector<256x256xbf16>
    %cst_55 = arith.constant dense<0.000000e+00> : vector<8x256xf32>
    %90 = tpu.matmul %88, %89, %cst_55 {dimension_numbers = #tpu.dot_dimension_numbers<[1], [0], [0], [1], [0, 0, 1, 1], [], []>} : vector<8x256xbf16>, vector<256x256xbf16>, vector<8x256xf32> -> vector<8x256xf32>
    %91 = arith.addf %87, %90 : vector<8x256xf32>
    %cst_56 = arith.constant 0.000000e+00 : f32
    %92 = vector.broadcast %cst_56 : f32 to vector<8x256xf32>
    %93 = arith.maximumf %91, %92 : vector<8x256xf32>
    %94 = arith.truncf %93 : vector<8x256xf32> to vector<8x256xbf16>
    %c0_57 = arith.constant 0 : index
    %c0_58 = arith.constant 0 : index
    %95 = vector.load %arg10[%c0_57, %c0_58] : memref<256x256xbf16, #tpu.memory_space<vmem>>, vector<256x256xbf16>
    %cst_59 = arith.constant dense<0.000000e+00> : vector<8x256xf32>
    %96 = tpu.matmul %94, %95, %cst_59 {dimension_numbers = #tpu.dot_dimension_numbers<[1], [0], [0], [1], [0, 0, 1, 1], [], []>} : vector<8x256xbf16>, vector<256x256xbf16>, vector<8x256xf32> -> vector<8x256xf32>
    %97 = arith.truncf %78 : vector<8x256xf32> to vector<8x256xbf16>
    %c0_60 = arith.constant 0 : index
    %c0_61 = arith.constant 0 : index
    %98 = vector.load %arg11[%c0_60, %c0_61] : memref<256x256xbf16, #tpu.memory_space<vmem>>, vector<256x256xbf16>
    %cst_62 = arith.constant dense<0.000000e+00> : vector<8x256xf32>
    %99 = tpu.matmul %97, %98, %cst_62 {dimension_numbers = #tpu.dot_dimension_numbers<[1], [0], [0], [1], [0, 0, 1, 1], [], []>} : vector<8x256xbf16>, vector<256x256xbf16>, vector<8x256xf32> -> vector<8x256xf32>
    %100 = arith.addf %96, %99 : vector<8x256xf32>
    %101 = vector.broadcast %3 : vector<1x256xf32> to vector<8x256xf32>
    %102 = arith.addf %100, %101 : vector<8x256xf32>
    %cst_63 = arith.constant 0.000000e+00 : f32
    %103 = vector.broadcast %cst_63 : f32 to vector<8x256xf32>
    %104 = arith.maximumf %102, %103 : vector<8x256xf32>
    %105 = arith.truncf %104 : vector<8x256xf32> to vector<8x256xbf16>
    %106 = arith.index_cast %c3_i32 : i32 to index
    %c0_64 = arith.constant 0 : index
    %c0_65 = arith.constant 0 : index
    %107 = vector.load %arg6[%106, %c0_64, %c0_65] : memref<8x8x256xbf16, #tpu.memory_space<vmem>>, vector<1x8x256xbf16>
    %108 = vector.shape_cast %107 : vector<1x8x256xbf16> to vector<8x256xbf16>
    %109 = vector.shape_cast %105 : vector<8x256xbf16> to vector<1x8x256xbf16>
    tpu.vector_store %arg6[%106, %c0_64, %c0_65], %109 {strides = array<i32>} : memref<8x8x256xbf16, #tpu.memory_space<vmem>>, vector<1x8x256xbf16>,
    %c4_i32 = arith.constant 4 : i32
    %110 = arith.index_cast %c4_i32 : i32 to index
    %c0_66 = arith.constant 0 : index
    %c0_67 = arith.constant 0 : index
    %111 = vector.load %arg1[%110, %c0_66, %c0_67] : memref<8x8x256xbf16, #tpu.memory_space<vmem>>, vector<1x8x256xbf16>
    %112 = vector.shape_cast %111 : vector<1x8x256xbf16> to vector<8x256xbf16>
    %113 = arith.extf %112 : vector<8x256xbf16> to vector<8x256xf32>
    %114 = arith.truncf %93 : vector<8x256xf32> to vector<8x256xbf16>
    %c0_68 = arith.constant 0 : index
    %c0_69 = arith.constant 0 : index
    %115 = vector.load %arg9[%c0_68, %c0_69] : memref<256x256xbf16, #tpu.memory_space<vmem>>, vector<256x256xbf16>
    %cst_70 = arith.constant dense<0.000000e+00> : vector<8x256xf32>
    %116 = tpu.matmul %114, %115, %cst_70 {dimension_numbers = #tpu.dot_dimension_numbers<[1], [0], [0], [1], [0, 0, 1, 1], [], []>} : vector<8x256xbf16>, vector<256x256xbf16>, vector<8x256xf32> -> vector<8x256xf32>
    %117 = arith.addf %113, %116 : vector<8x256xf32>
    %cst_71 = arith.constant 0.000000e+00 : f32
    %118 = vector.broadcast %cst_71 : f32 to vector<8x256xf32>
    %119 = arith.maximumf %117, %118 : vector<8x256xf32>
    %120 = arith.truncf %119 : vector<8x256xf32> to vector<8x256xbf16>
    %c0_72 = arith.constant 0 : index
    %c0_73 = arith.constant 0 : index
    %121 = vector.load %arg10[%c0_72, %c0_73] : memref<256x256xbf16, #tpu.memory_space<vmem>>, vector<256x256xbf16>
    %cst_74 = arith.constant dense<0.000000e+00> : vector<8x256xf32>
    %122 = tpu.matmul %120, %121, %cst_74 {dimension_numbers = #tpu.dot_dimension_numbers<[1], [0], [0], [1], [0, 0, 1, 1], [], []>} : vector<8x256xbf16>, vector<256x256xbf16>, vector<8x256xf32> -> vector<8x256xf32>
    %123 = arith.truncf %104 : vector<8x256xf32> to vector<8x256xbf16>
    %c0_75 = arith.constant 0 : index
    %c0_76 = arith.constant 0 : index
    %124 = vector.load %arg11[%c0_75, %c0_76] : memref<256x256xbf16, #tpu.memory_space<vmem>>, vector<256x256xbf16>
    %cst_77 = arith.constant dense<0.000000e+00> : vector<8x256xf32>
    %125 = tpu.matmul %123, %124, %cst_77 {dimension_numbers = #tpu.dot_dimension_numbers<[1], [0], [0], [1], [0, 0, 1, 1], [], []>} : vector<8x256xbf16>, vector<256x256xbf16>, vector<8x256xf32> -> vector<8x256xf32>
    %126 = arith.addf %122, %125 : vector<8x256xf32>
    %127 = vector.broadcast %3 : vector<1x256xf32> to vector<8x256xf32>
    %128 = arith.addf %126, %127 : vector<8x256xf32>
    %cst_78 = arith.constant 0.000000e+00 : f32
    %129 = vector.broadcast %cst_78 : f32 to vector<8x256xf32>
    %130 = arith.maximumf %128, %129 : vector<8x256xf32>
    %131 = arith.truncf %130 : vector<8x256xf32> to vector<8x256xbf16>
    %132 = arith.index_cast %c4_i32 : i32 to index
    %c0_79 = arith.constant 0 : index
    %c0_80 = arith.constant 0 : index
    %133 = vector.load %arg6[%132, %c0_79, %c0_80] : memref<8x8x256xbf16, #tpu.memory_space<vmem>>, vector<1x8x256xbf16>
    %134 = vector.shape_cast %133 : vector<1x8x256xbf16> to vector<8x256xbf16>
    %135 = vector.shape_cast %131 : vector<8x256xbf16> to vector<1x8x256xbf16>
    tpu.vector_store %arg6[%132, %c0_79, %c0_80], %135 {strides = array<i32>} : memref<8x8x256xbf16, #tpu.memory_space<vmem>>, vector<1x8x256xbf16>,
    %c5_i32 = arith.constant 5 : i32
    %136 = arith.index_cast %c5_i32 : i32 to index
    %c0_81 = arith.constant 0 : index
    %c0_82 = arith.constant 0 : index
    %137 = vector.load %arg1[%136, %c0_81, %c0_82] : memref<8x8x256xbf16, #tpu.memory_space<vmem>>, vector<1x8x256xbf16>
    %138 = vector.shape_cast %137 : vector<1x8x256xbf16> to vector<8x256xbf16>
    %139 = arith.extf %138 : vector<8x256xbf16> to vector<8x256xf32>
    %140 = arith.truncf %119 : vector<8x256xf32> to vector<8x256xbf16>
    %c0_83 = arith.constant 0 : index
    %c0_84 = arith.constant 0 : index
    %141 = vector.load %arg9[%c0_83, %c0_84] : memref<256x256xbf16, #tpu.memory_space<vmem>>, vector<256x256xbf16>
    %cst_85 = arith.constant dense<0.000000e+00> : vector<8x256xf32>
    %142 = tpu.matmul %140, %141, %cst_85 {dimension_numbers = #tpu.dot_dimension_numbers<[1], [0], [0], [1], [0, 0, 1, 1], [], []>} : vector<8x256xbf16>, vector<256x256xbf16>, vector<8x256xf32> -> vector<8x256xf32>
    %143 = arith.addf %139, %142 : vector<8x256xf32>
    %cst_86 = arith.constant 0.000000e+00 : f32
    %144 = vector.broadcast %cst_86 : f32 to vector<8x256xf32>
    %145 = arith.maximumf %143, %144 : vector<8x256xf32>
    %146 = arith.truncf %145 : vector<8x256xf32> to vector<8x256xbf16>
    %c0_87 = arith.constant 0 : index
    %c0_88 = arith.constant 0 : index
    %147 = vector.load %arg10[%c0_87, %c0_88] : memref<256x256xbf16, #tpu.memory_space<vmem>>, vector<256x256xbf16>
    %cst_89 = arith.constant dense<0.000000e+00> : vector<8x256xf32>
    %148 = tpu.matmul %146, %147, %cst_89 {dimension_numbers = #tpu.dot_dimension_numbers<[1], [0], [0], [1], [0, 0, 1, 1], [], []>} : vector<8x256xbf16>, vector<256x256xbf16>, vector<8x256xf32> -> vector<8x256xf32>
    %149 = arith.truncf %130 : vector<8x256xf32> to vector<8x256xbf16>
    %c0_90 = arith.constant 0 : index
    %c0_91 = arith.constant 0 : index
    %150 = vector.load %arg11[%c0_90, %c0_91] : memref<256x256xbf16, #tpu.memory_space<vmem>>, vector<256x256xbf16>
    %cst_92 = arith.constant dense<0.000000e+00> : vector<8x256xf32>
    %151 = tpu.matmul %149, %150, %cst_92 {dimension_numbers = #tpu.dot_dimension_numbers<[1], [0], [0], [1], [0, 0, 1, 1], [], []>} : vector<8x256xbf16>, vector<256x256xbf16>, vector<8x256xf32> -> vector<8x256xf32>
    %152 = arith.addf %148, %151 : vector<8x256xf32>
    %153 = vector.broadcast %3 : vector<1x256xf32> to vector<8x256xf32>
    %154 = arith.addf %152, %153 : vector<8x256xf32>
    %cst_93 = arith.constant 0.000000e+00 : f32
    %155 = vector.broadcast %cst_93 : f32 to vector<8x256xf32>
    %156 = arith.maximumf %154, %155 : vector<8x256xf32>
    %157 = arith.truncf %156 : vector<8x256xf32> to vector<8x256xbf16>
    %158 = arith.index_cast %c5_i32 : i32 to index
    %c0_94 = arith.constant 0 : index
    %c0_95 = arith.constant 0 : index
    %159 = vector.load %arg6[%158, %c0_94, %c0_95] : memref<8x8x256xbf16, #tpu.memory_space<vmem>>, vector<1x8x256xbf16>
    %160 = vector.shape_cast %159 : vector<1x8x256xbf16> to vector<8x256xbf16>
    %161 = vector.shape_cast %157 : vector<8x256xbf16> to vector<1x8x256xbf16>
    tpu.vector_store %arg6[%158, %c0_94, %c0_95], %161 {strides = array<i32>} : memref<8x8x256xbf16, #tpu.memory_space<vmem>>, vector<1x8x256xbf16>,
    %c6_i32 = arith.constant 6 : i32
    %162 = arith.index_cast %c6_i32 : i32 to index
    %c0_96 = arith.constant 0 : index
    %c0_97 = arith.constant 0 : index
    %163 = vector.load %arg1[%162, %c0_96, %c0_97] : memref<8x8x256xbf16, #tpu.memory_space<vmem>>, vector<1x8x256xbf16>
    %164 = vector.shape_cast %163 : vector<1x8x256xbf16> to vector<8x256xbf16>
    %165 = arith.extf %164 : vector<8x256xbf16> to vector<8x256xf32>
    %166 = arith.truncf %145 : vector<8x256xf32> to vector<8x256xbf16>
    %c0_98 = arith.constant 0 : index
    %c0_99 = arith.constant 0 : index
    %167 = vector.load %arg9[%c0_98, %c0_99] : memref<256x256xbf16, #tpu.memory_space<vmem>>, vector<256x256xbf16>
    %cst_100 = arith.constant dense<0.000000e+00> : vector<8x256xf32>
    %168 = tpu.matmul %166, %167, %cst_100 {dimension_numbers = #tpu.dot_dimension_numbers<[1], [0], [0], [1], [0, 0, 1, 1], [], []>} : vector<8x256xbf16>, vector<256x256xbf16>, vector<8x256xf32> -> vector<8x256xf32>
    %169 = arith.addf %165, %168 : vector<8x256xf32>
    %cst_101 = arith.constant 0.000000e+00 : f32
    %170 = vector.broadcast %cst_101 : f32 to vector<8x256xf32>
    %171 = arith.maximumf %169, %170 : vector<8x256xf32>
    %172 = arith.truncf %171 : vector<8x256xf32> to vector<8x256xbf16>
    %c0_102 = arith.constant 0 : index
    %c0_103 = arith.constant 0 : index
    %173 = vector.load %arg10[%c0_102, %c0_103] : memref<256x256xbf16, #tpu.memory_space<vmem>>, vector<256x256xbf16>
    %cst_104 = arith.constant dense<0.000000e+00> : vector<8x256xf32>
    %174 = tpu.matmul %172, %173, %cst_104 {dimension_numbers = #tpu.dot_dimension_numbers<[1], [0], [0], [1], [0, 0, 1, 1], [], []>} : vector<8x256xbf16>, vector<256x256xbf16>, vector<8x256xf32> -> vector<8x256xf32>
    %175 = arith.truncf %156 : vector<8x256xf32> to vector<8x256xbf16>
    %c0_105 = arith.constant 0 : index
    %c0_106 = arith.constant 0 : index
    %176 = vector.load %arg11[%c0_105, %c0_106] : memref<256x256xbf16, #tpu.memory_space<vmem>>, vector<256x256xbf16>
    %cst_107 = arith.constant dense<0.000000e+00> : vector<8x256xf32>
    %177 = tpu.matmul %175, %176, %cst_107 {dimension_numbers = #tpu.dot_dimension_numbers<[1], [0], [0], [1], [0, 0, 1, 1], [], []>} : vector<8x256xbf16>, vector<256x256xbf16>, vector<8x256xf32> -> vector<8x256xf32>
    %178 = arith.addf %174, %177 : vector<8x256xf32>
    %179 = vector.broadcast %3 : vector<1x256xf32> to vector<8x256xf32>
    %180 = arith.addf %178, %179 : vector<8x256xf32>
    %cst_108 = arith.constant 0.000000e+00 : f32
    %181 = vector.broadcast %cst_108 : f32 to vector<8x256xf32>
    %182 = arith.maximumf %180, %181 : vector<8x256xf32>
    %183 = arith.truncf %182 : vector<8x256xf32> to vector<8x256xbf16>
    %184 = arith.index_cast %c6_i32 : i32 to index
    %c0_109 = arith.constant 0 : index
    %c0_110 = arith.constant 0 : index
    %185 = vector.load %arg6[%184, %c0_109, %c0_110] : memref<8x8x256xbf16, #tpu.memory_space<vmem>>, vector<1x8x256xbf16>
    %186 = vector.shape_cast %185 : vector<1x8x256xbf16> to vector<8x256xbf16>
    %187 = vector.shape_cast %183 : vector<8x256xbf16> to vector<1x8x256xbf16>
    tpu.vector_store %arg6[%184, %c0_109, %c0_110], %187 {strides = array<i32>} : memref<8x8x256xbf16, #tpu.memory_space<vmem>>, vector<1x8x256xbf16>,
    %c7_i32 = arith.constant 7 : i32
    %188 = arith.index_cast %c7_i32 : i32 to index
    %c0_111 = arith.constant 0 : index
    %c0_112 = arith.constant 0 : index
    %189 = vector.load %arg1[%188, %c0_111, %c0_112] : memref<8x8x256xbf16, #tpu.memory_space<vmem>>, vector<1x8x256xbf16>
    %190 = vector.shape_cast %189 : vector<1x8x256xbf16> to vector<8x256xbf16>
    %191 = arith.extf %190 : vector<8x256xbf16> to vector<8x256xf32>
    %192 = arith.truncf %171 : vector<8x256xf32> to vector<8x256xbf16>
    %c0_113 = arith.constant 0 : index
    %c0_114 = arith.constant 0 : index
    %193 = vector.load %arg9[%c0_113, %c0_114] : memref<256x256xbf16, #tpu.memory_space<vmem>>, vector<256x256xbf16>
    %cst_115 = arith.constant dense<0.000000e+00> : vector<8x256xf32>
    %194 = tpu.matmul %192, %193, %cst_115 {dimension_numbers = #tpu.dot_dimension_numbers<[1], [0], [0], [1], [0, 0, 1, 1], [], []>} : vector<8x256xbf16>, vector<256x256xbf16>, vector<8x256xf32> -> vector<8x256xf32>
    %195 = arith.addf %191, %194 : vector<8x256xf32>
    %cst_116 = arith.constant 0.000000e+00 : f32
    %196 = vector.broadcast %cst_116 : f32 to vector<8x256xf32>
    %197 = arith.maximumf %195, %196 : vector<8x256xf32>
    %198 = arith.truncf %197 : vector<8x256xf32> to vector<8x256xbf16>
    %c0_117 = arith.constant 0 : index
    %c0_118 = arith.constant 0 : index
    %199 = vector.load %arg10[%c0_117, %c0_118] : memref<256x256xbf16, #tpu.memory_space<vmem>>, vector<256x256xbf16>
    %cst_119 = arith.constant dense<0.000000e+00> : vector<8x256xf32>
    %200 = tpu.matmul %198, %199, %cst_119 {dimension_numbers = #tpu.dot_dimension_numbers<[1], [0], [0], [1], [0, 0, 1, 1], [], []>} : vector<8x256xbf16>, vector<256x256xbf16>, vector<8x256xf32> -> vector<8x256xf32>
    %201 = arith.truncf %182 : vector<8x256xf32> to vector<8x256xbf16>
    %c0_120 = arith.constant 0 : index
    %c0_121 = arith.constant 0 : index
    %202 = vector.load %arg11[%c0_120, %c0_121] : memref<256x256xbf16, #tpu.memory_space<vmem>>, vector<256x256xbf16>
    %cst_122 = arith.constant dense<0.000000e+00> : vector<8x256xf32>
    %203 = tpu.matmul %201, %202, %cst_122 {dimension_numbers = #tpu.dot_dimension_numbers<[1], [0], [0], [1], [0, 0, 1, 1], [], []>} : vector<8x256xbf16>, vector<256x256xbf16>, vector<8x256xf32> -> vector<8x256xf32>
    %204 = arith.addf %200, %203 : vector<8x256xf32>
    %205 = vector.broadcast %3 : vector<1x256xf32> to vector<8x256xf32>
    %206 = arith.addf %204, %205 : vector<8x256xf32>
    %cst_123 = arith.constant 0.000000e+00 : f32
    %207 = vector.broadcast %cst_123 : f32 to vector<8x256xf32>
    %208 = arith.maximumf %206, %207 : vector<8x256xf32>
    %209 = arith.truncf %208 : vector<8x256xf32> to vector<8x256xbf16>
    %210 = arith.index_cast %c7_i32 : i32 to index
    %c0_124 = arith.constant 0 : index
    %c0_125 = arith.constant 0 : index
    %211 = vector.load %arg6[%210, %c0_124, %c0_125] : memref<8x8x256xbf16, #tpu.memory_space<vmem>>, vector<1x8x256xbf16>
    %212 = vector.shape_cast %211 : vector<1x8x256xbf16> to vector<8x256xbf16>
    %213 = vector.shape_cast %209 : vector<8x256xbf16> to vector<1x8x256xbf16>
    tpu.vector_store %arg6[%210, %c0_124, %c0_125], %213 {strides = array<i32>} : memref<8x8x256xbf16, #tpu.memory_space<vmem>>, vector<1x8x256xbf16>,
    %c8_i32 = arith.constant 8 : i32
    %c0_126 = arith.constant 0 : index
    %c0_127 = arith.constant 0 : index
    %214 = vector.load %arg7[%c0_126, %c0_127] : memref<8x256xf32, #tpu.memory_space<vmem>>, vector<8x256xf32>
    tpu.vector_store %arg7[%c0_126, %c0_127], %197 {strides = array<i32>} : memref<8x256xf32, #tpu.memory_space<vmem>>, vector<8x256xf32>,
    %c0_128 = arith.constant 0 : index
    %c0_129 = arith.constant 0 : index
    %215 = vector.load %arg8[%c0_128, %c0_129] : memref<8x256xf32, #tpu.memory_space<vmem>>, vector<8x256xf32>
    tpu.vector_store %arg8[%c0_128, %c0_129], %208 {strides = array<i32>} : memref<8x256xf32, #tpu.memory_space<vmem>>, vector<8x256xf32>,
    return
  }
  func.func @transform_0(%arg0: i32) -> (i32, i32, i32) {
    %c0_i32 = arith.constant 0 : i32
    %c0_i32_0 = arith.constant 0 : i32
    %c0_i32_1 = arith.constant 0 : i32
    return %arg0, %c0_i32, %c0_i32_0 : i32, i32, i32
  }
  func.func @transform_4(%arg0: i32) -> (i32, i32) {
    %c0_i32 = arith.constant 0 : i32
    %c0_i32_0 = arith.constant 0 : i32
    %c0_i32_1 = arith.constant 0 : i32
    return %c0_i32, %c0_i32_0 : i32, i32
  }
  func.func @transform_5(%arg0: i32) -> (i32, i32, i32) {
    %c0_i32 = arith.constant 0 : i32
    %c0_i32_0 = arith.constant 0 : i32
    %c0_i32_1 = arith.constant 0 : i32
    return %arg0, %c0_i32, %c0_i32_0 : i32, i32, i32
  }
}

module attributes {stable_mosaic.version = 11 : i64} {
  func.func @_mdn_kernel(%arg0: i32, %arg1: memref<64x256xbf16, #tpu.memory_space<vmem>>, %arg2: memref<256x128xbf16, #tpu.memory_space<vmem>>, %arg3: memref<1x128xf32, #tpu.memory_space<vmem>>, %arg4: memref<64x128xf32, #tpu.memory_space<vmem>>) attributes {dimension_semantics = [#tpu.dimension_semantics<parallel>], iteration_bounds = array<i64: 1>, scalar_prefetch = 0 : i64, scratch_operands = 0 : i64, tpu.core_type = #tpu.core_type<tc>, window_params = [{transform_indices = @transform_0, window_bounds = array<i64: 64, 256>}, {pipeline_mode = #tpu.pipeline_mode<synchronous>, transform_indices = @transform_1, window_bounds = array<i64: 256, 128>}, {pipeline_mode = #tpu.pipeline_mode<synchronous>, transform_indices = @transform_2, window_bounds = array<i64: 1, 128>}, {transform_indices = @transform_3, window_bounds = array<i64: 64, 128>}]} {
    %c0 = arith.constant 0 : index
    %c0_0 = arith.constant 0 : index
    %0 = vector.load %arg1[%c0, %c0_0] : memref<64x256xbf16, #tpu.memory_space<vmem>>, vector<64x256xbf16>
    %c0_1 = arith.constant 0 : index
    %c0_2 = arith.constant 0 : index
    %1 = vector.load %arg2[%c0_1, %c0_2] : memref<256x128xbf16, #tpu.memory_space<vmem>>, vector<256x128xbf16>
    %cst = arith.constant dense<0.000000e+00> : vector<64x128xf32>
    %2 = tpu.matmul %0, %1, %cst {dimension_numbers = #tpu.dot_dimension_numbers<[1], [0], [0], [1], [0, 0, 1, 1], [], []>} : vector<64x256xbf16>, vector<256x128xbf16>, vector<64x128xf32> -> vector<64x128xf32>
    %c0_3 = arith.constant 0 : index
    %c0_4 = arith.constant 0 : index
    %3 = vector.load %arg3[%c0_3, %c0_4] : memref<1x128xf32, #tpu.memory_space<vmem>>, vector<1x128xf32>
    %4 = vector.broadcast %3 : vector<1x128xf32> to vector<64x128xf32>
    %5 = arith.addf %2, %4 : vector<64x128xf32>
    %6 = tpu.iota {dimensions = array<i32: 1>} : vector<64x128xi32>
    %c5_i32 = arith.constant 5 : i32
    %7 = vector.broadcast %c5_i32 : i32 to vector<64x128xi32>
    %8 = arith.cmpi slt, %6, %7 : vector<64x128xi32>
    %c5_i32_5 = arith.constant 5 : i32
    %9 = vector.broadcast %c5_i32_5 : i32 to vector<64x128xi32>
    %10 = arith.cmpi sge, %6, %9 : vector<64x128xi32>
    %c40_i32 = arith.constant 40 : i32
    %11 = vector.broadcast %c40_i32 : i32 to vector<64x128xi32>
    %12 = arith.cmpi slt, %6, %11 : vector<64x128xi32>
    %13 = arith.andi %10, %12 : vector<64x128xi1>
    %cst_6 = arith.constant -1.000000e+30 : f32
    %14 = vector.broadcast %cst_6 : f32 to vector<64x128xf32>
    %15 = arith.select %8, %5, %14 : vector<64x128xi1>, vector<64x128xf32>
    %cst_7 = arith.constant dense<0xFF800000> : vector<64xf32>
    %16 = vector.multi_reduction <maximumf>, %15, %cst_7 [1] : vector<64x128xf32> to vector<64xf32>
    %17 = vector.shape_cast %16 : vector<64xf32> to vector<64x1xf32>
    %18 = vector.broadcast %17 : vector<64x1xf32> to vector<64x128xf32>
    %19 = arith.subf %15, %18 : vector<64x128xf32>
    %20 = math.exp %19 : vector<64x128xf32>
    %cst_8 = arith.constant dense<0.000000e+00> : vector<64xf32>
    %21 = vector.multi_reduction <add>, %20, %cst_8 [1] : vector<64x128xf32> to vector<64xf32>
    %22 = vector.shape_cast %21 : vector<64xf32> to vector<64x1xf32>
    %23 = vector.broadcast %22 : vector<64x1xf32> to vector<64x128xf32>
    %24 = arith.divf %20, %23 : vector<64x128xf32>
    %cst_9 = arith.constant 0.000000e+00 : f32
    %25 = vector.broadcast %cst_9 : f32 to vector<64x128xf32>
    %26 = arith.select %13, %5, %25 : vector<64x128xi1>, vector<64x128xf32>
    %27 = math.exp %26 : vector<64x128xf32>
    %28 = arith.select %13, %27, %5 : vector<64x128xi1>, vector<64x128xf32>
    %29 = arith.select %8, %24, %28 : vector<64x128xi1>, vector<64x128xf32>
    %c0_10 = arith.constant 0 : index
    %c0_11 = arith.constant 0 : index
    %30 = vector.load %arg4[%c0_10, %c0_11] : memref<64x128xf32, #tpu.memory_space<vmem>>, vector<64x128xf32>
    tpu.vector_store %arg4[%c0_10, %c0_11], %29 {strides = array<i32>} : memref<64x128xf32, #tpu.memory_space<vmem>>, vector<64x128xf32>,
    return
  }
  func.func @transform_0(%arg0: i32) -> (i32, i32) {
    %c0_i32 = arith.constant 0 : i32
    %c0_i32_0 = arith.constant 0 : i32
    return %arg0, %c0_i32 : i32, i32
  }
  func.func @transform_1(%arg0: i32) -> (i32, i32) {
    %c0_i32 = arith.constant 0 : i32
    %c0_i32_0 = arith.constant 0 : i32
    %c0_i32_1 = arith.constant 0 : i32
    return %c0_i32, %c0_i32_0 : i32, i32
  }
  func.func @transform_2(%arg0: i32) -> (i32, i32) {
    %c0_i32 = arith.constant 0 : i32
    %c0_i32_0 = arith.constant 0 : i32
    %c0_i32_1 = arith.constant 0 : i32
    return %c0_i32, %c0_i32_0 : i32, i32
  }
  func.func @transform_3(%arg0: i32) -> (i32, i32) {
    %c0_i32 = arith.constant 0 : i32
    %c0_i32_0 = arith.constant 0 : i32
    return %arg0, %c0_i32 : i32, i32
  }
}

</mosaic_0001>

<llo_original>
// kernel: action_decoder_forward.3
$region0: #{action_decoder_forward.3}
  #allocation0 [shape = 'u32[]', space=smem, size = 0x4, offset = 0x4, fixed_abs, tag = 'smem constant byte address 0x4 - core index']
  #allocation1 [shape = 'u32[144,128]{1,0:T(1,128)}', space=vmem, size = 0x12000, scoped, tag = 'internal scratch']
  %s0 = inlined_call_operand.vmem [shape: f32[64,128], index: 0, kind: input, shape index: {}]
  %s1 = inlined_call_operand.vmem [shape: bf16[128,256], index: 1, kind: input, shape index: {}]
  %s2 = inlined_call_operand.hbm [shape: f32[1,256], index: 2, kind: input, shape index: {}]
  %s3 = inlined_call_operand.vmem [shape: bf16[64,256], index: 3, kind: output, shape index: {}]
  %s4 = sld [smem:[#allocation0]]
  $region26: #{action_decoder_forward.3} parent=0
    _
  %s6 = ssub.s32 1, %s4
  %s7 = scalar_select 0, %s6, %s4
  $region1: #{action_decoder_forward.3} parent=0
    #allocation2 [shape = 'u8[1024]{0}', space=vmem, size = 0x400, scoped, tag = 'input window, operand 2, single buffered']
    #allocation3 [shape = 's32[1]{0}', space=sflag, size = 0x4, scoped, tag = 'scoped memory for action_decoder_forward.3']
    %8 = vsyncpa [#allocation3], 0
    // Predicated region
    $region2: #{action_decoder_forward.3} parent=1 // pred_check
      _
    $region3: #{action_decoder_forward.3} parent=1 // pred_check_branch
      %10 = sbr.rel (0) target = $region5
    $region4: #{action_decoder_forward.3} parent=1 // pred_region
      _
    $region5: #{action_decoder_forward.3} parent=1 // pred_fallthru
      _
    // Predicated region
    $region6: #{action_decoder_forward.3} parent=1 // pred_check
      _
    $region7: #{action_decoder_forward.3} parent=1 // pred_check_branch
      %12 = sbr.rel (0) target = $region9
    $region8: #{action_decoder_forward.3} parent=1 // pred_region
      _
    $region9: #{action_decoder_forward.3} parent=1 // pred_fallthru
      _
    // Predicated region
    $region10: #{action_decoder_forward.3} parent=1 // pred_check
      _
    $region11: #{action_decoder_forward.3} parent=1 // pred_check_branch
      %14 = sbr.rel (0) target = $region13
    $region12: #{action_decoder_forward.3} parent=1 // pred_region
      %s16 = ssub.s32 32, 32
      %17 = vsyncadd [#allocation3], %s16
      %s19 = sshll.u32 [#allocation2], 4
      %s20 = int_to_ptr.vmem [resolvable:$true] %s19
      %22 = dma.hbm_to_vmem [thread:$0]  %s2, 32, %s20, [#allocation3]
    $region13: #{action_decoder_forward.3} parent=1 // pred_fallthru
      _
    // Predicated region
    $region14: #{action_decoder_forward.3} parent=1 // pred_check
      _
    $region15: #{action_decoder_forward.3} parent=1 // pred_check_branch
      %24 = sbr.rel (0) target = $region17
    $region16: #{action_decoder_forward.3} parent=1 // pred_region
      %25 = dma.done [#allocation3], 32
    $region17: #{action_decoder_forward.3} parent=1 // pred_fallthru
      _
    %v27 = vld [vmem:[%s0] sm:$0xff]
    %v28 = vld [vmem:[%s0 + $0x8] sm:$0xff]
    %v29 = vld [vmem:[%s0 + $0x10] sm:$0xff]
    %v30 = vld [vmem:[%s0 + $0x18] sm:$0xff]
    %v31 = vld [vmem:[%s0 + $0x20] sm:$0xff]
    %v32 = vld [vmem:[%s0 + $0x28] sm:$0xff]
    %v33 = vld [vmem:[%s0 + $0x30] sm:$0xff]
    %v34 = vld [vmem:[%s0 + $0x38] sm:$0xff]
    %v35 = vpack.c.bf16 %v28, %v27
    %v36 = vpack.c.bf16 %v30, %v29
    %v37 = vpack.c.bf16 %v32, %v31
    %v38 = vpack.c.bf16 %v34, %v33
    %v39 = vld [vmem:[%s1] sm:$0xff]
    %v40 = vld [vmem:[%s1 + $0x8] sm:$0xff]
    %v41 = vld [vmem:[%s1 + $0x10] sm:$0xff]
    %v42 = vld [vmem:[%s1 + $0x18] sm:$0xff]
    %v43 = vld [vmem:[%s1 + $0x20] sm:$0xff]
    %v44 = vld [vmem:[%s1 + $0x28] sm:$0xff]
    %v45 = vld [vmem:[%s1 + $0x30] sm:$0xff]
    %v46 = vld [vmem:[%s1 + $0x38] sm:$0xff]
    %v47 = vld [vmem:[%s1 + $0x40] sm:$0xff]
    %v48 = vld [vmem:[%s1 + $0x48] sm:$0xff]
    %v49 = vld [vmem:[%s1 + $0x50] sm:$0xff]
    %v50 = vld [vmem:[%s1 + $0x58] sm:$0xff]
    %v51 = vld [vmem:[%s1 + $0x60] sm:$0xff]
    %v52 = vld [vmem:[%s1 + $0x68] sm:$0xff]
    %v53 = vld [vmem:[%s1 + $0x70] sm:$0xff]
    %v54 = vld [vmem:[%s1 + $0x78] sm:$0xff]
    %v55 = vld [vmem:[#allocation2] sm:$0x3]
    %v57 = vlaneseq
    %v58 = vshrl.u32 %v57, 7
    %v59 = vsub.s32 0, %v58
    %v60 = vrot.slane %v55, %v59
    %v61 = vlaneseq
    %v62 = vshrl.u32 %v61, 7
    %v63 = vsub.s32 1, %v62
    %v64 = vrot.slane %v55, %v63
    %v83 = vunpack.c.l.b16 %v39
    %v84 = vunpack.c.h.b16 %v39
    %v85 = vunpack.c.l.b16 %v40
    %v86 = vunpack.c.h.b16 %v40
    %v87 = vunpack.c.l.b16 %v41
    %v88 = vunpack.c.h.b16 %v41
    %v89 = vunpack.c.l.b16 %v42
    %v90 = vunpack.c.h.b16 %v42
    %v91 = vunpack.c.l.b16 %v43
    %v92 = vunpack.c.h.b16 %v43
    %v93 = vunpack.c.l.b16 %v44
    %v94 = vunpack.c.h.b16 %v44
    %v95 = vunpack.c.l.b16 %v45
    %v96 = vunpack.c.h.b16 %v45
    %v97 = vunpack.c.l.b16 %v46
    %v98 = vunpack.c.h.b16 %v46
    %v99 = vunpack.c.l.b16 %v47
    %v100 = vunpack.c.h.b16 %v47
    %v101 = vunpack.c.l.b16 %v48
    %v102 = vunpack.c.h.b16 %v48
    %v103 = vunpack.c.l.b16 %v49
    %v104 = vunpack.c.h.b16 %v49
    %v105 = vunpack.c.l.b16 %v50
    %v106 = vunpack.c.h.b16 %v50
    %v107 = vunpack.c.l.b16 %v51
    %v108 = vunpack.c.h.b16 %v51
    %v109 = vunpack.c.l.b16 %v52
    %v110 = vunpack.c.h.b16 %v52
    %v111 = vunpack.c.l.b16 %v53
    %v112 = vunpack.c.h.b16 %v53
    %v113 = vunpack.c.l.b16 %v54
    %v114 = vunpack.c.h.b16 %v54
    %v115 = vpack.c.b16 %v85, %v83
    %v116 = vpack.c.b16 %v86, %v84
    %v117 = vpack.c.b16 %v89, %v87
    %v118 = vpack.c.b16 %v90, %v88
    %v119 = vpack.c.b16 %v93, %v91
    %v120 = vpack.c.b16 %v94, %v92
    %v121 = vpack.c.b16 %v97, %v95
    %v122 = vpack.c.b16 %v98, %v96
    %v123 = vpack.c.b16 %v101, %v99
    %v124 = vpack.c.b16 %v102, %v100
    %v125 = vpack.c.b16 %v105, %v103
    %v126 = vpack.c.b16 %v106, %v104
    %v127 = vpack.c.b16 %v109, %v107
    %v128 = vpack.c.b16 %v110, %v108
    %v129 = vpack.c.b16 %v113, %v111
    %v130 = vpack.c.b16 %v114, %v112
    %147 = vmatprep.subr.bf16.mxu0 %v130
    %148 = vmatpush1.bf16.msra.mxu0 %v129
    %149 = vmatprep.subr.bf16.mxu0 %v128
    %150 = vmatpush1.bf16.msra.mxu0 %v127
    %151 = vmatprep.subr.bf16.mxu0 %v126
    %152 = vmatpush1.bf16.msra.mxu0 %v125
    %153 = vmatprep.subr.bf16.mxu0 %v124
    %154 = vmatpush1.bf16.msra.mxu0 %v123
    %155 = vmatprep.subr.bf16.mxu0 %v122
    %156 = vmatpush1.bf16.msra.mxu0 %v121
    %157 = vmatprep.subr.bf16.mxu0 %v120
    %158 = vmatpush1.bf16.msra.mxu0 %v119
    %159 = vmatprep.subr.bf16.mxu0 %v118
    %160 = vmatpush1.bf16.msra.mxu0 %v117
    %161 = vmatprep.subr.bf16.mxu0 %v116
    %162 = vmatpush1.bf16.msra.mxu0 %v115
    %163 = vmatprep.subr.bf16.mxu0 0
    %164 = vmatpush2.bf16.msra.mxu0 0
    %165 = vmatprep.subr.bf16.mxu0 0
    %166 = vmatpush2.bf16.msra.mxu0 0
    %167 = vmatprep.subr.bf16.mxu0 0
    %168 = vmatpush2.bf16.msra.mxu0 0
    %169 = vmatprep.subr.bf16.mxu0 0
    %170 = vmatpush2.bf16.msra.mxu0 0
    %171 = vmatprep.subr.bf16.mxu0 0
    %172 = vmatpush2.bf16.msra.mxu0 0
    %173 = vmatprep.subr.bf16.mxu0 0
    %174 = vmatpush2.bf16.msra.mxu0 0
    %175 = vmatprep.subr.bf16.mxu0 0
    %176 = vmatpush2.bf16.msra.mxu0 0
    %177 = vmatprep.subr.bf16.mxu0 0
    %178 = vmatpush2.bf16.msra.mxu0 0
    %179 = vmatprep.mubr.bf16.mxu0 0
    %180 = vmatmul.mubr.bf16.gmra.mxu0 %v35
    %v181 = vpop.f32.mrf.mxu0
    %v182 = vadd.f32 %v60, %v181
    %v183 = vpop.f32.mrf.mxu0
    %v184 = vadd.f32 %v64, %v183
    %v185 = vpop.f32.mrf.mxu0
    %v186 = vadd.f32 %v60, %v185
    %v187 = vpop.f32.mrf.mxu0
    %v188 = vadd.f32 %v64, %v187
    %189 = vmatprep.mubr.bf16.mxu0 0
    %190 = vmatmul.mubr.bf16.gmra.mxu0 %v36
    %v191 = vpop.f32.mrf.mxu0
    %v192 = vadd.f32 %v60, %v191
    %v193 = vpop.f32.mrf.mxu0
    %v194 = vadd.f32 %v64, %v193
    %v195 = vpop.f32.mrf.mxu0
    %v196 = vadd.f32 %v60, %v195
    %v197 = vpop.f32.mrf.mxu0
    %v198 = vadd.f32 %v64, %v197
    %199 = vmatprep.mubr.bf16.mxu0 0
    %200 = vmatmul.mubr.bf16.gmra.mxu0 %v37
    %v201 = vpop.f32.mrf.mxu0
    %v202 = vadd.f32 %v60, %v201
    %v203 = vpop.f32.mrf.mxu0
    %v204 = vadd.f32 %v64, %v203
    %v205 = vpop.f32.mrf.mxu0
    %v206 = vadd.f32 %v60, %v205
    %v207 = vpop.f32.mrf.mxu0
    %v208 = vadd.f32 %v64, %v207
    %209 = vmatprep.mubr.bf16.mxu0 0
    %210 = vmatmul.mubr.bf16.gmra.mxu0 %v38
    %v211 = vpop.f32.mrf.mxu0
    %v212 = vadd.f32 %v60, %v211
    %v213 = vpop.f32.mrf.mxu0
    %v214 = vadd.f32 %v64, %v213
    %v215 = vpop.f32.mrf.mxu0
    %v216 = vadd.f32 %v60, %v215
    %v217 = vpop.f32.mrf.mxu0
    %v218 = vadd.f32 %v64, %v217
    %219 = vdwg.mxu0
    %v220 = vpack.c.bf16 %v186, %v182
    %v221 = vpack.c.bf16 %v188, %v184
    %v222 = vpack.c.bf16 %v196, %v192
    %v223 = vpack.c.bf16 %v198, %v194
    %v224 = vpack.c.bf16 %v206, %v202
    %v225 = vpack.c.bf16 %v208, %v204
    %v226 = vpack.c.bf16 %v216, %v212
    %v227 = vpack.c.bf16 %v218, %v214
    %v236 = vunpack.c.l.b16 %v220
    %v237 = vunpack.c.l.b16 %v221
    %v238 = vunpack.c.h.b16 %v220
    %v239 = vunpack.c.h.b16 %v221
    %v240 = vunpack.c.l.b16 %v222
    %v241 = vunpack.c.l.b16 %v223
    %v242 = vunpack.c.h.b16 %v222
    %v243 = vunpack.c.h.b16 %v223
    %v244 = vunpack.c.l.b16 %v224
    %v245 = vunpack.c.l.b16 %v225
    %v246 = vunpack.c.h.b16 %v224
    %v247 = vunpack.c.h.b16 %v225
    %v248 = vunpack.c.l.b16 %v226
    %v249 = vunpack.c.l.b16 %v227
    %v250 = vunpack.c.h.b16 %v226
    %v251 = vunpack.c.h.b16 %v227
    %v252 = vpack.c.b16 %v237, %v236
    %v253 = vpack.c.b16 %v239, %v238
    %v254 = vpack.c.b16 %v241, %v240
    %v255 = vpack.c.b16 %v243, %v242
    %v256 = vpack.c.b16 %v245, %v244
    %v257 = vpack.c.b16 %v247, %v246
    %v258 = vpack.c.b16 %v249, %v248
    %v259 = vpack.c.b16 %v251, %v250
    %268 = vst [vmem:[%s3] sm:$0xff] %v252
    %269 = vst [vmem:[%s3 + $0x8] sm:$0xff] %v253
    %270 = vst [vmem:[%s3 + $0x10] sm:$0xff] %v254
    %271 = vst [vmem:[%s3 + $0x18] sm:$0xff] %v255
    %272 = vst [vmem:[%s3 + $0x20] sm:$0xff] %v256
    %273 = vst [vmem:[%s3 + $0x28] sm:$0xff] %v257
    %274 = vst [vmem:[%s3 + $0x30] sm:$0xff] %v258
    %275 = vst [vmem:[%s3 + $0x38] sm:$0xff] %v259
    // Predicated region
    $region18: #{action_decoder_forward.3} parent=1 // pred_check
      _
    $region19: #{action_decoder_forward.3} parent=1 // pred_check_branch
      %277 = sbr.rel (0) target = $region21
    $region20: #{action_decoder_forward.3} parent=1 // pred_region
      _
    $region21: #{action_decoder_forward.3} parent=1 // pred_fallthru
      _
    // Predicated region
    $region22: #{action_decoder_forward.3} parent=1 // pred_check
      _
    $region23: #{action_decoder_forward.3} parent=1 // pred_check_branch
      %279 = sbr.rel (0) target = $region25
    $region24: #{action_decoder_forward.3} parent=1 // pred_region
      _
    $region25: #{action_decoder_forward.3} parent=1 // pred_fallthru
      _
    %280 = vsyncpa [#allocation3], 1

// kernel: action_decoder_forward.5
$region0: #{action_decoder_forward.5}
  #allocation0 [shape = 'u32[]', space=smem, size = 0x4, offset = 0x4, fixed_abs, tag = 'smem constant byte address 0x4 - core index']
  #allocation1 [shape = 'u32[144,128]{1,0:T(1,128)}', space=vmem, size = 0x12000, scoped, tag = 'internal scratch']
  %s0 = inlined_call_operand.vmem [shape: bf16[64,256], index: 0, kind: input, shape index: {}]
  %s1 = inlined_call_operand.vmem [shape: bf16[256,128], index: 1, kind: input, shape index: {}]
  %s2 = inlined_call_operand.vmem [shape: f32[1,128], index: 2, kind: input, shape index: {}]
  %s3 = inlined_call_operand.vmem [shape: f32[64,128], index: 3, kind: output, shape index: {}]
  %s4 = sld [smem:[#allocation0]]
  $region22: #{action_decoder_forward.5} parent=0
    _
  %s6 = ssub.s32 1, %s4
  %s7 = scalar_select 0, %s6, %s4
  // Predicated region
  $region2: #{action_decoder_forward.5} parent=0 // pred_check
    _
  $region3: #{action_decoder_forward.5} parent=0 // pred_check_branch
    %9 = sbr.rel (0) target = $region5
  $region4: #{action_decoder_forward.5} parent=0 // pred_region
    _
  $region5: #{action_decoder_forward.5} parent=0 // pred_fallthru
    _
  // Predicated region
  $region6: #{action_decoder_forward.5} parent=0 // pred_check
    _
  $region7: #{action_decoder_forward.5} parent=0 // pred_check_branch
    %11 = sbr.rel (0) target = $region9
  $region8: #{action_decoder_forward.5} parent=0 // pred_region
    _
  $region9: #{action_decoder_forward.5} parent=0 // pred_fallthru
    _
  // Predicated region
  $region10: #{action_decoder_forward.5} parent=0 // pred_check
    _
  $region11: #{action_decoder_forward.5} parent=0 // pred_check_branch
    %13 = sbr.rel (0) target = $region13
  $region12: #{action_decoder_forward.5} parent=0 // pred_region
    _
  $region13: #{action_decoder_forward.5} parent=0 // pred_fallthru
    _
  %v15 = vld [vmem:[%s0] sm:$0xff]
  %v16 = vld [vmem:[%s0 + $0x8] sm:$0xff]
  %v17 = vld [vmem:[%s0 + $0x10] sm:$0xff]
  %v18 = vld [vmem:[%s0 + $0x18] sm:$0xff]
  %v19 = vld [vmem:[%s0 + $0x20] sm:$0xff]
  %v20 = vld [vmem:[%s0 + $0x28] sm:$0xff]
  %v21 = vld [vmem:[%s0 + $0x30] sm:$0xff]
  %v22 = vld [vmem:[%s0 + $0x38] sm:$0xff]
  %v23 = vld [vmem:[%s1] sm:$0xf]
  %v24 = vld [vmem:[%s1 + $0x4] sm:$0xf]
  %v25 = vld [vmem:[%s1 + $0x8] sm:$0xf]
  %v26 = vld [vmem:[%s1 + $0xc] sm:$0xf]
  %v27 = vld [vmem:[%s1 + $0x10] sm:$0xf]
  %v28 = vld [vmem:[%s1 + $0x14] sm:$0xf]
  %v29 = vld [vmem:[%s1 + $0x18] sm:$0xf]
  %v30 = vld [vmem:[%s1 + $0x1c] sm:$0xf]
  %v31 = vld [vmem:[%s1 + $0x20] sm:$0xf]
  %v32 = vld [vmem:[%s1 + $0x24] sm:$0xf]
  %v33 = vld [vmem:[%s1 + $0x28] sm:$0xf]
  %v34 = vld [vmem:[%s1 + $0x2c] sm:$0xf]
  %v35 = vld [vmem:[%s1 + $0x30] sm:$0xf]
  %v36 = vld [vmem:[%s1 + $0x34] sm:$0xf]
  %v37 = vld [vmem:[%s1 + $0x38] sm:$0xf]
  %v38 = vld [vmem:[%s1 + $0x3c] sm:$0xf]
  %v39 = vld [vmem:[%s1 + $0x40] sm:$0xf]
  %v40 = vld [vmem:[%s1 + $0x44] sm:$0xf]
  %v41 = vld [vmem:[%s1 + $0x48] sm:$0xf]
  %v42 = vld [vmem:[%s1 + $0x4c] sm:$0xf]
  %v43 = vld [vmem:[%s1 + $0x50] sm:$0xf]
  %v44 = vld [vmem:[%s1 + $0x54] sm:$0xf]
  %v45 = vld [vmem:[%s1 + $0x58] sm:$0xf]
  %v46 = vld [vmem:[%s1 + $0x5c] sm:$0xf]
  %v47 = vld [vmem:[%s1 + $0x60] sm:$0xf]
  %v48 = vld [vmem:[%s1 + $0x64] sm:$0xf]
  %v49 = vld [vmem:[%s1 + $0x68] sm:$0xf]
  %v50 = vld [vmem:[%s1 + $0x6c] sm:$0xf]
  %v51 = vld [vmem:[%s1 + $0x70] sm:$0xf]
  %v52 = vld [vmem:[%s1 + $0x74] sm:$0xf]
  %v53 = vld [vmem:[%s1 + $0x78] sm:$0xf]
  %v54 = vld [vmem:[%s1 + $0x7c] sm:$0xf]
  %v55 = vld [vmem:[%s2] sm:$0x1]
  %v57 = vlaneseq
  %v58 = vshrl.u32 %v57, 7
  %v59 = vsub.s32 0, %v58
  %v60 = vrot.slane %v55, %v59
  %v70 = vunpack.c.l.b16 %v15
  %v71 = vunpack.c.h.b16 %v15
  %v72 = vunpack.c.l.b16 %v16
  %v73 = vunpack.c.h.b16 %v16
  %v74 = vunpack.c.l.b16 %v17
  %v75 = vunpack.c.h.b16 %v17
  %v76 = vunpack.c.l.b16 %v18
  %v77 = vunpack.c.h.b16 %v18
  %v78 = vunpack.c.l.b16 %v19
  %v79 = vunpack.c.h.b16 %v19
  %v80 = vunpack.c.l.b16 %v20
  %v81 = vunpack.c.h.b16 %v20
  %v82 = vunpack.c.l.b16 %v21
  %v83 = vunpack.c.h.b16 %v21
  %v84 = vunpack.c.l.b16 %v22
  %v85 = vunpack.c.h.b16 %v22
  %v86 = vpack.c.b16 %v72, %v70
  %v87 = vpack.c.b16 %v73, %v71
  %v88 = vpack.c.b16 %v76, %v74
  %v89 = vpack.c.b16 %v77, %v75
  %v90 = vpack.c.b16 %v80, %v78
  %v91 = vpack.c.b16 %v81, %v79
  %v92 = vpack.c.b16 %v84, %v82
  %v93 = vpack.c.b16 %v85, %v83
  %v134 = vunpack.c.l.b16 %v23
  %v135 = vunpack.c.l.b16 %v24
  %v136 = vunpack.c.l.b16 %v25
  %v137 = vunpack.c.l.b16 %v26
  %v138 = vunpack.c.l.b16 %v27
  %v139 = vunpack.c.l.b16 %v28
  %v140 = vunpack.c.l.b16 %v29
  %v141 = vunpack.c.l.b16 %v30
  %v142 = vunpack.c.l.b16 %v31
  %v143 = vunpack.c.l.b16 %v32
  %v144 = vunpack.c.l.b16 %v33
  %v145 = vunpack.c.l.b16 %v34
  %v146 = vunpack.c.l.b16 %v35
  %v147 = vunpack.c.l.b16 %v36
  %v148 = vunpack.c.l.b16 %v37
  %v149 = vunpack.c.l.b16 %v38
  %v150 = vunpack.c.l.b16 %v39
  %v151 = vunpack.c.l.b16 %v40
  %v152 = vunpack.c.l.b16 %v41
  %v153 = vunpack.c.l.b16 %v42
  %v154 = vunpack.c.l.b16 %v43
  %v155 = vunpack.c.l.b16 %v44
  %v156 = vunpack.c.l.b16 %v45
  %v157 = vunpack.c.l.b16 %v46
  %v158 = vunpack.c.l.b16 %v47
  %v159 = vunpack.c.l.b16 %v48
  %v160 = vunpack.c.l.b16 %v49
  %v161 = vunpack.c.l.b16 %v50
  %v162 = vunpack.c.l.b16 %v51
  %v163 = vunpack.c.l.b16 %v52
  %v164 = vunpack.c.l.b16 %v53
  %v165 = vunpack.c.l.b16 %v54
  %v166 = vpack.c.b16 %v135, %v134
  %v167 = vpack.c.b16 %v137, %v136
  %v168 = vpack.c.b16 %v139, %v138
  %v169 = vpack.c.b16 %v141, %v140
  %v170 = vpack.c.b16 %v143, %v142
  %v171 = vpack.c.b16 %v145, %v144
  %v172 = vpack.c.b16 %v147, %v146
  %v173 = vpack.c.b16 %v149, %v148
  %v174 = vpack.c.b16 %v151, %v150
  %v175 = vpack.c.b16 %v153, %v152
  %v176 = vpack.c.b16 %v155, %v154
  %v177 = vpack.c.b16 %v157, %v156
  %v178 = vpack.c.b16 %v159, %v158
  %v179 = vpack.c.b16 %v161, %v160
  %v180 = vpack.c.b16 %v163, %v162
  %v181 = vpack.c.b16 %v165, %v164
  %198 = vmatprep.subr.bf16.mxu0 0
  %199 = vmatpush1.bf16.msra.mxu0 %v173
  %200 = vmatprep.subr.bf16.mxu0 0
  %201 = vmatpush1.bf16.msra.mxu0 %v172
  %202 = vmatprep.subr.bf16.mxu0 0
  %203 = vmatpush1.bf16.msra.mxu0 %v171
  %204 = vmatprep.subr.bf16.mxu0 0
  %205 = vmatpush1.bf16.msra.mxu0 %v170
  %206 = vmatprep.subr.bf16.mxu0 0
  %207 = vmatpush1.bf16.msra.mxu0 %v169
  %208 = vmatprep.subr.bf16.mxu0 0
  %209 = vmatpush1.bf16.msra.mxu0 %v168
  %210 = vmatprep.subr.bf16.mxu0 0
  %211 = vmatpush1.bf16.msra.mxu0 %v167
  %212 = vmatprep.subr.bf16.mxu0 0
  %213 = vmatpush1.bf16.msra.mxu0 %v166
  %214 = vmatprep.subr.bf16.mxu0 0
  %215 = vmatpush2.bf16.msra.mxu0 %v181
  %216 = vmatprep.subr.bf16.mxu0 0
  %217 = vmatpush2.bf16.msra.mxu0 %v180
  %218 = vmatprep.subr.bf16.mxu0 0
  %219 = vmatpush2.bf16.msra.mxu0 %v179
  %220 = vmatprep.subr.bf16.mxu0 0
  %221 = vmatpush2.bf16.msra.mxu0 %v178
  %222 = vmatprep.subr.bf16.mxu0 0
  %223 = vmatpush2.bf16.msra.mxu0 %v177
  %224 = vmatprep.subr.bf16.mxu0 0
  %225 = vmatpush2.bf16.msra.mxu0 %v176
  %226 = vmatprep.subr.bf16.mxu0 0
  %227 = vmatpush2.bf16.msra.mxu0 %v175
  %228 = vmatprep.subr.bf16.mxu0 0
  %229 = vmatpush2.bf16.msra.mxu0 %v174
  %230 = vmatprep.mubr.bf16.mxu0 %v87
  %231 = vmatmul.mubr.bf16.gmra.mxu0 %v86
  %v232 = vpop.f32.mrf.mxu0
  %v233 = vadd.f32 %v60, %v232
  %v234 = vpop.f32.mrf.mxu0
  %v235 = vpop.f32.mrf.mxu0
  %v236 = vadd.f32 %v60, %v235
  %v237 = vpop.f32.mrf.mxu0
  %238 = vmatprep.mubr.bf16.mxu0 %v89
  %239 = vmatmul.mubr.bf16.gmra.mxu0 %v88
  %v240 = vpop.f32.mrf.mxu0
  %v241 = vadd.f32 %v60, %v240
  %v242 = vpop.f32.mrf.mxu0
  %v243 = vpop.f32.mrf.mxu0
  %v244 = vadd.f32 %v60, %v243
  %v245 = vpop.f32.mrf.mxu0
  %246 = vmatprep.mubr.bf16.mxu0 %v91
  %247 = vmatmul.mubr.bf16.gmra.mxu0 %v90
  %v248 = vpop.f32.mrf.mxu0
  %v249 = vadd.f32 %v60, %v248
  %v250 = vpop.f32.mrf.mxu0
  %v251 = vpop.f32.mrf.mxu0
  %v252 = vadd.f32 %v60, %v251
  %v253 = vpop.f32.mrf.mxu0
  %254 = vmatprep.mubr.bf16.mxu0 %v93
  %255 = vmatmul.mubr.bf16.gmra.mxu0 %v92
  %v256 = vpop.f32.mrf.mxu0
  %v257 = vadd.f32 %v60, %v256
  %v258 = vpop.f32.mrf.mxu0
  %v259 = vpop.f32.mrf.mxu0
  %v260 = vadd.f32 %v60, %v259
  %v261 = vpop.f32.mrf.mxu0
  %262 = vdwg.mxu0
  %v263 = vlaneseq
  %v264 = vand.u32 %v263, 127
  %vm265 = vcmp.lt.s32.totalorder %v264, 5
  %vm266 = vcmp.ge.s32.totalorder %v264, 5
  %vm267 = vcmp.lt.s32.totalorder %v264, 40
  %vm268 = vmand %vm266, %vm267
  %v269 = vsel %vm265, %v233, -1e+30
  %v270 = vsel %vm265, %v236, -1e+30
  %v271 = vsel %vm265, %v241, -1e+30
  %v272 = vsel %vm265, %v244, -1e+30
  %v273 = vsel %vm265, %v249, -1e+30
  %v274 = vsel %vm265, %v252, -1e+30
  %v275 = vsel %vm265, %v257, -1e+30
  %v276 = vsel %vm265, %v260, -1e+30
  %277 = vmax.xlane.f32.xlu0 %v269
  %v278 = vpop.xlane.xlu0 %277
  %279 = vmax.xlane.f32.xlu0 %v270
  %v280 = vpop.xlane.xlu0 %279
  %281 = vmax.xlane.f32.xlu0 %v271
  %v282 = vpop.xlane.xlu0 %281
  %283 = vmax.xlane.f32.xlu0 %v272
  %v284 = vpop.xlane.xlu0 %283
  %285 = vmax.xlane.f32.xlu0 %v273
  %v286 = vpop.xlane.xlu0 %285
  %287 = vmax.xlane.f32.xlu0 %v274
  %v288 = vpop.xlane.xlu0 %287
  %289 = vmax.xlane.f32.xlu0 %v275
  %v290 = vpop.xlane.xlu0 %289
  %291 = vmax.xlane.f32.xlu0 %v276
  %v292 = vpop.xlane.xlu0 %291
  %v293 = vsub.f32 %v269, %v278
  %v294 = vsub.f32 %v270, %v280
  %v295 = vsub.f32 %v271, %v282
  %v296 = vsub.f32 %v272, %v284
  %v297 = vsub.f32 %v273, %v286
  %v298 = vsub.f32 %v274, %v288
  %v299 = vsub.f32 %v275, %v290
  %v300 = vsub.f32 %v276, %v292
  %v301 = vmul.f32 %v293, 1.442695
  %v302 = vpow.pop %v301
  %v303 = vmul.f32 %v294, 1.442695
  %v304 = vpow.pop %v303
  %v305 = vmul.f32 %v295, 1.442695
  %v306 = vpow.pop %v305
  %v307 = vmul.f32 %v296, 1.442695
  %v308 = vpow.pop %v307
  %v309 = vmul.f32 %v297, 1.442695
  %v310 = vpow.pop %v309
  %v311 = vmul.f32 %v298, 1.442695
  %v312 = vpow.pop %v311
  %v313 = vmul.f32 %v299, 1.442695
  %v314 = vpow.pop %v313
  %v315 = vmul.f32 %v300, 1.442695
  %v316 = vpow.pop %v315
  %317 = vadd.xlane.f32.xlu0 %v302
  %v318 = vpop.xlane.xlu0 %317
  %319 = vadd.xlane.f32.xlu0 %v304
  %v320 = vpop.xlane.xlu0 %319
  %321 = vadd.xlane.f32.xlu0 %v306
  %v322 = vpop.xlane.xlu0 %321
  %323 = vadd.xlane.f32.xlu0 %v308
  %v324 = vpop.xlane.xlu0 %323
  %325 = vadd.xlane.f32.xlu0 %v310
  %v326 = vpop.xlane.xlu0 %325
  %327 = vadd.xlane.f32.xlu0 %v312
  %v328 = vpop.xlane.xlu0 %327
  %329 = vadd.xlane.f32.xlu0 %v314
  %v330 = vpop.xlane.xlu0 %329
  %331 = vadd.xlane.f32.xlu0 %v316
  %v332 = vpop.xlane.xlu0 %331
  %v333 = vrcp.pop %v318
  %v334 = vmul.f32 %v302, %v333
  %v335 = vrcp.pop %v320
  %v336 = vmul.f32 %v304, %v335
  %v337 = vrcp.pop %v322
  %v338 = vmul.f32 %v306, %v337
  %v339 = vrcp.pop %v324
  %v340 = vmul.f32 %v308, %v339
  %v341 = vrcp.pop %v326
  %v342 = vmul.f32 %v310, %v341
  %v343 = vrcp.pop %v328
  %v344 = vmul.f32 %v312, %v343
  %v345 = vrcp.pop %v330
  %v346 = vmul.f32 %v314, %v345
  %v347 = vrcp.pop %v332
  %v348 = vmul.f32 %v316, %v347
  %v349 = vsel %vm268, %v233, 0.0
  %v350 = vsel %vm268, %v236, 0.0
  %v351 = vsel %vm268, %v241, 0.0
  %v352 = vsel %vm268, %v244, 0.0
  %v353 = vsel %vm268, %v249, 0.0
  %v354 = vsel %vm268, %v252, 0.0
  %v355 = vsel %vm268, %v257, 0.0
  %v356 = vsel %vm268, %v260, 0.0
  %v357 = vmul.f32 %v349, 1.442695
  %v358 = vpow.pop %v357
  %v359 = vmul.f32 %v350, 1.442695
  %v360 = vpow.pop %v359
  %v361 = vmul.f32 %v351, 1.442695
  %v362 = vpow.pop %v361
  %v363 = vmul.f32 %v352, 1.442695
  %v364 = vpow.pop %v363
  %v365 = vmul.f32 %v353, 1.442695
  %v366 = vpow.pop %v365
  %v367 = vmul.f32 %v354, 1.442695
  %v368 = vpow.pop %v367
  %v369 = vmul.f32 %v355, 1.442695
  %v370 = vpow.pop %v369
  %v371 = vmul.f32 %v356, 1.442695
  %v372 = vpow.pop %v371
  %v373 = vsel %vm268, %v358, %v233
  %v374 = vsel %vm268, %v360, %v236
  %v375 = vsel %vm268, %v362, %v241
  %v376 = vsel %vm268, %v364, %v244
  %v377 = vsel %vm268, %v366, %v249
  %v378 = vsel %vm268, %v368, %v252
  %v379 = vsel %vm268, %v370, %v257
  %v380 = vsel %vm268, %v372, %v260
  %v381 = vsel %vm265, %v334, %v373
  %v382 = vsel %vm265, %v336, %v374
  %v383 = vsel %vm265, %v338, %v375
  %v384 = vsel %vm265, %v340, %v376
  %v385 = vsel %vm265, %v342, %v377
  %v386 = vsel %vm265, %v344, %v378
  %v387 = vsel %vm265, %v346, %v379
  %v388 = vsel %vm265, %v348, %v380
  %389 = vst [vmem:[%s3] sm:$0xff] %v381
  %390 = vst [vmem:[%s3 + $0x8] sm:$0xff] %v382
  %391 = vst [vmem:[%s3 + $0x10] sm:$0xff] %v383
  %392 = vst [vmem:[%s3 + $0x18] sm:$0xff] %v384
  %393 = vst [vmem:[%s3 + $0x20] sm:$0xff] %v385
  %394 = vst [vmem:[%s3 + $0x28] sm:$0xff] %v386
  %395 = vst [vmem:[%s3 + $0x30] sm:$0xff] %v387
  %396 = vst [vmem:[%s3 + $0x38] sm:$0xff] %v388
  // Predicated region
  $region14: #{action_decoder_forward.5} parent=0 // pred_check
    _
  $region15: #{action_decoder_forward.5} parent=0 // pred_check_branch
    %398 = sbr.rel (0) target = $region17
  $region16: #{action_decoder_forward.5} parent=0 // pred_region
    _
  $region17: #{action_decoder_forward.5} parent=0 // pred_fallthru
    _
  // Predicated region
  $region18: #{action_decoder_forward.5} parent=0 // pred_check
    _
  $region19: #{action_decoder_forward.5} parent=0 // pred_check_branch
    %400 = sbr.rel (0) target = $region21
  $region20: #{action_decoder_forward.5} parent=0 // pred_region
    _
  $region21: #{action_decoder_forward.5} parent=0 // pred_fallthru
    _

// kernel: action_decoder_forward.4
$region0: #{action_decoder_forward.4}
  #allocation0 [shape = 'u32[]', space=smem, size = 0x4, offset = 0x4, fixed_abs, tag = 'smem constant byte address 0x4 - core index']
  #allocation1 [shape = 'u32[144,128]{1,0:T(1,128)}', space=vmem, size = 0x12000, scoped, tag = 'internal scratch']
  #allocation2 [shape = 'f32[8,256]{1,0:T(8,128)}', space=vmem, size = 0x2000, scoped, tag = 'scratch operand']
  #allocation3 [shape = 'f32[8,256]{1,0:T(8,128)}', space=vmem, size = 0x2000, scoped, tag = 'scratch operand']
  #allocation4 [shape = 'bf16[256,256]{1,0:T(8,128)(2,1)}', space=vmem, size = 0x20000, scoped, tag = 'scratch operand']
  #allocation5 [shape = 'bf16[256,256]{1,0:T(8,128)(2,1)}', space=vmem, size = 0x20000, scoped, tag = 'scratch operand']
  #allocation6 [shape = 'bf16[256,256]{1,0:T(8,128)(2,1)}', space=vmem, size = 0x20000, scoped, tag = 'scratch operand']
  #allocation7 [shape = 's32[3]{0}', space=sflag, size = 0xc, scoped, tag = 'scratch operand']
  #allocation8 [shape = 's32[]', space=sflag, size = 0x4, offset = 0, fixed_abs, tag = 'sflag constant byte address 0x0 - dummy sync flag']
  #allocation9 [shape = 's32[]', space=sflag, size = 0x4, offset = 0, fixed_abs, tag = 'sflag constant byte address 0x0 - dummy sync flag']
  #allocation10 [shape = 's32[]', space=sflag, size = 0x4, offset = 0, fixed_abs, tag = 'sflag constant byte address 0x0 - dummy sync flag']
  #allocation11 [shape = 'u32[]', space=smem, size = 0x4, offset = 0x44, fixed_abs, tag = 'smem constant byte address 0x44 - assertion arg 0']
  #allocation12 [shape = 'u32[]', space=smem, size = 0x4, offset = 0x48, fixed_abs, tag = 'smem constant byte address 0x48 - assertion arg 1']
  #allocation13 [shape = 's32[]', space=sflag, size = 0x4, offset = 0, fixed_abs, tag = 'sflag constant byte address 0x0 - dummy sync flag']
  #allocation14 [shape = 's32[]', space=sflag, size = 0x4, offset = 0, fixed_abs, tag = 'sflag constant byte address 0x0 - dummy sync flag']
  %s0 = inlined_call_operand.vmem [shape: bf16[8,8,256], index: 0, kind: input, shape index: {}]
  %s1 = inlined_call_operand.vmem [shape: bf16[256,256], index: 1, kind: input, shape index: {}]
  %s2 = inlined_call_operand.hbm [shape: bf16[256,256], index: 2, kind: input, shape index: {}]
  %s3 = inlined_call_operand.hbm [shape: bf16[256,256], index: 3, kind: input, shape index: {}]
  %s4 = inlined_call_operand.vmem [shape: f32[1,256], index: 4, kind: input, shape index: {}]
  %s5 = inlined_call_operand.vmem [shape: bf16[8,8,256], index: 5, kind: output, shape index: {}]
  %s6 = sld [smem:[#allocation0]]
  $region64: #{action_decoder_forward.4} parent=0
    _
  %s8 = ssub.s32 1, %s6
  %s9 = scalar_select 0, %s8, %s6
  // Predicated region
  $region2: #{action_decoder_forward.4} parent=0 // pred_check
    _
  $region3: #{action_decoder_forward.4} parent=0 // pred_check_branch
    %11 = sbr.rel (0) target = $region5
  $region4: #{action_decoder_forward.4} parent=0 // pred_region
    _
  $region5: #{action_decoder_forward.4} parent=0 // pred_fallthru
    _
  // Predicated region
  $region6: #{action_decoder_forward.4} parent=0 // pred_check
    _
  $region7: #{action_decoder_forward.4} parent=0 // pred_check_branch
    %13 = sbr.rel (0) target = $region9
  $region8: #{action_decoder_forward.4} parent=0 // pred_region
    _
  $region9: #{action_decoder_forward.4} parent=0 // pred_fallthru
    _
  %p14 = scmp.eq.s32.totalorder 0, 0
  // Predicated region
  $region10: #{action_decoder_forward.4} parent=0 // pred_check
    %p15 = pneg %p14
  $region11: #{action_decoder_forward.4} parent=0 // pred_check_branch
    %17 = sbr.rel (%p15) target = $region13
  $region12: #{action_decoder_forward.4} parent=0 // pred_region
    %p19 = scmp.lt.u32.totalorder 256, 8
    %p20 = pneg %p19
    // Predicated region
    $region14: #{action_decoder_forward.4} parent=12 // pred_check
      _
    $region15: #{action_decoder_forward.4} parent=12 // pred_check_branch
      %22 = sbr.rel (%p19) target = $region17
    $region16: #{action_decoder_forward.4} parent=12 // pred_region
      %s38 = sand.u32 256, 7
      %p39 = scmp.eq.s32.totalorder %s38, 0
      // Predicated region
      $region29: #{action_decoder_forward.4} parent=16 // pred_check
        %p40 = pneg %p39
      $region30: #{action_decoder_forward.4} parent=16 // pred_check_branch
        %42 = sbr.rel (%p40) target = $region32
      $region31: #{action_decoder_forward.4} parent=16 // pred_region
        loop: start=0, step=1, limit=1
        $region33: #{action_decoder_forward.4} parent=31 // loop_pre_header
          _
        $region34: #{action_decoder_forward.4} parent=31 // loop_header
          %s44 = sphi 0, %s48
          %p45 = scmp.ge.s32.totalorder %s44, 1
          %s49 = sphi %s1, %s1
          %s50 = sphi [#allocation4], [#allocation4]
        $region35: #{action_decoder_forward.4} parent=31 // loop_header_branch
          %47 = sbr.rel (%p45) target = $region39
        $region36: #{action_decoder_forward.4} parent=31 // loop_body
          %v51 = vld [vmem:[%s49] sm:$0xff]
          %52 = vst [vmem:[%s50] sm:$0xff] %v51
          %v53 = vld [vmem:[%s49 + $0x8] sm:$0xff]
          %54 = vst [vmem:[%s50 + $0x8] sm:$0xff] %v53
          %v55 = vld [vmem:[%s49 + $0x10] sm:$0xff]
          %56 = vst [vmem:[%s50 + $0x10] sm:$0xff] %v55
          %v57 = vld [vmem:[%s49 + $0x18] sm:$0xff]
          %58 = vst [vmem:[%s50 + $0x18] sm:$0xff] %v57
          %v59 = vld [vmem:[%s49 + $0x20] sm:$0xff]
          %60 = vst [vmem:[%s50 + $0x20] sm:$0xff] %v59
          %v61 = vld [vmem:[%s49 + $0x28] sm:$0xff]
          %62 = vst [vmem:[%s50 + $0x28] sm:$0xff] %v61
          %v63 = vld [vmem:[%s49 + $0x30] sm:$0xff]
          %64 = vst [vmem:[%s50 + $0x30] sm:$0xff] %v63
          %v65 = vld [vmem:[%s49 + $0x38] sm:$0xff]
          %66 = vst [vmem:[%s50 + $0x38] sm:$0xff] %v65
          %v67 = vld [vmem:[%s49 + $0x40] sm:$0xff]
          %68 = vst [vmem:[%s50 + $0x40] sm:$0xff] %v67
          %v69 = vld [vmem:[%s49 + $0x48] sm:$0xff]
          %70 = vst [vmem:[%s50 + $0x48] sm:$0xff] %v69
          %v71 = vld [vmem:[%s49 + $0x50] sm:$0xff]
          %72 = vst [vmem:[%s50 + $0x50] sm:$0xff] %v71
          %v73 = vld [vmem:[%s49 + $0x58] sm:$0xff]
          %74 = vst [vmem:[%s50 + $0x58] sm:$0xff] %v73
          %v75 = vld [vmem:[%s49 + $0x60] sm:$0xff]
          %76 = vst [vmem:[%s50 + $0x60] sm:$0xff] %v75
          %v77 = vld [vmem:[%s49 + $0x68] sm:$0xff]
          %78 = vst [vmem:[%s50 + $0x68] sm:$0xff] %v77
          %v79 = vld [vmem:[%s49 + $0x70] sm:$0xff]
          %80 = vst [vmem:[%s50 + $0x70] sm:$0xff] %v79
          %v81 = vld [vmem:[%s49 + $0x78] sm:$0xff]
          %82 = vst [vmem:[%s50 + $0x78] sm:$0xff] %v81
          %v83 = vld [vmem:[%s49 + $0x80] sm:$0xff]
          %84 = vst [vmem:[%s50 + $0x80] sm:$0xff] %v83
          %v85 = vld [vmem:[%s49 + $0x88] sm:$0xff]
          %86 = vst [vmem:[%s50 + $0x88] sm:$0xff] %v85
          %v87 = vld [vmem:[%s49 + $0x90] sm:$0xff]
          %88 = vst [vmem:[%s50 + $0x90] sm:$0xff] %v87
          %v89 = vld [vmem:[%s49 + $0x98] sm:$0xff]
          %90 = vst [vmem:[%s50 + $0x98] sm:$0xff] %v89
          %v91 = vld [vmem:[%s49 + $0xa0] sm:$0xff]
          %92 = vst [vmem:[%s50 + $0xa0] sm:$0xff] %v91
          %v93 = vld [vmem:[%s49 + $0xa8] sm:$0xff]
          %94 = vst [vmem:[%s50 + $0xa8] sm:$0xff] %v93
          %v95 = vld [vmem:[%s49 + $0xb0] sm:$0xff]
          %96 = vst [vmem:[%s50 + $0xb0] sm:$0xff] %v95
          %v97 = vld [vmem:[%s49 + $0xb8] sm:$0xff]
          %98 = vst [vmem:[%s50 + $0xb8] sm:$0xff] %v97
          %v99 = vld [vmem:[%s49 + $0xc0] sm:$0xff]
          %100 = vst [vmem:[%s50 + $0xc0] sm:$0xff] %v99
          %v101 = vld [vmem:[%s49 + $0xc8] sm:$0xff]
          %102 = vst [vmem:[%s50 + $0xc8] sm:$0xff] %v101
          %v103 = vld [vmem:[%s49 + $0xd0] sm:$0xff]
          %104 = vst [vmem:[%s50 + $0xd0] sm:$0xff] %v103
          %v105 = vld [vmem:[%s49 + $0xd8] sm:$0xff]
          %106 = vst [vmem:[%s50 + $0xd8] sm:$0xff] %v105
          %v107 = vld [vmem:[%s49 + $0xe0] sm:$0xff]
          %108 = vst [vmem:[%s50 + $0xe0] sm:$0xff] %v107
          %v109 = vld [vmem:[%s49 + $0xe8] sm:$0xff]
          %110 = vst [vmem:[%s50 + $0xe8] sm:$0xff] %v109
          %v111 = vld [vmem:[%s49 + $0xf0] sm:$0xff]
          %112 = vst [vmem:[%s50 + $0xf0] sm:$0xff] %v111
          %v113 = vld [vmem:[%s49 + $0xf8] sm:$0xff]
          %114 = vst [vmem:[%s50 + $0xf8] sm:$0xff] %v113
        $region37: #{action_decoder_forward.4} parent=31 // loop_footer
          %s48 = sadd.s32 1, %s44
        $region38: #{action_decoder_forward.4} parent=31 // loop_footer_branch
          %43 = sbr.rel target = $region34
        $region39: #{action_decoder_forward.4} parent=31 // loop_exit
          _
      $region32: #{action_decoder_forward.4} parent=16 // pred_fallthru
        _
      %p115 = pneg %p39
      // Predicated region
      $region40: #{action_decoder_forward.4} parent=16 // pred_check
        _
      $region41: #{action_decoder_forward.4} parent=16 // pred_check_branch
        %117 = sbr.rel (%p39) target = $region43
      $region42: #{action_decoder_forward.4} parent=16 // pred_region
        %s118 = sand.u32 256, 7
      $region43: #{action_decoder_forward.4} parent=16 // pred_fallthru
        _
    $region17: #{action_decoder_forward.4} parent=12 // pred_fallthru
      _
    // Predicated region
    $region18: #{action_decoder_forward.4} parent=12 // pred_check
      %p23 = pneg %p19
    $region19: #{action_decoder_forward.4} parent=12 // pred_check_branch
      %25 = sbr.rel (%p23) target = $region21
    $region20: #{action_decoder_forward.4} parent=12 // pred_region
      %s26 = sshll.u32 1, 256
      %s27 = ssub.s32 %s26, 1
      loop: start=0, step=1, limit=1
      $region22: #{action_decoder_forward.4} parent=20 // loop_pre_header
        _
      $region23: #{action_decoder_forward.4} parent=20 // loop_header
        %s29 = sphi 0, %s33
        %p30 = scmp.ge.s32.totalorder %s29, 1
        %s34 = sphi %s1, %s1
        %s35 = sphi [#allocation4], [#allocation4]
      $region24: #{action_decoder_forward.4} parent=20 // loop_header_branch
        %32 = sbr.rel (%p30) target = $region28
      $region25: #{action_decoder_forward.4} parent=20 // loop_body
        %v36 = vld [vmem:[%s34] sm:%s27]
        %37 = vst [vmem:[%s35] sm:%s27] %v36
      $region26: #{action_decoder_forward.4} parent=20 // loop_footer
        %s33 = sadd.s32 1, %s29
      $region27: #{action_decoder_forward.4} parent=20 // loop_footer_branch
        %28 = sbr.rel target = $region23
      $region28: #{action_decoder_forward.4} parent=20 // loop_exit
        _
    $region21: #{action_decoder_forward.4} parent=12 // pred_fallthru
      _
    // Predicated region
    $region44: #{action_decoder_forward.4} parent=12 // pred_check
      _
    $region45: #{action_decoder_forward.4} parent=12 // pred_check_branch
      %121 = sbr.rel (0) target = $region47
    $region46: #{action_decoder_forward.4} parent=12 // pred_region
      %122 = vsyncadd [#allocation7], 4096
    $region47: #{action_decoder_forward.4} parent=12 // pred_fallthru
      _
    %s123 = scalar_lea.sflag [#allocation7], 1
    // Predicated region
    $region48: #{action_decoder_forward.4} parent=12 // pred_check
      _
    $region49: #{action_decoder_forward.4} parent=12 // pred_check_branch
      %125 = sbr.rel target = $region51
    $region50: #{action_decoder_forward.4} parent=12 // pred_region
      %126 = sst [smem:[#allocation11]] [#allocation10]
      %127 = sst [smem:[#allocation12]] [#allocation9]
    $region51: #{action_decoder_forward.4} parent=12 // pred_fallthru
      _
    %129 = shalt.err (0)
    %s131 = sshll.u32 [#allocation5], 4
    %s132 = int_to_ptr.vmem [resolvable:$true] %s131
    %134 = dma.hbm_to_vmem [thread:$0]  %s2, 4096, %s132, %s123
    %s135 = scalar_lea.sflag [#allocation7], 2
    // Predicated region
    $region52: #{action_decoder_forward.4} parent=12 // pred_check
      _
    $region53: #{action_decoder_forward.4} parent=12 // pred_check_branch
      %137 = sbr.rel target = $region55
    $region54: #{action_decoder_forward.4} parent=12 // pred_region
      %138 = sst [smem:[#allocation11]] [#allocation14]
      %139 = sst [smem:[#allocation12]] [#allocation13]
    $region55: #{action_decoder_forward.4} parent=12 // pred_fallthru
      _
    %141 = shalt.err (0)
    %s143 = sshll.u32 [#allocation6], 4
    %s144 = int_to_ptr.vmem [resolvable:$true] %s143
    %146 = dma.hbm_to_vmem [thread:$0]  %s3, 4096, %s144, %s135
    %147 = vst [vmem:[#allocation2] sm:$0xff] 0.0
    %148 = vst [vmem:[#allocation2 + $0x8] sm:$0xff] 0.0
    %149 = vst [vmem:[#allocation3] sm:$0xff] 0.0
    %150 = vst [vmem:[#allocation3 + $0x8] sm:$0xff] 0.0
    %s151 = smul.u32 4, 32
    %s152 = smul.u32 %s151, 2
    %s153 = sshll.u32 %s152, 4
    %154 = dma.done [#allocation7], %s153
    %s155 = sshll.u32 %s152, 4
    %156 = dma.done %s123, %s155
    %s157 = sshll.u32 %s152, 4
    %158 = dma.done %s135, %s157
  $region13: #{action_decoder_forward.4} parent=0 // pred_fallthru
    _
  %v159 = vld [vmem:[%s4] sm:$0x3]
  %v160 = vld [vmem:[#allocation2] sm:$0xff]
  %v161 = vld [vmem:[#allocation2 + $0x8] sm:$0xff]
  %v162 = vld [vmem:[#allocation3] sm:$0xff]
  %v163 = vld [vmem:[#allocation3 + $0x8] sm:$0xff]
  %v164 = vld [vmem:[%s0] sm:$0xff]
  %v165 = vunpack.c.l.bf16 %v164
  %v166 = vunpack.c.h.bf16 %v164
  %v167 = vpack.c.bf16 %v160, %v160
  %v168 = vpack.c.bf16 %v161, %v161
  %v169 = vld [vmem:[#allocation4] sm:$0xff]
  %v170 = vld [vmem:[#allocation4 + $0x8] sm:$0xff]
  %v171 = vld [vmem:[#allocation4 + $0x10] sm:$0xff]
  %v172 = vld [vmem:[#allocation4 + $0x18] sm:$0xff]
  %v173 = vld [vmem:[#allocation4 + $0x20] sm:$0xff]
  %v174 = vld [vmem:[#allocation4 + $0x28] sm:$0xff]
  %v175 = vld [vmem:[#allocation4 + $0x30] sm:$0xff]
  %v176 = vld [vmem:[#allocation4 + $0x38] sm:$0xff]
  %v177 = vld [vmem:[#allocation4 + $0x40] sm:$0xff]
  %v178 = vld [vmem:[#allocation4 + $0x48] sm:$0xff]
  %v179 = vld [vmem:[#allocation4 + $0x50] sm:$0xff]
  %v180 = vld [vmem:[#allocation4 + $0x58] sm:$0xff]
  %v181 = vld [vmem:[#allocation4 + $0x60] sm:$0xff]
  %v182 = vld [vmem:[#allocation4 + $0x68] sm:$0xff]
  %v183 = vld [vmem:[#allocation4 + $0x70] sm:$0xff]
  %v184 = vld [vmem:[#allocation4 + $0x78] sm:$0xff]
  %v185 = vld [vmem:[#allocation4 + $0x80] sm:$0xff]
  %v186 = vld [vmem:[#allocation4 + $0x88] sm:$0xff]
  %v187 = vld [vmem:[#allocation4 + $0x90] sm:$0xff]
  %v188 = vld [vmem:[#allocation4 + $0x98] sm:$0xff]
  %v189 = vld [vmem:[#allocation4 + $0xa0] sm:$0xff]
  %v190 = vld [vmem:[#allocation4 + $0xa8] sm:$0xff]
  %v191 = vld [vmem:[#allocation4 + $0xb0] sm:$0xff]
  %v192 = vld [vmem:[#allocation4 + $0xb8] sm:$0xff]
  %v193 = vld [vmem:[#allocation4 + $0xc0] sm:$0xff]
  %v194 = vld [vmem:[#allocation4 + $0xc8] sm:$0xff]
  %v195 = vld [vmem:[#allocation4 + $0xd0] sm:$0xff]
  %v196 = vld [vmem:[#allocation4 + $0xd8] sm:$0xff]
  %v197 = vld [vmem:[#allocation4 + $0xe0] sm:$0xff]
  %v198 = vld [vmem:[#allocation4 + $0xe8] sm:$0xff]
  %v199 = vld [vmem:[#allocation4 + $0xf0] sm:$0xff]
  %v200 = vld [vmem:[#allocation4 + $0xf8] sm:$0xff]
  %v233 = vunpack.c.l.b16 %v169
  %v234 = vunpack.c.h.b16 %v169
  %v235 = vunpack.c.l.b16 %v170
  %v236 = vunpack.c.h.b16 %v170
  %v237 = vunpack.c.l.b16 %v171
  %v238 = vunpack.c.h.b16 %v171
  %v239 = vunpack.c.l.b16 %v172
  %v240 = vunpack.c.h.b16 %v172
  %v241 = vunpack.c.l.b16 %v173
  %v242 = vunpack.c.h.b16 %v173
  %v243 = vunpack.c.l.b16 %v174
  %v244 = vunpack.c.h.b16 %v174
  %v245 = vunpack.c.l.b16 %v175
  %v246 = vunpack.c.h.b16 %v175
  %v247 = vunpack.c.l.b16 %v176
  %v248 = vunpack.c.h.b16 %v176
  %v249 = vunpack.c.l.b16 %v177
  %v250 = vunpack.c.h.b16 %v177
  %v251 = vunpack.c.l.b16 %v178
  %v252 = vunpack.c.h.b16 %v178
  %v253 = vunpack.c.l.b16 %v179
  %v254 = vunpack.c.h.b16 %v179
  %v255 = vunpack.c.l.b16 %v180
  %v256 = vunpack.c.h.b16 %v180
  %v257 = vunpack.c.l.b16 %v181
  %v258 = vunpack.c.h.b16 %v181
  %v259 = vunpack.c.l.b16 %v182
  %v260 = vunpack.c.h.b16 %v182
  %v261 = vunpack.c.l.b16 %v183
  %v262 = vunpack.c.h.b16 %v183
  %v263 = vunpack.c.l.b16 %v184
  %v264 = vunpack.c.h.b16 %v184
  %v265 = vunpack.c.l.b16 %v185
  %v266 = vunpack.c.h.b16 %v185
  %v267 = vunpack.c.l.b16 %v186
  %v268 = vunpack.c.h.b16 %v186
  %v269 = vunpack.c.l.b16 %v187
  %v270 = vunpack.c.h.b16 %v187
  %v271 = vunpack.c.l.b16 %v188
  %v272 = vunpack.c.h.b16 %v188
  %v273 = vunpack.c.l.b16 %v189
  %v274 = vunpack.c.h.b16 %v189
  %v275 = vunpack.c.l.b16 %v190
  %v276 = vunpack.c.h.b16 %v190
  %v277 = vunpack.c.l.b16 %v191
  %v278 = vunpack.c.h.b16 %v191
  %v279 = vunpack.c.l.b16 %v192
  %v280 = vunpack.c.h.b16 %v192
  %v281 = vunpack.c.l.b16 %v193
  %v282 = vunpack.c.h.b16 %v193
  %v283 = vunpack.c.l.b16 %v194
  %v284 = vunpack.c.h.b16 %v194
  %v285 = vunpack.c.l.b16 %v195
  %v286 = vunpack.c.h.b16 %v195
  %v287 = vunpack.c.l.b16 %v196
  %v288 = vunpack.c.h.b16 %v196
  %v289 = vunpack.c.l.b16 %v197
  %v290 = vunpack.c.h.b16 %v197
  %v291 = vunpack.c.l.b16 %v198
  %v292 = vunpack.c.h.b16 %v198
  %v293 = vunpack.c.l.b16 %v199
  %v294 = vunpack.c.h.b16 %v199
  %v295 = vunpack.c.l.b16 %v200
  %v296 = vunpack.c.h.b16 %v200
  %v297 = vpack.c.b16 %v235, %v233
  %v298 = vpack.c.b16 %v236, %v234
  %v299 = vpack.c.b16 %v239, %v237
  %v300 = vpack.c.b16 %v240, %v238
  %v301 = vpack.c.b16 %v243, %v241
  %v302 = vpack.c.b16 %v244, %v242
  %v303 = vpack.c.b16 %v247, %v245
  %v304 = vpack.c.b16 %v248, %v246
  %v305 = vpack.c.b16 %v251, %v249
  %v306 = vpack.c.b16 %v252, %v250
  %v307 = vpack.c.b16 %v255, %v253
  %v308 = vpack.c.b16 %v256, %v254
  %v309 = vpack.c.b16 %v259, %v257
  %v310 = vpack.c.b16 %v260, %v258
  %v311 = vpack.c.b16 %v263, %v261
  %v312 = vpack.c.b16 %v264, %v262
  %v313 = vpack.c.b16 %v267, %v265
  %v314 = vpack.c.b16 %v268, %v266
  %v315 = vpack.c.b16 %v271, %v269
  %v316 = vpack.c.b16 %v272, %v270
  %v317 = vpack.c.b16 %v275, %v273
  %v318 = vpack.c.b16 %v276, %v274
  %v319 = vpack.c.b16 %v279, %v277
  %v320 = vpack.c.b16 %v280, %v278
  %v321 = vpack.c.b16 %v283, %v281
  %v322 = vpack.c.b16 %v284, %v282
  %v323 = vpack.c.b16 %v287, %v285
  %v324 = vpack.c.b16 %v288, %v286
  %v325 = vpack.c.b16 %v291, %v289
  %v326 = vpack.c.b16 %v292, %v290
  %v327 = vpack.c.b16 %v295, %v293
  %v328 = vpack.c.b16 %v296, %v294
  %361 = vmatprep.subr.bf16.mxu0 %v312
  %362 = vmatpush1.bf16.msra.mxu0 %v311
  %363 = vmatprep.subr.bf16.mxu0 %v310
  %364 = vmatpush1.bf16.msra.mxu0 %v309
  %365 = vmatprep.subr.bf16.mxu0 %v308
  %366 = vmatpush1.bf16.msra.mxu0 %v307
  %367 = vmatprep.subr.bf16.mxu0 %v306
  %368 = vmatpush1.bf16.msra.mxu0 %v305
  %369 = vmatprep.subr.bf16.mxu0 %v304
  %370 = vmatpush1.bf16.msra.mxu0 %v303
  %371 = vmatprep.subr.bf16.mxu0 %v302
  %372 = vmatpush1.bf16.msra.mxu0 %v301
  %373 = vmatprep.subr.bf16.mxu0 %v300
  %374 = vmatpush1.bf16.msra.mxu0 %v299
  %375 = vmatprep.subr.bf16.mxu0 %v298
  %376 = vmatpush1.bf16.msra.mxu0 %v297
  %377 = vmatprep.subr.bf16.mxu0 %v328
  %378 = vmatpush2.bf16.msra.mxu0 %v327
  %379 = vmatprep.subr.bf16.mxu0 %v326
  %380 = vmatpush2.bf16.msra.mxu0 %v325
  %381 = vmatprep.subr.bf16.mxu0 %v324
  %382 = vmatpush2.bf16.msra.mxu0 %v323
  %383 = vmatprep.subr.bf16.mxu0 %v322
  %384 = vmatpush2.bf16.msra.mxu0 %v321
  %385 = vmatprep.subr.bf16.mxu0 %v320
  %386 = vmatpush2.bf16.msra.mxu0 %v319
  %387 = vmatprep.subr.bf16.mxu0 %v318
  %388 = vmatpush2.bf16.msra.mxu0 %v317
  %389 = vmatprep.subr.bf16.mxu0 %v316
  %390 = vmatpush2.bf16.msra.mxu0 %v315
  %391 = vmatprep.subr.bf16.mxu0 %v314
  %392 = vmatpush2.bf16.msra.mxu0 %v313
  %393 = vmatprep.mubr.bf16.mxu0 %v168
  %394 = vmatmul.mubr.bf16.gmra.mxu0 %v167
  %v395 = vpop.f32.mrf.mxu0
  %v396 = vadd.f32 0.0, %v395
  %v397 = vpop.f32.mrf.mxu0
  %v398 = vadd.f32 0.0, %v397
  %v399 = vpop.f32.mrf.mxu0
  %v400 = vpop.f32.mrf.mxu0
  %401 = vdwg.mxu0
  %v402 = vadd.f32 %v165, %v396
  %v403 = vadd.f32 %v166, %v398
  %v404 = vmax.f32 %v402, 0.0
  %v405 = vmax.f32 %v403, 0.0
  %v406 = vpack.c.bf16 %v404, %v404
  %v407 = vpack.c.bf16 %v405, %v405
  %v408 = vld [vmem:[#allocation5] sm:$0xff]
  %v409 = vld [vmem:[#allocation5 + $0x8] sm:$0xff]
  %v410 = vld [vmem:[#allocation5 + $0x10] sm:$0xff]
  %v411 = vld [vmem:[#allocation5 + $0x18] sm:$0xff]
  %v412 = vld [vmem:[#allocation5 + $0x20] sm:$0xff]
  %v413 = vld [vmem:[#allocation5 + $0x28] sm:$0xff]
  %v414 = vld [vmem:[#allocation5 + $0x30] sm:$0xff]
  %v415 = vld [vmem:[#allocation5 + $0x38] sm:$0xff]
  %v416 = vld [vmem:[#allocation5 + $0x40] sm:$0xff]
  %v417 = vld [vmem:[#allocation5 + $0x48] sm:$0xff]
  %v418 = vld [vmem:[#allocation5 + $0x50] sm:$0xff]
  %v419 = vld [vmem:[#allocation5 + $0x58] sm:$0xff]
  %v420 = vld [vmem:[#allocation5 + $0x60] sm:$0xff]
  %v421 = vld [vmem:[#allocation5 + $0x68] sm:$0xff]
  %v422 = vld [vmem:[#allocation5 + $0x70] sm:$0xff]
  %v423 = vld [vmem:[#allocation5 + $0x78] sm:$0xff]
  %v424 = vld [vmem:[#allocation5 + $0x80] sm:$0xff]
  %v425 = vld [vmem:[#allocation5 + $0x88] sm:$0xff]
  %v426 = vld [vmem:[#allocation5 + $0x90] sm:$0xff]
  %v427 = vld [vmem:[#allocation5 + $0x98] sm:$0xff]
  %v428 = vld [vmem:[#allocation5 + $0xa0] sm:$0xff]
  %v429 = vld [vmem:[#allocation5 + $0xa8] sm:$0xff]
  %v430 = vld [vmem:[#allocation5 + $0xb0] sm:$0xff]
  %v431 = vld [vmem:[#allocation5 + $0xb8] sm:$0xff]
  %v432 = vld [vmem:[#allocation5 + $0xc0] sm:$0xff]
  %v433 = vld [vmem:[#allocation5 + $0xc8] sm:$0xff]
  %v434 = vld [vmem:[#allocation5 + $0xd0] sm:$0xff]
  %v435 = vld [vmem:[#allocation5 + $0xd8] sm:$0xff]
  %v436 = vld [vmem:[#allocation5 + $0xe0] sm:$0xff]
  %v437 = vld [vmem:[#allocation5 + $0xe8] sm:$0xff]
  %v438 = vld [vmem:[#allocation5 + $0xf0] sm:$0xff]
  %v439 = vld [vmem:[#allocation5 + $0xf8] sm:$0xff]
  %v440 = vpack.c.bf16 %v162, %v162
  %v441 = vpack.c.bf16 %v163, %v163
  %v442 = vld [vmem:[#allocation6] sm:$0xff]
  %v443 = vld [vmem:[#allocation6 + $0x8] sm:$0xff]
  %v444 = vld [vmem:[#allocation6 + $0x10] sm:$0xff]
  %v445 = vld [vmem:[#allocation6 + $0x18] sm:$0xff]
  %v446 = vld [vmem:[#allocation6 + $0x20] sm:$0xff]
  %v447 = vld [vmem:[#allocation6 + $0x28] sm:$0xff]
  %v448 = vld [vmem:[#allocation6 + $0x30] sm:$0xff]
  %v449 = vld [vmem:[#allocation6 + $0x38] sm:$0xff]
  %v450 = vld [vmem:[#allocation6 + $0x40] sm:$0xff]
  %v451 = vld [vmem:[#allocation6 + $0x48] sm:$0xff]
  %v452 = vld [vmem:[#allocation6 + $0x50] sm:$0xff]
  %v453 = vld [vmem:[#allocation6 + $0x58] sm:$0xff]
  %v454 = vld [vmem:[#allocation6 + $0x60] sm:$0xff]
  %v455 = vld [vmem:[#allocation6 + $0x68] sm:$0xff]
  %v456 = vld [vmem:[#allocation6 + $0x70] sm:$0xff]
  %v457 = vld [vmem:[#allocation6 + $0x78] sm:$0xff]
  %v458 = vld [vmem:[#allocation6 + $0x80] sm:$0xff]
  %v459 = vld [vmem:[#allocation6 + $0x88] sm:$0xff]
  %v460 = vld [vmem:[#allocation6 + $0x90] sm:$0xff]
  %v461 = vld [vmem:[#allocation6 + $0x98] sm:$0xff]
  %v462 = vld [vmem:[#allocation6 + $0xa0] sm:$0xff]
  %v463 = vld [vmem:[#allocation6 + $0xa8] sm:$0xff]
  %v464 = vld [vmem:[#allocation6 + $0xb0] sm:$0xff]
  %v465 = vld [vmem:[#allocation6 + $0xb8] sm:$0xff]
  %v466 = vld [vmem:[#allocation6 + $0xc0] sm:$0xff]
  %v467 = vld [vmem:[#allocation6 + $0xc8] sm:$0xff]
  %v468 = vld [vmem:[#allocation6 + $0xd0] sm:$0xff]
  %v469 = vld [vmem:[#allocation6 + $0xd8] sm:$0xff]
  %v470 = vld [vmem:[#allocation6 + $0xe0] sm:$0xff]
  %v471 = vld [vmem:[#allocation6 + $0xe8] sm:$0xff]
  %v472 = vld [vmem:[#allocation6 + $0xf0] sm:$0xff]
  %v473 = vld [vmem:[#allocation6 + $0xf8] sm:$0xff]
  %v506 = vunpack.c.l.b16 %v442
  %v507 = vunpack.c.h.b16 %v442
  %v508 = vunpack.c.l.b16 %v443
  %v509 = vunpack.c.h.b16 %v443
  %v510 = vunpack.c.l.b16 %v444
  %v511 = vunpack.c.h.b16 %v444
  %v512 = vunpack.c.l.b16 %v445
  %v513 = vunpack.c.h.b16 %v445
  %v514 = vunpack.c.l.b16 %v446
  %v515 = vunpack.c.h.b16 %v446
  %v516 = vunpack.c.l.b16 %v447
  %v517 = vunpack.c.h.b16 %v447
  %v518 = vunpack.c.l.b16 %v448
  %v519 = vunpack.c.h.b16 %v448
  %v520 = vunpack.c.l.b16 %v449
  %v521 = vunpack.c.h.b16 %v449
  %v522 = vunpack.c.l.b16 %v450
  %v523 = vunpack.c.h.b16 %v450
  %v524 = vunpack.c.l.b16 %v451
  %v525 = vunpack.c.h.b16 %v451
  %v526 = vunpack.c.l.b16 %v452
  %v527 = vunpack.c.h.b16 %v452
  %v528 = vunpack.c.l.b16 %v453
  %v529 = vunpack.c.h.b16 %v453
  %v530 = vunpack.c.l.b16 %v454
  %v531 = vunpack.c.h.b16 %v454
  %v532 = vunpack.c.l.b16 %v455
  %v533 = vunpack.c.h.b16 %v455
  %v534 = vunpack.c.l.b16 %v456
  %v535 = vunpack.c.h.b16 %v456
  %v536 = vunpack.c.l.b16 %v457
  %v537 = vunpack.c.h.b16 %v457
  %v538 = vunpack.c.l.b16 %v458
  %v539 = vunpack.c.h.b16 %v458
  %v540 = vunpack.c.l.b16 %v459
  %v541 = vunpack.c.h.b16 %v459
  %v542 = vunpack.c.l.b16 %v460
  %v543 = vunpack.c.h.b16 %v460
  %v544 = vunpack.c.l.b16 %v461
  %v545 = vunpack.c.h.b16 %v461
  %v546 = vunpack.c.l.b16 %v462
  %v547 = vunpack.c.h.b16 %v462
  %v548 = vunpack.c.l.b16 %v463
  %v549 = vunpack.c.h.b16 %v463
  %v550 = vunpack.c.l.b16 %v464
  %v551 = vunpack.c.h.b16 %v464
  %v552 = vunpack.c.l.b16 %v465
  %v553 = vunpack.c.h.b16 %v465
  %v554 = vunpack.c.l.b16 %v466
  %v555 = vunpack.c.h.b16 %v466
  %v556 = vunpack.c.l.b16 %v467
  %v557 = vunpack.c.h.b16 %v467
  %v558 = vunpack.c.l.b16 %v468
  %v559 = vunpack.c.h.b16 %v468
  %v560 = vunpack.c.l.b16 %v469
  %v561 = vunpack.c.h.b16 %v469
  %v562 = vunpack.c.l.b16 %v470
  %v563 = vunpack.c.h.b16 %v470
  %v564 = vunpack.c.l.b16 %v471
  %v565 = vunpack.c.h.b16 %v471
  %v566 = vunpack.c.l.b16 %v472
  %v567 = vunpack.c.h.b16 %v472
  %v568 = vunpack.c.l.b16 %v473
  %v569 = vunpack.c.h.b16 %v473
  %v570 = vpack.c.b16 %v508, %v506
  %v571 = vpack.c.b16 %v509, %v507
  %v572 = vpack.c.b16 %v512, %v510
  %v573 = vpack.c.b16 %v513, %v511
  %v574 = vpack.c.b16 %v516, %v514
  %v575 = vpack.c.b16 %v517, %v515
  %v576 = vpack.c.b16 %v520, %v518
  %v577 = vpack.c.b16 %v521, %v519
  %v578 = vpack.c.b16 %v524, %v522
  %v579 = vpack.c.b16 %v525, %v523
  %v580 = vpack.c.b16 %v528, %v526
  %v581 = vpack.c.b16 %v529, %v527
  %v582 = vpack.c.b16 %v532, %v530
  %v583 = vpack.c.b16 %v533, %v531
  %v584 = vpack.c.b16 %v536, %v534
  %v585 = vpack.c.b16 %v537, %v535
  %v586 = vpack.c.b16 %v540, %v538
  %v587 = vpack.c.b16 %v541, %v539
  %v588 = vpack.c.b16 %v544, %v542
  %v589 = vpack.c.b16 %v545, %v543
  %v590 = vpack.c.b16 %v548, %v546
  %v591 = vpack.c.b16 %v549, %v547
  %v592 = vpack.c.b16 %v552, %v550
  %v593 = vpack.c.b16 %v553, %v551
  %v594 = vpack.c.b16 %v556, %v554
  %v595 = vpack.c.b16 %v557, %v555
  %v596 = vpack.c.b16 %v560, %v558
  %v597 = vpack.c.b16 %v561, %v559
  %v598 = vpack.c.b16 %v564, %v562
  %v599 = vpack.c.b16 %v565, %v563
  %v600 = vpack.c.b16 %v568, %v566
  %v601 = vpack.c.b16 %v569, %v567
  %634 = vmatprep.subr.bf16.mxu0 %v585
  %635 = vmatpush1.bf16.msra.mxu0 %v584
  %636 = vmatprep.subr.bf16.mxu0 %v583
  %637 = vmatpush1.bf16.msra.mxu0 %v582
  %638 = vmatprep.subr.bf16.mxu0 %v581
  %639 = vmatpush1.bf16.msra.mxu0 %v580
  %640 = vmatprep.subr.bf16.mxu0 %v579
  %641 = vmatpush1.bf16.msra.mxu0 %v578
  %642 = vmatprep.subr.bf16.mxu0 %v577
  %643 = vmatpush1.bf16.msra.mxu0 %v576
  %644 = vmatprep.subr.bf16.mxu0 %v575
  %645 = vmatpush1.bf16.msra.mxu0 %v574
  %646 = vmatprep.subr.bf16.mxu0 %v573
  %647 = vmatpush1.bf16.msra.mxu0 %v572
  %648 = vmatprep.subr.bf16.mxu0 %v571
  %649 = vmatpush1.bf16.msra.mxu0 %v570
  %650 = vmatprep.subr.bf16.mxu0 %v601
  %651 = vmatpush2.bf16.msra.mxu0 %v600
  %652 = vmatprep.subr.bf16.mxu0 %v599
  %653 = vmatpush2.bf16.msra.mxu0 %v598
  %654 = vmatprep.subr.bf16.mxu0 %v597
  %655 = vmatpush2.bf16.msra.mxu0 %v596
  %656 = vmatprep.subr.bf16.mxu0 %v595
  %657 = vmatpush2.bf16.msra.mxu0 %v594
  %658 = vmatprep.subr.bf16.mxu0 %v593
  %659 = vmatpush2.bf16.msra.mxu0 %v592
  %660 = vmatprep.subr.bf16.mxu0 %v591
  %661 = vmatpush2.bf16.msra.mxu0 %v590
  %662 = vmatprep.subr.bf16.mxu0 %v589
  %663 = vmatpush2.bf16.msra.mxu0 %v588
  %664 = vmatprep.subr.bf16.mxu0 %v587
  %665 = vmatpush2.bf16.msra.mxu0 %v586
  %666 = vmatprep.mubr.bf16.mxu0 %v441
  %667 = vmatmul.mubr.bf16.gmra.mxu0 %v440
  %v668 = vpop.f32.mrf.mxu0
  %v669 = vadd.f32 0.0, %v668
  %v670 = vpop.f32.mrf.mxu0
  %v671 = vadd.f32 0.0, %v670
  %v672 = vpop.f32.mrf.mxu0
  %v673 = vpop.f32.mrf.mxu0
  %674 = vdwg.mxu0
  %v707 = vunpack.c.l.b16 %v408
  %v708 = vunpack.c.h.b16 %v408
  %v709 = vunpack.c.l.b16 %v409
  %v710 = vunpack.c.h.b16 %v409
  %v711 = vunpack.c.l.b16 %v410
  %v712 = vunpack.c.h.b16 %v410
  %v713 = vunpack.c.l.b16 %v411
  %v714 = vunpack.c.h.b16 %v411
  %v715 = vunpack.c.l.b16 %v412
  %v716 = vunpack.c.h.b16 %v412
  %v717 = vunpack.c.l.b16 %v413
  %v718 = vunpack.c.h.b16 %v413
  %v719 = vunpack.c.l.b16 %v414
  %v720 = vunpack.c.h.b16 %v414
  %v721 = vunpack.c.l.b16 %v415
  %v722 = vunpack.c.h.b16 %v415
  %v723 = vunpack.c.l.b16 %v416
  %v724 = vunpack.c.h.b16 %v416
  %v725 = vunpack.c.l.b16 %v417
  %v726 = vunpack.c.h.b16 %v417
  %v727 = vunpack.c.l.b16 %v418
  %v728 = vunpack.c.h.b16 %v418
  %v729 = vunpack.c.l.b16 %v419
  %v730 = vunpack.c.h.b16 %v419
  %v731 = vunpack.c.l.b16 %v420
  %v732 = vunpack.c.h.b16 %v420
  %v733 = vunpack.c.l.b16 %v421
  %v734 = vunpack.c.h.b16 %v421
  %v735 = vunpack.c.l.b16 %v422
  %v736 = vunpack.c.h.b16 %v422
  %v737 = vunpack.c.l.b16 %v423
  %v738 = vunpack.c.h.b16 %v423
  %v739 = vunpack.c.l.b16 %v424
  %v740 = vunpack.c.h.b16 %v424
  %v741 = vunpack.c.l.b16 %v425
  %v742 = vunpack.c.h.b16 %v425
  %v743 = vunpack.c.l.b16 %v426
  %v744 = vunpack.c.h.b16 %v426
  %v745 = vunpack.c.l.b16 %v427
  %v746 = vunpack.c.h.b16 %v427
  %v747 = vunpack.c.l.b16 %v428
  %v748 = vunpack.c.h.b16 %v428
  %v749 = vunpack.c.l.b16 %v429
  %v750 = vunpack.c.h.b16 %v429
  %v751 = vunpack.c.l.b16 %v430
  %v752 = vunpack.c.h.b16 %v430
  %v753 = vunpack.c.l.b16 %v431
  %v754 = vunpack.c.h.b16 %v431
  %v755 = vunpack.c.l.b16 %v432
  %v756 = vunpack.c.h.b16 %v432
  %v757 = vunpack.c.l.b16 %v433
  %v758 = vunpack.c.h.b16 %v433
  %v759 = vunpack.c.l.b16 %v434
  %v760 = vunpack.c.h.b16 %v434
  %v761 = vunpack.c.l.b16 %v435
  %v762 = vunpack.c.h.b16 %v435
  %v763 = vunpack.c.l.b16 %v436
  %v764 = vunpack.c.h.b16 %v436
  %v765 = vunpack.c.l.b16 %v437
  %v766 = vunpack.c.h.b16 %v437
  %v767 = vunpack.c.l.b16 %v438
  %v768 = vunpack.c.h.b16 %v438
  %v769 = vunpack.c.l.b16 %v439
  %v770 = vunpack.c.h.b16 %v439
  %v771 = vpack.c.b16 %v709, %v707
  %v772 = vpack.c.b16 %v710, %v708
  %v773 = vpack.c.b16 %v713, %v711
  %v774 = vpack.c.b16 %v714, %v712
  %v775 = vpack.c.b16 %v717, %v715
  %v776 = vpack.c.b16 %v718, %v716
  %v777 = vpack.c.b16 %v721, %v719
  %v778 = vpack.c.b16 %v722, %v720
  %v779 = vpack.c.b16 %v725, %v723
  %v780 = vpack.c.b16 %v726, %v724
  %v781 = vpack.c.b16 %v729, %v727
  %v782 = vpack.c.b16 %v730, %v728
  %v783 = vpack.c.b16 %v733, %v731
  %v784 = vpack.c.b16 %v734, %v732
  %v785 = vpack.c.b16 %v737, %v735
  %v786 = vpack.c.b16 %v738, %v736
  %v787 = vpack.c.b16 %v741, %v739
  %v788 = vpack.c.b16 %v742, %v740
  %v789 = vpack.c.b16 %v745, %v743
  %v790 = vpack.c.b16 %v746, %v744
  %v791 = vpack.c.b16 %v749, %v747
  %v792 = vpack.c.b16 %v750, %v748
  %v793 = vpack.c.b16 %v753, %v751
  %v794 = vpack.c.b16 %v754, %v752
  %v795 = vpack.c.b16 %v757, %v755
  %v796 = vpack.c.b16 %v758, %v756
  %v797 = vpack.c.b16 %v761, %v759
  %v798 = vpack.c.b16 %v762, %v760
  %v799 = vpack.c.b16 %v765, %v763
  %v800 = vpack.c.b16 %v766, %v764
  %v801 = vpack.c.b16 %v769, %v767
  %v802 = vpack.c.b16 %v770, %v768
  %835 = vmatprep.subr.bf16.mxu0 %v786
  %836 = vmatpush1.bf16.msra.mxu0 %v785
  %837 = vmatprep.subr.bf16.mxu0 %v784
  %838 = vmatpush1.bf16.msra.mxu0 %v783
  %839 = vmatprep.subr.bf16.mxu0 %v782
  %840 = vmatpush1.bf16.msra.mxu0 %v781
  %841 = vmatprep.subr.bf16.mxu0 %v780
  %842 = vmatpush1.bf16.msra.mxu0 %v779
  %843 = vmatprep.subr.bf16.mxu0 %v778
  %844 = vmatpush1.bf16.msra.mxu0 %v777
  %845 = vmatprep.subr.bf16.mxu0 %v776
  %846 = vmatpush1.bf16.msra.mxu0 %v775
  %847 = vmatprep.subr.bf16.mxu0 %v774
  %848 = vmatpush1.bf16.msra.mxu0 %v773
  %849 = vmatprep.subr.bf16.mxu0 %v772
  %850 = vmatpush1.bf16.msra.mxu0 %v771
  %851 = vmatprep.subr.bf16.mxu0 %v802
  %852 = vmatpush2.bf16.msra.mxu0 %v801
  %853 = vmatprep.subr.bf16.mxu0 %v800
  %854 = vmatpush2.bf16.msra.mxu0 %v799
  %855 = vmatprep.subr.bf16.mxu0 %v798
  %856 = vmatpush2.bf16.msra.mxu0 %v797
  %857 = vmatprep.subr.bf16.mxu0 %v796
  %858 = vmatpush2.bf16.msra.mxu0 %v795
  %859 = vmatprep.subr.bf16.mxu0 %v794
  %860 = vmatpush2.bf16.msra.mxu0 %v793
  %861 = vmatprep.subr.bf16.mxu0 %v792
  %862 = vmatpush2.bf16.msra.mxu0 %v791
  %863 = vmatprep.subr.bf16.mxu0 %v790
  %864 = vmatpush2.bf16.msra.mxu0 %v789
  %865 = vmatprep.subr.bf16.mxu0 %v788
  %866 = vmatpush2.bf16.msra.mxu0 %v787
  %867 = vmatprep.mubr.bf16.mxu0 %v407
  %868 = vmatmul.mubr.bf16.gmra.mxu0 %v406
  %v869 = vpop.f32.mrf.mxu0
  %v870 = vadd.f32 %v669, %v869
  %v871 = vpop.f32.mrf.mxu0
  %v872 = vadd.f32 %v671, %v871
  %v873 = vpop.f32.mrf.mxu0
  %v874 = vpop.f32.mrf.mxu0
  %875 = vdwg.mxu0
  %v877 = vlaneseq
  %v878 = vshrl.u32 %v877, 7
  %v879 = vsub.s32 0, %v878
  %v880 = vrot.slane %v159, %v879
  %v881 = vlaneseq
  %v882 = vshrl.u32 %v881, 7
  %v883 = vsub.s32 1, %v882
  %v884 = vrot.slane %v159, %v883
  %v887 = vadd.f32 %v870, %v880
  %v888 = vadd.f32 %v872, %v884
  %v889 = vmax.f32 %v887, 0.0
  %v890 = vmax.f32 %v888, 0.0
  %v891 = vpack.c.bf16 %v889, %v889
  %v892 = vpack.c.bf16 %v890, %v890
  %v895 = vunpack.c.l.b16 %v891
  %v896 = vunpack.c.l.b16 %v892
  %v897 = vpack.c.b16 %v896, %v895
  %899 = vst [vmem:[%s5] sm:$0xff] %v897
  %s900 = scalar_lea.vmem %s0, 8
  %v901 = vld [vmem:[%s900] sm:$0xff]
  %v902 = vunpack.c.l.bf16 %v901
  %v903 = vunpack.c.h.bf16 %v901
  %v904 = vld [vmem:[#allocation4] sm:$0xff]
  %v905 = vld [vmem:[#allocation4 + $0x8] sm:$0xff]
  %v906 = vld [vmem:[#allocation4 + $0x10] sm:$0xff]
  %v907 = vld [vmem:[#allocation4 + $0x18] sm:$0xff]
  %v908 = vld [vmem:[#allocation4 + $0x20] sm:$0xff]
  %v909 = vld [vmem:[#allocation4 + $0x28] sm:$0xff]
  %v910 = vld [vmem:[#allocation4 + $0x30] sm:$0xff]
  %v911 = vld [vmem:[#allocation4 + $0x38] sm:$0xff]
  %v912 = vld [vmem:[#allocation4 + $0x40] sm:$0xff]
  %v913 = vld [vmem:[#allocation4 + $0x48] sm:$0xff]
  %v914 = vld [vmem:[#allocation4 + $0x50] sm:$0xff]
  %v915 = vld [vmem:[#allocation4 + $0x58] sm:$0xff]
  %v916 = vld [vmem:[#allocation4 + $0x60] sm:$0xff]
  %v917 = vld [vmem:[#allocation4 + $0x68] sm:$0xff]
  %v918 = vld [vmem:[#allocation4 + $0x70] sm:$0xff]
  %v919 = vld [vmem:[#allocation4 + $0x78] sm:$0xff]
  %v920 = vld [vmem:[#allocation4 + $0x80] sm:$0xff]
  %v921 = vld [vmem:[#allocation4 + $0x88] sm:$0xff]
  %v922 = vld [vmem:[#allocation4 + $0x90] sm:$0xff]
  %v923 = vld [vmem:[#allocation4 + $0x98] sm:$0xff]
  %v924 = vld [vmem:[#allocation4 + $0xa0] sm:$0xff]
  %v925 = vld [vmem:[#allocation4 + $0xa8] sm:$0xff]
  %v926 = vld [vmem:[#allocation4 + $0xb0] sm:$0xff]
  %v927 = vld [vmem:[#allocation4 + $0xb8] sm:$0xff]
  %v928 = vld [vmem:[#allocation4 + $0xc0] sm:$0xff]
  %v929 = vld [vmem:[#allocation4 + $0xc8] sm:$0xff]
  %v930 = vld [vmem:[#allocation4 + $0xd0] sm:$0xff]
  %v931 = vld [vmem:[#allocation4 + $0xd8] sm:$0xff]
  %v932 = vld [vmem:[#allocation4 + $0xe0] sm:$0xff]
  %v933 = vld [vmem:[#allocation4 + $0xe8] sm:$0xff]
  %v934 = vld [vmem:[#allocation4 + $0xf0] sm:$0xff]
  %v935 = vld [vmem:[#allocation4 + $0xf8] sm:$0xff]
  %v968 = vunpack.c.l.b16 %v904
  %v969 = vunpack.c.h.b16 %v904
  %v970 = vunpack.c.l.b16 %v905
  %v971 = vunpack.c.h.b16 %v905
  %v972 = vunpack.c.l.b16 %v906
  %v973 = vunpack.c.h.b16 %v906
  %v974 = vunpack.c.l.b16 %v907
  %v975 = vunpack.c.h.b16 %v907
  %v976 = vunpack.c.l.b16 %v908
  %v977 = vunpack.c.h.b16 %v908
  %v978 = vunpack.c.l.b16 %v909
  %v979 = vunpack.c.h.b16 %v909
  %v980 = vunpack.c.l.b16 %v910
  %v981 = vunpack.c.h.b16 %v910
  %v982 = vunpack.c.l.b16 %v911
  %v983 = vunpack.c.h.b16 %v911
  %v984 = vunpack.c.l.b16 %v912
  %v985 = vunpack.c.h.b16 %v912
  %v986 = vunpack.c.l.b16 %v913
  %v987 = vunpack.c.h.b16 %v913
  %v988 = vunpack.c.l.b16 %v914
  %v989 = vunpack.c.h.b16 %v914
  %v990 = vunpack.c.l.b16 %v915
  %v991 = vunpack.c.h.b16 %v915
  %v992 = vunpack.c.l.b16 %v916
  %v993 = vunpack.c.h.b16 %v916
  %v994 = vunpack.c.l.b16 %v917
  %v995 = vunpack.c.h.b16 %v917
  %v996 = vunpack.c.l.b16 %v918
  %v997 = vunpack.c.h.b16 %v918
  %v998 = vunpack.c.l.b16 %v919
  %v999 = vunpack.c.h.b16 %v919
  %v1000 = vunpack.c.l.b16 %v920
  %v1001 = vunpack.c.h.b16 %v920
  %v1002 = vunpack.c.l.b16 %v921
  %v1003 = vunpack.c.h.b16 %v921
  %v1004 = vunpack.c.l.b16 %v922
  %v1005 = vunpack.c.h.b16 %v922
  %v1006 = vunpack.c.l.b16 %v923
  %v1007 = vunpack.c.h.b16 %v923
  %v1008 = vunpack.c.l.b16 %v924
  %v1009 = vunpack.c.h.b16 %v924
  %v1010 = vunpack.c.l.b16 %v925
  %v1011 = vunpack.c.h.b16 %v925
  %v1012 = vunpack.c.l.b16 %v926
  %v1013 = vunpack.c.h.b16 %v926
  %v1014 = vunpack.c.l.b16 %v927
  %v1015 = vunpack.c.h.b16 %v927
  %v1016 = vunpack.c.l.b16 %v928
  %v1017 = vunpack.c.h.b16 %v928
  %v1018 = vunpack.c.l.b16 %v929
  %v1019 = vunpack.c.h.b16 %v929
  %v1020 = vunpack.c.l.b16 %v930
  %v1021 = vunpack.c.h.b16 %v930
  %v1022 = vunpack.c.l.b16 %v931
  %v1023 = vunpack.c.h.b16 %v931
  %v1024 = vunpack.c.l.b16 %v932
  %v1025 = vunpack.c.h.b16 %v932
  %v1026 = vunpack.c.l.b16 %v933
  %v1027 = vunpack.c.h.b16 %v933
  %v1028 = vunpack.c.l.b16 %v934
  %v1029 = vunpack.c.h.b16 %v934
  %v1030 = vunpack.c.l.b16 %v935
  %v1031 = vunpack.c.h.b16 %v935
  %v1032 = vpack.c.b16 %v970, %v968
  %v1033 = vpack.c.b16 %v971, %v969
  %v1034 = vpack.c.b16 %v974, %v972
  %v1035 = vpack.c.b16 %v975, %v973
  %v1036 = vpack.c.b16 %v978, %v976
  %v1037 = vpack.c.b16 %v979, %v977
  %v1038 = vpack.c.b16 %v982, %v980
  %v1039 = vpack.c.b16 %v983, %v981
  %v1040 = vpack.c.b16 %v986, %v984
  %v1041 = vpack.c.b16 %v987, %v985
  %v1042 = vpack.c.b16 %v990, %v988
  %v1043 = vpack.c.b16 %v991, %v989
  %v1044 = vpack.c.b16 %v994, %v992
  %v1045 = vpack.c.b16 %v995, %v993
  %v1046 = vpack.c.b16 %v998, %v996
  %v1047 = vpack.c.b16 %v999, %v997
  %v1048 = vpack.c.b16 %v1002, %v1000
  %v1049 = vpack.c.b16 %v1003, %v1001
  %v1050 = vpack.c.b16 %v1006, %v1004
  %v1051 = vpack.c.b16 %v1007, %v1005
  %v1052 = vpack.c.b16 %v1010, %v1008
  %v1053 = vpack.c.b16 %v1011, %v1009
  %v1054 = vpack.c.b16 %v1014, %v1012
  %v1055 = vpack.c.b16 %v1015, %v1013
  %v1056 = vpack.c.b16 %v1018, %v1016
  %v1057 = vpack.c.b16 %v1019, %v1017
  %v1058 = vpack.c.b16 %v1022, %v1020
  %v1059 = vpack.c.b16 %v1023, %v1021
  %v1060 = vpack.c.b16 %v1026, %v1024
  %v1061 = vpack.c.b16 %v1027, %v1025
  %v1062 = vpack.c.b16 %v1030, %v1028
  %v1063 = vpack.c.b16 %v1031, %v1029
  %1096 = vmatprep.subr.bf16.mxu0 %v1047
  %1097 = vmatpush1.bf16.msra.mxu0 %v1046
  %1098 = vmatprep.subr.bf16.mxu0 %v1045
  %1099 = vmatpush1.bf16.msra.mxu0 %v1044
  %1100 = vmatprep.subr.bf16.mxu0 %v1043
  %1101 = vmatpush1.bf16.msra.mxu0 %v1042
  %1102 = vmatprep.subr.bf16.mxu0 %v1041
  %1103 = vmatpush1.bf16.msra.mxu0 %v1040
  %1104 = vmatprep.subr.bf16.mxu0 %v1039
  %1105 = vmatpush1.bf16.msra.mxu0 %v1038
  %1106 = vmatprep.subr.bf16.mxu0 %v1037
  %1107 = vmatpush1.bf16.msra.mxu0 %v1036
  %1108 = vmatprep.subr.bf16.mxu0 %v1035
  %1109 = vmatpush1.bf16.msra.mxu0 %v1034
  %1110 = vmatprep.subr.bf16.mxu0 %v1033
  %1111 = vmatpush1.bf16.msra.mxu0 %v1032
  %1112 = vmatprep.subr.bf16.mxu0 %v1063
  %1113 = vmatpush2.bf16.msra.mxu0 %v1062
  %1114 = vmatprep.subr.bf16.mxu0 %v1061
  %1115 = vmatpush2.bf16.msra.mxu0 %v1060
  %1116 = vmatprep.subr.bf16.mxu0 %v1059
  %1117 = vmatpush2.bf16.msra.mxu0 %v1058
  %1118 = vmatprep.subr.bf16.mxu0 %v1057
  %1119 = vmatpush2.bf16.msra.mxu0 %v1056
  %1120 = vmatprep.subr.bf16.mxu0 %v1055
  %1121 = vmatpush2.bf16.msra.mxu0 %v1054
  %1122 = vmatprep.subr.bf16.mxu0 %v1053
  %1123 = vmatpush2.bf16.msra.mxu0 %v1052
  %1124 = vmatprep.subr.bf16.mxu0 %v1051
  %1125 = vmatpush2.bf16.msra.mxu0 %v1050
  %1126 = vmatprep.subr.bf16.mxu0 %v1049
  %1127 = vmatpush2.bf16.msra.mxu0 %v1048
  %1128 = vmatprep.mubr.bf16.mxu0 %v407
  %1129 = vmatmul.mubr.bf16.gmra.mxu0 %v406
  %v1130 = vpop.f32.mrf.mxu0
  %v1131 = vadd.f32 0.0, %v1130
  %v1132 = vpop.f32.mrf.mxu0
  %v1133 = vadd.f32 0.0, %v1132
  %v1134 = vpop.f32.mrf.mxu0
  %v1135 = vpop.f32.mrf.mxu0
  %1136 = vdwg.mxu0
  %v1137 = vadd.f32 %v902, %v1131
  %v1138 = vadd.f32 %v903, %v1133
  %v1139 = vmax.f32 %v1137, 0.0
  %v1140 = vmax.f32 %v1138, 0.0
  %v1141 = vpack.c.bf16 %v1139, %v1139
  %v1142 = vpack.c.bf16 %v1140, %v1140
  %v1143 = vld [vmem:[#allocation5] sm:$0xff]
  %v1144 = vld [vmem:[#allocation5 + $0x8] sm:$0xff]
  %v1145 = vld [vmem:[#allocation5 + $0x10] sm:$0xff]
  %v1146 = vld [vmem:[#allocation5 + $0x18] sm:$0xff]
  %v1147 = vld [vmem:[#allocation5 + $0x20] sm:$0xff]
  %v1148 = vld [vmem:[#allocation5 + $0x28] sm:$0xff]
  %v1149 = vld [vmem:[#allocation5 + $0x30] sm:$0xff]
  %v1150 = vld [vmem:[#allocation5 + $0x38] sm:$0xff]
  %v1151 = vld [vmem:[#allocation5 + $0x40] sm:$0xff]
  %v1152 = vld [vmem:[#allocation5 + $0x48] sm:$0xff]
  %v1153 = vld [vmem:[#allocation5 + $0x50] sm:$0xff]
  %v1154 = vld [vmem:[#allocation5 + $0x58] sm:$0xff]
  %v1155 = vld [vmem:[#allocation5 + $0x60] sm:$0xff]
  %v1156 = vld [vmem:[#allocation5 + $0x68] sm:$0xff]
  %v1157 = vld [vmem:[#allocation5 + $0x70] sm:$0xff]
  %v1158 = vld [vmem:[#allocation5 + $0x78] sm:$0xff]
  %v1159 = vld [vmem:[#allocation5 + $0x80] sm:$0xff]
  %v1160 = vld [vmem:[#allocation5 + $0x88] sm:$0xff]
  %v1161 = vld [vmem:[#allocation5 + $0x90] sm:$0xff]
  %v1162 = vld [vmem:[#allocation5 + $0x98] sm:$0xff]
  %v1163 = vld [vmem:[#allocation5 + $0xa0] sm:$0xff]
  %v1164 = vld [vmem:[#allocation5 + $0xa8] sm:$0xff]
  %v1165 = vld [vmem:[#allocation5 + $0xb0] sm:$0xff]
  %v1166 = vld [vmem:[#allocation5 + $0xb8] sm:$0xff]
  %v1167 = vld [vmem:[#allocation5 + $0xc0] sm:$0xff]
  %v1168 = vld [vmem:[#allocation5 + $0xc8] sm:$0xff]
  %v1169 = vld [vmem:[#allocation5 + $0xd0] sm:$0xff]
  %v1170 = vld [vmem:[#allocation5 + $0xd8] sm:$0xff]
  %v1171 = vld [vmem:[#allocation5 + $0xe0] sm:$0xff]
  %v1172 = vld [vmem:[#allocation5 + $0xe8] sm:$0xff]
  %v1173 = vld [vmem:[#allocation5 + $0xf0] sm:$0xff]
  %v1174 = vld [vmem:[#allocation5 + $0xf8] sm:$0xff]
  %v1175 = vld [vmem:[#allocation6] sm:$0xff]
  %v1176 = vld [vmem:[#allocation6 + $0x8] sm:$0xff]
  %v1177 = vld [vmem:[#allocation6 + $0x10] sm:$0xff]
  %v1178 = vld [vmem:[#allocation6 + $0x18] sm:$0xff]
  %v1179 = vld [vmem:[#allocation6 + $0x20] sm:$0xff]
  %v1180 = vld [vmem:[#allocation6 + $0x28] sm:$0xff]
  %v1181 = vld [vmem:[#allocation6 + $0x30] sm:$0xff]
  %v1182 = vld [vmem:[#allocation6 + $0x38] sm:$0xff]
  %v1183 = vld [vmem:[#allocation6 + $0x40] sm:$0xff]
  %v1184 = vld [vmem:[#allocation6 + $0x48] sm:$0xff]
  %v1185 = vld [vmem:[#allocation6 + $0x50] sm:$0xff]
  %v1186 = vld [vmem:[#allocation6 + $0x58] sm:$0xff]
  %v1187 = vld [vmem:[#allocation6 + $0x60] sm:$0xff]
  %v1188 = vld [vmem:[#allocation6 + $0x68] sm:$0xff]
  %v1189 = vld [vmem:[#allocation6 + $0x70] sm:$0xff]
  %v1190 = vld [vmem:[#allocation6 + $0x78] sm:$0xff]
  %v1191 = vld [vmem:[#allocation6 + $0x80] sm:$0xff]
  %v1192 = vld [vmem:[#allocation6 + $0x88] sm:$0xff]
  %v1193 = vld [vmem:[#allocation6 + $0x90] sm:$0xff]
  %v1194 = vld [vmem:[#allocation6 + $0x98] sm:$0xff]
  %v1195 = vld [vmem:[#allocation6 + $0xa0] sm:$0xff]
  %v1196 = vld [vmem:[#allocation6 + $0xa8] sm:$0xff]
  %v1197 = vld [vmem:[#allocation6 + $0xb0] sm:$0xff]
  %v1198 = vld [vmem:[#allocation6 + $0xb8] sm:$0xff]
  %v1199 = vld [vmem:[#allocation6 + $0xc0] sm:$0xff]
  %v1200 = vld [vmem:[#allocation6 + $0xc8] sm:$0xff]
  %v1201 = vld [vmem:[#allocation6 + $0xd0] sm:$0xff]
  %v1202 = vld [vmem:[#allocation6 + $0xd8] sm:$0xff]
  %v1203 = vld [vmem:[#allocation6 + $0xe0] sm:$0xff]
  %v1204 = vld [vmem:[#allocation6 + $0xe8] sm:$0xff]
  %v1205 = vld [vmem:[#allocation6 + $0xf0] sm:$0xff]
  %v1206 = vld [vmem:[#allocation6 + $0xf8] sm:$0xff]
  %v1239 = vunpack.c.l.b16 %v1175
  %v1240 = vunpack.c.h.b16 %v1175
  %v1241 = vunpack.c.l.b16 %v1176
  %v1242 = vunpack.c.h.b16 %v1176
  %v1243 = vunpack.c.l.b16 %v1177
  %v1244 = vunpack.c.h.b16 %v1177
  %v1245 = vunpack.c.l.b16 %v1178
  %v1246 = vunpack.c.h.b16 %v1178
  %v1247 = vunpack.c.l.b16 %v1179
  %v1248 = vunpack.c.h.b16 %v1179
  %v1249 = vunpack.c.l.b16 %v1180
  %v1250 = vunpack.c.h.b16 %v1180
  %v1251 = vunpack.c.l.b16 %v1181
  %v1252 = vunpack.c.h.b16 %v1181
  %v1253 = vunpack.c.l.b16 %v1182
  %v1254 = vunpack.c.h.b16 %v1182
  %v1255 = vunpack.c.l.b16 %v1183
  %v1256 = vunpack.c.h.b16 %v1183
  %v1257 = vunpack.c.l.b16 %v1184
  %v1258 = vunpack.c.h.b16 %v1184
  %v1259 = vunpack.c.l.b16 %v1185
  %v1260 = vunpack.c.h.b16 %v1185
  %v1261 = vunpack.c.l.b16 %v1186
  %v1262 = vunpack.c.h.b16 %v1186
  %v1263 = vunpack.c.l.b16 %v1187
  %v1264 = vunpack.c.h.b16 %v1187
  %v1265 = vunpack.c.l.b16 %v1188
  %v1266 = vunpack.c.h.b16 %v1188
  %v1267 = vunpack.c.l.b16 %v1189
  %v1268 = vunpack.c.h.b16 %v1189
  %v1269 = vunpack.c.l.b16 %v1190
  %v1270 = vunpack.c.h.b16 %v1190
  %v1271 = vunpack.c.l.b16 %v1191
  %v1272 = vunpack.c.h.b16 %v1191
  %v1273 = vunpack.c.l.b16 %v1192
  %v1274 = vunpack.c.h.b16 %v1192
  %v1275 = vunpack.c.l.b16 %v1193
  %v1276 = vunpack.c.h.b16 %v1193
  %v1277 = vunpack.c.l.b16 %v1194
  %v1278 = vunpack.c.h.b16 %v1194
  %v1279 = vunpack.c.l.b16 %v1195
  %v1280 = vunpack.c.h.b16 %v1195
  %v1281 = vunpack.c.l.b16 %v1196
  %v1282 = vunpack.c.h.b16 %v1196
  %v1283 = vunpack.c.l.b16 %v1197
  %v1284 = vunpack.c.h.b16 %v1197
  %v1285 = vunpack.c.l.b16 %v1198
  %v1286 = vunpack.c.h.b16 %v1198
  %v1287 = vunpack.c.l.b16 %v1199
  %v1288 = vunpack.c.h.b16 %v1199
  %v1289 = vunpack.c.l.b16 %v1200
  %v1290 = vunpack.c.h.b16 %v1200
  %v1291 = vunpack.c.l.b16 %v1201
  %v1292 = vunpack.c.h.b16 %v1201
  %v1293 = vunpack.c.l.b16 %v1202
  %v1294 = vunpack.c.h.b16 %v1202
  %v1295 = vunpack.c.l.b16 %v1203
  %v1296 = vunpack.c.h.b16 %v1203
  %v1297 = vunpack.c.l.b16 %v1204
  %v1298 = vunpack.c.h.b16 %v1204
  %v1299 = vunpack.c.l.b16 %v1205
  %v1300 = vunpack.c.h.b16 %v1205
  %v1301 = vunpack.c.l.b16 %v1206
  %v1302 = vunpack.c.h.b16 %v1206
  %v1303 = vpack.c.b16 %v1241, %v1239
  %v1304 = vpack.c.b16 %v1242, %v1240
  %v1305 = vpack.c.b16 %v1245, %v1243
  %v1306 = vpack.c.b16 %v1246, %v1244
  %v1307 = vpack.c.b16 %v1249, %v1247
  %v1308 = vpack.c.b16 %v1250, %v1248
  %v1309 = vpack.c.b16 %v1253, %v1251
  %v1310 = vpack.c.b16 %v1254, %v1252
  %v1311 = vpack.c.b16 %v1257, %v1255
  %v1312 = vpack.c.b16 %v1258, %v1256
  %v1313 = vpack.c.b16 %v1261, %v1259
  %v1314 = vpack.c.b16 %v1262, %v1260
  %v1315 = vpack.c.b16 %v1265, %v1263
  %v1316 = vpack.c.b16 %v1266, %v1264
  %v1317 = vpack.c.b16 %v1269, %v1267
  %v1318 = vpack.c.b16 %v1270, %v1268
  %v1319 = vpack.c.b16 %v1273, %v1271
  %v1320 = vpack.c.b16 %v1274, %v1272
  %v1321 = vpack.c.b16 %v1277, %v1275
  %v1322 = vpack.c.b16 %v1278, %v1276
  %v1323 = vpack.c.b16 %v1281, %v1279
  %v1324 = vpack.c.b16 %v1282, %v1280
  %v1325 = vpack.c.b16 %v1285, %v1283
  %v1326 = vpack.c.b16 %v1286, %v1284
  %v1327 = vpack.c.b16 %v1289, %v1287
  %v1328 = vpack.c.b16 %v1290, %v1288
  %v1329 = vpack.c.b16 %v1293, %v1291
  %v1330 = vpack.c.b16 %v1294, %v1292
  %v1331 = vpack.c.b16 %v1297, %v1295
  %v1332 = vpack.c.b16 %v1298, %v1296
  %v1333 = vpack.c.b16 %v1301, %v1299
  %v1334 = vpack.c.b16 %v1302, %v1300
  %1367 = vmatprep.subr.bf16.mxu0 %v1318
  %1368 = vmatpush1.bf16.msra.mxu0 %v1317
  %1369 = vmatprep.subr.bf16.mxu0 %v1316
  %1370 = vmatpush1.bf16.msra.mxu0 %v1315
  %1371 = vmatprep.subr.bf16.mxu0 %v1314
  %1372 = vmatpush1.bf16.msra.mxu0 %v1313
  %1373 = vmatprep.subr.bf16.mxu0 %v1312
  %1374 = vmatpush1.bf16.msra.mxu0 %v1311
  %1375 = vmatprep.subr.bf16.mxu0 %v1310
  %1376 = vmatpush1.bf16.msra.mxu0 %v1309
  %1377 = vmatprep.subr.bf16.mxu0 %v1308
  %1378 = vmatpush1.bf16.msra.mxu0 %v1307
  %1379 = vmatprep.subr.bf16.mxu0 %v1306
  %1380 = vmatpush1.bf16.msra.mxu0 %v1305
  %1381 = vmatprep.subr.bf16.mxu0 %v1304
  %1382 = vmatpush1.bf16.msra.mxu0 %v1303
  %1383 = vmatprep.subr.bf16.mxu0 %v1334
  %1384 = vmatpush2.bf16.msra.mxu0 %v1333
  %1385 = vmatprep.subr.bf16.mxu0 %v1332
  %1386 = vmatpush2.bf16.msra.mxu0 %v1331
  %1387 = vmatprep.subr.bf16.mxu0 %v1330
  %1388 = vmatpush2.bf16.msra.mxu0 %v1329
  %1389 = vmatprep.subr.bf16.mxu0 %v1328
  %1390 = vmatpush2.bf16.msra.mxu0 %v1327
  %1391 = vmatprep.subr.bf16.mxu0 %v1326
  %1392 = vmatpush2.bf16.msra.mxu0 %v1325
  %1393 = vmatprep.subr.bf16.mxu0 %v1324
  %1394 = vmatpush2.bf16.msra.mxu0 %v1323
  %1395 = vmatprep.subr.bf16.mxu0 %v1322
  %1396 = vmatpush2.bf16.msra.mxu0 %v1321
  %1397 = vmatprep.subr.bf16.mxu0 %v1320
  %1398 = vmatpush2.bf16.msra.mxu0 %v1319
  %1399 = vmatprep.mubr.bf16.mxu0 %v892
  %1400 = vmatmul.mubr.bf16.gmra.mxu0 %v891
  %v1401 = vpop.f32.mrf.mxu0
  %v1402 = vadd.f32 0.0, %v1401
  %v1403 = vpop.f32.mrf.mxu0
  %v1404 = vadd.f32 0.0, %v1403
  %v1405 = vpop.f32.mrf.mxu0
  %v1406 = vpop.f32.mrf.mxu0
  %1407 = vdwg.mxu0
  %v1440 = vunpack.c.l.b16 %v1143
  %v1441 = vunpack.c.h.b16 %v1143
  %v1442 = vunpack.c.l.b16 %v1144
  %v1443 = vunpack.c.h.b16 %v1144
  %v1444 = vunpack.c.l.b16 %v1145
  %v1445 = vunpack.c.h.b16 %v1145
  %v1446 = vunpack.c.l.b16 %v1146
  %v1447 = vunpack.c.h.b16 %v1146
  %v1448 = vunpack.c.l.b16 %v1147
  %v1449 = vunpack.c.h.b16 %v1147
  %v1450 = vunpack.c.l.b16 %v1148
  %v1451 = vunpack.c.h.b16 %v1148
  %v1452 = vunpack.c.l.b16 %v1149
  %v1453 = vunpack.c.h.b16 %v1149
  %v1454 = vunpack.c.l.b16 %v1150
  %v1455 = vunpack.c.h.b16 %v1150
  %v1456 = vunpack.c.l.b16 %v1151
  %v1457 = vunpack.c.h.b16 %v1151
  %v1458 = vunpack.c.l.b16 %v1152
  %v1459 = vunpack.c.h.b16 %v1152
  %v1460 = vunpack.c.l.b16 %v1153
  %v1461 = vunpack.c.h.b16 %v1153
  %v1462 = vunpack.c.l.b16 %v1154
  %v1463 = vunpack.c.h.b16 %v1154
  %v1464 = vunpack.c.l.b16 %v1155
  %v1465 = vunpack.c.h.b16 %v1155
  %v1466 = vunpack.c.l.b16 %v1156
  %v1467 = vunpack.c.h.b16 %v1156
  %v1468 = vunpack.c.l.b16 %v1157
  %v1469 = vunpack.c.h.b16 %v1157
  %v1470 = vunpack.c.l.b16 %v1158
  %v1471 = vunpack.c.h.b16 %v1158
  %v1472 = vunpack.c.l.b16 %v1159
  %v1473 = vunpack.c.h.b16 %v1159
  %v1474 = vunpack.c.l.b16 %v1160
  %v1475 = vunpack.c.h.b16 %v1160
  %v1476 = vunpack.c.l.b16 %v1161
  %v1477 = vunpack.c.h.b16 %v1161
  %v1478 = vunpack.c.l.b16 %v1162
  %v1479 = vunpack.c.h.b16 %v1162
  %v1480 = vunpack.c.l.b16 %v1163
  %v1481 = vunpack.c.h.b16 %v1163
  %v1482 = vunpack.c.l.b16 %v1164
  %v1483 = vunpack.c.h.b16 %v1164
  %v1484 = vunpack.c.l.b16 %v1165
  %v1485 = vunpack.c.h.b16 %v1165
  %v1486 = vunpack.c.l.b16 %v1166
  %v1487 = vunpack.c.h.b16 %v1166
  %v1488 = vunpack.c.l.b16 %v1167
  %v1489 = vunpack.c.h.b16 %v1167
  %v1490 = vunpack.c.l.b16 %v1168
  %v1491 = vunpack.c.h.b16 %v1168
  %v1492 = vunpack.c.l.b16 %v1169
  %v1493 = vunpack.c.h.b16 %v1169
  %v1494 = vunpack.c.l.b16 %v1170
  %v1495 = vunpack.c.h.b16 %v1170
  %v1496 = vunpack.c.l.b16 %v1171
  %v1497 = vunpack.c.h.b16 %v1171
  %v1498 = vunpack.c.l.b16 %v1172
  %v1499 = vunpack.c.h.b16 %v1172
  %v1500 = vunpack.c.l.b16 %v1173
  %v1501 = vunpack.c.h.b16 %v1173
  %v1502 = vunpack.c.l.b16 %v1174
  %v1503 = vunpack.c.h.b16 %v1174
  %v1504 = vpack.c.b16 %v1442, %v1440
  %v1505 = vpack.c.b16 %v1443, %v1441
  %v1506 = vpack.c.b16 %v1446, %v1444
  %v1507 = vpack.c.b16 %v1447, %v1445
  %v1508 = vpack.c.b16 %v1450, %v1448
  %v1509 = vpack.c.b16 %v1451, %v1449
  %v1510 = vpack.c.b16 %v1454, %v1452
  %v1511 = vpack.c.b16 %v1455, %v1453
  %v1512 = vpack.c.b16 %v1458, %v1456
  %v1513 = vpack.c.b16 %v1459, %v1457
  %v1514 = vpack.c.b16 %v1462, %v1460
  %v1515 = vpack.c.b16 %v1463, %v1461
  %v1516 = vpack.c.b16 %v1466, %v1464
  %v1517 = vpack.c.b16 %v1467, %v1465
  %v1518 = vpack.c.b16 %v1470, %v1468
  %v1519 = vpack.c.b16 %v1471, %v1469
  %v1520 = vpack.c.b16 %v1474, %v1472
  %v1521 = vpack.c.b16 %v1475, %v1473
  %v1522 = vpack.c.b16 %v1478, %v1476
  %v1523 = vpack.c.b16 %v1479, %v1477
  %v1524 = vpack.c.b16 %v1482, %v1480
  %v1525 = vpack.c.b16 %v1483, %v1481
  %v1526 = vpack.c.b16 %v1486, %v1484
  %v1527 = vpack.c.b16 %v1487, %v1485
  %v1528 = vpack.c.b16 %v1490, %v1488
  %v1529 = vpack.c.b16 %v1491, %v1489
  %v1530 = vpack.c.b16 %v1494, %v1492
  %v1531 = vpack.c.b16 %v1495, %v1493
  %v1532 = vpack.c.b16 %v1498, %v1496
  %v1533 = vpack.c.b16 %v1499, %v1497
  %v1534 = vpack.c.b16 %v1502, %v1500
  %v1535 = vpack.c.b16 %v1503, %v1501
  %1568 = vmatprep.subr.bf16.mxu0 %v1519
  %1569 = vmatpush1.bf16.msra.mxu0 %v1518
  %1570 = vmatprep.subr.bf16.mxu0 %v1517
  %1571 = vmatpush1.bf16.msra.mxu0 %v1516
  %1572 = vmatprep.subr.bf16.mxu0 %v1515
  %1573 = vmatpush1.bf16.msra.mxu0 %v1514
  %1574 = vmatprep.subr.bf16.mxu0 %v1513
  %1575 = vmatpush1.bf16.msra.mxu0 %v1512
  %1576 = vmatprep.subr.bf16.mxu0 %v1511
  %1577 = vmatpush1.bf16.msra.mxu0 %v1510
  %1578 = vmatprep.subr.bf16.mxu0 %v1509
  %1579 = vmatpush1.bf16.msra.mxu0 %v1508
  %1580 = vmatprep.subr.bf16.mxu0 %v1507
  %1581 = vmatpush1.bf16.msra.mxu0 %v1506
  %1582 = vmatprep.subr.bf16.mxu0 %v1505
  %1583 = vmatpush1.bf16.msra.mxu0 %v1504
  %1584 = vmatprep.subr.bf16.mxu0 %v1535
  %1585 = vmatpush2.bf16.msra.mxu0 %v1534
  %1586 = vmatprep.subr.bf16.mxu0 %v1533
  %1587 = vmatpush2.bf16.msra.mxu0 %v1532
  %1588 = vmatprep.subr.bf16.mxu0 %v1531
  %1589 = vmatpush2.bf16.msra.mxu0 %v1530
  %1590 = vmatprep.subr.bf16.mxu0 %v1529
  %1591 = vmatpush2.bf16.msra.mxu0 %v1528
  %1592 = vmatprep.subr.bf16.mxu0 %v1527
  %1593 = vmatpush2.bf16.msra.mxu0 %v1526
  %1594 = vmatprep.subr.bf16.mxu0 %v1525
  %1595 = vmatpush2.bf16.msra.mxu0 %v1524
  %1596 = vmatprep.subr.bf16.mxu0 %v1523
  %1597 = vmatpush2.bf16.msra.mxu0 %v1522
  %1598 = vmatprep.subr.bf16.mxu0 %v1521
  %1599 = vmatpush2.bf16.msra.mxu0 %v1520
  %1600 = vmatprep.mubr.bf16.mxu0 %v1142
  %1601 = vmatmul.mubr.bf16.gmra.mxu0 %v1141
  %v1602 = vpop.f32.mrf.mxu0
  %v1603 = vadd.f32 %v1402, %v1602
  %v1604 = vpop.f32.mrf.mxu0
  %v1605 = vadd.f32 %v1404, %v1604
  %v1606 = vpop.f32.mrf.mxu0
  %v1607 = vpop.f32.mrf.mxu0
  %1608 = vdwg.mxu0
  %v1609 = vadd.f32 %v1603, %v880
  %v1610 = vadd.f32 %v1605, %v884
  %v1611 = vmax.f32 %v1609, 0.0
  %v1612 = vmax.f32 %v1610, 0.0
  %v1613 = vpack.c.bf16 %v1611, %v1611
  %v1614 = vpack.c.bf16 %v1612, %v1612
  %v1617 = vunpack.c.l.b16 %v1613
  %v1618 = vunpack.c.l.b16 %v1614
  %v1619 = vpack.c.b16 %v1618, %v1617
  %s1621 = scalar_lea.vmem %s5, 8
  %1622 = vst [vmem:[%s1621] sm:$0xff] %v1619
  %s1623 = scalar_lea.vmem %s0, 16
  %v1624 = vld [vmem:[%s1623] sm:$0xff]
  %v1625 = vunpack.c.l.bf16 %v1624
  %v1626 = vunpack.c.h.bf16 %v1624
  %v1627 = vld [vmem:[#allocation4] sm:$0xff]
  %v1628 = vld [vmem:[#allocation4 + $0x8] sm:$0xff]
  %v1629 = vld [vmem:[#allocation4 + $0x10] sm:$0xff]
  %v1630 = vld [vmem:[#allocation4 + $0x18] sm:$0xff]
  %v1631 = vld [vmem:[#allocation4 + $0x20] sm:$0xff]
  %v1632 = vld [vmem:[#allocation4 + $0x28] sm:$0xff]
  %v1633 = vld [vmem:[#allocation4 + $0x30] sm:$0xff]
  %v1634 = vld [vmem:[#allocation4 + $0x38] sm:$0xff]
  %v1635 = vld [vmem:[#allocation4 + $0x40] sm:$0xff]
  %v1636 = vld [vmem:[#allocation4 + $0x48] sm:$0xff]
  %v1637 = vld [vmem:[#allocation4 + $0x50] sm:$0xff]
  %v1638 = vld [vmem:[#allocation4 + $0x58] sm:$0xff]
  %v1639 = vld [vmem:[#allocation4 + $0x60] sm:$0xff]
  %v1640 = vld [vmem:[#allocation4 + $0x68] sm:$0xff]
  %v1641 = vld [vmem:[#allocation4 + $0x70] sm:$0xff]
  %v1642 = vld [vmem:[#allocation4 + $0x78] sm:$0xff]
  %v1643 = vld [vmem:[#allocation4 + $0x80] sm:$0xff]
  %v1644 = vld [vmem:[#allocation4 + $0x88] sm:$0xff]
  %v1645 = vld [vmem:[#allocation4 + $0x90] sm:$0xff]
  %v1646 = vld [vmem:[#allocation4 + $0x98] sm:$0xff]
  %v1647 = vld [vmem:[#allocation4 + $0xa0] sm:$0xff]
  %v1648 = vld [vmem:[#allocation4 + $0xa8] sm:$0xff]
  %v1649 = vld [vmem:[#allocation4 + $0xb0] sm:$0xff]
  %v1650 = vld [vmem:[#allocation4 + $0xb8] sm:$0xff]
  %v1651 = vld [vmem:[#allocation4 + $0xc0] sm:$0xff]
  %v1652 = vld [vmem:[#allocation4 + $0xc8] sm:$0xff]
  %v1653 = vld [vmem:[#allocation4 + $0xd0] sm:$0xff]
  %v1654 = vld [vmem:[#allocation4 + $0xd8] sm:$0xff]
  %v1655 = vld [vmem:[#allocation4 + $0xe0] sm:$0xff]
  %v1656 = vld [vmem:[#allocation4 + $0xe8] sm:$0xff]
  %v1657 = vld [vmem:[#allocation4 + $0xf0] sm:$0xff]
  %v1658 = vld [vmem:[#allocation4 + $0xf8] sm:$0xff]
  %v1691 = vunpack.c.l.b16 %v1627
  %v1692 = vunpack.c.h.b16 %v1627
  %v1693 = vunpack.c.l.b16 %v1628
  %v1694 = vunpack.c.h.b16 %v1628
  %v1695 = vunpack.c.l.b16 %v1629
  %v1696 = vunpack.c.h.b16 %v1629
  %v1697 = vunpack.c.l.b16 %v1630
  %v1698 = vunpack.c.h.b16 %v1630
  %v1699 = vunpack.c.l.b16 %v1631
  %v1700 = vunpack.c.h.b16 %v1631
  %v1701 = vunpack.c.l.b16 %v1632
  %v1702 = vunpack.c.h.b16 %v1632
  %v1703 = vunpack.c.l.b16 %v1633
  %v1704 = vunpack.c.h.b16 %v1633
  %v1705 = vunpack.c.l.b16 %v1634
  %v1706 = vunpack.c.h.b16 %v1634
  %v1707 = vunpack.c.l.b16 %v1635
  %v1708 = vunpack.c.h.b16 %v1635
  %v1709 = vunpack.c.l.b16 %v1636
  %v1710 = vunpack.c.h.b16 %v1636
  %v1711 = vunpack.c.l.b16 %v1637
  %v1712 = vunpack.c.h.b16 %v1637
  %v1713 = vunpack.c.l.b16 %v1638
  %v1714 = vunpack.c.h.b16 %v1638
  %v1715 = vunpack.c.l.b16 %v1639
  %v1716 = vunpack.c.h.b16 %v1639
  %v1717 = vunpack.c.l.b16 %v1640
  %v1718 = vunpack.c.h.b16 %v1640
  %v1719 = vunpack.c.l.b16 %v1641
  %v1720 = vunpack.c.h.b16 %v1641
  %v1721 = vunpack.c.l.b16 %v1642
  %v1722 = vunpack.c.h.b16 %v1642
  %v1723 = vunpack.c.l.b16 %v1643
  %v1724 = vunpack.c.h.b16 %v1643
  %v1725 = vunpack.c.l.b16 %v1644
  %v1726 = vunpack.c.h.b16 %v1644
  %v1727 = vunpack.c.l.b16 %v1645
  %v1728 = vunpack.c.h.b16 %v1645
  %v1729 = vunpack.c.l.b16 %v1646
  %v1730 = vunpack.c.h.b16 %v1646
  %v1731 = vunpack.c.l.b16 %v1647
  %v1732 = vunpack.c.h.b16 %v1647
  %v1733 = vunpack.c.l.b16 %v1648
  %v1734 = vunpack.c.h.b16 %v1648
  %v1735 = vunpack.c.l.b16 %v1649
  %v1736 = vunpack.c.h.b16 %v1649
  %v1737 = vunpack.c.l.b16 %v1650
  %v1738 = vunpack.c.h.b16 %v1650
  %v1739 = vunpack.c.l.b16 %v1651
  %v1740 = vunpack.c.h.b16 %v1651
  %v1741 = vunpack.c.l.b16 %v1652
  %v1742 = vunpack.c.h.b16 %v1652
  %v1743 = vunpack.c.l.b16 %v1653
  %v1744 = vunpack.c.h.b16 %v1653
  %v1745 = vunpack.c.l.b16 %v1654
  %v1746 = vunpack.c.h.b16 %v1654
  %v1747 = vunpack.c.l.b16 %v1655
  %v1748 = vunpack.c.h.b16 %v1655
  %v1749 = vunpack.c.l.b16 %v1656
  %v1750 = vunpack.c.h.b16 %v1656
  %v1751 = vunpack.c.l.b16 %v1657
  %v1752 = vunpack.c.h.b16 %v1657
  %v1753 = vunpack.c.l.b16 %v1658
  %v1754 = vunpack.c.h.b16 %v1658
  %v1755 = vpack.c.b16 %v1693, %v1691
  %v1756 = vpack.c.b16 %v1694, %v1692
  %v1757 = vpack.c.b16 %v1697, %v1695
  %v1758 = vpack.c.b16 %v1698, %v1696
  %v1759 = vpack.c.b16 %v1701, %v1699
  %v1760 = vpack.c.b16 %v1702, %v1700
  %v1761 = vpack.c.b16 %v1705, %v1703
  %v1762 = vpack.c.b16 %v1706, %v1704
  %v1763 = vpack.c.b16 %v1709, %v1707
  %v1764 = vpack.c.b16 %v1710, %v1708
  %v1765 = vpack.c.b16 %v1713, %v1711
  %v1766 = vpack.c.b16 %v1714, %v1712
  %v1767 = vpack.c.b16 %v1717, %v1715
  %v1768 = vpack.c.b16 %v1718, %v1716
  %v1769 = vpack.c.b16 %v1721, %v1719
  %v1770 = vpack.c.b16 %v1722, %v1720
  %v1771 = vpack.c.b16 %v1725, %v1723
  %v1772 = vpack.c.b16 %v1726, %v1724
  %v1773 = vpack.c.b16 %v1729, %v1727
  %v1774 = vpack.c.b16 %v1730, %v1728
  %v1775 = vpack.c.b16 %v1733, %v1731
  %v1776 = vpack.c.b16 %v1734, %v1732
  %v1777 = vpack.c.b16 %v1737, %v1735
  %v1778 = vpack.c.b16 %v1738, %v1736
  %v1779 = vpack.c.b16 %v1741, %v1739
  %v1780 = vpack.c.b16 %v1742, %v1740
  %v1781 = vpack.c.b16 %v1745, %v1743
  %v1782 = vpack.c.b16 %v1746, %v1744
  %v1783 = vpack.c.b16 %v1749, %v1747
  %v1784 = vpack.c.b16 %v1750, %v1748
  %v1785 = vpack.c.b16 %v1753, %v1751
  %v1786 = vpack.c.b16 %v1754, %v1752
  %1819 = vmatprep.subr.bf16.mxu0 %v1770
  %1820 = vmatpush1.bf16.msra.mxu0 %v1769
  %1821 = vmatprep.subr.bf16.mxu0 %v1768
  %1822 = vmatpush1.bf16.msra.mxu0 %v1767
  %1823 = vmatprep.subr.bf16.mxu0 %v1766
  %1824 = vmatpush1.bf16.msra.mxu0 %v1765
  %1825 = vmatprep.subr.bf16.mxu0 %v1764
  %1826 = vmatpush1.bf16.msra.mxu0 %v1763
  %1827 = vmatprep.subr.bf16.mxu0 %v1762
  %1828 = vmatpush1.bf16.msra.mxu0 %v1761
  %1829 = vmatprep.subr.bf16.mxu0 %v1760
  %1830 = vmatpush1.bf16.msra.mxu0 %v1759
  %1831 = vmatprep.subr.bf16.mxu0 %v1758
  %1832 = vmatpush1.bf16.msra.mxu0 %v1757
  %1833 = vmatprep.subr.bf16.mxu0 %v1756
  %1834 = vmatpush1.bf16.msra.mxu0 %v1755
  %1835 = vmatprep.subr.bf16.mxu0 %v1786
  %1836 = vmatpush2.bf16.msra.mxu0 %v1785
  %1837 = vmatprep.subr.bf16.mxu0 %v1784
  %1838 = vmatpush2.bf16.msra.mxu0 %v1783
  %1839 = vmatprep.subr.bf16.mxu0 %v1782
  %1840 = vmatpush2.bf16.msra.mxu0 %v1781
  %1841 = vmatprep.subr.bf16.mxu0 %v1780
  %1842 = vmatpush2.bf16.msra.mxu0 %v1779
  %1843 = vmatprep.subr.bf16.mxu0 %v1778
  %1844 = vmatpush2.bf16.msra.mxu0 %v1777
  %1845 = vmatprep.subr.bf16.mxu0 %v1776
  %1846 = vmatpush2.bf16.msra.mxu0 %v1775
  %1847 = vmatprep.subr.bf16.mxu0 %v1774
  %1848 = vmatpush2.bf16.msra.mxu0 %v1773
  %1849 = vmatprep.subr.bf16.mxu0 %v1772
  %1850 = vmatpush2.bf16.msra.mxu0 %v1771
  %1851 = vmatprep.mubr.bf16.mxu0 %v1142
  %1852 = vmatmul.mubr.bf16.gmra.mxu0 %v1141
  %v1853 = vpop.f32.mrf.mxu0
  %v1854 = vadd.f32 0.0, %v1853
  %v1855 = vpop.f32.mrf.mxu0
  %v1856 = vadd.f32 0.0, %v1855
  %v1857 = vpop.f32.mrf.mxu0
  %v1858 = vpop.f32.mrf.mxu0
  %1859 = vdwg.mxu0
  %v1860 = vadd.f32 %v1625, %v1854
  %v1861 = vadd.f32 %v1626, %v1856
  %v1862 = vmax.f32 %v1860, 0.0
  %v1863 = vmax.f32 %v1861, 0.0
  %v1864 = vpack.c.bf16 %v1862, %v1862
  %v1865 = vpack.c.bf16 %v1863, %v1863
  %v1866 = vld [vmem:[#allocation5] sm:$0xff]
  %v1867 = vld [vmem:[#allocation5 + $0x8] sm:$0xff]
  %v1868 = vld [vmem:[#allocation5 + $0x10] sm:$0xff]
  %v1869 = vld [vmem:[#allocation5 + $0x18] sm:$0xff]
  %v1870 = vld [vmem:[#allocation5 + $0x20] sm:$0xff]
  %v1871 = vld [vmem:[#allocation5 + $0x28] sm:$0xff]
  %v1872 = vld [vmem:[#allocation5 + $0x30] sm:$0xff]
  %v1873 = vld [vmem:[#allocation5 + $0x38] sm:$0xff]
  %v1874 = vld [vmem:[#allocation5 + $0x40] sm:$0xff]
  %v1875 = vld [vmem:[#allocation5 + $0x48] sm:$0xff]
  %v1876 = vld [vmem:[#allocation5 + $0x50] sm:$0xff]
  %v1877 = vld [vmem:[#allocation5 + $0x58] sm:$0xff]
  %v1878 = vld [vmem:[#allocation5 + $0x60] sm:$0xff]
  %v1879 = vld [vmem:[#allocation5 + $0x68] sm:$0xff]
  %v1880 = vld [vmem:[#allocation5 + $0x70] sm:$0xff]
  %v1881 = vld [vmem:[#allocation5 + $0x78] sm:$0xff]
  %v1882 = vld [vmem:[#allocation5 + $0x80] sm:$0xff]
  %v1883 = vld [vmem:[#allocation5 + $0x88] sm:$0xff]
  %v1884 = vld [vmem:[#allocation5 + $0x90] sm:$0xff]
  %v1885 = vld [vmem:[#allocation5 + $0x98] sm:$0xff]
  %v1886 = vld [vmem:[#allocation5 + $0xa0] sm:$0xff]
  %v1887 = vld [vmem:[#allocation5 + $0xa8] sm:$0xff]
  %v1888 = vld [vmem:[#allocation5 + $0xb0] sm:$0xff]
  %v1889 = vld [vmem:[#allocation5 + $0xb8] sm:$0xff]
  %v1890 = vld [vmem:[#allocation5 + $0xc0] sm:$0xff]
  %v1891 = vld [vmem:[#allocation5 + $0xc8] sm:$0xff]
  %v1892 = vld [vmem:[#allocation5 + $0xd0] sm:$0xff]
  %v1893 = vld [vmem:[#allocation5 + $0xd8] sm:$0xff]
  %v1894 = vld [vmem:[#allocation5 + $0xe0] sm:$0xff]
  %v1895 = vld [vmem:[#allocation5 + $0xe8] sm:$0xff]
  %v1896 = vld [vmem:[#allocation5 + $0xf0] sm:$0xff]
  %v1897 = vld [vmem:[#allocation5 + $0xf8] sm:$0xff]
  %v1898 = vld [vmem:[#allocation6] sm:$0xff]
  %v1899 = vld [vmem:[#allocation6 + $0x8] sm:$0xff]
  %v1900 = vld [vmem:[#allocation6 + $0x10] sm:$0xff]
  %v1901 = vld [vmem:[#allocation6 + $0x18] sm:$0xff]
  %v1902 = vld [vmem:[#allocation6 + $0x20] sm:$0xff]
  %v1903 = vld [vmem:[#allocation6 + $0x28] sm:$0xff]
  %v1904 = vld [vmem:[#allocation6 + $0x30] sm:$0xff]
  %v1905 = vld [vmem:[#allocation6 + $0x38] sm:$0xff]
  %v1906 = vld [vmem:[#allocation6 + $0x40] sm:$0xff]
  %v1907 = vld [vmem:[#allocation6 + $0x48] sm:$0xff]
  %v1908 = vld [vmem:[#allocation6 + $0x50] sm:$0xff]
  %v1909 = vld [vmem:[#allocation6 + $0x58] sm:$0xff]
  %v1910 = vld [vmem:[#allocation6 + $0x60] sm:$0xff]
  %v1911 = vld [vmem:[#allocation6 + $0x68] sm:$0xff]
  %v1912 = vld [vmem:[#allocation6 + $0x70] sm:$0xff]
  %v1913 = vld [vmem:[#allocation6 + $0x78] sm:$0xff]
  %v1914 = vld [vmem:[#allocation6 + $0x80] sm:$0xff]
  %v1915 = vld [vmem:[#allocation6 + $0x88] sm:$0xff]
  %v1916 = vld [vmem:[#allocation6 + $0x90] sm:$0xff]
  %v1917 = vld [vmem:[#allocation6 + $0x98] sm:$0xff]
  %v1918 = vld [vmem:[#allocation6 + $0xa0] sm:$0xff]
  %v1919 = vld [vmem:[#allocation6 + $0xa8] sm:$0xff]
  %v1920 = vld [vmem:[#allocation6 + $0xb0] sm:$0xff]
  %v1921 = vld [vmem:[#allocation6 + $0xb8] sm:$0xff]
  %v1922 = vld [vmem:[#allocation6 + $0xc0] sm:$0xff]
  %v1923 = vld [vmem:[#allocation6 + $0xc8] sm:$0xff]
  %v1924 = vld [vmem:[#allocation6 + $0xd0] sm:$0xff]
  %v1925 = vld [vmem:[#allocation6 + $0xd8] sm:$0xff]
  %v1926 = vld [vmem:[#allocation6 + $0xe0] sm:$0xff]
  %v1927 = vld [vmem:[#allocation6 + $0xe8] sm:$0xff]
  %v1928 = vld [vmem:[#allocation6 + $0xf0] sm:$0xff]
  %v1929 = vld [vmem:[#allocation6 + $0xf8] sm:$0xff]
  %v1962 = vunpack.c.l.b16 %v1898
  %v1963 = vunpack.c.h.b16 %v1898
  %v1964 = vunpack.c.l.b16 %v1899
  %v1965 = vunpack.c.h.b16 %v1899
  %v1966 = vunpack.c.l.b16 %v1900
  %v1967 = vunpack.c.h.b16 %v1900
  %v1968 = vunpack.c.l.b16 %v1901
  %v1969 = vunpack.c.h.b16 %v1901
  %v1970 = vunpack.c.l.b16 %v1902
  %v1971 = vunpack.c.h.b16 %v1902
  %v1972 = vunpack.c.l.b16 %v1903
  %v1973 = vunpack.c.h.b16 %v1903
  %v1974 = vunpack.c.l.b16 %v1904
  %v1975 = vunpack.c.h.b16 %v1904
  %v1976 = vunpack.c.l.b16 %v1905
  %v1977 = vunpack.c.h.b16 %v1905
  %v1978 = vunpack.c.l.b16 %v1906
  %v1979 = vunpack.c.h.b16 %v1906
  %v1980 = vunpack.c.l.b16 %v1907
  %v1981 = vunpack.c.h.b16 %v1907
  %v1982 = vunpack.c.l.b16 %v1908
  %v1983 = vunpack.c.h.b16 %v1908
  %v1984 = vunpack.c.l.b16 %v1909
  %v1985 = vunpack.c.h.b16 %v1909
  %v1986 = vunpack.c.l.b16 %v1910
  %v1987 = vunpack.c.h.b16 %v1910
  %v1988 = vunpack.c.l.b16 %v1911
  %v1989 = vunpack.c.h.b16 %v1911
  %v1990 = vunpack.c.l.b16 %v1912
  %v1991 = vunpack.c.h.b16 %v1912
  %v1992 = vunpack.c.l.b16 %v1913
  %v1993 = vunpack.c.h.b16 %v1913
  %v1994 = vunpack.c.l.b16 %v1914
  %v1995 = vunpack.c.h.b16 %v1914
  %v1996 = vunpack.c.l.b16 %v1915
  %v1997 = vunpack.c.h.b16 %v1915
  %v1998 = vunpack.c.l.b16 %v1916
  %v1999 = vunpack.c.h.b16 %v1916
  %v2000 = vunpack.c.l.b16 %v1917
  %v2001 = vunpack.c.h.b16 %v1917
  %v2002 = vunpack.c.l.b16 %v1918
  %v2003 = vunpack.c.h.b16 %v1918
  %v2004 = vunpack.c.l.b16 %v1919
  %v2005 = vunpack.c.h.b16 %v1919
  %v2006 = vunpack.c.l.b16 %v1920
  %v2007 = vunpack.c.h.b16 %v1920
  %v2008 = vunpack.c.l.b16 %v1921
  %v2009 = vunpack.c.h.b16 %v1921
  %v2010 = vunpack.c.l.b16 %v1922
  %v2011 = vunpack.c.h.b16 %v1922
  %v2012 = vunpack.c.l.b16 %v1923
  %v2013 = vunpack.c.h.b16 %v1923
  %v2014 = vunpack.c.l.b16 %v1924
  %v2015 = vunpack.c.h.b16 %v1924
  %v2016 = vunpack.c.l.b16 %v1925
  %v2017 = vunpack.c.h.b16 %v1925
  %v2018 = vunpack.c.l.b16 %v1926
  %v2019 = vunpack.c.h.b16 %v1926
  %v2020 = vunpack.c.l.b16 %v1927
  %v2021 = vunpack.c.h.b16 %v1927
  %v2022 = vunpack.c.l.b16 %v1928
  %v2023 = vunpack.c.h.b16 %v1928
  %v2024 = vunpack.c.l.b16 %v1929
  %v2025 = vunpack.c.h.b16 %v1929
  %v2026 = vpack.c.b16 %v1964, %v1962
  %v2027 = vpack.c.b16 %v1965, %v1963
  %v2028 = vpack.c.b16 %v1968, %v1966
  %v2029 = vpack.c.b16 %v1969, %v1967
  %v2030 = vpack.c.b16 %v1972, %v1970
  %v2031 = vpack.c.b16 %v1973, %v1971
  %v2032 = vpack.c.b16 %v1976, %v1974
  %v2033 = vpack.c.b16 %v1977, %v1975
  %v2034 = vpack.c.b16 %v1980, %v1978
  %v2035 = vpack.c.b16 %v1981, %v1979
  %v2036 = vpack.c.b16 %v1984, %v1982
  %v2037 = vpack.c.b16 %v1985, %v1983
  %v2038 = vpack.c.b16 %v1988, %v1986
  %v2039 = vpack.c.b16 %v1989, %v1987
  %v2040 = vpack.c.b16 %v1992, %v1990
  %v2041 = vpack.c.b16 %v1993, %v1991
  %v2042 = vpack.c.b16 %v1996, %v1994
  %v2043 = vpack.c.b16 %v1997, %v1995
  %v2044 = vpack.c.b16 %v2000, %v1998
  %v2045 = vpack.c.b16 %v2001, %v1999
  %v2046 = vpack.c.b16 %v2004, %v2002
  %v2047 = vpack.c.b16 %v2005, %v2003
  %v2048 = vpack.c.b16 %v2008, %v2006
  %v2049 = vpack.c.b16 %v2009, %v2007
  %v2050 = vpack.c.b16 %v2012, %v2010
  %v2051 = vpack.c.b16 %v2013, %v2011
  %v2052 = vpack.c.b16 %v2016, %v2014
  %v2053 = vpack.c.b16 %v2017, %v2015
  %v2054 = vpack.c.b16 %v2020, %v2018
  %v2055 = vpack.c.b16 %v2021, %v2019
  %v2056 = vpack.c.b16 %v2024, %v2022
  %v2057 = vpack.c.b16 %v2025, %v2023
  %2090 = vmatprep.subr.bf16.mxu0 %v2041
  %2091 = vmatpush1.bf16.msra.mxu0 %v2040
  %2092 = vmatprep.subr.bf16.mxu0 %v2039
  %2093 = vmatpush1.bf16.msra.mxu0 %v2038
  %2094 = vmatprep.subr.bf16.mxu0 %v2037
  %2095 = vmatpush1.bf16.msra.mxu0 %v2036
  %2096 = vmatprep.subr.bf16.mxu0 %v2035
  %2097 = vmatpush1.bf16.msra.mxu0 %v2034
  %2098 = vmatprep.subr.bf16.mxu0 %v2033
  %2099 = vmatpush1.bf16.msra.mxu0 %v2032
  %2100 = vmatprep.subr.bf16.mxu0 %v2031
  %2101 = vmatpush1.bf16.msra.mxu0 %v2030
  %2102 = vmatprep.subr.bf16.mxu0 %v2029
  %2103 = vmatpush1.bf16.msra.mxu0 %v2028
  %2104 = vmatprep.subr.bf16.mxu0 %v2027
  %2105 = vmatpush1.bf16.msra.mxu0 %v2026
  %2106 = vmatprep.subr.bf16.mxu0 %v2057
  %2107 = vmatpush2.bf16.msra.mxu0 %v2056
  %2108 = vmatprep.subr.bf16.mxu0 %v2055
  %2109 = vmatpush2.bf16.msra.mxu0 %v2054
  %2110 = vmatprep.subr.bf16.mxu0 %v2053
  %2111 = vmatpush2.bf16.msra.mxu0 %v2052
  %2112 = vmatprep.subr.bf16.mxu0 %v2051
  %2113 = vmatpush2.bf16.msra.mxu0 %v2050
  %2114 = vmatprep.subr.bf16.mxu0 %v2049
  %2115 = vmatpush2.bf16.msra.mxu0 %v2048
  %2116 = vmatprep.subr.bf16.mxu0 %v2047
  %2117 = vmatpush2.bf16.msra.mxu0 %v2046
  %2118 = vmatprep.subr.bf16.mxu0 %v2045
  %2119 = vmatpush2.bf16.msra.mxu0 %v2044
  %2120 = vmatprep.subr.bf16.mxu0 %v2043
  %2121 = vmatpush2.bf16.msra.mxu0 %v2042
  %2122 = vmatprep.mubr.bf16.mxu0 %v1614
  %2123 = vmatmul.mubr.bf16.gmra.mxu0 %v1613
  %v2124 = vpop.f32.mrf.mxu0
  %v2125 = vadd.f32 0.0, %v2124
  %v2126 = vpop.f32.mrf.mxu0
  %v2127 = vadd.f32 0.0, %v2126
  %v2128 = vpop.f32.mrf.mxu0
  %v2129 = vpop.f32.mrf.mxu0
  %2130 = vdwg.mxu0
  %v2163 = vunpack.c.l.b16 %v1866
  %v2164 = vunpack.c.h.b16 %v1866
  %v2165 = vunpack.c.l.b16 %v1867
  %v2166 = vunpack.c.h.b16 %v1867
  %v2167 = vunpack.c.l.b16 %v1868
  %v2168 = vunpack.c.h.b16 %v1868
  %v2169 = vunpack.c.l.b16 %v1869
  %v2170 = vunpack.c.h.b16 %v1869
  %v2171 = vunpack.c.l.b16 %v1870
  %v2172 = vunpack.c.h.b16 %v1870
  %v2173 = vunpack.c.l.b16 %v1871
  %v2174 = vunpack.c.h.b16 %v1871
  %v2175 = vunpack.c.l.b16 %v1872
  %v2176 = vunpack.c.h.b16 %v1872
  %v2177 = vunpack.c.l.b16 %v1873
  %v2178 = vunpack.c.h.b16 %v1873
  %v2179 = vunpack.c.l.b16 %v1874
  %v2180 = vunpack.c.h.b16 %v1874
  %v2181 = vunpack.c.l.b16 %v1875
  %v2182 = vunpack.c.h.b16 %v1875
  %v2183 = vunpack.c.l.b16 %v1876
  %v2184 = vunpack.c.h.b16 %v1876
  %v2185 = vunpack.c.l.b16 %v1877
  %v2186 = vunpack.c.h.b16 %v1877
  %v2187 = vunpack.c.l.b16 %v1878
  %v2188 = vunpack.c.h.b16 %v1878
  %v2189 = vunpack.c.l.b16 %v1879
  %v2190 = vunpack.c.h.b16 %v1879
  %v2191 = vunpack.c.l.b16 %v1880
  %v2192 = vunpack.c.h.b16 %v1880
  %v2193 = vunpack.c.l.b16 %v1881
  %v2194 = vunpack.c.h.b16 %v1881
  %v2195 = vunpack.c.l.b16 %v1882
  %v2196 = vunpack.c.h.b16 %v1882
  %v2197 = vunpack.c.l.b16 %v1883
  %v2198 = vunpack.c.h.b16 %v1883
  %v2199 = vunpack.c.l.b16 %v1884
  %v2200 = vunpack.c.h.b16 %v1884
  %v2201 = vunpack.c.l.b16 %v1885
  %v2202 = vunpack.c.h.b16 %v1885
  %v2203 = vunpack.c.l.b16 %v1886
  %v2204 = vunpack.c.h.b16 %v1886
  %v2205 = vunpack.c.l.b16 %v1887
  %v2206 = vunpack.c.h.b16 %v1887
  %v2207 = vunpack.c.l.b16 %v1888
  %v2208 = vunpack.c.h.b16 %v1888
  %v2209 = vunpack.c.l.b16 %v1889
  %v2210 = vunpack.c.h.b16 %v1889
  %v2211 = vunpack.c.l.b16 %v1890
  %v2212 = vunpack.c.h.b16 %v1890
  %v2213 = vunpack.c.l.b16 %v1891
  %v2214 = vunpack.c.h.b16 %v1891
  %v2215 = vunpack.c.l.b16 %v1892
  %v2216 = vunpack.c.h.b16 %v1892
  %v2217 = vunpack.c.l.b16 %v1893
  %v2218 = vunpack.c.h.b16 %v1893
  %v2219 = vunpack.c.l.b16 %v1894
  %v2220 = vunpack.c.h.b16 %v1894
  %v2221 = vunpack.c.l.b16 %v1895
  %v2222 = vunpack.c.h.b16 %v1895
  %v2223 = vunpack.c.l.b16 %v1896
  %v2224 = vunpack.c.h.b16 %v1896
  %v2225 = vunpack.c.l.b16 %v1897
  %v2226 = vunpack.c.h.b16 %v1897
  %v2227 = vpack.c.b16 %v2165, %v2163
  %v2228 = vpack.c.b16 %v2166, %v2164
  %v2229 = vpack.c.b16 %v2169, %v2167
  %v2230 = vpack.c.b16 %v2170, %v2168
  %v2231 = vpack.c.b16 %v2173, %v2171
  %v2232 = vpack.c.b16 %v2174, %v2172
  %v2233 = vpack.c.b16 %v2177, %v2175
  %v2234 = vpack.c.b16 %v2178, %v2176
  %v2235 = vpack.c.b16 %v2181, %v2179
  %v2236 = vpack.c.b16 %v2182, %v2180
  %v2237 = vpack.c.b16 %v2185, %v2183
  %v2238 = vpack.c.b16 %v2186, %v2184
  %v2239 = vpack.c.b16 %v2189, %v2187
  %v2240 = vpack.c.b16 %v2190, %v2188
  %v2241 = vpack.c.b16 %v2193, %v2191
  %v2242 = vpack.c.b16 %v2194, %v2192
  %v2243 = vpack.c.b16 %v2197, %v2195
  %v2244 = vpack.c.b16 %v2198, %v2196
  %v2245 = vpack.c.b16 %v2201, %v2199
  %v2246 = vpack.c.b16 %v2202, %v2200
  %v2247 = vpack.c.b16 %v2205, %v2203
  %v2248 = vpack.c.b16 %v2206, %v2204
  %v2249 = vpack.c.b16 %v2209, %v2207
  %v2250 = vpack.c.b16 %v2210, %v2208
  %v2251 = vpack.c.b16 %v2213, %v2211
  %v2252 = vpack.c.b16 %v2214, %v2212
  %v2253 = vpack.c.b16 %v2217, %v2215
  %v2254 = vpack.c.b16 %v2218, %v2216
  %v2255 = vpack.c.b16 %v2221, %v2219
  %v2256 = vpack.c.b16 %v2222, %v2220
  %v2257 = vpack.c.b16 %v2225, %v2223
  %v2258 = vpack.c.b16 %v2226, %v2224
  %2291 = vmatprep.subr.bf16.mxu0 %v2242
  %2292 = vmatpush1.bf16.msra.mxu0 %v2241
  %2293 = vmatprep.subr.bf16.mxu0 %v2240
  %2294 = vmatpush1.bf16.msra.mxu0 %v2239
  %2295 = vmatprep.subr.bf16.mxu0 %v2238
  %2296 = vmatpush1.bf16.msra.mxu0 %v2237
  %2297 = vmatprep.subr.bf16.mxu0 %v2236
  %2298 = vmatpush1.bf16.msra.mxu0 %v2235
  %2299 = vmatprep.subr.bf16.mxu0 %v2234
  %2300 = vmatpush1.bf16.msra.mxu0 %v2233
  %2301 = vmatprep.subr.bf16.mxu0 %v2232
  %2302 = vmatpush1.bf16.msra.mxu0 %v2231
  %2303 = vmatprep.subr.bf16.mxu0 %v2230
  %2304 = vmatpush1.bf16.msra.mxu0 %v2229
  %2305 = vmatprep.subr.bf16.mxu0 %v2228
  %2306 = vmatpush1.bf16.msra.mxu0 %v2227
  %2307 = vmatprep.subr.bf16.mxu0 %v2258
  %2308 = vmatpush2.bf16.msra.mxu0 %v2257
  %2309 = vmatprep.subr.bf16.mxu0 %v2256
  %2310 = vmatpush2.bf16.msra.mxu0 %v2255
  %2311 = vmatprep.subr.bf16.mxu0 %v2254
  %2312 = vmatpush2.bf16.msra.mxu0 %v2253
  %2313 = vmatprep.subr.bf16.mxu0 %v2252
  %2314 = vmatpush2.bf16.msra.mxu0 %v2251
  %2315 = vmatprep.subr.bf16.mxu0 %v2250
  %2316 = vmatpush2.bf16.msra.mxu0 %v2249
  %2317 = vmatprep.subr.bf16.mxu0 %v2248
  %2318 = vmatpush2.bf16.msra.mxu0 %v2247
  %2319 = vmatprep.subr.bf16.mxu0 %v2246
  %2320 = vmatpush2.bf16.msra.mxu0 %v2245
  %2321 = vmatprep.subr.bf16.mxu0 %v2244
  %2322 = vmatpush2.bf16.msra.mxu0 %v2243
  %2323 = vmatprep.mubr.bf16.mxu0 %v1865
  %2324 = vmatmul.mubr.bf16.gmra.mxu0 %v1864
  %v2325 = vpop.f32.mrf.mxu0
  %v2326 = vadd.f32 %v2125, %v2325
  %v2327 = vpop.f32.mrf.mxu0
  %v2328 = vadd.f32 %v2127, %v2327
  %v2329 = vpop.f32.mrf.mxu0
  %v2330 = vpop.f32.mrf.mxu0
  %2331 = vdwg.mxu0
  %v2332 = vadd.f32 %v2326, %v880
  %v2333 = vadd.f32 %v2328, %v884
  %v2334 = vmax.f32 %v2332, 0.0
  %v2335 = vmax.f32 %v2333, 0.0
  %v2336 = vpack.c.bf16 %v2334, %v2334
  %v2337 = vpack.c.bf16 %v2335, %v2335
  %v2340 = vunpack.c.l.b16 %v2336
  %v2341 = vunpack.c.l.b16 %v2337
  %v2342 = vpack.c.b16 %v2341, %v2340
  %s2344 = scalar_lea.vmem %s5, 16
  %2345 = vst [vmem:[%s2344] sm:$0xff] %v2342
  %s2346 = scalar_lea.vmem %s0, 24
  %v2347 = vld [vmem:[%s2346] sm:$0xff]
  %v2348 = vunpack.c.l.bf16 %v2347
  %v2349 = vunpack.c.h.bf16 %v2347
  %v2350 = vld [vmem:[#allocation4] sm:$0xff]
  %v2351 = vld [vmem:[#allocation4 + $0x8] sm:$0xff]
  %v2352 = vld [vmem:[#allocation4 + $0x10] sm:$0xff]
  %v2353 = vld [vmem:[#allocation4 + $0x18] sm:$0xff]
  %v2354 = vld [vmem:[#allocation4 + $0x20] sm:$0xff]
  %v2355 = vld [vmem:[#allocation4 + $0x28] sm:$0xff]
  %v2356 = vld [vmem:[#allocation4 + $0x30] sm:$0xff]
  %v2357 = vld [vmem:[#allocation4 + $0x38] sm:$0xff]
  %v2358 = vld [vmem:[#allocation4 + $0x40] sm:$0xff]
  %v2359 = vld [vmem:[#allocation4 + $0x48] sm:$0xff]
  %v2360 = vld [vmem:[#allocation4 + $0x50] sm:$0xff]
  %v2361 = vld [vmem:[#allocation4 + $0x58] sm:$0xff]
  %v2362 = vld [vmem:[#allocation4 + $0x60] sm:$0xff]
  %v2363 = vld [vmem:[#allocation4 + $0x68] sm:$0xff]
  %v2364 = vld [vmem:[#allocation4 + $0x70] sm:$0xff]
  %v2365 = vld [vmem:[#allocation4 + $0x78] sm:$0xff]
  %v2366 = vld [vmem:[#allocation4 + $0x80] sm:$0xff]
  %v2367 = vld [vmem:[#allocation4 + $0x88] sm:$0xff]
  %v2368 = vld [vmem:[#allocation4 + $0x90] sm:$0xff]
  %v2369 = vld [vmem:[#allocation4 + $0x98] sm:$0xff]
  %v2370 = vld [vmem:[#allocation4 + $0xa0] sm:$0xff]
  %v2371 = vld [vmem:[#allocation4 + $0xa8] sm:$0xff]
  %v2372 = vld [vmem:[#allocation4 + $0xb0] sm:$0xff]
  %v2373 = vld [vmem:[#allocation4 + $0xb8] sm:$0xff]
  %v2374 = vld [vmem:[#allocation4 + $0xc0] sm:$0xff]
  %v2375 = vld [vmem:[#allocation4 + $0xc8] sm:$0xff]
  %v2376 = vld [vmem:[#allocation4 + $0xd0] sm:$0xff]
  %v2377 = vld [vmem:[#allocation4 + $0xd8] sm:$0xff]
  %v2378 = vld [vmem:[#allocation4 + $0xe0] sm:$0xff]
  %v2379 = vld [vmem:[#allocation4 + $0xe8] sm:$0xff]
  %v2380 = vld [vmem:[#allocation4 + $0xf0] sm:$0xff]
  %v2381 = vld [vmem:[#allocation4 + $0xf8] sm:$0xff]
  %v2414 = vunpack.c.l.b16 %v2350
  %v2415 = vunpack.c.h.b16 %v2350
  %v2416 = vunpack.c.l.b16 %v2351
  %v2417 = vunpack.c.h.b16 %v2351
  %v2418 = vunpack.c.l.b16 %v2352
  %v2419 = vunpack.c.h.b16 %v2352
  %v2420 = vunpack.c.l.b16 %v2353
  %v2421 = vunpack.c.h.b16 %v2353
  %v2422 = vunpack.c.l.b16 %v2354
  %v2423 = vunpack.c.h.b16 %v2354
  %v2424 = vunpack.c.l.b16 %v2355
  %v2425 = vunpack.c.h.b16 %v2355
  %v2426 = vunpack.c.l.b16 %v2356
  %v2427 = vunpack.c.h.b16 %v2356
  %v2428 = vunpack.c.l.b16 %v2357
  %v2429 = vunpack.c.h.b16 %v2357
  %v2430 = vunpack.c.l.b16 %v2358
  %v2431 = vunpack.c.h.b16 %v2358
  %v2432 = vunpack.c.l.b16 %v2359
  %v2433 = vunpack.c.h.b16 %v2359
  %v2434 = vunpack.c.l.b16 %v2360
  %v2435 = vunpack.c.h.b16 %v2360
  %v2436 = vunpack.c.l.b16 %v2361
  %v2437 = vunpack.c.h.b16 %v2361
  %v2438 = vunpack.c.l.b16 %v2362
  %v2439 = vunpack.c.h.b16 %v2362
  %v2440 = vunpack.c.l.b16 %v2363
  %v2441 = vunpack.c.h.b16 %v2363
  %v2442 = vunpack.c.l.b16 %v2364
  %v2443 = vunpack.c.h.b16 %v2364
  %v2444 = vunpack.c.l.b16 %v2365
  %v2445 = vunpack.c.h.b16 %v2365
  %v2446 = vunpack.c.l.b16 %v2366
  %v2447 = vunpack.c.h.b16 %v2366
  %v2448 = vunpack.c.l.b16 %v2367
  %v2449 = vunpack.c.h.b16 %v2367
  %v2450 = vunpack.c.l.b16 %v2368
  %v2451 = vunpack.c.h.b16 %v2368
  %v2452 = vunpack.c.l.b16 %v2369
  %v2453 = vunpack.c.h.b16 %v2369
  %v2454 = vunpack.c.l.b16 %v2370
  %v2455 = vunpack.c.h.b16 %v2370
  %v2456 = vunpack.c.l.b16 %v2371
  %v2457 = vunpack.c.h.b16 %v2371
  %v2458 = vunpack.c.l.b16 %v2372
  %v2459 = vunpack.c.h.b16 %v2372
  %v2460 = vunpack.c.l.b16 %v2373
  %v2461 = vunpack.c.h.b16 %v2373
  %v2462 = vunpack.c.l.b16 %v2374
  %v2463 = vunpack.c.h.b16 %v2374
  %v2464 = vunpack.c.l.b16 %v2375
  %v2465 = vunpack.c.h.b16 %v2375
  %v2466 = vunpack.c.l.b16 %v2376
  %v2467 = vunpack.c.h.b16 %v2376
  %v2468 = vunpack.c.l.b16 %v2377
  %v2469 = vunpack.c.h.b16 %v2377
  %v2470 = vunpack.c.l.b16 %v2378
  %v2471 = vunpack.c.h.b16 %v2378
  %v2472 = vunpack.c.l.b16 %v2379
  %v2473 = vunpack.c.h.b16 %v2379
  %v2474 = vunpack.c.l.b16 %v2380
  %v2475 = vunpack.c.h.b16 %v2380
  %v2476 = vunpack.c.l.b16 %v2381
  %v2477 = vunpack.c.h.b16 %v2381
  %v2478 = vpack.c.b16 %v2416, %v2414
  %v2479 = vpack.c.b16 %v2417, %v2415
  %v2480 = vpack.c.b16 %v2420, %v2418
  %v2481 = vpack.c.b16 %v2421, %v2419
  %v2482 = vpack.c.b16 %v2424, %v2422
  %v2483 = vpack.c.b16 %v2425, %v2423
  %v2484 = vpack.c.b16 %v2428, %v2426
  %v2485 = vpack.c.b16 %v2429, %v2427
  %v2486 = vpack.c.b16 %v2432, %v2430
  %v2487 = vpack.c.b16 %v2433, %v2431
  %v2488 = vpack.c.b16 %v2436, %v2434
  %v2489 = vpack.c.b16 %v2437, %v2435
  %v2490 = vpack.c.b16 %v2440, %v2438
  %v2491 = vpack.c.b16 %v2441, %v2439
  %v2492 = vpack.c.b16 %v2444, %v2442
  %v2493 = vpack.c.b16 %v2445, %v2443
  %v2494 = vpack.c.b16 %v2448, %v2446
  %v2495 = vpack.c.b16 %v2449, %v2447
  %v2496 = vpack.c.b16 %v2452, %v2450
  %v2497 = vpack.c.b16 %v2453, %v2451
  %v2498 = vpack.c.b16 %v2456, %v2454
  %v2499 = vpack.c.b16 %v2457, %v2455
  %v2500 = vpack.c.b16 %v2460, %v2458
  %v2501 = vpack.c.b16 %v2461, %v2459
  %v2502 = vpack.c.b16 %v2464, %v2462
  %v2503 = vpack.c.b16 %v2465, %v2463
  %v2504 = vpack.c.b16 %v2468, %v2466
  %v2505 = vpack.c.b16 %v2469, %v2467
  %v2506 = vpack.c.b16 %v2472, %v2470
  %v2507 = vpack.c.b16 %v2473, %v2471
  %v2508 = vpack.c.b16 %v2476, %v2474
  %v2509 = vpack.c.b16 %v2477, %v2475
  %2542 = vmatprep.subr.bf16.mxu0 %v2493
  %2543 = vmatpush1.bf16.msra.mxu0 %v2492
  %2544 = vmatprep.subr.bf16.mxu0 %v2491
  %2545 = vmatpush1.bf16.msra.mxu0 %v2490
  %2546 = vmatprep.subr.bf16.mxu0 %v2489
  %2547 = vmatpush1.bf16.msra.mxu0 %v2488
  %2548 = vmatprep.subr.bf16.mxu0 %v2487
  %2549 = vmatpush1.bf16.msra.mxu0 %v2486
  %2550 = vmatprep.subr.bf16.mxu0 %v2485
  %2551 = vmatpush1.bf16.msra.mxu0 %v2484
  %2552 = vmatprep.subr.bf16.mxu0 %v2483
  %2553 = vmatpush1.bf16.msra.mxu0 %v2482
  %2554 = vmatprep.subr.bf16.mxu0 %v2481
  %2555 = vmatpush1.bf16.msra.mxu0 %v2480
  %2556 = vmatprep.subr.bf16.mxu0 %v2479
  %2557 = vmatpush1.bf16.msra.mxu0 %v2478
  %2558 = vmatprep.subr.bf16.mxu0 %v2509
  %2559 = vmatpush2.bf16.msra.mxu0 %v2508
  %2560 = vmatprep.subr.bf16.mxu0 %v2507
  %2561 = vmatpush2.bf16.msra.mxu0 %v2506
  %2562 = vmatprep.subr.bf16.mxu0 %v2505
  %2563 = vmatpush2.bf16.msra.mxu0 %v2504
  %2564 = vmatprep.subr.bf16.mxu0 %v2503
  %2565 = vmatpush2.bf16.msra.mxu0 %v2502
  %2566 = vmatprep.subr.bf16.mxu0 %v2501
  %2567 = vmatpush2.bf16.msra.mxu0 %v2500
  %2568 = vmatprep.subr.bf16.mxu0 %v2499
  %2569 = vmatpush2.bf16.msra.mxu0 %v2498
  %2570 = vmatprep.subr.bf16.mxu0 %v2497
  %2571 = vmatpush2.bf16.msra.mxu0 %v2496
  %2572 = vmatprep.subr.bf16.mxu0 %v2495
  %2573 = vmatpush2.bf16.msra.mxu0 %v2494
  %2574 = vmatprep.mubr.bf16.mxu0 %v1865
  %2575 = vmatmul.mubr.bf16.gmra.mxu0 %v1864
  %v2576 = vpop.f32.mrf.mxu0
  %v2577 = vadd.f32 0.0, %v2576
  %v2578 = vpop.f32.mrf.mxu0
  %v2579 = vadd.f32 0.0, %v2578
  %v2580 = vpop.f32.mrf.mxu0
  %v2581 = vpop.f32.mrf.mxu0
  %2582 = vdwg.mxu0
  %v2583 = vadd.f32 %v2348, %v2577
  %v2584 = vadd.f32 %v2349, %v2579
  %v2585 = vmax.f32 %v2583, 0.0
  %v2586 = vmax.f32 %v2584, 0.0
  %v2587 = vpack.c.bf16 %v2585, %v2585
  %v2588 = vpack.c.bf16 %v2586, %v2586
  %v2589 = vld [vmem:[#allocation5] sm:$0xff]
  %v2590 = vld [vmem:[#allocation5 + $0x8] sm:$0xff]
  %v2591 = vld [vmem:[#allocation5 + $0x10] sm:$0xff]
  %v2592 = vld [vmem:[#allocation5 + $0x18] sm:$0xff]
  %v2593 = vld [vmem:[#allocation5 + $0x20] sm:$0xff]
  %v2594 = vld [vmem:[#allocation5 + $0x28] sm:$0xff]
  %v2595 = vld [vmem:[#allocation5 + $0x30] sm:$0xff]
  %v2596 = vld [vmem:[#allocation5 + $0x38] sm:$0xff]
  %v2597 = vld [vmem:[#allocation5 + $0x40] sm:$0xff]
  %v2598 = vld [vmem:[#allocation5 + $0x48] sm:$0xff]
  %v2599 = vld [vmem:[#allocation5 + $0x50] sm:$0xff]
  %v2600 = vld [vmem:[#allocation5 + $0x58] sm:$0xff]
  %v2601 = vld [vmem:[#allocation5 + $0x60] sm:$0xff]
  %v2602 = vld [vmem:[#allocation5 + $0x68] sm:$0xff]
  %v2603 = vld [vmem:[#allocation5 + $0x70] sm:$0xff]
  %v2604 = vld [vmem:[#allocation5 + $0x78] sm:$0xff]
  %v2605 = vld [vmem:[#allocation5 + $0x80] sm:$0xff]
  %v2606 = vld [vmem:[#allocation5 + $0x88] sm:$0xff]
  %v2607 = vld [vmem:[#allocation5 + $0x90] sm:$0xff]
  %v2608 = vld [vmem:[#allocation5 + $0x98] sm:$0xff]
  %v2609 = vld [vmem:[#allocation5 + $0xa0] sm:$0xff]
  %v2610 = vld [vmem:[#allocation5 + $0xa8] sm:$0xff]
  %v2611 = vld [vmem:[#allocation5 + $0xb0] sm:$0xff]
  %v2612 = vld [vmem:[#allocation5 + $0xb8] sm:$0xff]
  %v2613 = vld [vmem:[#allocation5 + $0xc0] sm:$0xff]
  %v2614 = vld [vmem:[#allocation5 + $0xc8] sm:$0xff]
  %v2615 = vld [vmem:[#allocation5 + $0xd0] sm:$0xff]
  %v2616 = vld [vmem:[#allocation5 + $0xd8] sm:$0xff]
  %v2617 = vld [vmem:[#allocation5 + $0xe0] sm:$0xff]
  %v2618 = vld [vmem:[#allocation5 + $0xe8] sm:$0xff]
  %v2619 = vld [vmem:[#allocation5 + $0xf0] sm:$0xff]
  %v2620 = vld [vmem:[#allocation5 + $0xf8] sm:$0xff]
  %v2621 = vld [vmem:[#allocation6] sm:$0xff]
  %v2622 = vld [vmem:[#allocation6 + $0x8] sm:$0xff]
  %v2623 = vld [vmem:[#allocation6 + $0x10] sm:$0xff]
  %v2624 = vld [vmem:[#allocation6 + $0x18] sm:$0xff]
  %v2625 = vld [vmem:[#allocation6 + $0x20] sm:$0xff]
  %v2626 = vld [vmem:[#allocation6 + $0x28] sm:$0xff]
  %v2627 = vld [vmem:[#allocation6 + $0x30] sm:$0xff]
  %v2628 = vld [vmem:[#allocation6 + $0x38] sm:$0xff]
  %v2629 = vld [vmem:[#allocation6 + $0x40] sm:$0xff]
  %v2630 = vld [vmem:[#allocation6 + $0x48] sm:$0xff]
  %v2631 = vld [vmem:[#allocation6 + $0x50] sm:$0xff]
  %v2632 = vld [vmem:[#allocation6 + $0x58] sm:$0xff]
  %v2633 = vld [vmem:[#allocation6 + $0x60] sm:$0xff]
  %v2634 = vld [vmem:[#allocation6 + $0x68] sm:$0xff]
  %v2635 = vld [vmem:[#allocation6 + $0x70] sm:$0xff]
  %v2636 = vld [vmem:[#allocation6 + $0x78] sm:$0xff]
  %v2637 = vld [vmem:[#allocation6 + $0x80] sm:$0xff]
  %v2638 = vld [vmem:[#allocation6 + $0x88] sm:$0xff]
  %v2639 = vld [vmem:[#allocation6 + $0x90] sm:$0xff]
  %v2640 = vld [vmem:[#allocation6 + $0x98] sm:$0xff]
  %v2641 = vld [vmem:[#allocation6 + $0xa0] sm:$0xff]
  %v2642 = vld [vmem:[#allocation6 + $0xa8] sm:$0xff]
  %v2643 = vld [vmem:[#allocation6 + $0xb0] sm:$0xff]
  %v2644 = vld [vmem:[#allocation6 + $0xb8] sm:$0xff]
  %v2645 = vld [vmem:[#allocation6 + $0xc0] sm:$0xff]
  %v2646 = vld [vmem:[#allocation6 + $0xc8] sm:$0xff]
  %v2647 = vld [vmem:[#allocation6 + $0xd0] sm:$0xff]
  %v2648 = vld [vmem:[#allocation6 + $0xd8] sm:$0xff]
  %v2649 = vld [vmem:[#allocation6 + $0xe0] sm:$0xff]
  %v2650 = vld [vmem:[#allocation6 + $0xe8] sm:$0xff]
  %v2651 = vld [vmem:[#allocation6 + $0xf0] sm:$0xff]
  %v2652 = vld [vmem:[#allocation6 + $0xf8] sm:$0xff]
  %v2685 = vunpack.c.l.b16 %v2621
  %v2686 = vunpack.c.h.b16 %v2621
  %v2687 = vunpack.c.l.b16 %v2622
  %v2688 = vunpack.c.h.b16 %v2622
  %v2689 = vunpack.c.l.b16 %v2623
  %v2690 = vunpack.c.h.b16 %v2623
  %v2691 = vunpack.c.l.b16 %v2624
  %v2692 = vunpack.c.h.b16 %v2624
  %v2693 = vunpack.c.l.b16 %v2625
  %v2694 = vunpack.c.h.b16 %v2625
  %v2695 = vunpack.c.l.b16 %v2626
  %v2696 = vunpack.c.h.b16 %v2626
  %v2697 = vunpack.c.l.b16 %v2627
  %v2698 = vunpack.c.h.b16 %v2627
  %v2699 = vunpack.c.l.b16 %v2628
  %v2700 = vunpack.c.h.b16 %v2628
  %v2701 = vunpack.c.l.b16 %v2629
  %v2702 = vunpack.c.h.b16 %v2629
  %v2703 = vunpack.c.l.b16 %v2630
  %v2704 = vunpack.c.h.b16 %v2630
  %v2705 = vunpack.c.l.b16 %v2631
  %v2706 = vunpack.c.h.b16 %v2631
  %v2707 = vunpack.c.l.b16 %v2632
  %v2708 = vunpack.c.h.b16 %v2632
  %v2709 = vunpack.c.l.b16 %v2633
  %v2710 = vunpack.c.h.b16 %v2633
  %v2711 = vunpack.c.l.b16 %v2634
  %v2712 = vunpack.c.h.b16 %v2634
  %v2713 = vunpack.c.l.b16 %v2635
  %v2714 = vunpack.c.h.b16 %v2635
  %v2715 = vunpack.c.l.b16 %v2636
  %v2716 = vunpack.c.h.b16 %v2636
  %v2717 = vunpack.c.l.b16 %v2637
  %v2718 = vunpack.c.h.b16 %v2637
  %v2719 = vunpack.c.l.b16 %v2638
  %v2720 = vunpack.c.h.b16 %v2638
  %v2721 = vunpack.c.l.b16 %v2639
  %v2722 = vunpack.c.h.b16 %v2639
  %v2723 = vunpack.c.l.b16 %v2640
  %v2724 = vunpack.c.h.b16 %v2640
  %v2725 = vunpack.c.l.b16 %v2641
  %v2726 = vunpack.c.h.b16 %v2641
  %v2727 = vunpack.c.l.b16 %v2642
  %v2728 = vunpack.c.h.b16 %v2642
  %v2729 = vunpack.c.l.b16 %v2643
  %v2730 = vunpack.c.h.b16 %v2643
  %v2731 = vunpack.c.l.b16 %v2644
  %v2732 = vunpack.c.h.b16 %v2644
  %v2733 = vunpack.c.l.b16 %v2645
  %v2734 = vunpack.c.h.b16 %v2645
  %v2735 = vunpack.c.l.b16 %v2646
  %v2736 = vunpack.c.h.b16 %v2646
  %v2737 = vunpack.c.l.b16 %v2647
  %v2738 = vunpack.c.h.b16 %v2647
  %v2739 = vunpack.c.l.b16 %v2648
  %v2740 = vunpack.c.h.b16 %v2648
  %v2741 = vunpack.c.l.b16 %v2649
  %v2742 = vunpack.c.h.b16 %v2649
  %v2743 = vunpack.c.l.b16 %v2650
  %v2744 = vunpack.c.h.b16 %v2650
  %v2745 = vunpack.c.l.b16 %v2651
  %v2746 = vunpack.c.h.b16 %v2651
  %v2747 = vunpack.c.l.b16 %v2652
  %v2748 = vunpack.c.h.b16 %v2652
  %v2749 = vpack.c.b16 %v2687, %v2685
  %v2750 = vpack.c.b16 %v2688, %v2686
  %v2751 = vpack.c.b16 %v2691, %v2689
  %v2752 = vpack.c.b16 %v2692, %v2690
  %v2753 = vpack.c.b16 %v2695, %v2693
  %v2754 = vpack.c.b16 %v2696, %v2694
  %v2755 = vpack.c.b16 %v2699, %v2697
  %v2756 = vpack.c.b16 %v2700, %v2698
  %v2757 = vpack.c.b16 %v2703, %v2701
  %v2758 = vpack.c.b16 %v2704, %v2702
  %v2759 = vpack.c.b16 %v2707, %v2705
  %v2760 = vpack.c.b16 %v2708, %v2706
  %v2761 = vpack.c.b16 %v2711, %v2709
  %v2762 = vpack.c.b16 %v2712, %v2710
  %v2763 = vpack.c.b16 %v2715, %v2713
  %v2764 = vpack.c.b16 %v2716, %v2714
  %v2765 = vpack.c.b16 %v2719, %v2717
  %v2766 = vpack.c.b16 %v2720, %v2718
  %v2767 = vpack.c.b16 %v2723, %v2721
  %v2768 = vpack.c.b16 %v2724, %v2722
  %v2769 = vpack.c.b16 %v2727, %v2725
  %v2770 = vpack.c.b16 %v2728, %v2726
  %v2771 = vpack.c.b16 %v2731, %v2729
  %v2772 = vpack.c.b16 %v2732, %v2730
  %v2773 = vpack.c.b16 %v2735, %v2733
  %v2774 = vpack.c.b16 %v2736, %v2734
  %v2775 = vpack.c.b16 %v2739, %v2737
  %v2776 = vpack.c.b16 %v2740, %v2738
  %v2777 = vpack.c.b16 %v2743, %v2741
  %v2778 = vpack.c.b16 %v2744, %v2742
  %v2779 = vpack.c.b16 %v2747, %v2745
  %v2780 = vpack.c.b16 %v2748, %v2746
  %2813 = vmatprep.subr.bf16.mxu0 %v2764
  %2814 = vmatpush1.bf16.msra.mxu0 %v2763
  %2815 = vmatprep.subr.bf16.mxu0 %v2762
  %2816 = vmatpush1.bf16.msra.mxu0 %v2761
  %2817 = vmatprep.subr.bf16.mxu0 %v2760
  %2818 = vmatpush1.bf16.msra.mxu0 %v2759
  %2819 = vmatprep.subr.bf16.mxu0 %v2758
  %2820 = vmatpush1.bf16.msra.mxu0 %v2757
  %2821 = vmatprep.subr.bf16.mxu0 %v2756
  %2822 = vmatpush1.bf16.msra.mxu0 %v2755
  %2823 = vmatprep.subr.bf16.mxu0 %v2754
  %2824 = vmatpush1.bf16.msra.mxu0 %v2753
  %2825 = vmatprep.subr.bf16.mxu0 %v2752
  %2826 = vmatpush1.bf16.msra.mxu0 %v2751
  %2827 = vmatprep.subr.bf16.mxu0 %v2750
  %2828 = vmatpush1.bf16.msra.mxu0 %v2749
  %2829 = vmatprep.subr.bf16.mxu0 %v2780
  %2830 = vmatpush2.bf16.msra.mxu0 %v2779
  %2831 = vmatprep.subr.bf16.mxu0 %v2778
  %2832 = vmatpush2.bf16.msra.mxu0 %v2777
  %2833 = vmatprep.subr.bf16.mxu0 %v2776
  %2834 = vmatpush2.bf16.msra.mxu0 %v2775
  %2835 = vmatprep.subr.bf16.mxu0 %v2774
  %2836 = vmatpush2.bf16.msra.mxu0 %v2773
  %2837 = vmatprep.subr.bf16.mxu0 %v2772
  %2838 = vmatpush2.bf16.msra.mxu0 %v2771
  %2839 = vmatprep.subr.bf16.mxu0 %v2770
  %2840 = vmatpush2.bf16.msra.mxu0 %v2769
  %2841 = vmatprep.subr.bf16.mxu0 %v2768
  %2842 = vmatpush2.bf16.msra.mxu0 %v2767
  %2843 = vmatprep.subr.bf16.mxu0 %v2766
  %2844 = vmatpush2.bf16.msra.mxu0 %v2765
  %2845 = vmatprep.mubr.bf16.mxu0 %v2337
  %2846 = vmatmul.mubr.bf16.gmra.mxu0 %v2336
  %v2847 = vpop.f32.mrf.mxu0
  %v2848 = vadd.f32 0.0, %v2847
  %v2849 = vpop.f32.mrf.mxu0
  %v2850 = vadd.f32 0.0, %v2849
  %v2851 = vpop.f32.mrf.mxu0
  %v2852 = vpop.f32.mrf.mxu0
  %2853 = vdwg.mxu0
  %v2886 = vunpack.c.l.b16 %v2589
  %v2887 = vunpack.c.h.b16 %v2589
  %v2888 = vunpack.c.l.b16 %v2590
  %v2889 = vunpack.c.h.b16 %v2590
  %v2890 = vunpack.c.l.b16 %v2591
  %v2891 = vunpack.c.h.b16 %v2591
  %v2892 = vunpack.c.l.b16 %v2592
  %v2893 = vunpack.c.h.b16 %v2592
  %v2894 = vunpack.c.l.b16 %v2593
  %v2895 = vunpack.c.h.b16 %v2593
  %v2896 = vunpack.c.l.b16 %v2594
  %v2897 = vunpack.c.h.b16 %v2594
  %v2898 = vunpack.c.l.b16 %v2595
  %v2899 = vunpack.c.h.b16 %v2595
  %v2900 = vunpack.c.l.b16 %v2596
  %v2901 = vunpack.c.h.b16 %v2596
  %v2902 = vunpack.c.l.b16 %v2597
  %v2903 = vunpack.c.h.b16 %v2597
  %v2904 = vunpack.c.l.b16 %v2598
  %v2905 = vunpack.c.h.b16 %v2598
  %v2906 = vunpack.c.l.b16 %v2599
  %v2907 = vunpack.c.h.b16 %v2599
  %v2908 = vunpack.c.l.b16 %v2600
  %v2909 = vunpack.c.h.b16 %v2600
  %v2910 = vunpack.c.l.b16 %v2601
  %v2911 = vunpack.c.h.b16 %v2601
  %v2912 = vunpack.c.l.b16 %v2602
  %v2913 = vunpack.c.h.b16 %v2602
  %v2914 = vunpack.c.l.b16 %v2603
  %v2915 = vunpack.c.h.b16 %v2603
  %v2916 = vunpack.c.l.b16 %v2604
  %v2917 = vunpack.c.h.b16 %v2604
  %v2918 = vunpack.c.l.b16 %v2605
  %v2919 = vunpack.c.h.b16 %v2605
  %v2920 = vunpack.c.l.b16 %v2606
  %v2921 = vunpack.c.h.b16 %v2606
  %v2922 = vunpack.c.l.b16 %v2607
  %v2923 = vunpack.c.h.b16 %v2607
  %v2924 = vunpack.c.l.b16 %v2608
  %v2925 = vunpack.c.h.b16 %v2608
  %v2926 = vunpack.c.l.b16 %v2609
  %v2927 = vunpack.c.h.b16 %v2609
  %v2928 = vunpack.c.l.b16 %v2610
  %v2929 = vunpack.c.h.b16 %v2610
  %v2930 = vunpack.c.l.b16 %v2611
  %v2931 = vunpack.c.h.b16 %v2611
  %v2932 = vunpack.c.l.b16 %v2612
  %v2933 = vunpack.c.h.b16 %v2612
  %v2934 = vunpack.c.l.b16 %v2613
  %v2935 = vunpack.c.h.b16 %v2613
  %v2936 = vunpack.c.l.b16 %v2614
  %v2937 = vunpack.c.h.b16 %v2614
  %v2938 = vunpack.c.l.b16 %v2615
  %v2939 = vunpack.c.h.b16 %v2615
  %v2940 = vunpack.c.l.b16 %v2616
  %v2941 = vunpack.c.h.b16 %v2616
  %v2942 = vunpack.c.l.b16 %v2617
  %v2943 = vunpack.c.h.b16 %v2617
  %v2944 = vunpack.c.l.b16 %v2618
  %v2945 = vunpack.c.h.b16 %v2618
  %v2946 = vunpack.c.l.b16 %v2619
  %v2947 = vunpack.c.h.b16 %v2619
  %v2948 = vunpack.c.l.b16 %v2620
  %v2949 = vunpack.c.h.b16 %v2620
  %v2950 = vpack.c.b16 %v2888, %v2886
  %v2951 = vpack.c.b16 %v2889, %v2887
  %v2952 = vpack.c.b16 %v2892, %v2890
  %v2953 = vpack.c.b16 %v2893, %v2891
  %v2954 = vpack.c.b16 %v2896, %v2894
  %v2955 = vpack.c.b16 %v2897, %v2895
  %v2956 = vpack.c.b16 %v2900, %v2898
  %v2957 = vpack.c.b16 %v2901, %v2899
  %v2958 = vpack.c.b16 %v2904, %v2902
  %v2959 = vpack.c.b16 %v2905, %v2903
  %v2960 = vpack.c.b16 %v2908, %v2906
  %v2961 = vpack.c.b16 %v2909, %v2907
  %v2962 = vpack.c.b16 %v2912, %v2910
  %v2963 = vpack.c.b16 %v2913, %v2911
  %v2964 = vpack.c.b16 %v2916, %v2914
  %v2965 = vpack.c.b16 %v2917, %v2915
  %v2966 = vpack.c.b16 %v2920, %v2918
  %v2967 = vpack.c.b16 %v2921, %v2919
  %v2968 = vpack.c.b16 %v2924, %v2922
  %v2969 = vpack.c.b16 %v2925, %v2923
  %v2970 = vpack.c.b16 %v2928, %v2926
  %v2971 = vpack.c.b16 %v2929, %v2927
  %v2972 = vpack.c.b16 %v2932, %v2930
  %v2973 = vpack.c.b16 %v2933, %v2931
  %v2974 = vpack.c.b16 %v2936, %v2934
  %v2975 = vpack.c.b16 %v2937, %v2935
  %v2976 = vpack.c.b16 %v2940, %v2938
  %v2977 = vpack.c.b16 %v2941, %v2939
  %v2978 = vpack.c.b16 %v2944, %v2942
  %v2979 = vpack.c.b16 %v2945, %v2943
  %v2980 = vpack.c.b16 %v2948, %v2946
  %v2981 = vpack.c.b16 %v2949, %v2947
  %3014 = vmatprep.subr.bf16.mxu0 %v2965
  %3015 = vmatpush1.bf16.msra.mxu0 %v2964
  %3016 = vmatprep.subr.bf16.mxu0 %v2963
  %3017 = vmatpush1.bf16.msra.mxu0 %v2962
  %3018 = vmatprep.subr.bf16.mxu0 %v2961
  %3019 = vmatpush1.bf16.msra.mxu0 %v2960
  %3020 = vmatprep.subr.bf16.mxu0 %v2959
  %3021 = vmatpush1.bf16.msra.mxu0 %v2958
  %3022 = vmatprep.subr.bf16.mxu0 %v2957
  %3023 = vmatpush1.bf16.msra.mxu0 %v2956
  %3024 = vmatprep.subr.bf16.mxu0 %v2955
  %3025 = vmatpush1.bf16.msra.mxu0 %v2954
  %3026 = vmatprep.subr.bf16.mxu0 %v2953
  %3027 = vmatpush1.bf16.msra.mxu0 %v2952
  %3028 = vmatprep.subr.bf16.mxu0 %v2951
  %3029 = vmatpush1.bf16.msra.mxu0 %v2950
  %3030 = vmatprep.subr.bf16.mxu0 %v2981
  %3031 = vmatpush2.bf16.msra.mxu0 %v2980
  %3032 = vmatprep.subr.bf16.mxu0 %v2979
  %3033 = vmatpush2.bf16.msra.mxu0 %v2978
  %3034 = vmatprep.subr.bf16.mxu0 %v2977
  %3035 = vmatpush2.bf16.msra.mxu0 %v2976
  %3036 = vmatprep.subr.bf16.mxu0 %v2975
  %3037 = vmatpush2.bf16.msra.mxu0 %v2974
  %3038 = vmatprep.subr.bf16.mxu0 %v2973
  %3039 = vmatpush2.bf16.msra.mxu0 %v2972
  %3040 = vmatprep.subr.bf16.mxu0 %v2971
  %3041 = vmatpush2.bf16.msra.mxu0 %v2970
  %3042 = vmatprep.subr.bf16.mxu0 %v2969
  %3043 = vmatpush2.bf16.msra.mxu0 %v2968
  %3044 = vmatprep.subr.bf16.mxu0 %v2967
  %3045 = vmatpush2.bf16.msra.mxu0 %v2966
  %3046 = vmatprep.mubr.bf16.mxu0 %v2588
  %3047 = vmatmul.mubr.bf16.gmra.mxu0 %v2587
  %v3048 = vpop.f32.mrf.mxu0
  %v3049 = vadd.f32 %v2848, %v3048
  %v3050 = vpop.f32.mrf.mxu0
  %v3051 = vadd.f32 %v2850, %v3050
  %v3052 = vpop.f32.mrf.mxu0
  %v3053 = vpop.f32.mrf.mxu0
  %3054 = vdwg.mxu0
  %v3055 = vadd.f32 %v3049, %v880
  %v3056 = vadd.f32 %v3051, %v884
  %v3057 = vmax.f32 %v3055, 0.0
  %v3058 = vmax.f32 %v3056, 0.0
  %v3059 = vpack.c.bf16 %v3057, %v3057
  %v3060 = vpack.c.bf16 %v3058, %v3058
  %v3063 = vunpack.c.l.b16 %v3059
  %v3064 = vunpack.c.l.b16 %v3060
  %v3065 = vpack.c.b16 %v3064, %v3063
  %s3067 = scalar_lea.vmem %s5, 24
  %3068 = vst [vmem:[%s3067] sm:$0xff] %v3065
  %s3069 = scalar_lea.vmem %s0, 32
  %v3070 = vld [vmem:[%s3069] sm:$0xff]
  %v3071 = vunpack.c.l.bf16 %v3070
  %v3072 = vunpack.c.h.bf16 %v3070
  %v3073 = vld [vmem:[#allocation4] sm:$0xff]
  %v3074 = vld [vmem:[#allocation4 + $0x8] sm:$0xff]
  %v3075 = vld [vmem:[#allocation4 + $0x10] sm:$0xff]
  %v3076 = vld [vmem:[#allocation4 + $0x18] sm:$0xff]
  %v3077 = vld [vmem:[#allocation4 + $0x20] sm:$0xff]
  %v3078 = vld [vmem:[#allocation4 + $0x28] sm:$0xff]
  %v3079 = vld [vmem:[#allocation4 + $0x30] sm:$0xff]
  %v3080 = vld [vmem:[#allocation4 + $0x38] sm:$0xff]
  %v3081 = vld [vmem:[#allocation4 + $0x40] sm:$0xff]
  %v3082 = vld [vmem:[#allocation4 + $0x48] sm:$0xff]
  %v3083 = vld [vmem:[#allocation4 + $0x50] sm:$0xff]
  %v3084 = vld [vmem:[#allocation4 + $0x58] sm:$0xff]
  %v3085 = vld [vmem:[#allocation4 + $0x60] sm:$0xff]
  %v3086 = vld [vmem:[#allocation4 + $0x68] sm:$0xff]
  %v3087 = vld [vmem:[#allocation4 + $0x70] sm:$0xff]
  %v3088 = vld [vmem:[#allocation4 + $0x78] sm:$0xff]
  %v3089 = vld [vmem:[#allocation4 + $0x80] sm:$0xff]
  %v3090 = vld [vmem:[#allocation4 + $0x88] sm:$0xff]
  %v3091 = vld [vmem:[#allocation4 + $0x90] sm:$0xff]
  %v3092 = vld [vmem:[#allocation4 + $0x98] sm:$0xff]
  %v3093 = vld [vmem:[#allocation4 + $0xa0] sm:$0xff]
  %v3094 = vld [vmem:[#allocation4 + $0xa8] sm:$0xff]
  %v3095 = vld [vmem:[#allocation4 + $0xb0] sm:$0xff]
  %v3096 = vld [vmem:[#allocation4 + $0xb8] sm:$0xff]
  %v3097 = vld [vmem:[#allocation4 + $0xc0] sm:$0xff]
  %v3098 = vld [vmem:[#allocation4 + $0xc8] sm:$0xff]
  %v3099 = vld [vmem:[#allocation4 + $0xd0] sm:$0xff]
  %v3100 = vld [vmem:[#allocation4 + $0xd8] sm:$0xff]
  %v3101 = vld [vmem:[#allocation4 + $0xe0] sm:$0xff]
  %v3102 = vld [vmem:[#allocation4 + $0xe8] sm:$0xff]
  %v3103 = vld [vmem:[#allocation4 + $0xf0] sm:$0xff]
  %v3104 = vld [vmem:[#allocation4 + $0xf8] sm:$0xff]
  %v3137 = vunpack.c.l.b16 %v3073
  %v3138 = vunpack.c.h.b16 %v3073
  %v3139 = vunpack.c.l.b16 %v3074
  %v3140 = vunpack.c.h.b16 %v3074
  %v3141 = vunpack.c.l.b16 %v3075
  %v3142 = vunpack.c.h.b16 %v3075
  %v3143 = vunpack.c.l.b16 %v3076
  %v3144 = vunpack.c.h.b16 %v3076
  %v3145 = vunpack.c.l.b16 %v3077
  %v3146 = vunpack.c.h.b16 %v3077
  %v3147 = vunpack.c.l.b16 %v3078
  %v3148 = vunpack.c.h.b16 %v3078
  %v3149 = vunpack.c.l.b16 %v3079
  %v3150 = vunpack.c.h.b16 %v3079
  %v3151 = vunpack.c.l.b16 %v3080
  %v3152 = vunpack.c.h.b16 %v3080
  %v3153 = vunpack.c.l.b16 %v3081
  %v3154 = vunpack.c.h.b16 %v3081
  %v3155 = vunpack.c.l.b16 %v3082
  %v3156 = vunpack.c.h.b16 %v3082
  %v3157 = vunpack.c.l.b16 %v3083
  %v3158 = vunpack.c.h.b16 %v3083
  %v3159 = vunpack.c.l.b16 %v3084
  %v3160 = vunpack.c.h.b16 %v3084
  %v3161 = vunpack.c.l.b16 %v3085
  %v3162 = vunpack.c.h.b16 %v3085
  %v3163 = vunpack.c.l.b16 %v3086
  %v3164 = vunpack.c.h.b16 %v3086
  %v3165 = vunpack.c.l.b16 %v3087
  %v3166 = vunpack.c.h.b16 %v3087
  %v3167 = vunpack.c.l.b16 %v3088
  %v3168 = vunpack.c.h.b16 %v3088
  %v3169 = vunpack.c.l.b16 %v3089
  %v3170 = vunpack.c.h.b16 %v3089
  %v3171 = vunpack.c.l.b16 %v3090
  %v3172 = vunpack.c.h.b16 %v3090
  %v3173 = vunpack.c.l.b16 %v3091
  %v3174 = vunpack.c.h.b16 %v3091
  %v3175 = vunpack.c.l.b16 %v3092
  %v3176 = vunpack.c.h.b16 %v3092
  %v3177 = vunpack.c.l.b16 %v3093
  %v3178 = vunpack.c.h.b16 %v3093
  %v3179 = vunpack.c.l.b16 %v3094
  %v3180 = vunpack.c.h.b16 %v3094
  %v3181 = vunpack.c.l.b16 %v3095
  %v3182 = vunpack.c.h.b16 %v3095
  %v3183 = vunpack.c.l.b16 %v3096
  %v3184 = vunpack.c.h.b16 %v3096
  %v3185 = vunpack.c.l.b16 %v3097
  %v3186 = vunpack.c.h.b16 %v3097
  %v3187 = vunpack.c.l.b16 %v3098
  %v3188 = vunpack.c.h.b16 %v3098
  %v3189 = vunpack.c.l.b16 %v3099
  %v3190 = vunpack.c.h.b16 %v3099
  %v3191 = vunpack.c.l.b16 %v3100
  %v3192 = vunpack.c.h.b16 %v3100
  %v3193 = vunpack.c.l.b16 %v3101
  %v3194 = vunpack.c.h.b16 %v3101
  %v3195 = vunpack.c.l.b16 %v3102
  %v3196 = vunpack.c.h.b16 %v3102
  %v3197 = vunpack.c.l.b16 %v3103
  %v3198 = vunpack.c.h.b16 %v3103
  %v3199 = vunpack.c.l.b16 %v3104
  %v3200 = vunpack.c.h.b16 %v3104
  %v3201 = vpack.c.b16 %v3139, %v3137
  %v3202 = vpack.c.b16 %v3140, %v3138
  %v3203 = vpack.c.b16 %v3143, %v3141
  %v3204 = vpack.c.b16 %v3144, %v3142
  %v3205 = vpack.c.b16 %v3147, %v3145
  %v3206 = vpack.c.b16 %v3148, %v3146
  %v3207 = vpack.c.b16 %v3151, %v3149
  %v3208 = vpack.c.b16 %v3152, %v3150
  %v3209 = vpack.c.b16 %v3155, %v3153
  %v3210 = vpack.c.b16 %v3156, %v3154
  %v3211 = vpack.c.b16 %v3159, %v3157
  %v3212 = vpack.c.b16 %v3160, %v3158
  %v3213 = vpack.c.b16 %v3163, %v3161
  %v3214 = vpack.c.b16 %v3164, %v3162
  %v3215 = vpack.c.b16 %v3167, %v3165
  %v3216 = vpack.c.b16 %v3168, %v3166
  %v3217 = vpack.c.b16 %v3171, %v3169
  %v3218 = vpack.c.b16 %v3172, %v3170
  %v3219 = vpack.c.b16 %v3175, %v3173
  %v3220 = vpack.c.b16 %v3176, %v3174
  %v3221 = vpack.c.b16 %v3179, %v3177
  %v3222 = vpack.c.b16 %v3180, %v3178
  %v3223 = vpack.c.b16 %v3183, %v3181
  %v3224 = vpack.c.b16 %v3184, %v3182
  %v3225 = vpack.c.b16 %v3187, %v3185
  %v3226 = vpack.c.b16 %v3188, %v3186
  %v3227 = vpack.c.b16 %v3191, %v3189
  %v3228 = vpack.c.b16 %v3192, %v3190
  %v3229 = vpack.c.b16 %v3195, %v3193
  %v3230 = vpack.c.b16 %v3196, %v3194
  %v3231 = vpack.c.b16 %v3199, %v3197
  %v3232 = vpack.c.b16 %v3200, %v3198
  %3265 = vmatprep.subr.bf16.mxu0 %v3216
  %3266 = vmatpush1.bf16.msra.mxu0 %v3215
  %3267 = vmatprep.subr.bf16.mxu0 %v3214
  %3268 = vmatpush1.bf16.msra.mxu0 %v3213
  %3269 = vmatprep.subr.bf16.mxu0 %v3212
  %3270 = vmatpush1.bf16.msra.mxu0 %v3211
  %3271 = vmatprep.subr.bf16.mxu0 %v3210
  %3272 = vmatpush1.bf16.msra.mxu0 %v3209
  %3273 = vmatprep.subr.bf16.mxu0 %v3208
  %3274 = vmatpush1.bf16.msra.mxu0 %v3207
  %3275 = vmatprep.subr.bf16.mxu0 %v3206
  %3276 = vmatpush1.bf16.msra.mxu0 %v3205
  %3277 = vmatprep.subr.bf16.mxu0 %v3204
  %3278 = vmatpush1.bf16.msra.mxu0 %v3203
  %3279 = vmatprep.subr.bf16.mxu0 %v3202
  %3280 = vmatpush1.bf16.msra.mxu0 %v3201
  %3281 = vmatprep.subr.bf16.mxu0 %v3232
  %3282 = vmatpush2.bf16.msra.mxu0 %v3231
  %3283 = vmatprep.subr.bf16.mxu0 %v3230
  %3284 = vmatpush2.bf16.msra.mxu0 %v3229
  %3285 = vmatprep.subr.bf16.mxu0 %v3228
  %3286 = vmatpush2.bf16.msra.mxu0 %v3227
  %3287 = vmatprep.subr.bf16.mxu0 %v3226
  %3288 = vmatpush2.bf16.msra.mxu0 %v3225
  %3289 = vmatprep.subr.bf16.mxu0 %v3224
  %3290 = vmatpush2.bf16.msra.mxu0 %v3223
  %3291 = vmatprep.subr.bf16.mxu0 %v3222
  %3292 = vmatpush2.bf16.msra.mxu0 %v3221
  %3293 = vmatprep.subr.bf16.mxu0 %v3220
  %3294 = vmatpush2.bf16.msra.mxu0 %v3219
  %3295 = vmatprep.subr.bf16.mxu0 %v3218
  %3296 = vmatpush2.bf16.msra.mxu0 %v3217
  %3297 = vmatprep.mubr.bf16.mxu0 %v2588
  %3298 = vmatmul.mubr.bf16.gmra.mxu0 %v2587
  %v3299 = vpop.f32.mrf.mxu0
  %v3300 = vadd.f32 0.0, %v3299
  %v3301 = vpop.f32.mrf.mxu0
  %v3302 = vadd.f32 0.0, %v3301
  %v3303 = vpop.f32.mrf.mxu0
  %v3304 = vpop.f32.mrf.mxu0
  %3305 = vdwg.mxu0
  %v3306 = vadd.f32 %v3071, %v3300
  %v3307 = vadd.f32 %v3072, %v3302
  %v3308 = vmax.f32 %v3306, 0.0
  %v3309 = vmax.f32 %v3307, 0.0
  %v3310 = vpack.c.bf16 %v3308, %v3308
  %v3311 = vpack.c.bf16 %v3309, %v3309
  %v3312 = vld [vmem:[#allocation5] sm:$0xff]
  %v3313 = vld [vmem:[#allocation5 + $0x8] sm:$0xff]
  %v3314 = vld [vmem:[#allocation5 + $0x10] sm:$0xff]
  %v3315 = vld [vmem:[#allocation5 + $0x18] sm:$0xff]
  %v3316 = vld [vmem:[#allocation5 + $0x20] sm:$0xff]
  %v3317 = vld [vmem:[#allocation5 + $0x28] sm:$0xff]
  %v3318 = vld [vmem:[#allocation5 + $0x30] sm:$0xff]
  %v3319 = vld [vmem:[#allocation5 + $0x38] sm:$0xff]
  %v3320 = vld [vmem:[#allocation5 + $0x40] sm:$0xff]
  %v3321 = vld [vmem:[#allocation5 + $0x48] sm:$0xff]
  %v3322 = vld [vmem:[#allocation5 + $0x50] sm:$0xff]
  %v3323 = vld [vmem:[#allocation5 + $0x58] sm:$0xff]
  %v3324 = vld [vmem:[#allocation5 + $0x60] sm:$0xff]
  %v3325 = vld [vmem:[#allocation5 + $0x68] sm:$0xff]
  %v3326 = vld [vmem:[#allocation5 + $0x70] sm:$0xff]
  %v3327 = vld [vmem:[#allocation5 + $0x78] sm:$0xff]
  %v3328 = vld [vmem:[#allocation5 + $0x80] sm:$0xff]
  %v3329 = vld [vmem:[#allocation5 + $0x88] sm:$0xff]
  %v3330 = vld [vmem:[#allocation5 + $0x90] sm:$0xff]
  %v3331 = vld [vmem:[#allocation5 + $0x98] sm:$0xff]
  %v3332 = vld [vmem:[#allocation5 + $0xa0] sm:$0xff]
  %v3333 = vld [vmem:[#allocation5 + $0xa8] sm:$0xff]
  %v3334 = vld [vmem:[#allocation5 + $0xb0] sm:$0xff]
  %v3335 = vld [vmem:[#allocation5 + $0xb8] sm:$0xff]
  %v3336 = vld [vmem:[#allocation5 + $0xc0] sm:$0xff]
  %v3337 = vld [vmem:[#allocation5 + $0xc8] sm:$0xff]
  %v3338 = vld [vmem:[#allocation5 + $0xd0] sm:$0xff]
  %v3339 = vld [vmem:[#allocation5 + $0xd8] sm:$0xff]
  %v3340 = vld [vmem:[#allocation5 + $0xe0] sm:$0xff]
  %v3341 = vld [vmem:[#allocation5 + $0xe8] sm:$0xff]
  %v3342 = vld [vmem:[#allocation5 + $0xf0] sm:$0xff]
  %v3343 = vld [vmem:[#allocation5 + $0xf8] sm:$0xff]
  %v3344 = vld [vmem:[#allocation6] sm:$0xff]
  %v3345 = vld [vmem:[#allocation6 + $0x8] sm:$0xff]
  %v3346 = vld [vmem:[#allocation6 + $0x10] sm:$0xff]
  %v3347 = vld [vmem:[#allocation6 + $0x18] sm:$0xff]
  %v3348 = vld [vmem:[#allocation6 + $0x20] sm:$0xff]
  %v3349 = vld [vmem:[#allocation6 + $0x28] sm:$0xff]
  %v3350 = vld [vmem:[#allocation6 + $0x30] sm:$0xff]
  %v3351 = vld [vmem:[#allocation6 + $0x38] sm:$0xff]
  %v3352 = vld [vmem:[#allocation6 + $0x40] sm:$0xff]
  %v3353 = vld [vmem:[#allocation6 + $0x48] sm:$0xff]
  %v3354 = vld [vmem:[#allocation6 + $0x50] sm:$0xff]
  %v3355 = vld [vmem:[#allocation6 + $0x58] sm:$0xff]
  %v3356 = vld [vmem:[#allocation6 + $0x60] sm:$0xff]
  %v3357 = vld [vmem:[#allocation6 + $0x68] sm:$0xff]
  %v3358 = vld [vmem:[#allocation6 + $0x70] sm:$0xff]
  %v3359 = vld [vmem:[#allocation6 + $0x78] sm:$0xff]
  %v3360 = vld [vmem:[#allocation6 + $0x80] sm:$0xff]
  %v3361 = vld [vmem:[#allocation6 + $0x88] sm:$0xff]
  %v3362 = vld [vmem:[#allocation6 + $0x90] sm:$0xff]
  %v3363 = vld [vmem:[#allocation6 + $0x98] sm:$0xff]
  %v3364 = vld [vmem:[#allocation6 + $0xa0] sm:$0xff]
  %v3365 = vld [vmem:[#allocation6 + $0xa8] sm:$0xff]
  %v3366 = vld [vmem:[#allocation6 + $0xb0] sm:$0xff]
  %v3367 = vld [vmem:[#allocation6 + $0xb8] sm:$0xff]
  %v3368 = vld [vmem:[#allocation6 + $0xc0] sm:$0xff]
  %v3369 = vld [vmem:[#allocation6 + $0xc8] sm:$0xff]
  %v3370 = vld [vmem:[#allocation6 + $0xd0] sm:$0xff]
  %v3371 = vld [vmem:[#allocation6 + $0xd8] sm:$0xff]
  %v3372 = vld [vmem:[#allocation6 + $0xe0] sm:$0xff]
  %v3373 = vld [vmem:[#allocation6 + $0xe8] sm:$0xff]
  %v3374 = vld [vmem:[#allocation6 + $0xf0] sm:$0xff]
  %v3375 = vld [vmem:[#allocation6 + $0xf8] sm:$0xff]
  %v3408 = vunpack.c.l.b16 %v3344
  %v3409 = vunpack.c.h.b16 %v3344
  %v3410 = vunpack.c.l.b16 %v3345
  %v3411 = vunpack.c.h.b16 %v3345
  %v3412 = vunpack.c.l.b16 %v3346
  %v3413 = vunpack.c.h.b16 %v3346
  %v3414 = vunpack.c.l.b16 %v3347
  %v3415 = vunpack.c.h.b16 %v3347
  %v3416 = vunpack.c.l.b16 %v3348
  %v3417 = vunpack.c.h.b16 %v3348
  %v3418 = vunpack.c.l.b16 %v3349
  %v3419 = vunpack.c.h.b16 %v3349
  %v3420 = vunpack.c.l.b16 %v3350
  %v3421 = vunpack.c.h.b16 %v3350
  %v3422 = vunpack.c.l.b16 %v3351
  %v3423 = vunpack.c.h.b16 %v3351
  %v3424 = vunpack.c.l.b16 %v3352
  %v3425 = vunpack.c.h.b16 %v3352
  %v3426 = vunpack.c.l.b16 %v3353
  %v3427 = vunpack.c.h.b16 %v3353
  %v3428 = vunpack.c.l.b16 %v3354
  %v3429 = vunpack.c.h.b16 %v3354
  %v3430 = vunpack.c.l.b16 %v3355
  %v3431 = vunpack.c.h.b16 %v3355
  %v3432 = vunpack.c.l.b16 %v3356
  %v3433 = vunpack.c.h.b16 %v3356
  %v3434 = vunpack.c.l.b16 %v3357
  %v3435 = vunpack.c.h.b16 %v3357
  %v3436 = vunpack.c.l.b16 %v3358
  %v3437 = vunpack.c.h.b16 %v3358
  %v3438 = vunpack.c.l.b16 %v3359
  %v3439 = vunpack.c.h.b16 %v3359
  %v3440 = vunpack.c.l.b16 %v3360
  %v3441 = vunpack.c.h.b16 %v3360
  %v3442 = vunpack.c.l.b16 %v3361
  %v3443 = vunpack.c.h.b16 %v3361
  %v3444 = vunpack.c.l.b16 %v3362
  %v3445 = vunpack.c.h.b16 %v3362
  %v3446 = vunpack.c.l.b16 %v3363
  %v3447 = vunpack.c.h.b16 %v3363
  %v3448 = vunpack.c.l.b16 %v3364
  %v3449 = vunpack.c.h.b16 %v3364
  %v3450 = vunpack.c.l.b16 %v3365
  %v3451 = vunpack.c.h.b16 %v3365
  %v3452 = vunpack.c.l.b16 %v3366
  %v3453 = vunpack.c.h.b16 %v3366
  %v3454 = vunpack.c.l.b16 %v3367
  %v3455 = vunpack.c.h.b16 %v3367
  %v3456 = vunpack.c.l.b16 %v3368
  %v3457 = vunpack.c.h.b16 %v3368
  %v3458 = vunpack.c.l.b16 %v3369
  %v3459 = vunpack.c.h.b16 %v3369
  %v3460 = vunpack.c.l.b16 %v3370
  %v3461 = vunpack.c.h.b16 %v3370
  %v3462 = vunpack.c.l.b16 %v3371
  %v3463 = vunpack.c.h.b16 %v3371
  %v3464 = vunpack.c.l.b16 %v3372
  %v3465 = vunpack.c.h.b16 %v3372
  %v3466 = vunpack.c.l.b16 %v3373
  %v3467 = vunpack.c.h.b16 %v3373
  %v3468 = vunpack.c.l.b16 %v3374
  %v3469 = vunpack.c.h.b16 %v3374
  %v3470 = vunpack.c.l.b16 %v3375
  %v3471 = vunpack.c.h.b16 %v3375
  %v3472 = vpack.c.b16 %v3410, %v3408
  %v3473 = vpack.c.b16 %v3411, %v3409
  %v3474 = vpack.c.b16 %v3414, %v3412
  %v3475 = vpack.c.b16 %v3415, %v3413
  %v3476 = vpack.c.b16 %v3418, %v3416
  %v3477 = vpack.c.b16 %v3419, %v3417
  %v3478 = vpack.c.b16 %v3422, %v3420
  %v3479 = vpack.c.b16 %v3423, %v3421
  %v3480 = vpack.c.b16 %v3426, %v3424
  %v3481 = vpack.c.b16 %v3427, %v3425
  %v3482 = vpack.c.b16 %v3430, %v3428
  %v3483 = vpack.c.b16 %v3431, %v3429
  %v3484 = vpack.c.b16 %v3434, %v3432
  %v3485 = vpack.c.b16 %v3435, %v3433
  %v3486 = vpack.c.b16 %v3438, %v3436
  %v3487 = vpack.c.b16 %v3439, %v3437
  %v3488 = vpack.c.b16 %v3442, %v3440
  %v3489 = vpack.c.b16 %v3443, %v3441
  %v3490 = vpack.c.b16 %v3446, %v3444
  %v3491 = vpack.c.b16 %v3447, %v3445
  %v3492 = vpack.c.b16 %v3450, %v3448
  %v3493 = vpack.c.b16 %v3451, %v3449
  %v3494 = vpack.c.b16 %v3454, %v3452
  %v3495 = vpack.c.b16 %v3455, %v3453
  %v3496 = vpack.c.b16 %v3458, %v3456
  %v3497 = vpack.c.b16 %v3459, %v3457
  %v3498 = vpack.c.b16 %v3462, %v3460
  %v3499 = vpack.c.b16 %v3463, %v3461
  %v3500 = vpack.c.b16 %v3466, %v3464
  %v3501 = vpack.c.b16 %v3467, %v3465
  %v3502 = vpack.c.b16 %v3470, %v3468
  %v3503 = vpack.c.b16 %v3471, %v3469
  %3536 = vmatprep.subr.bf16.mxu0 %v3487
  %3537 = vmatpush1.bf16.msra.mxu0 %v3486
  %3538 = vmatprep.subr.bf16.mxu0 %v3485
  %3539 = vmatpush1.bf16.msra.mxu0 %v3484
  %3540 = vmatprep.subr.bf16.mxu0 %v3483
  %3541 = vmatpush1.bf16.msra.mxu0 %v3482
  %3542 = vmatprep.subr.bf16.mxu0 %v3481
  %3543 = vmatpush1.bf16.msra.mxu0 %v3480
  %3544 = vmatprep.subr.bf16.mxu0 %v3479
  %3545 = vmatpush1.bf16.msra.mxu0 %v3478
  %3546 = vmatprep.subr.bf16.mxu0 %v3477
  %3547 = vmatpush1.bf16.msra.mxu0 %v3476
  %3548 = vmatprep.subr.bf16.mxu0 %v3475
  %3549 = vmatpush1.bf16.msra.mxu0 %v3474
  %3550 = vmatprep.subr.bf16.mxu0 %v3473
  %3551 = vmatpush1.bf16.msra.mxu0 %v3472
  %3552 = vmatprep.subr.bf16.mxu0 %v3503
  %3553 = vmatpush2.bf16.msra.mxu0 %v3502
  %3554 = vmatprep.subr.bf16.mxu0 %v3501
  %3555 = vmatpush2.bf16.msra.mxu0 %v3500
  %3556 = vmatprep.subr.bf16.mxu0 %v3499
  %3557 = vmatpush2.bf16.msra.mxu0 %v3498
  %3558 = vmatprep.subr.bf16.mxu0 %v3497
  %3559 = vmatpush2.bf16.msra.mxu0 %v3496
  %3560 = vmatprep.subr.bf16.mxu0 %v3495
  %3561 = vmatpush2.bf16.msra.mxu0 %v3494
  %3562 = vmatprep.subr.bf16.mxu0 %v3493
  %3563 = vmatpush2.bf16.msra.mxu0 %v3492
  %3564 = vmatprep.subr.bf16.mxu0 %v3491
  %3565 = vmatpush2.bf16.msra.mxu0 %v3490
  %3566 = vmatprep.subr.bf16.mxu0 %v3489
  %3567 = vmatpush2.bf16.msra.mxu0 %v3488
  %3568 = vmatprep.mubr.bf16.mxu0 %v3060
  %3569 = vmatmul.mubr.bf16.gmra.mxu0 %v3059
  %v3570 = vpop.f32.mrf.mxu0
  %v3571 = vadd.f32 0.0, %v3570
  %v3572 = vpop.f32.mrf.mxu0
  %v3573 = vadd.f32 0.0, %v3572
  %v3574 = vpop.f32.mrf.mxu0
  %v3575 = vpop.f32.mrf.mxu0
  %3576 = vdwg.mxu0
  %v3609 = vunpack.c.l.b16 %v3312
  %v3610 = vunpack.c.h.b16 %v3312
  %v3611 = vunpack.c.l.b16 %v3313
  %v3612 = vunpack.c.h.b16 %v3313
  %v3613 = vunpack.c.l.b16 %v3314
  %v3614 = vunpack.c.h.b16 %v3314
  %v3615 = vunpack.c.l.b16 %v3315
  %v3616 = vunpack.c.h.b16 %v3315
  %v3617 = vunpack.c.l.b16 %v3316
  %v3618 = vunpack.c.h.b16 %v3316
  %v3619 = vunpack.c.l.b16 %v3317
  %v3620 = vunpack.c.h.b16 %v3317
  %v3621 = vunpack.c.l.b16 %v3318
  %v3622 = vunpack.c.h.b16 %v3318
  %v3623 = vunpack.c.l.b16 %v3319
  %v3624 = vunpack.c.h.b16 %v3319
  %v3625 = vunpack.c.l.b16 %v3320
  %v3626 = vunpack.c.h.b16 %v3320
  %v3627 = vunpack.c.l.b16 %v3321
  %v3628 = vunpack.c.h.b16 %v3321
  %v3629 = vunpack.c.l.b16 %v3322
  %v3630 = vunpack.c.h.b16 %v3322
  %v3631 = vunpack.c.l.b16 %v3323
  %v3632 = vunpack.c.h.b16 %v3323
  %v3633 = vunpack.c.l.b16 %v3324
  %v3634 = vunpack.c.h.b16 %v3324
  %v3635 = vunpack.c.l.b16 %v3325
  %v3636 = vunpack.c.h.b16 %v3325
  %v3637 = vunpack.c.l.b16 %v3326
  %v3638 = vunpack.c.h.b16 %v3326
  %v3639 = vunpack.c.l.b16 %v3327
  %v3640 = vunpack.c.h.b16 %v3327
  %v3641 = vunpack.c.l.b16 %v3328
  %v3642 = vunpack.c.h.b16 %v3328
  %v3643 = vunpack.c.l.b16 %v3329
  %v3644 = vunpack.c.h.b16 %v3329
  %v3645 = vunpack.c.l.b16 %v3330
  %v3646 = vunpack.c.h.b16 %v3330
  %v3647 = vunpack.c.l.b16 %v3331
  %v3648 = vunpack.c.h.b16 %v3331
  %v3649 = vunpack.c.l.b16 %v3332
  %v3650 = vunpack.c.h.b16 %v3332
  %v3651 = vunpack.c.l.b16 %v3333
  %v3652 = vunpack.c.h.b16 %v3333
  %v3653 = vunpack.c.l.b16 %v3334
  %v3654 = vunpack.c.h.b16 %v3334
  %v3655 = vunpack.c.l.b16 %v3335
  %v3656 = vunpack.c.h.b16 %v3335
  %v3657 = vunpack.c.l.b16 %v3336
  %v3658 = vunpack.c.h.b16 %v3336
  %v3659 = vunpack.c.l.b16 %v3337
  %v3660 = vunpack.c.h.b16 %v3337
  %v3661 = vunpack.c.l.b16 %v3338
  %v3662 = vunpack.c.h.b16 %v3338
  %v3663 = vunpack.c.l.b16 %v3339
  %v3664 = vunpack.c.h.b16 %v3339
  %v3665 = vunpack.c.l.b16 %v3340
  %v3666 = vunpack.c.h.b16 %v3340
  %v3667 = vunpack.c.l.b16 %v3341
  %v3668 = vunpack.c.h.b16 %v3341
  %v3669 = vunpack.c.l.b16 %v3342
  %v3670 = vunpack.c.h.b16 %v3342
  %v3671 = vunpack.c.l.b16 %v3343
  %v3672 = vunpack.c.h.b16 %v3343
  %v3673 = vpack.c.b16 %v3611, %v3609
  %v3674 = vpack.c.b16 %v3612, %v3610
  %v3675 = vpack.c.b16 %v3615, %v3613
  %v3676 = vpack.c.b16 %v3616, %v3614
  %v3677 = vpack.c.b16 %v3619, %v3617
  %v3678 = vpack.c.b16 %v3620, %v3618
  %v3679 = vpack.c.b16 %v3623, %v3621
  %v3680 = vpack.c.b16 %v3624, %v3622
  %v3681 = vpack.c.b16 %v3627, %v3625
  %v3682 = vpack.c.b16 %v3628, %v3626
  %v3683 = vpack.c.b16 %v3631, %v3629
  %v3684 = vpack.c.b16 %v3632, %v3630
  %v3685 = vpack.c.b16 %v3635, %v3633
  %v3686 = vpack.c.b16 %v3636, %v3634
  %v3687 = vpack.c.b16 %v3639, %v3637
  %v3688 = vpack.c.b16 %v3640, %v3638
  %v3689 = vpack.c.b16 %v3643, %v3641
  %v3690 = vpack.c.b16 %v3644, %v3642
  %v3691 = vpack.c.b16 %v3647, %v3645
  %v3692 = vpack.c.b16 %v3648, %v3646
  %v3693 = vpack.c.b16 %v3651, %v3649
  %v3694 = vpack.c.b16 %v3652, %v3650
  %v3695 = vpack.c.b16 %v3655, %v3653
  %v3696 = vpack.c.b16 %v3656, %v3654
  %v3697 = vpack.c.b16 %v3659, %v3657
  %v3698 = vpack.c.b16 %v3660, %v3658
  %v3699 = vpack.c.b16 %v3663, %v3661
  %v3700 = vpack.c.b16 %v3664, %v3662
  %v3701 = vpack.c.b16 %v3667, %v3665
  %v3702 = vpack.c.b16 %v3668, %v3666
  %v3703 = vpack.c.b16 %v3671, %v3669
  %v3704 = vpack.c.b16 %v3672, %v3670
  %3737 = vmatprep.subr.bf16.mxu0 %v3688
  %3738 = vmatpush1.bf16.msra.mxu0 %v3687
  %3739 = vmatprep.subr.bf16.mxu0 %v3686
  %3740 = vmatpush1.bf16.msra.mxu0 %v3685
  %3741 = vmatprep.subr.bf16.mxu0 %v3684
  %3742 = vmatpush1.bf16.msra.mxu0 %v3683
  %3743 = vmatprep.subr.bf16.mxu0 %v3682
  %3744 = vmatpush1.bf16.msra.mxu0 %v3681
  %3745 = vmatprep.subr.bf16.mxu0 %v3680
  %3746 = vmatpush1.bf16.msra.mxu0 %v3679
  %3747 = vmatprep.subr.bf16.mxu0 %v3678
  %3748 = vmatpush1.bf16.msra.mxu0 %v3677
  %3749 = vmatprep.subr.bf16.mxu0 %v3676
  %3750 = vmatpush1.bf16.msra.mxu0 %v3675
  %3751 = vmatprep.subr.bf16.mxu0 %v3674
  %3752 = vmatpush1.bf16.msra.mxu0 %v3673
  %3753 = vmatprep.subr.bf16.mxu0 %v3704
  %3754 = vmatpush2.bf16.msra.mxu0 %v3703
  %3755 = vmatprep.subr.bf16.mxu0 %v3702
  %3756 = vmatpush2.bf16.msra.mxu0 %v3701
  %3757 = vmatprep.subr.bf16.mxu0 %v3700
  %3758 = vmatpush2.bf16.msra.mxu0 %v3699
  %3759 = vmatprep.subr.bf16.mxu0 %v3698
  %3760 = vmatpush2.bf16.msra.mxu0 %v3697
  %3761 = vmatprep.subr.bf16.mxu0 %v3696
  %3762 = vmatpush2.bf16.msra.mxu0 %v3695
  %3763 = vmatprep.subr.bf16.mxu0 %v3694
  %3764 = vmatpush2.bf16.msra.mxu0 %v3693
  %3765 = vmatprep.subr.bf16.mxu0 %v3692
  %3766 = vmatpush2.bf16.msra.mxu0 %v3691
  %3767 = vmatprep.subr.bf16.mxu0 %v3690
  %3768 = vmatpush2.bf16.msra.mxu0 %v3689
  %3769 = vmatprep.mubr.bf16.mxu0 %v3311
  %3770 = vmatmul.mubr.bf16.gmra.mxu0 %v3310
  %v3771 = vpop.f32.mrf.mxu0
  %v3772 = vadd.f32 %v3571, %v3771
  %v3773 = vpop.f32.mrf.mxu0
  %v3774 = vadd.f32 %v3573, %v3773
  %v3775 = vpop.f32.mrf.mxu0
  %v3776 = vpop.f32.mrf.mxu0
  %3777 = vdwg.mxu0
  %v3778 = vadd.f32 %v3772, %v880
  %v3779 = vadd.f32 %v3774, %v884
  %v3780 = vmax.f32 %v3778, 0.0
  %v3781 = vmax.f32 %v3779, 0.0
  %v3782 = vpack.c.bf16 %v3780, %v3780
  %v3783 = vpack.c.bf16 %v3781, %v3781
  %v3786 = vunpack.c.l.b16 %v3782
  %v3787 = vunpack.c.l.b16 %v3783
  %v3788 = vpack.c.b16 %v3787, %v3786
  %s3790 = scalar_lea.vmem %s5, 32
  %3791 = vst [vmem:[%s3790] sm:$0xff] %v3788
  %s3792 = scalar_lea.vmem %s0, 40
  %v3793 = vld [vmem:[%s3792] sm:$0xff]
  %v3794 = vunpack.c.l.bf16 %v3793
  %v3795 = vunpack.c.h.bf16 %v3793
  %v3796 = vld [vmem:[#allocation4] sm:$0xff]
  %v3797 = vld [vmem:[#allocation4 + $0x8] sm:$0xff]
  %v3798 = vld [vmem:[#allocation4 + $0x10] sm:$0xff]
  %v3799 = vld [vmem:[#allocation4 + $0x18] sm:$0xff]
  %v3800 = vld [vmem:[#allocation4 + $0x20] sm:$0xff]
  %v3801 = vld [vmem:[#allocation4 + $0x28] sm:$0xff]
  %v3802 = vld [vmem:[#allocation4 + $0x30] sm:$0xff]
  %v3803 = vld [vmem:[#allocation4 + $0x38] sm:$0xff]
  %v3804 = vld [vmem:[#allocation4 + $0x40] sm:$0xff]
  %v3805 = vld [vmem:[#allocation4 + $0x48] sm:$0xff]
  %v3806 = vld [vmem:[#allocation4 + $0x50] sm:$0xff]
  %v3807 = vld [vmem:[#allocation4 + $0x58] sm:$0xff]
  %v3808 = vld [vmem:[#allocation4 + $0x60] sm:$0xff]
  %v3809 = vld [vmem:[#allocation4 + $0x68] sm:$0xff]
  %v3810 = vld [vmem:[#allocation4 + $0x70] sm:$0xff]
  %v3811 = vld [vmem:[#allocation4 + $0x78] sm:$0xff]
  %v3812 = vld [vmem:[#allocation4 + $0x80] sm:$0xff]
  %v3813 = vld [vmem:[#allocation4 + $0x88] sm:$0xff]
  %v3814 = vld [vmem:[#allocation4 + $0x90] sm:$0xff]
  %v3815 = vld [vmem:[#allocation4 + $0x98] sm:$0xff]
  %v3816 = vld [vmem:[#allocation4 + $0xa0] sm:$0xff]
  %v3817 = vld [vmem:[#allocation4 + $0xa8] sm:$0xff]
  %v3818 = vld [vmem:[#allocation4 + $0xb0] sm:$0xff]
  %v3819 = vld [vmem:[#allocation4 + $0xb8] sm:$0xff]
  %v3820 = vld [vmem:[#allocation4 + $0xc0] sm:$0xff]
  %v3821 = vld [vmem:[#allocation4 + $0xc8] sm:$0xff]
  %v3822 = vld [vmem:[#allocation4 + $0xd0] sm:$0xff]
  %v3823 = vld [vmem:[#allocation4 + $0xd8] sm:$0xff]
  %v3824 = vld [vmem:[#allocation4 + $0xe0] sm:$0xff]
  %v3825 = vld [vmem:[#allocation4 + $0xe8] sm:$0xff]
  %v3826 = vld [vmem:[#allocation4 + $0xf0] sm:$0xff]
  %v3827 = vld [vmem:[#allocation4 + $0xf8] sm:$0xff]
  %v3860 = vunpack.c.l.b16 %v3796
  %v3861 = vunpack.c.h.b16 %v3796
  %v3862 = vunpack.c.l.b16 %v3797
  %v3863 = vunpack.c.h.b16 %v3797
  %v3864 = vunpack.c.l.b16 %v3798
  %v3865 = vunpack.c.h.b16 %v3798
  %v3866 = vunpack.c.l.b16 %v3799
  %v3867 = vunpack.c.h.b16 %v3799
  %v3868 = vunpack.c.l.b16 %v3800
  %v3869 = vunpack.c.h.b16 %v3800
  %v3870 = vunpack.c.l.b16 %v3801
  %v3871 = vunpack.c.h.b16 %v3801
  %v3872 = vunpack.c.l.b16 %v3802
  %v3873 = vunpack.c.h.b16 %v3802
  %v3874 = vunpack.c.l.b16 %v3803
  %v3875 = vunpack.c.h.b16 %v3803
  %v3876 = vunpack.c.l.b16 %v3804
  %v3877 = vunpack.c.h.b16 %v3804
  %v3878 = vunpack.c.l.b16 %v3805
  %v3879 = vunpack.c.h.b16 %v3805
  %v3880 = vunpack.c.l.b16 %v3806
  %v3881 = vunpack.c.h.b16 %v3806
  %v3882 = vunpack.c.l.b16 %v3807
  %v3883 = vunpack.c.h.b16 %v3807
  %v3884 = vunpack.c.l.b16 %v3808
  %v3885 = vunpack.c.h.b16 %v3808
  %v3886 = vunpack.c.l.b16 %v3809
  %v3887 = vunpack.c.h.b16 %v3809
  %v3888 = vunpack.c.l.b16 %v3810
  %v3889 = vunpack.c.h.b16 %v3810
  %v3890 = vunpack.c.l.b16 %v3811
  %v3891 = vunpack.c.h.b16 %v3811
  %v3892 = vunpack.c.l.b16 %v3812
  %v3893 = vunpack.c.h.b16 %v3812
  %v3894 = vunpack.c.l.b16 %v3813
  %v3895 = vunpack.c.h.b16 %v3813
  %v3896 = vunpack.c.l.b16 %v3814
  %v3897 = vunpack.c.h.b16 %v3814
  %v3898 = vunpack.c.l.b16 %v3815
  %v3899 = vunpack.c.h.b16 %v3815
  %v3900 = vunpack.c.l.b16 %v3816
  %v3901 = vunpack.c.h.b16 %v3816
  %v3902 = vunpack.c.l.b16 %v3817
  %v3903 = vunpack.c.h.b16 %v3817
  %v3904 = vunpack.c.l.b16 %v3818
  %v3905 = vunpack.c.h.b16 %v3818
  %v3906 = vunpack.c.l.b16 %v3819
  %v3907 = vunpack.c.h.b16 %v3819
  %v3908 = vunpack.c.l.b16 %v3820
  %v3909 = vunpack.c.h.b16 %v3820
  %v3910 = vunpack.c.l.b16 %v3821
  %v3911 = vunpack.c.h.b16 %v3821
  %v3912 = vunpack.c.l.b16 %v3822
  %v3913 = vunpack.c.h.b16 %v3822
  %v3914 = vunpack.c.l.b16 %v3823
  %v3915 = vunpack.c.h.b16 %v3823
  %v3916 = vunpack.c.l.b16 %v3824
  %v3917 = vunpack.c.h.b16 %v3824
  %v3918 = vunpack.c.l.b16 %v3825
  %v3919 = vunpack.c.h.b16 %v3825
  %v3920 = vunpack.c.l.b16 %v3826
  %v3921 = vunpack.c.h.b16 %v3826
  %v3922 = vunpack.c.l.b16 %v3827
  %v3923 = vunpack.c.h.b16 %v3827
  %v3924 = vpack.c.b16 %v3862, %v3860
  %v3925 = vpack.c.b16 %v3863, %v3861
  %v3926 = vpack.c.b16 %v3866, %v3864
  %v3927 = vpack.c.b16 %v3867, %v3865
  %v3928 = vpack.c.b16 %v3870, %v3868
  %v3929 = vpack.c.b16 %v3871, %v3869
  %v3930 = vpack.c.b16 %v3874, %v3872
  %v3931 = vpack.c.b16 %v3875, %v3873
  %v3932 = vpack.c.b16 %v3878, %v3876
  %v3933 = vpack.c.b16 %v3879, %v3877
  %v3934 = vpack.c.b16 %v3882, %v3880
  %v3935 = vpack.c.b16 %v3883, %v3881
  %v3936 = vpack.c.b16 %v3886, %v3884
  %v3937 = vpack.c.b16 %v3887, %v3885
  %v3938 = vpack.c.b16 %v3890, %v3888
  %v3939 = vpack.c.b16 %v3891, %v3889
  %v3940 = vpack.c.b16 %v3894, %v3892
  %v3941 = vpack.c.b16 %v3895, %v3893
  %v3942 = vpack.c.b16 %v3898, %v3896
  %v3943 = vpack.c.b16 %v3899, %v3897
  %v3944 = vpack.c.b16 %v3902, %v3900
  %v3945 = vpack.c.b16 %v3903, %v3901
  %v3946 = vpack.c.b16 %v3906, %v3904
  %v3947 = vpack.c.b16 %v3907, %v3905
  %v3948 = vpack.c.b16 %v3910, %v3908
  %v3949 = vpack.c.b16 %v3911, %v3909
  %v3950 = vpack.c.b16 %v3914, %v3912
  %v3951 = vpack.c.b16 %v3915, %v3913
  %v3952 = vpack.c.b16 %v3918, %v3916
  %v3953 = vpack.c.b16 %v3919, %v3917
  %v3954 = vpack.c.b16 %v3922, %v3920
  %v3955 = vpack.c.b16 %v3923, %v3921
  %3988 = vmatprep.subr.bf16.mxu0 %v3939
  %3989 = vmatpush1.bf16.msra.mxu0 %v3938
  %3990 = vmatprep.subr.bf16.mxu0 %v3937
  %3991 = vmatpush1.bf16.msra.mxu0 %v3936
  %3992 = vmatprep.subr.bf16.mxu0 %v3935
  %3993 = vmatpush1.bf16.msra.mxu0 %v3934
  %3994 = vmatprep.subr.bf16.mxu0 %v3933
  %3995 = vmatpush1.bf16.msra.mxu0 %v3932
  %3996 = vmatprep.subr.bf16.mxu0 %v3931
  %3997 = vmatpush1.bf16.msra.mxu0 %v3930
  %3998 = vmatprep.subr.bf16.mxu0 %v3929
  %3999 = vmatpush1.bf16.msra.mxu0 %v3928
  %4000 = vmatprep.subr.bf16.mxu0 %v3927
  %4001 = vmatpush1.bf16.msra.mxu0 %v3926
  %4002 = vmatprep.subr.bf16.mxu0 %v3925
  %4003 = vmatpush1.bf16.msra.mxu0 %v3924
  %4004 = vmatprep.subr.bf16.mxu0 %v3955
  %4005 = vmatpush2.bf16.msra.mxu0 %v3954
  %4006 = vmatprep.subr.bf16.mxu0 %v3953
  %4007 = vmatpush2.bf16.msra.mxu0 %v3952
  %4008 = vmatprep.subr.bf16.mxu0 %v3951
  %4009 = vmatpush2.bf16.msra.mxu0 %v3950
  %4010 = vmatprep.subr.bf16.mxu0 %v3949
  %4011 = vmatpush2.bf16.msra.mxu0 %v3948
  %4012 = vmatprep.subr.bf16.mxu0 %v3947
  %4013 = vmatpush2.bf16.msra.mxu0 %v3946
  %4014 = vmatprep.subr.bf16.mxu0 %v3945
  %4015 = vmatpush2.bf16.msra.mxu0 %v3944
  %4016 = vmatprep.subr.bf16.mxu0 %v3943
  %4017 = vmatpush2.bf16.msra.mxu0 %v3942
  %4018 = vmatprep.subr.bf16.mxu0 %v3941
  %4019 = vmatpush2.bf16.msra.mxu0 %v3940
  %4020 = vmatprep.mubr.bf16.mxu0 %v3311
  %4021 = vmatmul.mubr.bf16.gmra.mxu0 %v3310
  %v4022 = vpop.f32.mrf.mxu0
  %v4023 = vadd.f32 0.0, %v4022
  %v4024 = vpop.f32.mrf.mxu0
  %v4025 = vadd.f32 0.0, %v4024
  %v4026 = vpop.f32.mrf.mxu0
  %v4027 = vpop.f32.mrf.mxu0
  %4028 = vdwg.mxu0
  %v4029 = vadd.f32 %v3794, %v4023
  %v4030 = vadd.f32 %v3795, %v4025
  %v4031 = vmax.f32 %v4029, 0.0
  %v4032 = vmax.f32 %v4030, 0.0
  %v4033 = vpack.c.bf16 %v4031, %v4031
  %v4034 = vpack.c.bf16 %v4032, %v4032
  %v4035 = vld [vmem:[#allocation5] sm:$0xff]
  %v4036 = vld [vmem:[#allocation5 + $0x8] sm:$0xff]
  %v4037 = vld [vmem:[#allocation5 + $0x10] sm:$0xff]
  %v4038 = vld [vmem:[#allocation5 + $0x18] sm:$0xff]
  %v4039 = vld [vmem:[#allocation5 + $0x20] sm:$0xff]
  %v4040 = vld [vmem:[#allocation5 + $0x28] sm:$0xff]
  %v4041 = vld [vmem:[#allocation5 + $0x30] sm:$0xff]
  %v4042 = vld [vmem:[#allocation5 + $0x38] sm:$0xff]
  %v4043 = vld [vmem:[#allocation5 + $0x40] sm:$0xff]
  %v4044 = vld [vmem:[#allocation5 + $0x48] sm:$0xff]
  %v4045 = vld [vmem:[#allocation5 + $0x50] sm:$0xff]
  %v4046 = vld [vmem:[#allocation5 + $0x58] sm:$0xff]
  %v4047 = vld [vmem:[#allocation5 + $0x60] sm:$0xff]
  %v4048 = vld [vmem:[#allocation5 + $0x68] sm:$0xff]
  %v4049 = vld [vmem:[#allocation5 + $0x70] sm:$0xff]
  %v4050 = vld [vmem:[#allocation5 + $0x78] sm:$0xff]
  %v4051 = vld [vmem:[#allocation5 + $0x80] sm:$0xff]
  %v4052 = vld [vmem:[#allocation5 + $0x88] sm:$0xff]
  %v4053 = vld [vmem:[#allocation5 + $0x90] sm:$0xff]
  %v4054 = vld [vmem:[#allocation5 + $0x98] sm:$0xff]
  %v4055 = vld [vmem:[#allocation5 + $0xa0] sm:$0xff]
  %v4056 = vld [vmem:[#allocation5 + $0xa8] sm:$0xff]
  %v4057 = vld [vmem:[#allocation5 + $0xb0] sm:$0xff]
  %v4058 = vld [vmem:[#allocation5 + $0xb8] sm:$0xff]
  %v4059 = vld [vmem:[#allocation5 + $0xc0] sm:$0xff]
  %v4060 = vld [vmem:[#allocation5 + $0xc8] sm:$0xff]
  %v4061 = vld [vmem:[#allocation5 + $0xd0] sm:$0xff]
  %v4062 = vld [vmem:[#allocation5 + $0xd8] sm:$0xff]
  %v4063 = vld [vmem:[#allocation5 + $0xe0] sm:$0xff]
  %v4064 = vld [vmem:[#allocation5 + $0xe8] sm:$0xff]
  %v4065 = vld [vmem:[#allocation5 + $0xf0] sm:$0xff]
  %v4066 = vld [vmem:[#allocation5 + $0xf8] sm:$0xff]
  %v4067 = vld [vmem:[#allocation6] sm:$0xff]
  %v4068 = vld [vmem:[#allocation6 + $0x8] sm:$0xff]
  %v4069 = vld [vmem:[#allocation6 + $0x10] sm:$0xff]
  %v4070 = vld [vmem:[#allocation6 + $0x18] sm:$0xff]
  %v4071 = vld [vmem:[#allocation6 + $0x20] sm:$0xff]
  %v4072 = vld [vmem:[#allocation6 + $0x28] sm:$0xff]
  %v4073 = vld [vmem:[#allocation6 + $0x30] sm:$0xff]
  %v4074 = vld [vmem:[#allocation6 + $0x38] sm:$0xff]
  %v4075 = vld [vmem:[#allocation6 + $0x40] sm:$0xff]
  %v4076 = vld [vmem:[#allocation6 + $0x48] sm:$0xff]
  %v4077 = vld [vmem:[#allocation6 + $0x50] sm:$0xff]
  %v4078 = vld [vmem:[#allocation6 + $0x58] sm:$0xff]
  %v4079 = vld [vmem:[#allocation6 + $0x60] sm:$0xff]
  %v4080 = vld [vmem:[#allocation6 + $0x68] sm:$0xff]
  %v4081 = vld [vmem:[#allocation6 + $0x70] sm:$0xff]
  %v4082 = vld [vmem:[#allocation6 + $0x78] sm:$0xff]
  %v4083 = vld [vmem:[#allocation6 + $0x80] sm:$0xff]
  %v4084 = vld [vmem:[#allocation6 + $0x88] sm:$0xff]
  %v4085 = vld [vmem:[#allocation6 + $0x90] sm:$0xff]
  %v4086 = vld [vmem:[#allocation6 + $0x98] sm:$0xff]
  %v4087 = vld [vmem:[#allocation6 + $0xa0] sm:$0xff]
  %v4088 = vld [vmem:[#allocation6 + $0xa8] sm:$0xff]
  %v4089 = vld [vmem:[#allocation6 + $0xb0] sm:$0xff]
  %v4090 = vld [vmem:[#allocation6 + $0xb8] sm:$0xff]
  %v4091 = vld [vmem:[#allocation6 + $0xc0] sm:$0xff]
  %v4092 = vld [vmem:[#allocation6 + $0xc8] sm:$0xff]
  %v4093 = vld [vmem:[#allocation6 + $0xd0] sm:$0xff]
  %v4094 = vld [vmem:[#allocation6 + $0xd8] sm:$0xff]
  %v4095 = vld [vmem:[#allocation6 + $0xe0] sm:$0xff]
  %v4096 = vld [vmem:[#allocation6 + $0xe8] sm:$0xff]
  %v4097 = vld [vmem:[#allocation6 + $0xf0] sm:$0xff]
  %v4098 = vld [vmem:[#allocation6 + $0xf8] sm:$0xff]
  %v4131 = vunpack.c.l.b16 %v4067
  %v4132 = vunpack.c.h.b16 %v4067
  %v4133 = vunpack.c.l.b16 %v4068
  %v4134 = vunpack.c.h.b16 %v4068
  %v4135 = vunpack.c.l.b16 %v4069
  %v4136 = vunpack.c.h.b16 %v4069
  %v4137 = vunpack.c.l.b16 %v4070
  %v4138 = vunpack.c.h.b16 %v4070
  %v4139 = vunpack.c.l.b16 %v4071
  %v4140 = vunpack.c.h.b16 %v4071
  %v4141 = vunpack.c.l.b16 %v4072
  %v4142 = vunpack.c.h.b16 %v4072
  %v4143 = vunpack.c.l.b16 %v4073
  %v4144 = vunpack.c.h.b16 %v4073
  %v4145 = vunpack.c.l.b16 %v4074
  %v4146 = vunpack.c.h.b16 %v4074
  %v4147 = vunpack.c.l.b16 %v4075
  %v4148 = vunpack.c.h.b16 %v4075
  %v4149 = vunpack.c.l.b16 %v4076
  %v4150 = vunpack.c.h.b16 %v4076
  %v4151 = vunpack.c.l.b16 %v4077
  %v4152 = vunpack.c.h.b16 %v4077
  %v4153 = vunpack.c.l.b16 %v4078
  %v4154 = vunpack.c.h.b16 %v4078
  %v4155 = vunpack.c.l.b16 %v4079
  %v4156 = vunpack.c.h.b16 %v4079
  %v4157 = vunpack.c.l.b16 %v4080
  %v4158 = vunpack.c.h.b16 %v4080
  %v4159 = vunpack.c.l.b16 %v4081
  %v4160 = vunpack.c.h.b16 %v4081
  %v4161 = vunpack.c.l.b16 %v4082
  %v4162 = vunpack.c.h.b16 %v4082
  %v4163 = vunpack.c.l.b16 %v4083
  %v4164 = vunpack.c.h.b16 %v4083
  %v4165 = vunpack.c.l.b16 %v4084
  %v4166 = vunpack.c.h.b16 %v4084
  %v4167 = vunpack.c.l.b16 %v4085
  %v4168 = vunpack.c.h.b16 %v4085
  %v4169 = vunpack.c.l.b16 %v4086
  %v4170 = vunpack.c.h.b16 %v4086
  %v4171 = vunpack.c.l.b16 %v4087
  %v4172 = vunpack.c.h.b16 %v4087
  %v4173 = vunpack.c.l.b16 %v4088
  %v4174 = vunpack.c.h.b16 %v4088
  %v4175 = vunpack.c.l.b16 %v4089
  %v4176 = vunpack.c.h.b16 %v4089
  %v4177 = vunpack.c.l.b16 %v4090
  %v4178 = vunpack.c.h.b16 %v4090
  %v4179 = vunpack.c.l.b16 %v4091
  %v4180 = vunpack.c.h.b16 %v4091
  %v4181 = vunpack.c.l.b16 %v4092
  %v4182 = vunpack.c.h.b16 %v4092
  %v4183 = vunpack.c.l.b16 %v4093
  %v4184 = vunpack.c.h.b16 %v4093
  %v4185 = vunpack.c.l.b16 %v4094
  %v4186 = vunpack.c.h.b16 %v4094
  %v4187 = vunpack.c.l.b16 %v4095
  %v4188 = vunpack.c.h.b16 %v4095
  %v4189 = vunpack.c.l.b16 %v4096
  %v4190 = vunpack.c.h.b16 %v4096
  %v4191 = vunpack.c.l.b16 %v4097
  %v4192 = vunpack.c.h.b16 %v4097
  %v4193 = vunpack.c.l.b16 %v4098
  %v4194 = vunpack.c.h.b16 %v4098
  %v4195 = vpack.c.b16 %v4133, %v4131
  %v4196 = vpack.c.b16 %v4134, %v4132
  %v4197 = vpack.c.b16 %v4137, %v4135
  %v4198 = vpack.c.b16 %v4138, %v4136
  %v4199 = vpack.c.b16 %v4141, %v4139
  %v4200 = vpack.c.b16 %v4142, %v4140
  %v4201 = vpack.c.b16 %v4145, %v4143
  %v4202 = vpack.c.b16 %v4146, %v4144
  %v4203 = vpack.c.b16 %v4149, %v4147
  %v4204 = vpack.c.b16 %v4150, %v4148
  %v4205 = vpack.c.b16 %v4153, %v4151
  %v4206 = vpack.c.b16 %v4154, %v4152
  %v4207 = vpack.c.b16 %v4157, %v4155
  %v4208 = vpack.c.b16 %v4158, %v4156
  %v4209 = vpack.c.b16 %v4161, %v4159
  %v4210 = vpack.c.b16 %v4162, %v4160
  %v4211 = vpack.c.b16 %v4165, %v4163
  %v4212 = vpack.c.b16 %v4166, %v4164
  %v4213 = vpack.c.b16 %v4169, %v4167
  %v4214 = vpack.c.b16 %v4170, %v4168
  %v4215 = vpack.c.b16 %v4173, %v4171
  %v4216 = vpack.c.b16 %v4174, %v4172
  %v4217 = vpack.c.b16 %v4177, %v4175
  %v4218 = vpack.c.b16 %v4178, %v4176
  %v4219 = vpack.c.b16 %v4181, %v4179
  %v4220 = vpack.c.b16 %v4182, %v4180
  %v4221 = vpack.c.b16 %v4185, %v4183
  %v4222 = vpack.c.b16 %v4186, %v4184
  %v4223 = vpack.c.b16 %v4189, %v4187
  %v4224 = vpack.c.b16 %v4190, %v4188
  %v4225 = vpack.c.b16 %v4193, %v4191
  %v4226 = vpack.c.b16 %v4194, %v4192
  %4259 = vmatprep.subr.bf16.mxu0 %v4210
  %4260 = vmatpush1.bf16.msra.mxu0 %v4209
  %4261 = vmatprep.subr.bf16.mxu0 %v4208
  %4262 = vmatpush1.bf16.msra.mxu0 %v4207
  %4263 = vmatprep.subr.bf16.mxu0 %v4206
  %4264 = vmatpush1.bf16.msra.mxu0 %v4205
  %4265 = vmatprep.subr.bf16.mxu0 %v4204
  %4266 = vmatpush1.bf16.msra.mxu0 %v4203
  %4267 = vmatprep.subr.bf16.mxu0 %v4202
  %4268 = vmatpush1.bf16.msra.mxu0 %v4201
  %4269 = vmatprep.subr.bf16.mxu0 %v4200
  %4270 = vmatpush1.bf16.msra.mxu0 %v4199
  %4271 = vmatprep.subr.bf16.mxu0 %v4198
  %4272 = vmatpush1.bf16.msra.mxu0 %v4197
  %4273 = vmatprep.subr.bf16.mxu0 %v4196
  %4274 = vmatpush1.bf16.msra.mxu0 %v4195
  %4275 = vmatprep.subr.bf16.mxu0 %v4226
  %4276 = vmatpush2.bf16.msra.mxu0 %v4225
  %4277 = vmatprep.subr.bf16.mxu0 %v4224
  %4278 = vmatpush2.bf16.msra.mxu0 %v4223
  %4279 = vmatprep.subr.bf16.mxu0 %v4222
  %4280 = vmatpush2.bf16.msra.mxu0 %v4221
  %4281 = vmatprep.subr.bf16.mxu0 %v4220
  %4282 = vmatpush2.bf16.msra.mxu0 %v4219
  %4283 = vmatprep.subr.bf16.mxu0 %v4218
  %4284 = vmatpush2.bf16.msra.mxu0 %v4217
  %4285 = vmatprep.subr.bf16.mxu0 %v4216
  %4286 = vmatpush2.bf16.msra.mxu0 %v4215
  %4287 = vmatprep.subr.bf16.mxu0 %v4214
  %4288 = vmatpush2.bf16.msra.mxu0 %v4213
  %4289 = vmatprep.subr.bf16.mxu0 %v4212
  %4290 = vmatpush2.bf16.msra.mxu0 %v4211
  %4291 = vmatprep.mubr.bf16.mxu0 %v3783
  %4292 = vmatmul.mubr.bf16.gmra.mxu0 %v3782
  %v4293 = vpop.f32.mrf.mxu0
  %v4294 = vadd.f32 0.0, %v4293
  %v4295 = vpop.f32.mrf.mxu0
  %v4296 = vadd.f32 0.0, %v4295
  %v4297 = vpop.f32.mrf.mxu0
  %v4298 = vpop.f32.mrf.mxu0
  %4299 = vdwg.mxu0
  %v4332 = vunpack.c.l.b16 %v4035
  %v4333 = vunpack.c.h.b16 %v4035
  %v4334 = vunpack.c.l.b16 %v4036
  %v4335 = vunpack.c.h.b16 %v4036
  %v4336 = vunpack.c.l.b16 %v4037
  %v4337 = vunpack.c.h.b16 %v4037
  %v4338 = vunpack.c.l.b16 %v4038
  %v4339 = vunpack.c.h.b16 %v4038
  %v4340 = vunpack.c.l.b16 %v4039
  %v4341 = vunpack.c.h.b16 %v4039
  %v4342 = vunpack.c.l.b16 %v4040
  %v4343 = vunpack.c.h.b16 %v4040
  %v4344 = vunpack.c.l.b16 %v4041
  %v4345 = vunpack.c.h.b16 %v4041
  %v4346 = vunpack.c.l.b16 %v4042
  %v4347 = vunpack.c.h.b16 %v4042
  %v4348 = vunpack.c.l.b16 %v4043
  %v4349 = vunpack.c.h.b16 %v4043
  %v4350 = vunpack.c.l.b16 %v4044
  %v4351 = vunpack.c.h.b16 %v4044
  %v4352 = vunpack.c.l.b16 %v4045
  %v4353 = vunpack.c.h.b16 %v4045
  %v4354 = vunpack.c.l.b16 %v4046
  %v4355 = vunpack.c.h.b16 %v4046
  %v4356 = vunpack.c.l.b16 %v4047
  %v4357 = vunpack.c.h.b16 %v4047
  %v4358 = vunpack.c.l.b16 %v4048
  %v4359 = vunpack.c.h.b16 %v4048
  %v4360 = vunpack.c.l.b16 %v4049
  %v4361 = vunpack.c.h.b16 %v4049
  %v4362 = vunpack.c.l.b16 %v4050
  %v4363 = vunpack.c.h.b16 %v4050
  %v4364 = vunpack.c.l.b16 %v4051
  %v4365 = vunpack.c.h.b16 %v4051
  %v4366 = vunpack.c.l.b16 %v4052
  %v4367 = vunpack.c.h.b16 %v4052
  %v4368 = vunpack.c.l.b16 %v4053
  %v4369 = vunpack.c.h.b16 %v4053
  %v4370 = vunpack.c.l.b16 %v4054
  %v4371 = vunpack.c.h.b16 %v4054
  %v4372 = vunpack.c.l.b16 %v4055
  %v4373 = vunpack.c.h.b16 %v4055
  %v4374 = vunpack.c.l.b16 %v4056
  %v4375 = vunpack.c.h.b16 %v4056
  %v4376 = vunpack.c.l.b16 %v4057
  %v4377 = vunpack.c.h.b16 %v4057
  %v4378 = vunpack.c.l.b16 %v4058
  %v4379 = vunpack.c.h.b16 %v4058
  %v4380 = vunpack.c.l.b16 %v4059
  %v4381 = vunpack.c.h.b16 %v4059
  %v4382 = vunpack.c.l.b16 %v4060
  %v4383 = vunpack.c.h.b16 %v4060
  %v4384 = vunpack.c.l.b16 %v4061
  %v4385 = vunpack.c.h.b16 %v4061
  %v4386 = vunpack.c.l.b16 %v4062
  %v4387 = vunpack.c.h.b16 %v4062
  %v4388 = vunpack.c.l.b16 %v4063
  %v4389 = vunpack.c.h.b16 %v4063
  %v4390 = vunpack.c.l.b16 %v4064
  %v4391 = vunpack.c.h.b16 %v4064
  %v4392 = vunpack.c.l.b16 %v4065
  %v4393 = vunpack.c.h.b16 %v4065
  %v4394 = vunpack.c.l.b16 %v4066
  %v4395 = vunpack.c.h.b16 %v4066
  %v4396 = vpack.c.b16 %v4334, %v4332
  %v4397 = vpack.c.b16 %v4335, %v4333
  %v4398 = vpack.c.b16 %v4338, %v4336
  %v4399 = vpack.c.b16 %v4339, %v4337
  %v4400 = vpack.c.b16 %v4342, %v4340
  %v4401 = vpack.c.b16 %v4343, %v4341
  %v4402 = vpack.c.b16 %v4346, %v4344
  %v4403 = vpack.c.b16 %v4347, %v4345
  %v4404 = vpack.c.b16 %v4350, %v4348
  %v4405 = vpack.c.b16 %v4351, %v4349
  %v4406 = vpack.c.b16 %v4354, %v4352
  %v4407 = vpack.c.b16 %v4355, %v4353
  %v4408 = vpack.c.b16 %v4358, %v4356
  %v4409 = vpack.c.b16 %v4359, %v4357
  %v4410 = vpack.c.b16 %v4362, %v4360
  %v4411 = vpack.c.b16 %v4363, %v4361
  %v4412 = vpack.c.b16 %v4366, %v4364
  %v4413 = vpack.c.b16 %v4367, %v4365
  %v4414 = vpack.c.b16 %v4370, %v4368
  %v4415 = vpack.c.b16 %v4371, %v4369
  %v4416 = vpack.c.b16 %v4374, %v4372
  %v4417 = vpack.c.b16 %v4375, %v4373
  %v4418 = vpack.c.b16 %v4378, %v4376
  %v4419 = vpack.c.b16 %v4379, %v4377
  %v4420 = vpack.c.b16 %v4382, %v4380
  %v4421 = vpack.c.b16 %v4383, %v4381
  %v4422 = vpack.c.b16 %v4386, %v4384
  %v4423 = vpack.c.b16 %v4387, %v4385
  %v4424 = vpack.c.b16 %v4390, %v4388
  %v4425 = vpack.c.b16 %v4391, %v4389
  %v4426 = vpack.c.b16 %v4394, %v4392
  %v4427 = vpack.c.b16 %v4395, %v4393
  %4460 = vmatprep.subr.bf16.mxu0 %v4411
  %4461 = vmatpush1.bf16.msra.mxu0 %v4410
  %4462 = vmatprep.subr.bf16.mxu0 %v4409
  %4463 = vmatpush1.bf16.msra.mxu0 %v4408
  %4464 = vmatprep.subr.bf16.mxu0 %v4407
  %4465 = vmatpush1.bf16.msra.mxu0 %v4406
  %4466 = vmatprep.subr.bf16.mxu0 %v4405
  %4467 = vmatpush1.bf16.msra.mxu0 %v4404
  %4468 = vmatprep.subr.bf16.mxu0 %v4403
  %4469 = vmatpush1.bf16.msra.mxu0 %v4402
  %4470 = vmatprep.subr.bf16.mxu0 %v4401
  %4471 = vmatpush1.bf16.msra.mxu0 %v4400
  %4472 = vmatprep.subr.bf16.mxu0 %v4399
  %4473 = vmatpush1.bf16.msra.mxu0 %v4398
  %4474 = vmatprep.subr.bf16.mxu0 %v4397
  %4475 = vmatpush1.bf16.msra.mxu0 %v4396
  %4476 = vmatprep.subr.bf16.mxu0 %v4427
  %4477 = vmatpush2.bf16.msra.mxu0 %v4426
  %4478 = vmatprep.subr.bf16.mxu0 %v4425
  %4479 = vmatpush2.bf16.msra.mxu0 %v4424
  %4480 = vmatprep.subr.bf16.mxu0 %v4423
  %4481 = vmatpush2.bf16.msra.mxu0 %v4422
  %4482 = vmatprep.subr.bf16.mxu0 %v4421
  %4483 = vmatpush2.bf16.msra.mxu0 %v4420
  %4484 = vmatprep.subr.bf16.mxu0 %v4419
  %4485 = vmatpush2.bf16.msra.mxu0 %v4418
  %4486 = vmatprep.subr.bf16.mxu0 %v4417
  %4487 = vmatpush2.bf16.msra.mxu0 %v4416
  %4488 = vmatprep.subr.bf16.mxu0 %v4415
  %4489 = vmatpush2.bf16.msra.mxu0 %v4414
  %4490 = vmatprep.subr.bf16.mxu0 %v4413
  %4491 = vmatpush2.bf16.msra.mxu0 %v4412
  %4492 = vmatprep.mubr.bf16.mxu0 %v4034
  %4493 = vmatmul.mubr.bf16.gmra.mxu0 %v4033
  %v4494 = vpop.f32.mrf.mxu0
  %v4495 = vadd.f32 %v4294, %v4494
  %v4496 = vpop.f32.mrf.mxu0
  %v4497 = vadd.f32 %v4296, %v4496
  %v4498 = vpop.f32.mrf.mxu0
  %v4499 = vpop.f32.mrf.mxu0
  %4500 = vdwg.mxu0
  %v4501 = vadd.f32 %v4495, %v880
  %v4502 = vadd.f32 %v4497, %v884
  %v4503 = vmax.f32 %v4501, 0.0
  %v4504 = vmax.f32 %v4502, 0.0
  %v4505 = vpack.c.bf16 %v4503, %v4503
  %v4506 = vpack.c.bf16 %v4504, %v4504
  %v4509 = vunpack.c.l.b16 %v4505
  %v4510 = vunpack.c.l.b16 %v4506
  %v4511 = vpack.c.b16 %v4510, %v4509
  %s4513 = scalar_lea.vmem %s5, 40
  %4514 = vst [vmem:[%s4513] sm:$0xff] %v4511
  %s4515 = scalar_lea.vmem %s0, 48
  %v4516 = vld [vmem:[%s4515] sm:$0xff]
  %v4517 = vunpack.c.l.bf16 %v4516
  %v4518 = vunpack.c.h.bf16 %v4516
  %v4519 = vld [vmem:[#allocation4] sm:$0xff]
  %v4520 = vld [vmem:[#allocation4 + $0x8] sm:$0xff]
  %v4521 = vld [vmem:[#allocation4 + $0x10] sm:$0xff]
  %v4522 = vld [vmem:[#allocation4 + $0x18] sm:$0xff]
  %v4523 = vld [vmem:[#allocation4 + $0x20] sm:$0xff]
  %v4524 = vld [vmem:[#allocation4 + $0x28] sm:$0xff]
  %v4525 = vld [vmem:[#allocation4 + $0x30] sm:$0xff]
  %v4526 = vld [vmem:[#allocation4 + $0x38] sm:$0xff]
  %v4527 = vld [vmem:[#allocation4 + $0x40] sm:$0xff]
  %v4528 = vld [vmem:[#allocation4 + $0x48] sm:$0xff]
  %v4529 = vld [vmem:[#allocation4 + $0x50] sm:$0xff]
  %v4530 = vld [vmem:[#allocation4 + $0x58] sm:$0xff]
  %v4531 = vld [vmem:[#allocation4 + $0x60] sm:$0xff]
  %v4532 = vld [vmem:[#allocation4 + $0x68] sm:$0xff]
  %v4533 = vld [vmem:[#allocation4 + $0x70] sm:$0xff]
  %v4534 = vld [vmem:[#allocation4 + $0x78] sm:$0xff]
  %v4535 = vld [vmem:[#allocation4 + $0x80] sm:$0xff]
  %v4536 = vld [vmem:[#allocation4 + $0x88] sm:$0xff]
  %v4537 = vld [vmem:[#allocation4 + $0x90] sm:$0xff]
  %v4538 = vld [vmem:[#allocation4 + $0x98] sm:$0xff]
  %v4539 = vld [vmem:[#allocation4 + $0xa0] sm:$0xff]
  %v4540 = vld [vmem:[#allocation4 + $0xa8] sm:$0xff]
  %v4541 = vld [vmem:[#allocation4 + $0xb0] sm:$0xff]
  %v4542 = vld [vmem:[#allocation4 + $0xb8] sm:$0xff]
  %v4543 = vld [vmem:[#allocation4 + $0xc0] sm:$0xff]
  %v4544 = vld [vmem:[#allocation4 + $0xc8] sm:$0xff]
  %v4545 = vld [vmem:[#allocation4 + $0xd0] sm:$0xff]
  %v4546 = vld [vmem:[#allocation4 + $0xd8] sm:$0xff]
  %v4547 = vld [vmem:[#allocation4 + $0xe0] sm:$0xff]
  %v4548 = vld [vmem:[#allocation4 + $0xe8] sm:$0xff]
  %v4549 = vld [vmem:[#allocation4 + $0xf0] sm:$0xff]
  %v4550 = vld [vmem:[#allocation4 + $0xf8] sm:$0xff]
  %v4583 = vunpack.c.l.b16 %v4519
  %v4584 = vunpack.c.h.b16 %v4519
  %v4585 = vunpack.c.l.b16 %v4520
  %v4586 = vunpack.c.h.b16 %v4520
  %v4587 = vunpack.c.l.b16 %v4521
  %v4588 = vunpack.c.h.b16 %v4521
  %v4589 = vunpack.c.l.b16 %v4522
  %v4590 = vunpack.c.h.b16 %v4522
  %v4591 = vunpack.c.l.b16 %v4523
  %v4592 = vunpack.c.h.b16 %v4523
  %v4593 = vunpack.c.l.b16 %v4524
  %v4594 = vunpack.c.h.b16 %v4524
  %v4595 = vunpack.c.l.b16 %v4525
  %v4596 = vunpack.c.h.b16 %v4525
  %v4597 = vunpack.c.l.b16 %v4526
  %v4598 = vunpack.c.h.b16 %v4526
  %v4599 = vunpack.c.l.b16 %v4527
  %v4600 = vunpack.c.h.b16 %v4527
  %v4601 = vunpack.c.l.b16 %v4528
  %v4602 = vunpack.c.h.b16 %v4528
  %v4603 = vunpack.c.l.b16 %v4529
  %v4604 = vunpack.c.h.b16 %v4529
  %v4605 = vunpack.c.l.b16 %v4530
  %v4606 = vunpack.c.h.b16 %v4530
  %v4607 = vunpack.c.l.b16 %v4531
  %v4608 = vunpack.c.h.b16 %v4531
  %v4609 = vunpack.c.l.b16 %v4532
  %v4610 = vunpack.c.h.b16 %v4532
  %v4611 = vunpack.c.l.b16 %v4533
  %v4612 = vunpack.c.h.b16 %v4533
  %v4613 = vunpack.c.l.b16 %v4534
  %v4614 = vunpack.c.h.b16 %v4534
  %v4615 = vunpack.c.l.b16 %v4535
  %v4616 = vunpack.c.h.b16 %v4535
  %v4617 = vunpack.c.l.b16 %v4536
  %v4618 = vunpack.c.h.b16 %v4536
  %v4619 = vunpack.c.l.b16 %v4537
  %v4620 = vunpack.c.h.b16 %v4537
  %v4621 = vunpack.c.l.b16 %v4538
  %v4622 = vunpack.c.h.b16 %v4538
  %v4623 = vunpack.c.l.b16 %v4539
  %v4624 = vunpack.c.h.b16 %v4539
  %v4625 = vunpack.c.l.b16 %v4540
  %v4626 = vunpack.c.h.b16 %v4540
  %v4627 = vunpack.c.l.b16 %v4541
  %v4628 = vunpack.c.h.b16 %v4541
  %v4629 = vunpack.c.l.b16 %v4542
  %v4630 = vunpack.c.h.b16 %v4542
  %v4631 = vunpack.c.l.b16 %v4543
  %v4632 = vunpack.c.h.b16 %v4543
  %v4633 = vunpack.c.l.b16 %v4544
  %v4634 = vunpack.c.h.b16 %v4544
  %v4635 = vunpack.c.l.b16 %v4545
  %v4636 = vunpack.c.h.b16 %v4545
  %v4637 = vunpack.c.l.b16 %v4546
  %v4638 = vunpack.c.h.b16 %v4546
  %v4639 = vunpack.c.l.b16 %v4547
  %v4640 = vunpack.c.h.b16 %v4547
  %v4641 = vunpack.c.l.b16 %v4548
  %v4642 = vunpack.c.h.b16 %v4548
  %v4643 = vunpack.c.l.b16 %v4549
  %v4644 = vunpack.c.h.b16 %v4549
  %v4645 = vunpack.c.l.b16 %v4550
  %v4646 = vunpack.c.h.b16 %v4550
  %v4647 = vpack.c.b16 %v4585, %v4583
  %v4648 = vpack.c.b16 %v4586, %v4584
  %v4649 = vpack.c.b16 %v4589, %v4587
  %v4650 = vpack.c.b16 %v4590, %v4588
  %v4651 = vpack.c.b16 %v4593, %v4591
  %v4652 = vpack.c.b16 %v4594, %v4592
  %v4653 = vpack.c.b16 %v4597, %v4595
  %v4654 = vpack.c.b16 %v4598, %v4596
  %v4655 = vpack.c.b16 %v4601, %v4599
  %v4656 = vpack.c.b16 %v4602, %v4600
  %v4657 = vpack.c.b16 %v4605, %v4603
  %v4658 = vpack.c.b16 %v4606, %v4604
  %v4659 = vpack.c.b16 %v4609, %v4607
  %v4660 = vpack.c.b16 %v4610, %v4608
  %v4661 = vpack.c.b16 %v4613, %v4611
  %v4662 = vpack.c.b16 %v4614, %v4612
  %v4663 = vpack.c.b16 %v4617, %v4615
  %v4664 = vpack.c.b16 %v4618, %v4616
  %v4665 = vpack.c.b16 %v4621, %v4619
  %v4666 = vpack.c.b16 %v4622, %v4620
  %v4667 = vpack.c.b16 %v4625, %v4623
  %v4668 = vpack.c.b16 %v4626, %v4624
  %v4669 = vpack.c.b16 %v4629, %v4627
  %v4670 = vpack.c.b16 %v4630, %v4628
  %v4671 = vpack.c.b16 %v4633, %v4631
  %v4672 = vpack.c.b16 %v4634, %v4632
  %v4673 = vpack.c.b16 %v4637, %v4635
  %v4674 = vpack.c.b16 %v4638, %v4636
  %v4675 = vpack.c.b16 %v4641, %v4639
  %v4676 = vpack.c.b16 %v4642, %v4640
  %v4677 = vpack.c.b16 %v4645, %v4643
  %v4678 = vpack.c.b16 %v4646, %v4644
  %4711 = vmatprep.subr.bf16.mxu0 %v4662
  %4712 = vmatpush1.bf16.msra.mxu0 %v4661
  %4713 = vmatprep.subr.bf16.mxu0 %v4660
  %4714 = vmatpush1.bf16.msra.mxu0 %v4659
  %4715 = vmatprep.subr.bf16.mxu0 %v4658
  %4716 = vmatpush1.bf16.msra.mxu0 %v4657
  %4717 = vmatprep.subr.bf16.mxu0 %v4656
  %4718 = vmatpush1.bf16.msra.mxu0 %v4655
  %4719 = vmatprep.subr.bf16.mxu0 %v4654
  %4720 = vmatpush1.bf16.msra.mxu0 %v4653
  %4721 = vmatprep.subr.bf16.mxu0 %v4652
  %4722 = vmatpush1.bf16.msra.mxu0 %v4651
  %4723 = vmatprep.subr.bf16.mxu0 %v4650
  %4724 = vmatpush1.bf16.msra.mxu0 %v4649
  %4725 = vmatprep.subr.bf16.mxu0 %v4648
  %4726 = vmatpush1.bf16.msra.mxu0 %v4647
  %4727 = vmatprep.subr.bf16.mxu0 %v4678
  %4728 = vmatpush2.bf16.msra.mxu0 %v4677
  %4729 = vmatprep.subr.bf16.mxu0 %v4676
  %4730 = vmatpush2.bf16.msra.mxu0 %v4675
  %4731 = vmatprep.subr.bf16.mxu0 %v4674
  %4732 = vmatpush2.bf16.msra.mxu0 %v4673
  %4733 = vmatprep.subr.bf16.mxu0 %v4672
  %4734 = vmatpush2.bf16.msra.mxu0 %v4671
  %4735 = vmatprep.subr.bf16.mxu0 %v4670
  %4736 = vmatpush2.bf16.msra.mxu0 %v4669
  %4737 = vmatprep.subr.bf16.mxu0 %v4668
  %4738 = vmatpush2.bf16.msra.mxu0 %v4667
  %4739 = vmatprep.subr.bf16.mxu0 %v4666
  %4740 = vmatpush2.bf16.msra.mxu0 %v4665
  %4741 = vmatprep.subr.bf16.mxu0 %v4664
  %4742 = vmatpush2.bf16.msra.mxu0 %v4663
  %4743 = vmatprep.mubr.bf16.mxu0 %v4034
  %4744 = vmatmul.mubr.bf16.gmra.mxu0 %v4033
  %v4745 = vpop.f32.mrf.mxu0
  %v4746 = vadd.f32 0.0, %v4745
  %v4747 = vpop.f32.mrf.mxu0
  %v4748 = vadd.f32 0.0, %v4747
  %v4749 = vpop.f32.mrf.mxu0
  %v4750 = vpop.f32.mrf.mxu0
  %4751 = vdwg.mxu0
  %v4752 = vadd.f32 %v4517, %v4746
  %v4753 = vadd.f32 %v4518, %v4748
  %v4754 = vmax.f32 %v4752, 0.0
  %v4755 = vmax.f32 %v4753, 0.0
  %v4756 = vpack.c.bf16 %v4754, %v4754
  %v4757 = vpack.c.bf16 %v4755, %v4755
  %v4758 = vld [vmem:[#allocation5] sm:$0xff]
  %v4759 = vld [vmem:[#allocation5 + $0x8] sm:$0xff]
  %v4760 = vld [vmem:[#allocation5 + $0x10] sm:$0xff]
  %v4761 = vld [vmem:[#allocation5 + $0x18] sm:$0xff]
  %v4762 = vld [vmem:[#allocation5 + $0x20] sm:$0xff]
  %v4763 = vld [vmem:[#allocation5 + $0x28] sm:$0xff]
  %v4764 = vld [vmem:[#allocation5 + $0x30] sm:$0xff]
  %v4765 = vld [vmem:[#allocation5 + $0x38] sm:$0xff]
  %v4766 = vld [vmem:[#allocation5 + $0x40] sm:$0xff]
  %v4767 = vld [vmem:[#allocation5 + $0x48] sm:$0xff]
  %v4768 = vld [vmem:[#allocation5 + $0x50] sm:$0xff]
  %v4769 = vld [vmem:[#allocation5 + $0x58] sm:$0xff]
  %v4770 = vld [vmem:[#allocation5 + $0x60] sm:$0xff]
  %v4771 = vld [vmem:[#allocation5 + $0x68] sm:$0xff]
  %v4772 = vld [vmem:[#allocation5 + $0x70] sm:$0xff]
  %v4773 = vld [vmem:[#allocation5 + $0x78] sm:$0xff]
  %v4774 = vld [vmem:[#allocation5 + $0x80] sm:$0xff]
  %v4775 = vld [vmem:[#allocation5 + $0x88] sm:$0xff]
  %v4776 = vld [vmem:[#allocation5 + $0x90] sm:$0xff]
  %v4777 = vld [vmem:[#allocation5 + $0x98] sm:$0xff]
  %v4778 = vld [vmem:[#allocation5 + $0xa0] sm:$0xff]
  %v4779 = vld [vmem:[#allocation5 + $0xa8] sm:$0xff]
  %v4780 = vld [vmem:[#allocation5 + $0xb0] sm:$0xff]
  %v4781 = vld [vmem:[#allocation5 + $0xb8] sm:$0xff]
  %v4782 = vld [vmem:[#allocation5 + $0xc0] sm:$0xff]
  %v4783 = vld [vmem:[#allocation5 + $0xc8] sm:$0xff]
  %v4784 = vld [vmem:[#allocation5 + $0xd0] sm:$0xff]
  %v4785 = vld [vmem:[#allocation5 + $0xd8] sm:$0xff]
  %v4786 = vld [vmem:[#allocation5 + $0xe0] sm:$0xff]
  %v4787 = vld [vmem:[#allocation5 + $0xe8] sm:$0xff]
  %v4788 = vld [vmem:[#allocation5 + $0xf0] sm:$0xff]
  %v4789 = vld [vmem:[#allocation5 + $0xf8] sm:$0xff]
  %v4790 = vld [vmem:[#allocation6] sm:$0xff]
  %v4791 = vld [vmem:[#allocation6 + $0x8] sm:$0xff]
  %v4792 = vld [vmem:[#allocation6 + $0x10] sm:$0xff]
  %v4793 = vld [vmem:[#allocation6 + $0x18] sm:$0xff]
  %v4794 = vld [vmem:[#allocation6 + $0x20] sm:$0xff]
  %v4795 = vld [vmem:[#allocation6 + $0x28] sm:$0xff]
  %v4796 = vld [vmem:[#allocation6 + $0x30] sm:$0xff]
  %v4797 = vld [vmem:[#allocation6 + $0x38] sm:$0xff]
  %v4798 = vld [vmem:[#allocation6 + $0x40] sm:$0xff]
  %v4799 = vld [vmem:[#allocation6 + $0x48] sm:$0xff]
  %v4800 = vld [vmem:[#allocation6 + $0x50] sm:$0xff]
  %v4801 = vld [vmem:[#allocation6 + $0x58] sm:$0xff]
  %v4802 = vld [vmem:[#allocation6 + $0x60] sm:$0xff]
  %v4803 = vld [vmem:[#allocation6 + $0x68] sm:$0xff]
  %v4804 = vld [vmem:[#allocation6 + $0x70] sm:$0xff]
  %v4805 = vld [vmem:[#allocation6 + $0x78] sm:$0xff]
  %v4806 = vld [vmem:[#allocation6 + $0x80] sm:$0xff]
  %v4807 = vld [vmem:[#allocation6 + $0x88] sm:$0xff]
  %v4808 = vld [vmem:[#allocation6 + $0x90] sm:$0xff]
  %v4809 = vld [vmem:[#allocation6 + $0x98] sm:$0xff]
  %v4810 = vld [vmem:[#allocation6 + $0xa0] sm:$0xff]
  %v4811 = vld [vmem:[#allocation6 + $0xa8] sm:$0xff]
  %v4812 = vld [vmem:[#allocation6 + $0xb0] sm:$0xff]
  %v4813 = vld [vmem:[#allocation6 + $0xb8] sm:$0xff]
  %v4814 = vld [vmem:[#allocation6 + $0xc0] sm:$0xff]
  %v4815 = vld [vmem:[#allocation6 + $0xc8] sm:$0xff]
  %v4816 = vld [vmem:[#allocation6 + $0xd0] sm:$0xff]
  %v4817 = vld [vmem:[#allocation6 + $0xd8] sm:$0xff]
  %v4818 = vld [vmem:[#allocation6 + $0xe0] sm:$0xff]
  %v4819 = vld [vmem:[#allocation6 + $0xe8] sm:$0xff]
  %v4820 = vld [vmem:[#allocation6 + $0xf0] sm:$0xff]
  %v4821 = vld [vmem:[#allocation6 + $0xf8] sm:$0xff]
  %v4854 = vunpack.c.l.b16 %v4790
  %v4855 = vunpack.c.h.b16 %v4790
  %v4856 = vunpack.c.l.b16 %v4791
  %v4857 = vunpack.c.h.b16 %v4791
  %v4858 = vunpack.c.l.b16 %v4792
  %v4859 = vunpack.c.h.b16 %v4792
  %v4860 = vunpack.c.l.b16 %v4793
  %v4861 = vunpack.c.h.b16 %v4793
  %v4862 = vunpack.c.l.b16 %v4794
  %v4863 = vunpack.c.h.b16 %v4794
  %v4864 = vunpack.c.l.b16 %v4795
  %v4865 = vunpack.c.h.b16 %v4795
  %v4866 = vunpack.c.l.b16 %v4796
  %v4867 = vunpack.c.h.b16 %v4796
  %v4868 = vunpack.c.l.b16 %v4797
  %v4869 = vunpack.c.h.b16 %v4797
  %v4870 = vunpack.c.l.b16 %v4798
  %v4871 = vunpack.c.h.b16 %v4798
  %v4872 = vunpack.c.l.b16 %v4799
  %v4873 = vunpack.c.h.b16 %v4799
  %v4874 = vunpack.c.l.b16 %v4800
  %v4875 = vunpack.c.h.b16 %v4800
  %v4876 = vunpack.c.l.b16 %v4801
  %v4877 = vunpack.c.h.b16 %v4801
  %v4878 = vunpack.c.l.b16 %v4802
  %v4879 = vunpack.c.h.b16 %v4802
  %v4880 = vunpack.c.l.b16 %v4803
  %v4881 = vunpack.c.h.b16 %v4803
  %v4882 = vunpack.c.l.b16 %v4804
  %v4883 = vunpack.c.h.b16 %v4804
  %v4884 = vunpack.c.l.b16 %v4805
  %v4885 = vunpack.c.h.b16 %v4805
  %v4886 = vunpack.c.l.b16 %v4806
  %v4887 = vunpack.c.h.b16 %v4806
  %v4888 = vunpack.c.l.b16 %v4807
  %v4889 = vunpack.c.h.b16 %v4807
  %v4890 = vunpack.c.l.b16 %v4808
  %v4891 = vunpack.c.h.b16 %v4808
  %v4892 = vunpack.c.l.b16 %v4809
  %v4893 = vunpack.c.h.b16 %v4809
  %v4894 = vunpack.c.l.b16 %v4810
  %v4895 = vunpack.c.h.b16 %v4810
  %v4896 = vunpack.c.l.b16 %v4811
  %v4897 = vunpack.c.h.b16 %v4811
  %v4898 = vunpack.c.l.b16 %v4812
  %v4899 = vunpack.c.h.b16 %v4812
  %v4900 = vunpack.c.l.b16 %v4813
  %v4901 = vunpack.c.h.b16 %v4813
  %v4902 = vunpack.c.l.b16 %v4814
  %v4903 = vunpack.c.h.b16 %v4814
  %v4904 = vunpack.c.l.b16 %v4815
  %v4905 = vunpack.c.h.b16 %v4815
  %v4906 = vunpack.c.l.b16 %v4816
  %v4907 = vunpack.c.h.b16 %v4816
  %v4908 = vunpack.c.l.b16 %v4817
  %v4909 = vunpack.c.h.b16 %v4817
  %v4910 = vunpack.c.l.b16 %v4818
  %v4911 = vunpack.c.h.b16 %v4818
  %v4912 = vunpack.c.l.b16 %v4819
  %v4913 = vunpack.c.h.b16 %v4819
  %v4914 = vunpack.c.l.b16 %v4820
  %v4915 = vunpack.c.h.b16 %v4820
  %v4916 = vunpack.c.l.b16 %v4821
  %v4917 = vunpack.c.h.b16 %v4821
  %v4918 = vpack.c.b16 %v4856, %v4854
  %v4919 = vpack.c.b16 %v4857, %v4855
  %v4920 = vpack.c.b16 %v4860, %v4858
  %v4921 = vpack.c.b16 %v4861, %v4859
  %v4922 = vpack.c.b16 %v4864, %v4862
  %v4923 = vpack.c.b16 %v4865, %v4863
  %v4924 = vpack.c.b16 %v4868, %v4866
  %v4925 = vpack.c.b16 %v4869, %v4867
  %v4926 = vpack.c.b16 %v4872, %v4870
  %v4927 = vpack.c.b16 %v4873, %v4871
  %v4928 = vpack.c.b16 %v4876, %v4874
  %v4929 = vpack.c.b16 %v4877, %v4875
  %v4930 = vpack.c.b16 %v4880, %v4878
  %v4931 = vpack.c.b16 %v4881, %v4879
  %v4932 = vpack.c.b16 %v4884, %v4882
  %v4933 = vpack.c.b16 %v4885, %v4883
  %v4934 = vpack.c.b16 %v4888, %v4886
  %v4935 = vpack.c.b16 %v4889, %v4887
  %v4936 = vpack.c.b16 %v4892, %v4890
  %v4937 = vpack.c.b16 %v4893, %v4891
  %v4938 = vpack.c.b16 %v4896, %v4894
  %v4939 = vpack.c.b16 %v4897, %v4895
  %v4940 = vpack.c.b16 %v4900, %v4898
  %v4941 = vpack.c.b16 %v4901, %v4899
  %v4942 = vpack.c.b16 %v4904, %v4902
  %v4943 = vpack.c.b16 %v4905, %v4903
  %v4944 = vpack.c.b16 %v4908, %v4906
  %v4945 = vpack.c.b16 %v4909, %v4907
  %v4946 = vpack.c.b16 %v4912, %v4910
  %v4947 = vpack.c.b16 %v4913, %v4911
  %v4948 = vpack.c.b16 %v4916, %v4914
  %v4949 = vpack.c.b16 %v4917, %v4915
  %4982 = vmatprep.subr.bf16.mxu0 %v4933
  %4983 = vmatpush1.bf16.msra.mxu0 %v4932
  %4984 = vmatprep.subr.bf16.mxu0 %v4931
  %4985 = vmatpush1.bf16.msra.mxu0 %v4930
  %4986 = vmatprep.subr.bf16.mxu0 %v4929
  %4987 = vmatpush1.bf16.msra.mxu0 %v4928
  %4988 = vmatprep.subr.bf16.mxu0 %v4927
  %4989 = vmatpush1.bf16.msra.mxu0 %v4926
  %4990 = vmatprep.subr.bf16.mxu0 %v4925
  %4991 = vmatpush1.bf16.msra.mxu0 %v4924
  %4992 = vmatprep.subr.bf16.mxu0 %v4923
  %4993 = vmatpush1.bf16.msra.mxu0 %v4922
  %4994 = vmatprep.subr.bf16.mxu0 %v4921
  %4995 = vmatpush1.bf16.msra.mxu0 %v4920
  %4996 = vmatprep.subr.bf16.mxu0 %v4919
  %4997 = vmatpush1.bf16.msra.mxu0 %v4918
  %4998 = vmatprep.subr.bf16.mxu0 %v4949
  %4999 = vmatpush2.bf16.msra.mxu0 %v4948
  %5000 = vmatprep.subr.bf16.mxu0 %v4947
  %5001 = vmatpush2.bf16.msra.mxu0 %v4946
  %5002 = vmatprep.subr.bf16.mxu0 %v4945
  %5003 = vmatpush2.bf16.msra.mxu0 %v4944
  %5004 = vmatprep.subr.bf16.mxu0 %v4943
  %5005 = vmatpush2.bf16.msra.mxu0 %v4942
  %5006 = vmatprep.subr.bf16.mxu0 %v4941
  %5007 = vmatpush2.bf16.msra.mxu0 %v4940
  %5008 = vmatprep.subr.bf16.mxu0 %v4939
  %5009 = vmatpush2.bf16.msra.mxu0 %v4938
  %5010 = vmatprep.subr.bf16.mxu0 %v4937
  %5011 = vmatpush2.bf16.msra.mxu0 %v4936
  %5012 = vmatprep.subr.bf16.mxu0 %v4935
  %5013 = vmatpush2.bf16.msra.mxu0 %v4934
  %5014 = vmatprep.mubr.bf16.mxu0 %v4506
  %5015 = vmatmul.mubr.bf16.gmra.mxu0 %v4505
  %v5016 = vpop.f32.mrf.mxu0
  %v5017 = vadd.f32 0.0, %v5016
  %v5018 = vpop.f32.mrf.mxu0
  %v5019 = vadd.f32 0.0, %v5018
  %v5020 = vpop.f32.mrf.mxu0
  %v5021 = vpop.f32.mrf.mxu0
  %5022 = vdwg.mxu0
  %v5055 = vunpack.c.l.b16 %v4758
  %v5056 = vunpack.c.h.b16 %v4758
  %v5057 = vunpack.c.l.b16 %v4759
  %v5058 = vunpack.c.h.b16 %v4759
  %v5059 = vunpack.c.l.b16 %v4760
  %v5060 = vunpack.c.h.b16 %v4760
  %v5061 = vunpack.c.l.b16 %v4761
  %v5062 = vunpack.c.h.b16 %v4761
  %v5063 = vunpack.c.l.b16 %v4762
  %v5064 = vunpack.c.h.b16 %v4762
  %v5065 = vunpack.c.l.b16 %v4763
  %v5066 = vunpack.c.h.b16 %v4763
  %v5067 = vunpack.c.l.b16 %v4764
  %v5068 = vunpack.c.h.b16 %v4764
  %v5069 = vunpack.c.l.b16 %v4765
  %v5070 = vunpack.c.h.b16 %v4765
  %v5071 = vunpack.c.l.b16 %v4766
  %v5072 = vunpack.c.h.b16 %v4766
  %v5073 = vunpack.c.l.b16 %v4767
  %v5074 = vunpack.c.h.b16 %v4767
  %v5075 = vunpack.c.l.b16 %v4768
  %v5076 = vunpack.c.h.b16 %v4768
  %v5077 = vunpack.c.l.b16 %v4769
  %v5078 = vunpack.c.h.b16 %v4769
  %v5079 = vunpack.c.l.b16 %v4770
  %v5080 = vunpack.c.h.b16 %v4770
  %v5081 = vunpack.c.l.b16 %v4771
  %v5082 = vunpack.c.h.b16 %v4771
  %v5083 = vunpack.c.l.b16 %v4772
  %v5084 = vunpack.c.h.b16 %v4772
  %v5085 = vunpack.c.l.b16 %v4773
  %v5086 = vunpack.c.h.b16 %v4773
  %v5087 = vunpack.c.l.b16 %v4774
  %v5088 = vunpack.c.h.b16 %v4774
  %v5089 = vunpack.c.l.b16 %v4775
  %v5090 = vunpack.c.h.b16 %v4775
  %v5091 = vunpack.c.l.b16 %v4776
  %v5092 = vunpack.c.h.b16 %v4776
  %v5093 = vunpack.c.l.b16 %v4777
  %v5094 = vunpack.c.h.b16 %v4777
  %v5095 = vunpack.c.l.b16 %v4778
  %v5096 = vunpack.c.h.b16 %v4778
  %v5097 = vunpack.c.l.b16 %v4779
  %v5098 = vunpack.c.h.b16 %v4779
  %v5099 = vunpack.c.l.b16 %v4780
  %v5100 = vunpack.c.h.b16 %v4780
  %v5101 = vunpack.c.l.b16 %v4781
  %v5102 = vunpack.c.h.b16 %v4781
  %v5103 = vunpack.c.l.b16 %v4782
  %v5104 = vunpack.c.h.b16 %v4782
  %v5105 = vunpack.c.l.b16 %v4783
  %v5106 = vunpack.c.h.b16 %v4783
  %v5107 = vunpack.c.l.b16 %v4784
  %v5108 = vunpack.c.h.b16 %v4784
  %v5109 = vunpack.c.l.b16 %v4785
  %v5110 = vunpack.c.h.b16 %v4785
  %v5111 = vunpack.c.l.b16 %v4786
  %v5112 = vunpack.c.h.b16 %v4786
  %v5113 = vunpack.c.l.b16 %v4787
  %v5114 = vunpack.c.h.b16 %v4787
  %v5115 = vunpack.c.l.b16 %v4788
  %v5116 = vunpack.c.h.b16 %v4788
  %v5117 = vunpack.c.l.b16 %v4789
  %v5118 = vunpack.c.h.b16 %v4789
  %v5119 = vpack.c.b16 %v5057, %v5055
  %v5120 = vpack.c.b16 %v5058, %v5056
  %v5121 = vpack.c.b16 %v5061, %v5059
  %v5122 = vpack.c.b16 %v5062, %v5060
  %v5123 = vpack.c.b16 %v5065, %v5063
  %v5124 = vpack.c.b16 %v5066, %v5064
  %v5125 = vpack.c.b16 %v5069, %v5067
  %v5126 = vpack.c.b16 %v5070, %v5068
  %v5127 = vpack.c.b16 %v5073, %v5071
  %v5128 = vpack.c.b16 %v5074, %v5072
  %v5129 = vpack.c.b16 %v5077, %v5075
  %v5130 = vpack.c.b16 %v5078, %v5076
  %v5131 = vpack.c.b16 %v5081, %v5079
  %v5132 = vpack.c.b16 %v5082, %v5080
  %v5133 = vpack.c.b16 %v5085, %v5083
  %v5134 = vpack.c.b16 %v5086, %v5084
  %v5135 = vpack.c.b16 %v5089, %v5087
  %v5136 = vpack.c.b16 %v5090, %v5088
  %v5137 = vpack.c.b16 %v5093, %v5091
  %v5138 = vpack.c.b16 %v5094, %v5092
  %v5139 = vpack.c.b16 %v5097, %v5095
  %v5140 = vpack.c.b16 %v5098, %v5096
  %v5141 = vpack.c.b16 %v5101, %v5099
  %v5142 = vpack.c.b16 %v5102, %v5100
  %v5143 = vpack.c.b16 %v5105, %v5103
  %v5144 = vpack.c.b16 %v5106, %v5104
  %v5145 = vpack.c.b16 %v5109, %v5107
  %v5146 = vpack.c.b16 %v5110, %v5108
  %v5147 = vpack.c.b16 %v5113, %v5111
  %v5148 = vpack.c.b16 %v5114, %v5112
  %v5149 = vpack.c.b16 %v5117, %v5115
  %v5150 = vpack.c.b16 %v5118, %v5116
  %5183 = vmatprep.subr.bf16.mxu0 %v5134
  %5184 = vmatpush1.bf16.msra.mxu0 %v5133
  %5185 = vmatprep.subr.bf16.mxu0 %v5132
  %5186 = vmatpush1.bf16.msra.mxu0 %v5131
  %5187 = vmatprep.subr.bf16.mxu0 %v5130
  %5188 = vmatpush1.bf16.msra.mxu0 %v5129
  %5189 = vmatprep.subr.bf16.mxu0 %v5128
  %5190 = vmatpush1.bf16.msra.mxu0 %v5127
  %5191 = vmatprep.subr.bf16.mxu0 %v5126
  %5192 = vmatpush1.bf16.msra.mxu0 %v5125
  %5193 = vmatprep.subr.bf16.mxu0 %v5124
  %5194 = vmatpush1.bf16.msra.mxu0 %v5123
  %5195 = vmatprep.subr.bf16.mxu0 %v5122
  %5196 = vmatpush1.bf16.msra.mxu0 %v5121
  %5197 = vmatprep.subr.bf16.mxu0 %v5120
  %5198 = vmatpush1.bf16.msra.mxu0 %v5119
  %5199 = vmatprep.subr.bf16.mxu0 %v5150
  %5200 = vmatpush2.bf16.msra.mxu0 %v5149
  %5201 = vmatprep.subr.bf16.mxu0 %v5148
  %5202 = vmatpush2.bf16.msra.mxu0 %v5147
  %5203 = vmatprep.subr.bf16.mxu0 %v5146
  %5204 = vmatpush2.bf16.msra.mxu0 %v5145
  %5205 = vmatprep.subr.bf16.mxu0 %v5144
  %5206 = vmatpush2.bf16.msra.mxu0 %v5143
  %5207 = vmatprep.subr.bf16.mxu0 %v5142
  %5208 = vmatpush2.bf16.msra.mxu0 %v5141
  %5209 = vmatprep.subr.bf16.mxu0 %v5140
  %5210 = vmatpush2.bf16.msra.mxu0 %v5139
  %5211 = vmatprep.subr.bf16.mxu0 %v5138
  %5212 = vmatpush2.bf16.msra.mxu0 %v5137
  %5213 = vmatprep.subr.bf16.mxu0 %v5136
  %5214 = vmatpush2.bf16.msra.mxu0 %v5135
  %5215 = vmatprep.mubr.bf16.mxu0 %v4757
  %5216 = vmatmul.mubr.bf16.gmra.mxu0 %v4756
  %v5217 = vpop.f32.mrf.mxu0
  %v5218 = vadd.f32 %v5017, %v5217
  %v5219 = vpop.f32.mrf.mxu0
  %v5220 = vadd.f32 %v5019, %v5219
  %v5221 = vpop.f32.mrf.mxu0
  %v5222 = vpop.f32.mrf.mxu0
  %5223 = vdwg.mxu0
  %v5224 = vadd.f32 %v5218, %v880
  %v5225 = vadd.f32 %v5220, %v884
  %v5226 = vmax.f32 %v5224, 0.0
  %v5227 = vmax.f32 %v5225, 0.0
  %v5228 = vpack.c.bf16 %v5226, %v5226
  %v5229 = vpack.c.bf16 %v5227, %v5227
  %v5232 = vunpack.c.l.b16 %v5228
  %v5233 = vunpack.c.l.b16 %v5229
  %v5234 = vpack.c.b16 %v5233, %v5232
  %s5236 = scalar_lea.vmem %s5, 48
  %5237 = vst [vmem:[%s5236] sm:$0xff] %v5234
  %s5238 = scalar_lea.vmem %s0, 56
  %v5239 = vld [vmem:[%s5238] sm:$0xff]
  %v5240 = vunpack.c.l.bf16 %v5239
  %v5241 = vunpack.c.h.bf16 %v5239
  %v5242 = vld [vmem:[#allocation4] sm:$0xff]
  %v5243 = vld [vmem:[#allocation4 + $0x8] sm:$0xff]
  %v5244 = vld [vmem:[#allocation4 + $0x10] sm:$0xff]
  %v5245 = vld [vmem:[#allocation4 + $0x18] sm:$0xff]
  %v5246 = vld [vmem:[#allocation4 + $0x20] sm:$0xff]
  %v5247 = vld [vmem:[#allocation4 + $0x28] sm:$0xff]
  %v5248 = vld [vmem:[#allocation4 + $0x30] sm:$0xff]
  %v5249 = vld [vmem:[#allocation4 + $0x38] sm:$0xff]
  %v5250 = vld [vmem:[#allocation4 + $0x40] sm:$0xff]
  %v5251 = vld [vmem:[#allocation4 + $0x48] sm:$0xff]
  %v5252 = vld [vmem:[#allocation4 + $0x50] sm:$0xff]
  %v5253 = vld [vmem:[#allocation4 + $0x58] sm:$0xff]
  %v5254 = vld [vmem:[#allocation4 + $0x60] sm:$0xff]
  %v5255 = vld [vmem:[#allocation4 + $0x68] sm:$0xff]
  %v5256 = vld [vmem:[#allocation4 + $0x70] sm:$0xff]
  %v5257 = vld [vmem:[#allocation4 + $0x78] sm:$0xff]
  %v5258 = vld [vmem:[#allocation4 + $0x80] sm:$0xff]
  %v5259 = vld [vmem:[#allocation4 + $0x88] sm:$0xff]
  %v5260 = vld [vmem:[#allocation4 + $0x90] sm:$0xff]
  %v5261 = vld [vmem:[#allocation4 + $0x98] sm:$0xff]
  %v5262 = vld [vmem:[#allocation4 + $0xa0] sm:$0xff]
  %v5263 = vld [vmem:[#allocation4 + $0xa8] sm:$0xff]
  %v5264 = vld [vmem:[#allocation4 + $0xb0] sm:$0xff]
  %v5265 = vld [vmem:[#allocation4 + $0xb8] sm:$0xff]
  %v5266 = vld [vmem:[#allocation4 + $0xc0] sm:$0xff]
  %v5267 = vld [vmem:[#allocation4 + $0xc8] sm:$0xff]
  %v5268 = vld [vmem:[#allocation4 + $0xd0] sm:$0xff]
  %v5269 = vld [vmem:[#allocation4 + $0xd8] sm:$0xff]
  %v5270 = vld [vmem:[#allocation4 + $0xe0] sm:$0xff]
  %v5271 = vld [vmem:[#allocation4 + $0xe8] sm:$0xff]
  %v5272 = vld [vmem:[#allocation4 + $0xf0] sm:$0xff]
  %v5273 = vld [vmem:[#allocation4 + $0xf8] sm:$0xff]
  %v5306 = vunpack.c.l.b16 %v5242
  %v5307 = vunpack.c.h.b16 %v5242
  %v5308 = vunpack.c.l.b16 %v5243
  %v5309 = vunpack.c.h.b16 %v5243
  %v5310 = vunpack.c.l.b16 %v5244
  %v5311 = vunpack.c.h.b16 %v5244
  %v5312 = vunpack.c.l.b16 %v5245
  %v5313 = vunpack.c.h.b16 %v5245
  %v5314 = vunpack.c.l.b16 %v5246
  %v5315 = vunpack.c.h.b16 %v5246
  %v5316 = vunpack.c.l.b16 %v5247
  %v5317 = vunpack.c.h.b16 %v5247
  %v5318 = vunpack.c.l.b16 %v5248
  %v5319 = vunpack.c.h.b16 %v5248
  %v5320 = vunpack.c.l.b16 %v5249
  %v5321 = vunpack.c.h.b16 %v5249
  %v5322 = vunpack.c.l.b16 %v5250
  %v5323 = vunpack.c.h.b16 %v5250
  %v5324 = vunpack.c.l.b16 %v5251
  %v5325 = vunpack.c.h.b16 %v5251
  %v5326 = vunpack.c.l.b16 %v5252
  %v5327 = vunpack.c.h.b16 %v5252
  %v5328 = vunpack.c.l.b16 %v5253
  %v5329 = vunpack.c.h.b16 %v5253
  %v5330 = vunpack.c.l.b16 %v5254
  %v5331 = vunpack.c.h.b16 %v5254
  %v5332 = vunpack.c.l.b16 %v5255
  %v5333 = vunpack.c.h.b16 %v5255
  %v5334 = vunpack.c.l.b16 %v5256
  %v5335 = vunpack.c.h.b16 %v5256
  %v5336 = vunpack.c.l.b16 %v5257
  %v5337 = vunpack.c.h.b16 %v5257
  %v5338 = vunpack.c.l.b16 %v5258
  %v5339 = vunpack.c.h.b16 %v5258
  %v5340 = vunpack.c.l.b16 %v5259
  %v5341 = vunpack.c.h.b16 %v5259
  %v5342 = vunpack.c.l.b16 %v5260
  %v5343 = vunpack.c.h.b16 %v5260
  %v5344 = vunpack.c.l.b16 %v5261
  %v5345 = vunpack.c.h.b16 %v5261
  %v5346 = vunpack.c.l.b16 %v5262
  %v5347 = vunpack.c.h.b16 %v5262
  %v5348 = vunpack.c.l.b16 %v5263
  %v5349 = vunpack.c.h.b16 %v5263
  %v5350 = vunpack.c.l.b16 %v5264
  %v5351 = vunpack.c.h.b16 %v5264
  %v5352 = vunpack.c.l.b16 %v5265
  %v5353 = vunpack.c.h.b16 %v5265
  %v5354 = vunpack.c.l.b16 %v5266
  %v5355 = vunpack.c.h.b16 %v5266
  %v5356 = vunpack.c.l.b16 %v5267
  %v5357 = vunpack.c.h.b16 %v5267
  %v5358 = vunpack.c.l.b16 %v5268
  %v5359 = vunpack.c.h.b16 %v5268
  %v5360 = vunpack.c.l.b16 %v5269
  %v5361 = vunpack.c.h.b16 %v5269
  %v5362 = vunpack.c.l.b16 %v5270
  %v5363 = vunpack.c.h.b16 %v5270
  %v5364 = vunpack.c.l.b16 %v5271
  %v5365 = vunpack.c.h.b16 %v5271
  %v5366 = vunpack.c.l.b16 %v5272
  %v5367 = vunpack.c.h.b16 %v5272
  %v5368 = vunpack.c.l.b16 %v5273
  %v5369 = vunpack.c.h.b16 %v5273
  %v5370 = vpack.c.b16 %v5308, %v5306
  %v5371 = vpack.c.b16 %v5309, %v5307
  %v5372 = vpack.c.b16 %v5312, %v5310
  %v5373 = vpack.c.b16 %v5313, %v5311
  %v5374 = vpack.c.b16 %v5316, %v5314
  %v5375 = vpack.c.b16 %v5317, %v5315
  %v5376 = vpack.c.b16 %v5320, %v5318
  %v5377 = vpack.c.b16 %v5321, %v5319
  %v5378 = vpack.c.b16 %v5324, %v5322
  %v5379 = vpack.c.b16 %v5325, %v5323
  %v5380 = vpack.c.b16 %v5328, %v5326
  %v5381 = vpack.c.b16 %v5329, %v5327
  %v5382 = vpack.c.b16 %v5332, %v5330
  %v5383 = vpack.c.b16 %v5333, %v5331
  %v5384 = vpack.c.b16 %v5336, %v5334
  %v5385 = vpack.c.b16 %v5337, %v5335
  %v5386 = vpack.c.b16 %v5340, %v5338
  %v5387 = vpack.c.b16 %v5341, %v5339
  %v5388 = vpack.c.b16 %v5344, %v5342
  %v5389 = vpack.c.b16 %v5345, %v5343
  %v5390 = vpack.c.b16 %v5348, %v5346
  %v5391 = vpack.c.b16 %v5349, %v5347
  %v5392 = vpack.c.b16 %v5352, %v5350
  %v5393 = vpack.c.b16 %v5353, %v5351
  %v5394 = vpack.c.b16 %v5356, %v5354
  %v5395 = vpack.c.b16 %v5357, %v5355
  %v5396 = vpack.c.b16 %v5360, %v5358
  %v5397 = vpack.c.b16 %v5361, %v5359
  %v5398 = vpack.c.b16 %v5364, %v5362
  %v5399 = vpack.c.b16 %v5365, %v5363
  %v5400 = vpack.c.b16 %v5368, %v5366
  %v5401 = vpack.c.b16 %v5369, %v5367
  %5434 = vmatprep.subr.bf16.mxu0 %v5385
  %5435 = vmatpush1.bf16.msra.mxu0 %v5384
  %5436 = vmatprep.subr.bf16.mxu0 %v5383
  %5437 = vmatpush1.bf16.msra.mxu0 %v5382
  %5438 = vmatprep.subr.bf16.mxu0 %v5381
  %5439 = vmatpush1.bf16.msra.mxu0 %v5380
  %5440 = vmatprep.subr.bf16.mxu0 %v5379
  %5441 = vmatpush1.bf16.msra.mxu0 %v5378
  %5442 = vmatprep.subr.bf16.mxu0 %v5377
  %5443 = vmatpush1.bf16.msra.mxu0 %v5376
  %5444 = vmatprep.subr.bf16.mxu0 %v5375
  %5445 = vmatpush1.bf16.msra.mxu0 %v5374
  %5446 = vmatprep.subr.bf16.mxu0 %v5373
  %5447 = vmatpush1.bf16.msra.mxu0 %v5372
  %5448 = vmatprep.subr.bf16.mxu0 %v5371
  %5449 = vmatpush1.bf16.msra.mxu0 %v5370
  %5450 = vmatprep.subr.bf16.mxu0 %v5401
  %5451 = vmatpush2.bf16.msra.mxu0 %v5400
  %5452 = vmatprep.subr.bf16.mxu0 %v5399
  %5453 = vmatpush2.bf16.msra.mxu0 %v5398
  %5454 = vmatprep.subr.bf16.mxu0 %v5397
  %5455 = vmatpush2.bf16.msra.mxu0 %v5396
  %5456 = vmatprep.subr.bf16.mxu0 %v5395
  %5457 = vmatpush2.bf16.msra.mxu0 %v5394
  %5458 = vmatprep.subr.bf16.mxu0 %v5393
  %5459 = vmatpush2.bf16.msra.mxu0 %v5392
  %5460 = vmatprep.subr.bf16.mxu0 %v5391
  %5461 = vmatpush2.bf16.msra.mxu0 %v5390
  %5462 = vmatprep.subr.bf16.mxu0 %v5389
  %5463 = vmatpush2.bf16.msra.mxu0 %v5388
  %5464 = vmatprep.subr.bf16.mxu0 %v5387
  %5465 = vmatpush2.bf16.msra.mxu0 %v5386
  %5466 = vmatprep.mubr.bf16.mxu0 %v4757
  %5467 = vmatmul.mubr.bf16.gmra.mxu0 %v4756
  %v5468 = vpop.f32.mrf.mxu0
  %v5469 = vadd.f32 0.0, %v5468
  %v5470 = vpop.f32.mrf.mxu0
  %v5471 = vadd.f32 0.0, %v5470
  %v5472 = vpop.f32.mrf.mxu0
  %v5473 = vpop.f32.mrf.mxu0
  %5474 = vdwg.mxu0
  %v5475 = vadd.f32 %v5240, %v5469
  %v5476 = vadd.f32 %v5241, %v5471
  %v5477 = vmax.f32 %v5475, 0.0
  %v5478 = vmax.f32 %v5476, 0.0
  %v5479 = vpack.c.bf16 %v5477, %v5477
  %v5480 = vpack.c.bf16 %v5478, %v5478
  %v5481 = vld [vmem:[#allocation5] sm:$0xff]
  %v5482 = vld [vmem:[#allocation5 + $0x8] sm:$0xff]
  %v5483 = vld [vmem:[#allocation5 + $0x10] sm:$0xff]
  %v5484 = vld [vmem:[#allocation5 + $0x18] sm:$0xff]
  %v5485 = vld [vmem:[#allocation5 + $0x20] sm:$0xff]
  %v5486 = vld [vmem:[#allocation5 + $0x28] sm:$0xff]
  %v5487 = vld [vmem:[#allocation5 + $0x30] sm:$0xff]
  %v5488 = vld [vmem:[#allocation5 + $0x38] sm:$0xff]
  %v5489 = vld [vmem:[#allocation5 + $0x40] sm:$0xff]
  %v5490 = vld [vmem:[#allocation5 + $0x48] sm:$0xff]
  %v5491 = vld [vmem:[#allocation5 + $0x50] sm:$0xff]
  %v5492 = vld [vmem:[#allocation5 + $0x58] sm:$0xff]
  %v5493 = vld [vmem:[#allocation5 + $0x60] sm:$0xff]
  %v5494 = vld [vmem:[#allocation5 + $0x68] sm:$0xff]
  %v5495 = vld [vmem:[#allocation5 + $0x70] sm:$0xff]
  %v5496 = vld [vmem:[#allocation5 + $0x78] sm:$0xff]
  %v5497 = vld [vmem:[#allocation5 + $0x80] sm:$0xff]
  %v5498 = vld [vmem:[#allocation5 + $0x88] sm:$0xff]
  %v5499 = vld [vmem:[#allocation5 + $0x90] sm:$0xff]
  %v5500 = vld [vmem:[#allocation5 + $0x98] sm:$0xff]
  %v5501 = vld [vmem:[#allocation5 + $0xa0] sm:$0xff]
  %v5502 = vld [vmem:[#allocation5 + $0xa8] sm:$0xff]
  %v5503 = vld [vmem:[#allocation5 + $0xb0] sm:$0xff]
  %v5504 = vld [vmem:[#allocation5 + $0xb8] sm:$0xff]
  %v5505 = vld [vmem:[#allocation5 + $0xc0] sm:$0xff]
  %v5506 = vld [vmem:[#allocation5 + $0xc8] sm:$0xff]
  %v5507 = vld [vmem:[#allocation5 + $0xd0] sm:$0xff]
  %v5508 = vld [vmem:[#allocation5 + $0xd8] sm:$0xff]
  %v5509 = vld [vmem:[#allocation5 + $0xe0] sm:$0xff]
  %v5510 = vld [vmem:[#allocation5 + $0xe8] sm:$0xff]
  %v5511 = vld [vmem:[#allocation5 + $0xf0] sm:$0xff]
  %v5512 = vld [vmem:[#allocation5 + $0xf8] sm:$0xff]
  %v5513 = vld [vmem:[#allocation6] sm:$0xff]
  %v5514 = vld [vmem:[#allocation6 + $0x8] sm:$0xff]
  %v5515 = vld [vmem:[#allocation6 + $0x10] sm:$0xff]
  %v5516 = vld [vmem:[#allocation6 + $0x18] sm:$0xff]
  %v5517 = vld [vmem:[#allocation6 + $0x20] sm:$0xff]
  %v5518 = vld [vmem:[#allocation6 + $0x28] sm:$0xff]
  %v5519 = vld [vmem:[#allocation6 + $0x30] sm:$0xff]
  %v5520 = vld [vmem:[#allocation6 + $0x38] sm:$0xff]
  %v5521 = vld [vmem:[#allocation6 + $0x40] sm:$0xff]
  %v5522 = vld [vmem:[#allocation6 + $0x48] sm:$0xff]
  %v5523 = vld [vmem:[#allocation6 + $0x50] sm:$0xff]
  %v5524 = vld [vmem:[#allocation6 + $0x58] sm:$0xff]
  %v5525 = vld [vmem:[#allocation6 + $0x60] sm:$0xff]
  %v5526 = vld [vmem:[#allocation6 + $0x68] sm:$0xff]
  %v5527 = vld [vmem:[#allocation6 + $0x70] sm:$0xff]
  %v5528 = vld [vmem:[#allocation6 + $0x78] sm:$0xff]
  %v5529 = vld [vmem:[#allocation6 + $0x80] sm:$0xff]
  %v5530 = vld [vmem:[#allocation6 + $0x88] sm:$0xff]
  %v5531 = vld [vmem:[#allocation6 + $0x90] sm:$0xff]
  %v5532 = vld [vmem:[#allocation6 + $0x98] sm:$0xff]
  %v5533 = vld [vmem:[#allocation6 + $0xa0] sm:$0xff]
  %v5534 = vld [vmem:[#allocation6 + $0xa8] sm:$0xff]
  %v5535 = vld [vmem:[#allocation6 + $0xb0] sm:$0xff]
  %v5536 = vld [vmem:[#allocation6 + $0xb8] sm:$0xff]
  %v5537 = vld [vmem:[#allocation6 + $0xc0] sm:$0xff]
  %v5538 = vld [vmem:[#allocation6 + $0xc8] sm:$0xff]
  %v5539 = vld [vmem:[#allocation6 + $0xd0] sm:$0xff]
  %v5540 = vld [vmem:[#allocation6 + $0xd8] sm:$0xff]
  %v5541 = vld [vmem:[#allocation6 + $0xe0] sm:$0xff]
  %v5542 = vld [vmem:[#allocation6 + $0xe8] sm:$0xff]
  %v5543 = vld [vmem:[#allocation6 + $0xf0] sm:$0xff]
  %v5544 = vld [vmem:[#allocation6 + $0xf8] sm:$0xff]
  %v5577 = vunpack.c.l.b16 %v5513
  %v5578 = vunpack.c.h.b16 %v5513
  %v5579 = vunpack.c.l.b16 %v5514
  %v5580 = vunpack.c.h.b16 %v5514
  %v5581 = vunpack.c.l.b16 %v5515
  %v5582 = vunpack.c.h.b16 %v5515
  %v5583 = vunpack.c.l.b16 %v5516
  %v5584 = vunpack.c.h.b16 %v5516
  %v5585 = vunpack.c.l.b16 %v5517
  %v5586 = vunpack.c.h.b16 %v5517
  %v5587 = vunpack.c.l.b16 %v5518
  %v5588 = vunpack.c.h.b16 %v5518
  %v5589 = vunpack.c.l.b16 %v5519
  %v5590 = vunpack.c.h.b16 %v5519
  %v5591 = vunpack.c.l.b16 %v5520
  %v5592 = vunpack.c.h.b16 %v5520
  %v5593 = vunpack.c.l.b16 %v5521
  %v5594 = vunpack.c.h.b16 %v5521
  %v5595 = vunpack.c.l.b16 %v5522
  %v5596 = vunpack.c.h.b16 %v5522
  %v5597 = vunpack.c.l.b16 %v5523
  %v5598 = vunpack.c.h.b16 %v5523
  %v5599 = vunpack.c.l.b16 %v5524
  %v5600 = vunpack.c.h.b16 %v5524
  %v5601 = vunpack.c.l.b16 %v5525
  %v5602 = vunpack.c.h.b16 %v5525
  %v5603 = vunpack.c.l.b16 %v5526
  %v5604 = vunpack.c.h.b16 %v5526
  %v5605 = vunpack.c.l.b16 %v5527
  %v5606 = vunpack.c.h.b16 %v5527
  %v5607 = vunpack.c.l.b16 %v5528
  %v5608 = vunpack.c.h.b16 %v5528
  %v5609 = vunpack.c.l.b16 %v5529
  %v5610 = vunpack.c.h.b16 %v5529
  %v5611 = vunpack.c.l.b16 %v5530
  %v5612 = vunpack.c.h.b16 %v5530
  %v5613 = vunpack.c.l.b16 %v5531
  %v5614 = vunpack.c.h.b16 %v5531
  %v5615 = vunpack.c.l.b16 %v5532
  %v5616 = vunpack.c.h.b16 %v5532
  %v5617 = vunpack.c.l.b16 %v5533
  %v5618 = vunpack.c.h.b16 %v5533
  %v5619 = vunpack.c.l.b16 %v5534
  %v5620 = vunpack.c.h.b16 %v5534
  %v5621 = vunpack.c.l.b16 %v5535
  %v5622 = vunpack.c.h.b16 %v5535
  %v5623 = vunpack.c.l.b16 %v5536
  %v5624 = vunpack.c.h.b16 %v5536
  %v5625 = vunpack.c.l.b16 %v5537
  %v5626 = vunpack.c.h.b16 %v5537
  %v5627 = vunpack.c.l.b16 %v5538
  %v5628 = vunpack.c.h.b16 %v5538
  %v5629 = vunpack.c.l.b16 %v5539
  %v5630 = vunpack.c.h.b16 %v5539
  %v5631 = vunpack.c.l.b16 %v5540
  %v5632 = vunpack.c.h.b16 %v5540
  %v5633 = vunpack.c.l.b16 %v5541
  %v5634 = vunpack.c.h.b16 %v5541
  %v5635 = vunpack.c.l.b16 %v5542
  %v5636 = vunpack.c.h.b16 %v5542
  %v5637 = vunpack.c.l.b16 %v5543
  %v5638 = vunpack.c.h.b16 %v5543
  %v5639 = vunpack.c.l.b16 %v5544
  %v5640 = vunpack.c.h.b16 %v5544
  %v5641 = vpack.c.b16 %v5579, %v5577
  %v5642 = vpack.c.b16 %v5580, %v5578
  %v5643 = vpack.c.b16 %v5583, %v5581
  %v5644 = vpack.c.b16 %v5584, %v5582
  %v5645 = vpack.c.b16 %v5587, %v5585
  %v5646 = vpack.c.b16 %v5588, %v5586
  %v5647 = vpack.c.b16 %v5591, %v5589
  %v5648 = vpack.c.b16 %v5592, %v5590
  %v5649 = vpack.c.b16 %v5595, %v5593
  %v5650 = vpack.c.b16 %v5596, %v5594
  %v5651 = vpack.c.b16 %v5599, %v5597
  %v5652 = vpack.c.b16 %v5600, %v5598
  %v5653 = vpack.c.b16 %v5603, %v5601
  %v5654 = vpack.c.b16 %v5604, %v5602
  %v5655 = vpack.c.b16 %v5607, %v5605
  %v5656 = vpack.c.b16 %v5608, %v5606
  %v5657 = vpack.c.b16 %v5611, %v5609
  %v5658 = vpack.c.b16 %v5612, %v5610
  %v5659 = vpack.c.b16 %v5615, %v5613
  %v5660 = vpack.c.b16 %v5616, %v5614
  %v5661 = vpack.c.b16 %v5619, %v5617
  %v5662 = vpack.c.b16 %v5620, %v5618
  %v5663 = vpack.c.b16 %v5623, %v5621
  %v5664 = vpack.c.b16 %v5624, %v5622
  %v5665 = vpack.c.b16 %v5627, %v5625
  %v5666 = vpack.c.b16 %v5628, %v5626
  %v5667 = vpack.c.b16 %v5631, %v5629
  %v5668 = vpack.c.b16 %v5632, %v5630
  %v5669 = vpack.c.b16 %v5635, %v5633
  %v5670 = vpack.c.b16 %v5636, %v5634
  %v5671 = vpack.c.b16 %v5639, %v5637
  %v5672 = vpack.c.b16 %v5640, %v5638
  %5705 = vmatprep.subr.bf16.mxu0 %v5656
  %5706 = vmatpush1.bf16.msra.mxu0 %v5655
  %5707 = vmatprep.subr.bf16.mxu0 %v5654
  %5708 = vmatpush1.bf16.msra.mxu0 %v5653
  %5709 = vmatprep.subr.bf16.mxu0 %v5652
  %5710 = vmatpush1.bf16.msra.mxu0 %v5651
  %5711 = vmatprep.subr.bf16.mxu0 %v5650
  %5712 = vmatpush1.bf16.msra.mxu0 %v5649
  %5713 = vmatprep.subr.bf16.mxu0 %v5648
  %5714 = vmatpush1.bf16.msra.mxu0 %v5647
  %5715 = vmatprep.subr.bf16.mxu0 %v5646
  %5716 = vmatpush1.bf16.msra.mxu0 %v5645
  %5717 = vmatprep.subr.bf16.mxu0 %v5644
  %5718 = vmatpush1.bf16.msra.mxu0 %v5643
  %5719 = vmatprep.subr.bf16.mxu0 %v5642
  %5720 = vmatpush1.bf16.msra.mxu0 %v5641
  %5721 = vmatprep.subr.bf16.mxu0 %v5672
  %5722 = vmatpush2.bf16.msra.mxu0 %v5671
  %5723 = vmatprep.subr.bf16.mxu0 %v5670
  %5724 = vmatpush2.bf16.msra.mxu0 %v5669
  %5725 = vmatprep.subr.bf16.mxu0 %v5668
  %5726 = vmatpush2.bf16.msra.mxu0 %v5667
  %5727 = vmatprep.subr.bf16.mxu0 %v5666
  %5728 = vmatpush2.bf16.msra.mxu0 %v5665
  %5729 = vmatprep.subr.bf16.mxu0 %v5664
  %5730 = vmatpush2.bf16.msra.mxu0 %v5663
  %5731 = vmatprep.subr.bf16.mxu0 %v5662
  %5732 = vmatpush2.bf16.msra.mxu0 %v5661
  %5733 = vmatprep.subr.bf16.mxu0 %v5660
  %5734 = vmatpush2.bf16.msra.mxu0 %v5659
  %5735 = vmatprep.subr.bf16.mxu0 %v5658
  %5736 = vmatpush2.bf16.msra.mxu0 %v5657
  %5737 = vmatprep.mubr.bf16.mxu0 %v5229
  %5738 = vmatmul.mubr.bf16.gmra.mxu0 %v5228
  %v5739 = vpop.f32.mrf.mxu0
  %v5740 = vadd.f32 0.0, %v5739
  %v5741 = vpop.f32.mrf.mxu0
  %v5742 = vadd.f32 0.0, %v5741
  %v5743 = vpop.f32.mrf.mxu0
  %v5744 = vpop.f32.mrf.mxu0
  %5745 = vdwg.mxu0
  %v5778 = vunpack.c.l.b16 %v5481
  %v5779 = vunpack.c.h.b16 %v5481
  %v5780 = vunpack.c.l.b16 %v5482
  %v5781 = vunpack.c.h.b16 %v5482
  %v5782 = vunpack.c.l.b16 %v5483
  %v5783 = vunpack.c.h.b16 %v5483
  %v5784 = vunpack.c.l.b16 %v5484
  %v5785 = vunpack.c.h.b16 %v5484
  %v5786 = vunpack.c.l.b16 %v5485
  %v5787 = vunpack.c.h.b16 %v5485
  %v5788 = vunpack.c.l.b16 %v5486
  %v5789 = vunpack.c.h.b16 %v5486
  %v5790 = vunpack.c.l.b16 %v5487
  %v5791 = vunpack.c.h.b16 %v5487
  %v5792 = vunpack.c.l.b16 %v5488
  %v5793 = vunpack.c.h.b16 %v5488
  %v5794 = vunpack.c.l.b16 %v5489
  %v5795 = vunpack.c.h.b16 %v5489
  %v5796 = vunpack.c.l.b16 %v5490
  %v5797 = vunpack.c.h.b16 %v5490
  %v5798 = vunpack.c.l.b16 %v5491
  %v5799 = vunpack.c.h.b16 %v5491
  %v5800 = vunpack.c.l.b16 %v5492
  %v5801 = vunpack.c.h.b16 %v5492
  %v5802 = vunpack.c.l.b16 %v5493
  %v5803 = vunpack.c.h.b16 %v5493
  %v5804 = vunpack.c.l.b16 %v5494
  %v5805 = vunpack.c.h.b16 %v5494
  %v5806 = vunpack.c.l.b16 %v5495
  %v5807 = vunpack.c.h.b16 %v5495
  %v5808 = vunpack.c.l.b16 %v5496
  %v5809 = vunpack.c.h.b16 %v5496
  %v5810 = vunpack.c.l.b16 %v5497
  %v5811 = vunpack.c.h.b16 %v5497
  %v5812 = vunpack.c.l.b16 %v5498
  %v5813 = vunpack.c.h.b16 %v5498
  %v5814 = vunpack.c.l.b16 %v5499
  %v5815 = vunpack.c.h.b16 %v5499
  %v5816 = vunpack.c.l.b16 %v5500
  %v5817 = vunpack.c.h.b16 %v5500
  %v5818 = vunpack.c.l.b16 %v5501
  %v5819 = vunpack.c.h.b16 %v5501
  %v5820 = vunpack.c.l.b16 %v5502
  %v5821 = vunpack.c.h.b16 %v5502
  %v5822 = vunpack.c.l.b16 %v5503
  %v5823 = vunpack.c.h.b16 %v5503
  %v5824 = vunpack.c.l.b16 %v5504
  %v5825 = vunpack.c.h.b16 %v5504
  %v5826 = vunpack.c.l.b16 %v5505
  %v5827 = vunpack.c.h.b16 %v5505
  %v5828 = vunpack.c.l.b16 %v5506
  %v5829 = vunpack.c.h.b16 %v5506
  %v5830 = vunpack.c.l.b16 %v5507
  %v5831 = vunpack.c.h.b16 %v5507
  %v5832 = vunpack.c.l.b16 %v5508
  %v5833 = vunpack.c.h.b16 %v5508
  %v5834 = vunpack.c.l.b16 %v5509
  %v5835 = vunpack.c.h.b16 %v5509
  %v5836 = vunpack.c.l.b16 %v5510
  %v5837 = vunpack.c.h.b16 %v5510
  %v5838 = vunpack.c.l.b16 %v5511
  %v5839 = vunpack.c.h.b16 %v5511
  %v5840 = vunpack.c.l.b16 %v5512
  %v5841 = vunpack.c.h.b16 %v5512
  %v5842 = vpack.c.b16 %v5780, %v5778
  %v5843 = vpack.c.b16 %v5781, %v5779
  %v5844 = vpack.c.b16 %v5784, %v5782
  %v5845 = vpack.c.b16 %v5785, %v5783
  %v5846 = vpack.c.b16 %v5788, %v5786
  %v5847 = vpack.c.b16 %v5789, %v5787
  %v5848 = vpack.c.b16 %v5792, %v5790
  %v5849 = vpack.c.b16 %v5793, %v5791
  %v5850 = vpack.c.b16 %v5796, %v5794
  %v5851 = vpack.c.b16 %v5797, %v5795
  %v5852 = vpack.c.b16 %v5800, %v5798
  %v5853 = vpack.c.b16 %v5801, %v5799
  %v5854 = vpack.c.b16 %v5804, %v5802
  %v5855 = vpack.c.b16 %v5805, %v5803
  %v5856 = vpack.c.b16 %v5808, %v5806
  %v5857 = vpack.c.b16 %v5809, %v5807
  %v5858 = vpack.c.b16 %v5812, %v5810
  %v5859 = vpack.c.b16 %v5813, %v5811
  %v5860 = vpack.c.b16 %v5816, %v5814
  %v5861 = vpack.c.b16 %v5817, %v5815
  %v5862 = vpack.c.b16 %v5820, %v5818
  %v5863 = vpack.c.b16 %v5821, %v5819
  %v5864 = vpack.c.b16 %v5824, %v5822
  %v5865 = vpack.c.b16 %v5825, %v5823
  %v5866 = vpack.c.b16 %v5828, %v5826
  %v5867 = vpack.c.b16 %v5829, %v5827
  %v5868 = vpack.c.b16 %v5832, %v5830
  %v5869 = vpack.c.b16 %v5833, %v5831
  %v5870 = vpack.c.b16 %v5836, %v5834
  %v5871 = vpack.c.b16 %v5837, %v5835
  %v5872 = vpack.c.b16 %v5840, %v5838
  %v5873 = vpack.c.b16 %v5841, %v5839
  %5906 = vmatprep.subr.bf16.mxu0 %v5857
  %5907 = vmatpush1.bf16.msra.mxu0 %v5856
  %5908 = vmatprep.subr.bf16.mxu0 %v5855
  %5909 = vmatpush1.bf16.msra.mxu0 %v5854
  %5910 = vmatprep.subr.bf16.mxu0 %v5853
  %5911 = vmatpush1.bf16.msra.mxu0 %v5852
  %5912 = vmatprep.subr.bf16.mxu0 %v5851
  %5913 = vmatpush1.bf16.msra.mxu0 %v5850
  %5914 = vmatprep.subr.bf16.mxu0 %v5849
  %5915 = vmatpush1.bf16.msra.mxu0 %v5848
  %5916 = vmatprep.subr.bf16.mxu0 %v5847
  %5917 = vmatpush1.bf16.msra.mxu0 %v5846
  %5918 = vmatprep.subr.bf16.mxu0 %v5845
  %5919 = vmatpush1.bf16.msra.mxu0 %v5844
  %5920 = vmatprep.subr.bf16.mxu0 %v5843
  %5921 = vmatpush1.bf16.msra.mxu0 %v5842
  %5922 = vmatprep.subr.bf16.mxu0 %v5873
  %5923 = vmatpush2.bf16.msra.mxu0 %v5872
  %5924 = vmatprep.subr.bf16.mxu0 %v5871
  %5925 = vmatpush2.bf16.msra.mxu0 %v5870
  %5926 = vmatprep.subr.bf16.mxu0 %v5869
  %5927 = vmatpush2.bf16.msra.mxu0 %v5868
  %5928 = vmatprep.subr.bf16.mxu0 %v5867
  %5929 = vmatpush2.bf16.msra.mxu0 %v5866
  %5930 = vmatprep.subr.bf16.mxu0 %v5865
  %5931 = vmatpush2.bf16.msra.mxu0 %v5864
  %5932 = vmatprep.subr.bf16.mxu0 %v5863
  %5933 = vmatpush2.bf16.msra.mxu0 %v5862
  %5934 = vmatprep.subr.bf16.mxu0 %v5861
  %5935 = vmatpush2.bf16.msra.mxu0 %v5860
  %5936 = vmatprep.subr.bf16.mxu0 %v5859
  %5937 = vmatpush2.bf16.msra.mxu0 %v5858
  %5938 = vmatprep.mubr.bf16.mxu0 %v5480
  %5939 = vmatmul.mubr.bf16.gmra.mxu0 %v5479
  %v5940 = vpop.f32.mrf.mxu0
  %v5941 = vadd.f32 %v5740, %v5940
  %v5942 = vpop.f32.mrf.mxu0
  %v5943 = vadd.f32 %v5742, %v5942
  %v5944 = vpop.f32.mrf.mxu0
  %v5945 = vpop.f32.mrf.mxu0
  %5946 = vdwg.mxu0
  %v5947 = vadd.f32 %v5941, %v880
  %v5948 = vadd.f32 %v5943, %v884
  %v5949 = vmax.f32 %v5947, 0.0
  %v5950 = vmax.f32 %v5948, 0.0
  %v5951 = vpack.c.bf16 %v5949, %v5949
  %v5952 = vpack.c.bf16 %v5950, %v5950
  %v5955 = vunpack.c.l.b16 %v5951
  %v5956 = vunpack.c.l.b16 %v5952
  %v5957 = vpack.c.b16 %v5956, %v5955
  %s5959 = scalar_lea.vmem %s5, 56
  %5960 = vst [vmem:[%s5959] sm:$0xff] %v5957
  %5961 = vst [vmem:[#allocation2] sm:$0xff] %v5477
  %5962 = vst [vmem:[#allocation2 + $0x8] sm:$0xff] %v5478
  %5963 = vst [vmem:[#allocation3] sm:$0xff] %v5949
  %5964 = vst [vmem:[#allocation3 + $0x8] sm:$0xff] %v5950
  // Predicated region
  $region56: #{action_decoder_forward.4} parent=0 // pred_check
    _
  $region57: #{action_decoder_forward.4} parent=0 // pred_check_branch
    %5966 = sbr.rel (0) target = $region59
  $region58: #{action_decoder_forward.4} parent=0 // pred_region
    _
  $region59: #{action_decoder_forward.4} parent=0 // pred_fallthru
    _
  // Predicated region
  $region60: #{action_decoder_forward.4} parent=0 // pred_check
    _
  $region61: #{action_decoder_forward.4} parent=0 // pred_check_branch
    %5968 = sbr.rel (0) target = $region63
  $region62: #{action_decoder_forward.4} parent=0 // pred_region
    _
  $region63: #{action_decoder_forward.4} parent=0 // pred_fallthru
    _
  %5969 = vsyncmov [#allocation7]
  %s5970 = vpop.sfrf %5969
  %p5971 = scmp.eq.s32.totalorder %s5970, 0
  %p5972 = pneg %p5971
  %5974 = shalt.err (%p5972)
  %s5975 = scalar_lea.sflag [#allocation7], 1
  %5976 = vsyncmov %s5975
  %s5977 = vpop.sfrf %5976
  %p5978 = scmp.eq.s32.totalorder %s5977, 0
  %p5979 = pneg %p5978
  %5981 = shalt.err (%p5979)
  %s5982 = scalar_lea.sflag [#allocation7], 2
  %5983 = vsyncmov %s5982
  %s5984 = vpop.sfrf %5983
  %p5985 = scmp.eq.s32.totalorder %s5984, 0
  %p5986 = pneg %p5985
  %5988 = shalt.err (%p5986)

</llo_original>
